<compile_context>
chip_gen: v6e
topology: v6e:2x2x1
jax: 0.10.0
libtpu: 0.0.40
codegen_flags: <defaults>
</compile_context>

<pallas_src>
import math

import numpy as np
import jax
import jax.numpy as jnp
from jax.experimental import pallas as pl
from jax.experimental.pallas import tpu as pltpu

BN_EPS = 1e-5
BN_SCALE = 1.0 / math.sqrt(1.0 + BN_EPS)  # eval-mode fresh BatchNorm1d scale

TILE_B = 256  # batch tile: multiple of 256 (v6e/v7x MXU) and 128 (v5e MXU)


# ----------------------------------------------------------------------------
# Kernel
# ----------------------------------------------------------------------------
def _mymodel_kernel(
    x_ref,
    # MLPModel (Cool_Temp_and_Hi_Press_model) -- BN scales + column select folded
    w1, b1, w2, b2, w3, b3, w4, b4,
    # Com_Out_Temp_model.MLP1 (1->8->8->1) -- BN scales folded, last W transposed
    m1w1, m1b1, m1w2, m1b2, m1w3t, m1b3,
    # Com_Out_Temp_model.MLP2 (10->256->64->1) -- BN scales folded
    m2w1, m2b1, m2w2, m2b2, m2w3, m2b3,
    out_ref,
):
    f32 = jnp.float32
    x = x_ref[...].astype(f32)                       # [TB, 13]
    tb = x.shape[0]

    # ---------- Cool_Temp_and_Hi_Press_model (MLPModel) ----------
    # column selection, the x[:,11] = x[:,2]-x[:,11] update and all BN scales
    # are pre-folded into w1/b1..w3/b3 -> plain relu(x @ W + b).
    h1 = jnp.maximum(jnp.dot(x, w1[...], preferred_element_type=f32) + b1[...], 0.0)
    h2 = jnp.maximum(jnp.dot(h1, w2[...], preferred_element_type=f32) + b2[...], 0.0)
    h3 = jnp.maximum(jnp.dot(h2, w3[...], preferred_element_type=f32) + b3[...], 0.0)
    out3 = jnp.dot(h3, w4[...], preferred_element_type=f32) + b4[...]       # [TB, 3]

    temp_p_h_5 = jnp.maximum(out3[:, 0:1], 0.0)      # clamp(min=0)
    hi_pressure = jnp.maximum(out3[:, 2:3], 0.0)     # clamp(min=0)

    # ---------- raw feature columns needed by Com_Out_Temp_model ----------
    air_temp = x[:, 0:1]
    compressor_speed = x[:, 2:3]
    cab_heating = x[:, 3:4]
    temp_p_h_1 = x[:, 4:5]
    lo_pressure = x[:, 5:6]
    heat_coolant_vol = x[:, 7:8]
    aim_hi_pressure = x[:, 10:11]
    aim_lo_pressure = x[:, 12:13]
    diff_compressor_speed = compressor_speed - x[:, 11:12]   # post in-place update

    # Matches reference semantics (div-by-zero -> inf clipped to 100 / NaN).
    ratio = jnp.clip(hi_pressure / lo_pressure, 3.0, 100.0)
    wind_and_coolant = air_temp * heat_coolant_vol
    diff_hp = aim_hi_pressure - hi_pressure
    diff_lp = lo_pressure - aim_lo_pressure
    # TODO(synk): tem_sat_press(hi_pressure) in the reference forward is dead
    # code (its result is never used downstream), so it is intentionally omitted.

    # ---------- MLP2: first layer as 10 rank-1 VPU FMAs (no lane concat) ----------
    cols = (hi_pressure, compressor_speed, temp_p_h_1, lo_pressure, cab_heating,
            temp_p_h_5, ratio, wind_and_coolant, diff_hp, diff_lp)
    m2w1v = m2w1[...]                                                # [10, 256]
    acc = jnp.broadcast_to(m2b1[...], (tb, m2w1v.shape[1]))          # hoisted broadcast
    for k, c in enumerate(cols):
        acc = acc + c * m2w1v[k:k + 1, :]
    a1 = jnp.tanh(acc)                                               # [TB, 256]
    a2 = jnp.tanh(jnp.dot(a1, m2w2[...], preferred_element_type=f32) + m2b2[...])
    part2 = jnp.dot(a2, m2w3[...], preferred_element_type=f32) + m2b3[...]   # [TB, 1]

    # ---------- MLP1 (1->8->8->1): kept entirely off the MXU ----------
    p1 = jnp.tanh(diff_compressor_speed * m1w1[...] + m1b1[...])     # [TB,1]*[1,8] -> [TB,8]
    m1w2v = m1w2[...]                                                # [8, 8]
    acc1 = jnp.broadcast_to(m1b2[...], (tb, 8))
    for k in range(8):
        acc1 = acc1 + p1[:, k:k + 1] * m1w2v[k:k + 1, :]
    p2 = jnp.tanh(acc1)                                              # [TB, 8]
    part1 = jnp.sum(p2 * m1w3t[...], axis=-1, keepdims=True) + m1b3[...]     # [TB, 1]

    com_out_temp = part1 + part2

    # final: cat(temp_p_h_5, Com_Out_Temp, hi_pressure)
    out_ref[...] = jnp.concatenate([temp_p_h_5, com_out_temp, hi_pressure], axis=1)


# ----------------------------------------------------------------------------
# Parameter construction (mirrors the PyTorch init) + host-time folding
# ----------------------------------------------------------------------------
def _xavier_uniform(key, fan_in, fan_out):
    bound = math.sqrt(6.0 / (fan_in + fan_out))
    return jax.random.uniform(key, (fan_in, fan_out), jnp.float32, -bound, bound)


_LAYER_SHAPES = (
    ("l1", 10, 256), ("l2", 256, 64), ("l3", 64, 32), ("l4", 32, 3),       # MLPModel
    ("m1l1", 1, 8), ("m1l2", 8, 8), ("m1l3", 8, 1),                        # MLP1
    ("m2l1", 10, 256), ("m2l2", 256, 64), ("m2l3", 64, 1),                 # MLP2
)


def init_raw_params(key):
    """xavier_uniform weights [in,out], zero biases [1,out] (as in the reference)."""
    params = {}
    for name, fi, fo in _LAYER_SHAPES:
        key, sub = jax.random.split(key)
        params[name + "_w"] = _xavier_uniform(sub, fi, fo)
        params[name + "_b"] = jnp.zeros((1, fo), jnp.float32)
    return params


def fold_params(raw):
    """Fold BN scales + static column-selection matrix into the weights."""
    s = np.float32(BN_SCALE)

    # x0 = cat(x[:,0:6], x[:,7], x[:,9:11], x[:,2]-x[:,11])  ==  x @ S
    S = np.zeros((13, 10), np.float32)
    for dst, src in enumerate([0, 1, 2, 3, 4, 5, 7, 9, 10]):
        S[src, dst] = 1.0
    S[2, 9] = 1.0
    S[11, 9] = -1.0
    S = jnp.asarray(S)

    return (
        # MLPModel
        (s * s) * (S @ raw["l1_w"]), s * raw["l1_b"],
        s * raw["l2_w"], s * raw["l2_b"],
        s * raw["l3_w"], s * raw["l3_b"],
        raw["l4_w"], raw["l4_b"],
        # MLP1
        s * raw["m1l1_w"], s * raw["m1l1_b"],
        s * raw["m1l2_w"], s * raw["m1l2_b"],
        raw["m1l3_w"].T, raw["m1l3_b"],          # last W stored as [1, 8]
        # MLP2
        s * raw["m2l1_w"], s * raw["m2l1_b"],
        s * raw["m2l2_w"], s * raw["m2l2_b"],
        raw["m2l3_w"], raw["m2l3_b"],
    )


# ----------------------------------------------------------------------------
# Wrapper
# ----------------------------------------------------------------------------
def mymodel_forward(x, params, *, tile_b=TILE_B):
    # Note: for tiny batches (B ~ 8) a fused XLA graph is cheaper than any
    # pallas_call; this path is aimed at large-batch inference.
    B = x.shape[0]
    B_pad = max(tile_b, ((B + tile_b - 1) // tile_b) * tile_b)
    x = x.astype(jnp.float32)
    if B_pad != B:
        x = jnp.pad(x, ((0, B_pad - B), (0, 0)), mode="edge")  # edge-pad avoids 0/0 NaNs

    grid = (B_pad // tile_b,)

    weight_specs = [pl.BlockSpec(p.shape, lambda i: (0, 0)) for p in params]

    per_row_flops = 2 * (13 * 256 + 256 * 64 + 64 * 32 + 32 * 3
                         + 10 * 256 + 256 * 64 + 64 + 8 + 64 + 8)
    cost = pl.CostEstimate(
        flops=B_pad * per_row_flops,
        transcendentals=B_pad * (256 + 64 + 8 + 8),
        bytes_accessed=B_pad * (13 + 3) * 4 + sum(int(p.size) * 4 for p in params),
    )

    out = pl.pallas_call(
        _mymodel_kernel,
        out_shape=jax.ShapeDtypeStruct((B_pad, 3), jnp.float32),
        grid=grid,
        in_specs=[pl.BlockSpec((tile_b, 13), lambda i: (i, 0))] + weight_specs,
        out_specs=pl.BlockSpec((tile_b, 3), lambda i: (i, 0)),
        compiler_params=pltpu.CompilerParams(dimension_semantics=("parallel",)),
        cost_estimate=cost,
    )(x, *params)
    return out[:B]


# ----------------------------------------------------------------------------
# Pure-JAX reference (un-folded) for a numerical sanity check
# ----------------------------------------------------------------------------
def mymodel_reference(x, raw):
    s = jnp.float32(BN_SCALE)
    x = x.astype(jnp.float32)
    col11 = x[:, 2:3] - x[:, 11:12]
    x0 = jnp.concatenate([x[:, 0:6], x[:, 7:8], x[:, 9:11], col11], axis=1)
    x1 = x0 * s
    h1 = jax.nn.relu((x1 @ raw["l1_w"] + raw["l1_b"]) * s)
    h2 = jax.nn.relu((h1 @ raw["l2_w"] + raw["l2_b"]) * s)
    h3 = jax.nn.relu((h2 @ raw["l3_w"] + raw["l3_b"]) * s)
    out3 = h3 @ raw["l4_w"] + raw["l4_b"]
    temp_p_h_5 = jnp.maximum(out3[:, 0:1], 0.0)
    hi = jnp.maximum(out3[:, 2:3], 0.0)
    lo = x[:, 5:6]
    ratio = jnp.clip(hi / lo, 3.0, 100.0)
    wind_and_coolant = x[:, 0:1] * x[:, 7:8]
    diff_hp = x[:, 10:11] - hi
    diff_lp = lo - x[:, 12:13]
    use_x2 = jnp.concatenate([hi, x[:, 2:3], x[:, 4:5], lo, x[:, 3:4],
                              temp_p_h_5, ratio, wind_and_coolant, diff_hp, diff_lp], axis=1)
    a1 = jnp.tanh((use_x2 @ raw["m2l1_w"] + raw["m2l1_b"]) * s)
    a2 = jnp.tanh((a1 @ raw["m2l2_w"] + raw["m2l2_b"]) * s)
    part2 = a2 @ raw["m2l3_w"] + raw["m2l3_b"]
    p1 = jnp.tanh((col11 @ raw["m1l1_w"] + raw["m1l1_b"]) * s)
    p2 = jnp.tanh((p1 @ raw["m1l2_w"] + raw["m1l2_b"]) * s)
    part1 = p2 @ raw["m1l3_w"] + raw["m1l3_b"]
    return jnp.concatenate([temp_p_h_5, part1 + part2, hi], axis=1)


if __name__ == "__main__":
    key = jax.random.PRNGKey(0)
    k_params, k_x = jax.random.split(key)

    raw_params = init_raw_params(k_params)
    params = fold_params(raw_params)

    B = 512  # -> grid of 2 batch tiles at TILE_B=256
    x = jax.random.normal(k_x, (B, 13), dtype=jnp.float32)

    fwd = jax.jit(mymodel_forward)
    out = jax.block_until_ready(fwd(x, params))
    assert out.shape == (B, 3)

    ref = jax.block_until_ready(jax.jit(mymodel_reference)(x, raw_params))
    max_diff = float(jnp.max(jnp.abs(out - ref)))
    assert max_diff < 1e-3, f"kernel vs reference mismatch: {max_diff}"

    print("KERNEL_OK")
</pallas_src>

<mosaic_0001>
module attributes {stable_mosaic.version = 11 : i64} {
  func.func @_mymodel_kernel(%arg0: i32, %arg1: memref<256x13xf32, #tpu.memory_space<vmem>>, %arg2: memref<13x256xf32, #tpu.memory_space<vmem>>, %arg3: memref<1x256xf32, #tpu.memory_space<vmem>>, %arg4: memref<256x64xf32, #tpu.memory_space<vmem>>, %arg5: memref<1x64xf32, #tpu.memory_space<vmem>>, %arg6: memref<64x32xf32, #tpu.memory_space<vmem>>, %arg7: memref<1x32xf32, #tpu.memory_space<vmem>>, %arg8: memref<32x3xf32, #tpu.memory_space<vmem>>, %arg9: memref<1x3xf32, #tpu.memory_space<vmem>>, %arg10: memref<1x8xf32, #tpu.memory_space<vmem>>, %arg11: memref<1x8xf32, #tpu.memory_space<vmem>>, %arg12: memref<8x8xf32, #tpu.memory_space<vmem>>, %arg13: memref<1x8xf32, #tpu.memory_space<vmem>>, %arg14: memref<1x8xf32, #tpu.memory_space<vmem>>, %arg15: memref<1x1xf32, #tpu.memory_space<vmem>>, %arg16: memref<10x256xf32, #tpu.memory_space<vmem>>, %arg17: memref<1x256xf32, #tpu.memory_space<vmem>>, %arg18: memref<256x64xf32, #tpu.memory_space<vmem>>, %arg19: memref<1x64xf32, #tpu.memory_space<vmem>>, %arg20: memref<64x1xf32, #tpu.memory_space<vmem>>, %arg21: memref<1x1xf32, #tpu.memory_space<vmem>>, %arg22: memref<256x3xf32, #tpu.memory_space<vmem>>) attributes {dimension_semantics = [#tpu.dimension_semantics<parallel>], iteration_bounds = array<i64: 2>, scalar_prefetch = 0 : i64, scratch_operands = 0 : i64, tpu.core_type = #tpu.core_type<tc>, window_params = [{transform_indices = @transform_0, window_bounds = array<i64: 256, 13>}, {pipeline_mode = #tpu.pipeline_mode<synchronous>, transform_indices = @transform_1, window_bounds = array<i64: 13, 256>}, {pipeline_mode = #tpu.pipeline_mode<synchronous>, transform_indices = @transform_2, window_bounds = array<i64: 1, 256>}, {pipeline_mode = #tpu.pipeline_mode<synchronous>, transform_indices = @transform_3, window_bounds = array<i64: 256, 64>}, {pipeline_mode = #tpu.pipeline_mode<synchronous>, transform_indices = @transform_4, window_bounds = array<i64: 1, 64>}, {pipeline_mode = #tpu.pipeline_mode<synchronous>, transform_indices = @transform_5, window_bounds = array<i64: 64, 32>}, {pipeline_mode = #tpu.pipeline_mode<synchronous>, transform_indices = @transform_6, window_bounds = array<i64: 1, 32>}, {pipeline_mode = #tpu.pipeline_mode<synchronous>, transform_indices = @transform_7, window_bounds = array<i64: 32, 3>}, {pipeline_mode = #tpu.pipeline_mode<synchronous>, transform_indices = @transform_8, window_bounds = array<i64: 1, 3>}, {pipeline_mode = #tpu.pipeline_mode<synchronous>, transform_indices = @transform_9, window_bounds = array<i64: 1, 8>}, {pipeline_mode = #tpu.pipeline_mode<synchronous>, transform_indices = @transform_10, window_bounds = array<i64: 1, 8>}, {pipeline_mode = #tpu.pipeline_mode<synchronous>, transform_indices = @transform_11, window_bounds = array<i64: 8, 8>}, {pipeline_mode = #tpu.pipeline_mode<synchronous>, transform_indices = @transform_12, window_bounds = array<i64: 1, 8>}, {pipeline_mode = #tpu.pipeline_mode<synchronous>, transform_indices = @transform_13, window_bounds = array<i64: 1, 8>}, {pipeline_mode = #tpu.pipeline_mode<synchronous>, transform_indices = @transform_14, window_bounds = array<i64: 1, 1>}, {pipeline_mode = #tpu.pipeline_mode<synchronous>, transform_indices = @transform_15, window_bounds = array<i64: 10, 256>}, {pipeline_mode = #tpu.pipeline_mode<synchronous>, transform_indices = @transform_16, window_bounds = array<i64: 1, 256>}, {pipeline_mode = #tpu.pipeline_mode<synchronous>, transform_indices = @transform_17, window_bounds = array<i64: 256, 64>}, {pipeline_mode = #tpu.pipeline_mode<synchronous>, transform_indices = @transform_18, window_bounds = array<i64: 1, 64>}, {pipeline_mode = #tpu.pipeline_mode<synchronous>, transform_indices = @transform_19, window_bounds = array<i64: 64, 1>}, {pipeline_mode = #tpu.pipeline_mode<synchronous>, transform_indices = @transform_20, window_bounds = array<i64: 1, 1>}, {transform_indices = @transform_21, window_bounds = array<i64: 256, 3>}]} {
    %c0 = arith.constant 0 : index
    %c0_0 = arith.constant 0 : index
    %0 = vector.load %arg1[%c0, %c0_0] : memref<256x13xf32, #tpu.memory_space<vmem>>, vector<256x13xf32>
    %c0_1 = arith.constant 0 : index
    %c0_2 = arith.constant 0 : index
    %1 = vector.load %arg2[%c0_1, %c0_2] : memref<13x256xf32, #tpu.memory_space<vmem>>, vector<13x256xf32>
    %cst = arith.constant dense<0.000000e+00> : vector<256x256xf32>
    %2 = tpu.matmul %0, %1, %cst {dimension_numbers = #tpu.dot_dimension_numbers<[1], [0], [0], [1], [0, 0, 1, 1], [], []>} : vector<256x13xf32>, vector<13x256xf32>, vector<256x256xf32> -> vector<256x256xf32>
    %c0_3 = arith.constant 0 : index
    %c0_4 = arith.constant 0 : index
    %3 = vector.load %arg3[%c0_3, %c0_4] : memref<1x256xf32, #tpu.memory_space<vmem>>, vector<1x256xf32>
    %4 = vector.broadcast %3 : vector<1x256xf32> to vector<256x256xf32>
    %5 = arith.addf %2, %4 : vector<256x256xf32>
    %cst_5 = arith.constant 0.000000e+00 : f32
    %6 = vector.broadcast %cst_5 : f32 to vector<256x256xf32>
    %7 = arith.maximumf %5, %6 : vector<256x256xf32>
    %c0_6 = arith.constant 0 : index
    %c0_7 = arith.constant 0 : index
    %8 = vector.load %arg4[%c0_6, %c0_7] : memref<256x64xf32, #tpu.memory_space<vmem>>, vector<256x64xf32>
    %cst_8 = arith.constant dense<0.000000e+00> : vector<256x64xf32>
    %9 = tpu.matmul %7, %8, %cst_8 {dimension_numbers = #tpu.dot_dimension_numbers<[1], [0], [0], [1], [0, 0, 1, 1], [], []>} : vector<256x256xf32>, vector<256x64xf32>, vector<256x64xf32> -> vector<256x64xf32>
    %c0_9 = arith.constant 0 : index
    %c0_10 = arith.constant 0 : index
    %10 = vector.load %arg5[%c0_9, %c0_10] : memref<1x64xf32, #tpu.memory_space<vmem>>, vector<1x64xf32>
    %11 = vector.broadcast %10 : vector<1x64xf32> to vector<256x64xf32>
    %12 = arith.addf %9, %11 : vector<256x64xf32>
    %cst_11 = arith.constant 0.000000e+00 : f32
    %13 = vector.broadcast %cst_11 : f32 to vector<256x64xf32>
    %14 = arith.maximumf %12, %13 : vector<256x64xf32>
    %c0_12 = arith.constant 0 : index
    %c0_13 = arith.constant 0 : index
    %15 = vector.load %arg6[%c0_12, %c0_13] : memref<64x32xf32, #tpu.memory_space<vmem>>, vector<64x32xf32>
    %cst_14 = arith.constant dense<0.000000e+00> : vector<256x32xf32>
    %16 = tpu.matmul %14, %15, %cst_14 {dimension_numbers = #tpu.dot_dimension_numbers<[1], [0], [0], [1], [0, 0, 1, 1], [], []>} : vector<256x64xf32>, vector<64x32xf32>, vector<256x32xf32> -> vector<256x32xf32>
    %c0_15 = arith.constant 0 : index
    %c0_16 = arith.constant 0 : index
    %17 = vector.load %arg7[%c0_15, %c0_16] : memref<1x32xf32, #tpu.memory_space<vmem>>, vector<1x32xf32>
    %18 = vector.broadcast %17 : vector<1x32xf32> to vector<256x32xf32>
    %19 = arith.addf %16, %18 : vector<256x32xf32>
    %cst_17 = arith.constant 0.000000e+00 : f32
    %20 = vector.broadcast %cst_17 : f32 to vector<256x32xf32>
    %21 = arith.maximumf %19, %20 : vector<256x32xf32>
    %c0_18 = arith.constant 0 : index
    %c0_19 = arith.constant 0 : index
    %22 = vector.load %arg8[%c0_18, %c0_19] : memref<32x3xf32, #tpu.memory_space<vmem>>, vector<32x3xf32>
    %cst_20 = arith.constant dense<0.000000e+00> : vector<256x3xf32>
    %23 = tpu.matmul %21, %22, %cst_20 {dimension_numbers = #tpu.dot_dimension_numbers<[1], [0], [0], [1], [0, 0, 1, 1], [], []>} : vector<256x32xf32>, vector<32x3xf32>, vector<256x3xf32> -> vector<256x3xf32>
    %c0_21 = arith.constant 0 : index
    %c0_22 = arith.constant 0 : index
    %24 = vector.load %arg9[%c0_21, %c0_22] : memref<1x3xf32, #tpu.memory_space<vmem>>, vector<1x3xf32>
    %25 = vector.broadcast %24 : vector<1x3xf32> to vector<256x3xf32>
    %26 = arith.addf %23, %25 : vector<256x3xf32>
    %27 = vector.extract_strided_slice %26 {offsets = [0, 0], sizes = [256, 1], strides = [1, 1]} : vector<256x3xf32> to vector<256x1xf32>
    %cst_23 = arith.constant 0.000000e+00 : f32
    %28 = vector.broadcast %cst_23 : f32 to vector<256x1xf32>
    %29 = arith.maximumf %27, %28 : vector<256x1xf32>
    %30 = vector.extract_strided_slice %26 {offsets = [0, 2], sizes = [256, 1], strides = [1, 1]} : vector<256x3xf32> to vector<256x1xf32>
    %cst_24 = arith.constant 0.000000e+00 : f32
    %31 = vector.broadcast %cst_24 : f32 to vector<256x1xf32>
    %32 = arith.maximumf %30, %31 : vector<256x1xf32>
    %33 = vector.extract_strided_slice %0 {offsets = [0, 0], sizes = [256, 1], strides = [1, 1]} : vector<256x13xf32> to vector<256x1xf32>
    %34 = vector.extract_strided_slice %0 {offsets = [0, 2], sizes = [256, 1], strides = [1, 1]} : vector<256x13xf32> to vector<256x1xf32>
    %35 = vector.extract_strided_slice %0 {offsets = [0, 3], sizes = [256, 1], strides = [1, 1]} : vector<256x13xf32> to vector<256x1xf32>
    %36 = vector.extract_strided_slice %0 {offsets = [0, 4], sizes = [256, 1], strides = [1, 1]} : vector<256x13xf32> to vector<256x1xf32>
    %37 = vector.extract_strided_slice %0 {offsets = [0, 5], sizes = [256, 1], strides = [1, 1]} : vector<256x13xf32> to vector<256x1xf32>
    %38 = vector.extract_strided_slice %0 {offsets = [0, 7], sizes = [256, 1], strides = [1, 1]} : vector<256x13xf32> to vector<256x1xf32>
    %39 = vector.extract_strided_slice %0 {offsets = [0, 10], sizes = [256, 1], strides = [1, 1]} : vector<256x13xf32> to vector<256x1xf32>
    %40 = vector.extract_strided_slice %0 {offsets = [0, 12], sizes = [256, 1], strides = [1, 1]} : vector<256x13xf32> to vector<256x1xf32>
    %41 = vector.extract_strided_slice %0 {offsets = [0, 11], sizes = [256, 1], strides = [1, 1]} : vector<256x13xf32> to vector<256x1xf32>
    %42 = arith.subf %34, %41 : vector<256x1xf32>
    %43 = arith.divf %32, %37 : vector<256x1xf32>
    %cst_25 = arith.constant 3.000000e+00 : f32
    %cst_26 = arith.constant 1.000000e+02 : f32
    %44 = vector.broadcast %cst_25 : f32 to vector<256x1xf32>
    %45 = arith.maximumf %44, %43 : vector<256x1xf32>
    %46 = vector.broadcast %cst_26 : f32 to vector<256x1xf32>
    %47 = arith.minimumf %46, %45 : vector<256x1xf32>
    %48 = arith.mulf %33, %38 : vector<256x1xf32>
    %49 = arith.subf %39, %32 : vector<256x1xf32>
    %50 = arith.subf %37, %40 : vector<256x1xf32>
    %c0_27 = arith.constant 0 : index
    %c0_28 = arith.constant 0 : index
    %51 = vector.load %arg16[%c0_27, %c0_28] : memref<10x256xf32, #tpu.memory_space<vmem>>, vector<10x256xf32>
    %c0_29 = arith.constant 0 : index
    %c0_30 = arith.constant 0 : index
    %52 = vector.load %arg17[%c0_29, %c0_30] : memref<1x256xf32, #tpu.memory_space<vmem>>, vector<1x256xf32>
    %53 = vector.shape_cast %52 : vector<1x256xf32> to vector<1x256xf32>
    %54 = vector.broadcast %53 : vector<1x256xf32> to vector<256x256xf32>
    %55 = vector.extract_strided_slice %51 {offsets = [0, 0], sizes = [1, 256], strides = [1, 1]} : vector<10x256xf32> to vector<1x256xf32>
    %56 = vector.broadcast %32 : vector<256x1xf32> to vector<256x256xf32>
    %57 = vector.broadcast %55 : vector<1x256xf32> to vector<256x256xf32>
    %58 = arith.mulf %56, %57 : vector<256x256xf32>
    %59 = arith.addf %54, %58 : vector<256x256xf32>
    %60 = vector.extract_strided_slice %51 {offsets = [1, 0], sizes = [1, 256], strides = [1, 1]} : vector<10x256xf32> to vector<1x256xf32>
    %61 = vector.broadcast %34 : vector<256x1xf32> to vector<256x256xf32>
    %62 = vector.broadcast %60 : vector<1x256xf32> to vector<256x256xf32>
    %63 = arith.mulf %61, %62 : vector<256x256xf32>
    %64 = arith.addf %59, %63 : vector<256x256xf32>
    %65 = vector.extract_strided_slice %51 {offsets = [2, 0], sizes = [1, 256], strides = [1, 1]} : vector<10x256xf32> to vector<1x256xf32>
    %66 = vector.broadcast %36 : vector<256x1xf32> to vector<256x256xf32>
    %67 = vector.broadcast %65 : vector<1x256xf32> to vector<256x256xf32>
    %68 = arith.mulf %66, %67 : vector<256x256xf32>
    %69 = arith.addf %64, %68 : vector<256x256xf32>
    %70 = vector.extract_strided_slice %51 {offsets = [3, 0], sizes = [1, 256], strides = [1, 1]} : vector<10x256xf32> to vector<1x256xf32>
    %71 = vector.broadcast %37 : vector<256x1xf32> to vector<256x256xf32>
    %72 = vector.broadcast %70 : vector<1x256xf32> to vector<256x256xf32>
    %73 = arith.mulf %71, %72 : vector<256x256xf32>
    %74 = arith.addf %69, %73 : vector<256x256xf32>
    %75 = vector.extract_strided_slice %51 {offsets = [4, 0], sizes = [1, 256], strides = [1, 1]} : vector<10x256xf32> to vector<1x256xf32>
    %76 = vector.broadcast %35 : vector<256x1xf32> to vector<256x256xf32>
    %77 = vector.broadcast %75 : vector<1x256xf32> to vector<256x256xf32>
    %78 = arith.mulf %76, %77 : vector<256x256xf32>
    %79 = arith.addf %74, %78 : vector<256x256xf32>
    %80 = vector.extract_strided_slice %51 {offsets = [5, 0], sizes = [1, 256], strides = [1, 1]} : vector<10x256xf32> to vector<1x256xf32>
    %81 = vector.broadcast %29 : vector<256x1xf32> to vector<256x256xf32>
    %82 = vector.broadcast %80 : vector<1x256xf32> to vector<256x256xf32>
    %83 = arith.mulf %81, %82 : vector<256x256xf32>
    %84 = arith.addf %79, %83 : vector<256x256xf32>
    %85 = vector.extract_strided_slice %51 {offsets = [6, 0], sizes = [1, 256], strides = [1, 1]} : vector<10x256xf32> to vector<1x256xf32>
    %86 = vector.broadcast %47 : vector<256x1xf32> to vector<256x256xf32>
    %87 = vector.broadcast %85 : vector<1x256xf32> to vector<256x256xf32>
    %88 = arith.mulf %86, %87 : vector<256x256xf32>
    %89 = arith.addf %84, %88 : vector<256x256xf32>
    %90 = vector.extract_strided_slice %51 {offsets = [7, 0], sizes = [1, 256], strides = [1, 1]} : vector<10x256xf32> to vector<1x256xf32>
    %91 = vector.broadcast %48 : vector<256x1xf32> to vector<256x256xf32>
    %92 = vector.broadcast %90 : vector<1x256xf32> to vector<256x256xf32>
    %93 = arith.mulf %91, %92 : vector<256x256xf32>
    %94 = arith.addf %89, %93 : vector<256x256xf32>
    %95 = vector.extract_strided_slice %51 {offsets = [8, 0], sizes = [1, 256], strides = [1, 1]} : vector<10x256xf32> to vector<1x256xf32>
    %96 = vector.broadcast %49 : vector<256x1xf32> to vector<256x256xf32>
    %97 = vector.broadcast %95 : vector<1x256xf32> to vector<256x256xf32>
    %98 = arith.mulf %96, %97 : vector<256x256xf32>
    %99 = arith.addf %94, %98 : vector<256x256xf32>
    %100 = vector.extract_strided_slice %51 {offsets = [9, 0], sizes = [1, 256], strides = [1, 1]} : vector<10x256xf32> to vector<1x256xf32>
    %101 = vector.broadcast %50 : vector<256x1xf32> to vector<256x256xf32>
    %102 = vector.broadcast %100 : vector<1x256xf32> to vector<256x256xf32>
    %103 = arith.mulf %101, %102 : vector<256x256xf32>
    %104 = arith.addf %99, %103 : vector<256x256xf32>
    %105 = math.tanh %104 : vector<256x256xf32>
    %c0_31 = arith.constant 0 : index
    %c0_32 = arith.constant 0 : index
    %106 = vector.load %arg18[%c0_31, %c0_32] : memref<256x64xf32, #tpu.memory_space<vmem>>, vector<256x64xf32>
    %cst_33 = arith.constant dense<0.000000e+00> : vector<256x64xf32>
    %107 = tpu.matmul %105, %106, %cst_33 {dimension_numbers = #tpu.dot_dimension_numbers<[1], [0], [0], [1], [0, 0, 1, 1], [], []>} : vector<256x256xf32>, vector<256x64xf32>, vector<256x64xf32> -> vector<256x64xf32>
    %c0_34 = arith.constant 0 : index
    %c0_35 = arith.constant 0 : index
    %108 = vector.load %arg19[%c0_34, %c0_35] : memref<1x64xf32, #tpu.memory_space<vmem>>, vector<1x64xf32>
    %109 = vector.broadcast %108 : vector<1x64xf32> to vector<256x64xf32>
    %110 = arith.addf %107, %109 : vector<256x64xf32>
    %111 = math.tanh %110 : vector<256x64xf32>
    %c0_36 = arith.constant 0 : index
    %c0_37 = arith.constant 0 : index
    %112 = vector.load %arg20[%c0_36, %c0_37] : memref<64x1xf32, #tpu.memory_space<vmem>>, vector<64x1xf32>
    %cst_38 = arith.constant dense<0.000000e+00> : vector<256x1xf32>
    %113 = tpu.matmul %111, %112, %cst_38 {dimension_numbers = #tpu.dot_dimension_numbers<[1], [0], [0], [1], [0, 0, 1, 1], [], []>} : vector<256x64xf32>, vector<64x1xf32>, vector<256x1xf32> -> vector<256x1xf32>
    %c0_39 = arith.constant 0 : index
    %c0_40 = arith.constant 0 : index
    %114 = vector.load %arg21[%c0_39, %c0_40] : memref<1x1xf32, #tpu.memory_space<vmem>>, vector<1x1xf32>
    %115 = vector.broadcast %114 : vector<1x1xf32> to vector<256x1xf32>
    %116 = arith.addf %113, %115 : vector<256x1xf32>
    %c0_41 = arith.constant 0 : index
    %c0_42 = arith.constant 0 : index
    %117 = vector.load %arg10[%c0_41, %c0_42] : memref<1x8xf32, #tpu.memory_space<vmem>>, vector<1x8xf32>
    %118 = vector.broadcast %42 : vector<256x1xf32> to vector<256x8xf32>
    %119 = vector.broadcast %117 : vector<1x8xf32> to vector<256x8xf32>
    %120 = arith.mulf %118, %119 : vector<256x8xf32>
    %c0_43 = arith.constant 0 : index
    %c0_44 = arith.constant 0 : index
    %121 = vector.load %arg11[%c0_43, %c0_44] : memref<1x8xf32, #tpu.memory_space<vmem>>, vector<1x8xf32>
    %122 = vector.broadcast %121 : vector<1x8xf32> to vector<256x8xf32>
    %123 = arith.addf %120, %122 : vector<256x8xf32>
    %124 = math.tanh %123 : vector<256x8xf32>
    %c0_45 = arith.constant 0 : index
    %c0_46 = arith.constant 0 : index
    %125 = vector.load %arg12[%c0_45, %c0_46] : memref<8x8xf32, #tpu.memory_space<vmem>>, vector<8x8xf32>
    %c0_47 = arith.constant 0 : index
    %c0_48 = arith.constant 0 : index
    %126 = vector.load %arg13[%c0_47, %c0_48] : memref<1x8xf32, #tpu.memory_space<vmem>>, vector<1x8xf32>
    %127 = vector.shape_cast %126 : vector<1x8xf32> to vector<1x8xf32>
    %128 = vector.broadcast %127 : vector<1x8xf32> to vector<256x8xf32>
    %129 = vector.extract_strided_slice %124 {offsets = [0, 0], sizes = [256, 1], strides = [1, 1]} : vector<256x8xf32> to vector<256x1xf32>
    %130 = vector.extract_strided_slice %125 {offsets = [0, 0], sizes = [1, 8], strides = [1, 1]} : vector<8x8xf32> to vector<1x8xf32>
    %131 = vector.broadcast %129 : vector<256x1xf32> to vector<256x8xf32>
    %132 = vector.broadcast %130 : vector<1x8xf32> to vector<256x8xf32>
    %133 = arith.mulf %131, %132 : vector<256x8xf32>
    %134 = arith.addf %128, %133 : vector<256x8xf32>
    %135 = vector.extract_strided_slice %124 {offsets = [0, 1], sizes = [256, 1], strides = [1, 1]} : vector<256x8xf32> to vector<256x1xf32>
    %136 = vector.extract_strided_slice %125 {offsets = [1, 0], sizes = [1, 8], strides = [1, 1]} : vector<8x8xf32> to vector<1x8xf32>
    %137 = vector.broadcast %135 : vector<256x1xf32> to vector<256x8xf32>
    %138 = vector.broadcast %136 : vector<1x8xf32> to vector<256x8xf32>
    %139 = arith.mulf %137, %138 : vector<256x8xf32>
    %140 = arith.addf %134, %139 : vector<256x8xf32>
    %141 = vector.extract_strided_slice %124 {offsets = [0, 2], sizes = [256, 1], strides = [1, 1]} : vector<256x8xf32> to vector<256x1xf32>
    %142 = vector.extract_strided_slice %125 {offsets = [2, 0], sizes = [1, 8], strides = [1, 1]} : vector<8x8xf32> to vector<1x8xf32>
    %143 = vector.broadcast %141 : vector<256x1xf32> to vector<256x8xf32>
    %144 = vector.broadcast %142 : vector<1x8xf32> to vector<256x8xf32>
    %145 = arith.mulf %143, %144 : vector<256x8xf32>
    %146 = arith.addf %140, %145 : vector<256x8xf32>
    %147 = vector.extract_strided_slice %124 {offsets = [0, 3], sizes = [256, 1], strides = [1, 1]} : vector<256x8xf32> to vector<256x1xf32>
    %148 = vector.extract_strided_slice %125 {offsets = [3, 0], sizes = [1, 8], strides = [1, 1]} : vector<8x8xf32> to vector<1x8xf32>
    %149 = vector.broadcast %147 : vector<256x1xf32> to vector<256x8xf32>
    %150 = vector.broadcast %148 : vector<1x8xf32> to vector<256x8xf32>
    %151 = arith.mulf %149, %150 : vector<256x8xf32>
    %152 = arith.addf %146, %151 : vector<256x8xf32>
    %153 = vector.extract_strided_slice %124 {offsets = [0, 4], sizes = [256, 1], strides = [1, 1]} : vector<256x8xf32> to vector<256x1xf32>
    %154 = vector.extract_strided_slice %125 {offsets = [4, 0], sizes = [1, 8], strides = [1, 1]} : vector<8x8xf32> to vector<1x8xf32>
    %155 = vector.broadcast %153 : vector<256x1xf32> to vector<256x8xf32>
    %156 = vector.broadcast %154 : vector<1x8xf32> to vector<256x8xf32>
    %157 = arith.mulf %155, %156 : vector<256x8xf32>
    %158 = arith.addf %152, %157 : vector<256x8xf32>
    %159 = vector.extract_strided_slice %124 {offsets = [0, 5], sizes = [256, 1], strides = [1, 1]} : vector<256x8xf32> to vector<256x1xf32>
    %160 = vector.extract_strided_slice %125 {offsets = [5, 0], sizes = [1, 8], strides = [1, 1]} : vector<8x8xf32> to vector<1x8xf32>
    %161 = vector.broadcast %159 : vector<256x1xf32> to vector<256x8xf32>
    %162 = vector.broadcast %160 : vector<1x8xf32> to vector<256x8xf32>
    %163 = arith.mulf %161, %162 : vector<256x8xf32>
    %164 = arith.addf %158, %163 : vector<256x8xf32>
    %165 = vector.extract_strided_slice %124 {offsets = [0, 6], sizes = [256, 1], strides = [1, 1]} : vector<256x8xf32> to vector<256x1xf32>
    %166 = vector.extract_strided_slice %125 {offsets = [6, 0], sizes = [1, 8], strides = [1, 1]} : vector<8x8xf32> to vector<1x8xf32>
    %167 = vector.broadcast %165 : vector<256x1xf32> to vector<256x8xf32>
    %168 = vector.broadcast %166 : vector<1x8xf32> to vector<256x8xf32>
    %169 = arith.mulf %167, %168 : vector<256x8xf32>
    %170 = arith.addf %164, %169 : vector<256x8xf32>
    %171 = vector.extract_strided_slice %124 {offsets = [0, 7], sizes = [256, 1], strides = [1, 1]} : vector<256x8xf32> to vector<256x1xf32>
    %172 = vector.extract_strided_slice %125 {offsets = [7, 0], sizes = [1, 8], strides = [1, 1]} : vector<8x8xf32> to vector<1x8xf32>
    %173 = vector.broadcast %171 : vector<256x1xf32> to vector<256x8xf32>
    %174 = vector.broadcast %172 : vector<1x8xf32> to vector<256x8xf32>
    %175 = arith.mulf %173, %174 : vector<256x8xf32>
    %176 = arith.addf %170, %175 : vector<256x8xf32>
    %177 = math.tanh %176 : vector<256x8xf32>
    %c0_49 = arith.constant 0 : index
    %c0_50 = arith.constant 0 : index
    %178 = vector.load %arg14[%c0_49, %c0_50] : memref<1x8xf32, #tpu.memory_space<vmem>>, vector<1x8xf32>
    %179 = vector.broadcast %178 : vector<1x8xf32> to vector<256x8xf32>
    %180 = arith.mulf %177, %179 : vector<256x8xf32>
    %cst_51 = arith.constant dense<0.000000e+00> : vector<256xf32>
    %181 = vector.multi_reduction <add>, %180, %cst_51 [1] : vector<256x8xf32> to vector<256xf32>
    %182 = vector.shape_cast %181 : vector<256xf32> to vector<256x1xf32>
    %c0_52 = arith.constant 0 : index
    %c0_53 = arith.constant 0 : index
    %183 = vector.load %arg15[%c0_52, %c0_53] : memref<1x1xf32, #tpu.memory_space<vmem>>, vector<1x1xf32>
    %184 = vector.broadcast %183 : vector<1x1xf32> to vector<256x1xf32>
    %185 = arith.addf %182, %184 : vector<256x1xf32>
    %186 = arith.addf %185, %116 : vector<256x1xf32>
    %187 = tpu.concatenate %29, %186, %32 in 1 : vector<256x1xf32>, vector<256x1xf32>, vector<256x1xf32> -> vector<256x3xf32>
    %c0_54 = arith.constant 0 : index
    %c0_55 = arith.constant 0 : index
    %188 = vector.load %arg22[%c0_54, %c0_55] : memref<256x3xf32, #tpu.memory_space<vmem>>, vector<256x3xf32>
    tpu.vector_store %arg22[%c0_54, %c0_55], %187 {strides = array<i32>} : memref<256x3xf32, #tpu.memory_space<vmem>>, vector<256x3xf32>,
    return
  }
  func.func @transform_0(%arg0: i32) -> (i32, i32) {
    %c0_i32 = arith.constant 0 : i32
    %c0_i32_0 = arith.constant 0 : i32
    return %arg0, %c0_i32 : i32, i32
  }
  func.func @transform_1(%arg0: i32) -> (i32, i32) {
    %c0_i32 = arith.constant 0 : i32
    %c0_i32_0 = arith.constant 0 : i32
    %c0_i32_1 = arith.constant 0 : i32
    return %c0_i32, %c0_i32_0 : i32, i32
  }
  func.func @transform_2(%arg0: i32) -> (i32, i32) {
    %c0_i32 = arith.constant 0 : i32
    %c0_i32_0 = arith.constant 0 : i32
    %c0_i32_1 = arith.constant 0 : i32
    return %c0_i32, %c0_i32_0 : i32, i32
  }
  func.func @transform_3(%arg0: i32) -> (i32, i32) {
    %c0_i32 = arith.constant 0 : i32
    %c0_i32_0 = arith.constant 0 : i32
    %c0_i32_1 = arith.constant 0 : i32
    return %c0_i32, %c0_i32_0 : i32, i32
  }
  func.func @transform_4(%arg0: i32) -> (i32, i32) {
    %c0_i32 = arith.constant 0 : i32
    %c0_i32_0 = arith.constant 0 : i32
    %c0_i32_1 = arith.constant 0 : i32
    return %c0_i32, %c0_i32_0 : i32, i32
  }
  func.func @transform_5(%arg0: i32) -> (i32, i32) {
    %c0_i32 = arith.constant 0 : i32
    %c0_i32_0 = arith.constant 0 : i32
    %c0_i32_1 = arith.constant 0 : i32
    return %c0_i32, %c0_i32_0 : i32, i32
  }
  func.func @transform_6(%arg0: i32) -> (i32, i32) {
    %c0_i32 = arith.constant 0 : i32
    %c0_i32_0 = arith.constant 0 : i32
    %c0_i32_1 = arith.constant 0 : i32
    return %c0_i32, %c0_i32_0 : i32, i32
  }
  func.func @transform_7(%arg0: i32) -> (i32, i32) {
    %c0_i32 = arith.constant 0 : i32
    %c0_i32_0 = arith.constant 0 : i32
    %c0_i32_1 = arith.constant 0 : i32
    return %c0_i32, %c0_i32_0 : i32, i32
  }
  func.func @transform_8(%arg0: i32) -> (i32, i32) {
    %c0_i32 = arith.constant 0 : i32
    %c0_i32_0 = arith.constant 0 : i32
    %c0_i32_1 = arith.constant 0 : i32
    return %c0_i32, %c0_i32_0 : i32, i32
  }
  func.func @transform_9(%arg0: i32) -> (i32, i32) {
    %c0_i32 = arith.constant 0 : i32
    %c0_i32_0 = arith.constant 0 : i32
    %c0_i32_1 = arith.constant 0 : i32
    return %c0_i32, %c0_i32_0 : i32, i32
  }
  func.func @transform_10(%arg0: i32) -> (i32, i32) {
    %c0_i32 = arith.constant 0 : i32
    %c0_i32_0 = arith.constant 0 : i32
    %c0_i32_1 = arith.constant 0 : i32
    return %c0_i32, %c0_i32_0 : i32, i32
  }
  func.func @transform_11(%arg0: i32) -> (i32, i32) {
    %c0_i32 = arith.constant 0 : i32
    %c0_i32_0 = arith.constant 0 : i32
    %c0_i32_1 = arith.constant 0 : i32
    return %c0_i32, %c0_i32_0 : i32, i32
  }
  func.func @transform_12(%arg0: i32) -> (i32, i32) {
    %c0_i32 = arith.constant 0 : i32
    %c0_i32_0 = arith.constant 0 : i32
    %c0_i32_1 = arith.constant 0 : i32
    return %c0_i32, %c0_i32_0 : i32, i32
  }
  func.func @transform_13(%arg0: i32) -> (i32, i32) {
    %c0_i32 = arith.constant 0 : i32
    %c0_i32_0 = arith.constant 0 : i32
    %c0_i32_1 = arith.constant 0 : i32
    return %c0_i32, %c0_i32_0 : i32, i32
  }
  func.func @transform_14(%arg0: i32) -> (i32, i32) {
    %c0_i32 = arith.constant 0 : i32
    %c0_i32_0 = arith.constant 0 : i32
    %c0_i32_1 = arith.constant 0 : i32
    return %c0_i32, %c0_i32_0 : i32, i32
  }
  func.func @transform_15(%arg0: i32) -> (i32, i32) {
    %c0_i32 = arith.constant 0 : i32
    %c0_i32_0 = arith.constant 0 : i32
    %c0_i32_1 = arith.constant 0 : i32
    return %c0_i32, %c0_i32_0 : i32, i32
  }
  func.func @transform_16(%arg0: i32) -> (i32, i32) {
    %c0_i32 = arith.constant 0 : i32
    %c0_i32_0 = arith.constant 0 : i32
    %c0_i32_1 = arith.constant 0 : i32
    return %c0_i32, %c0_i32_0 : i32, i32
  }
  func.func @transform_17(%arg0: i32) -> (i32, i32) {
    %c0_i32 = arith.constant 0 : i32
    %c0_i32_0 = arith.constant 0 : i32
    %c0_i32_1 = arith.constant 0 : i32
    return %c0_i32, %c0_i32_0 : i32, i32
  }
  func.func @transform_18(%arg0: i32) -> (i32, i32) {
    %c0_i32 = arith.constant 0 : i32
    %c0_i32_0 = arith.constant 0 : i32
    %c0_i32_1 = arith.constant 0 : i32
    return %c0_i32, %c0_i32_0 : i32, i32
  }
  func.func @transform_19(%arg0: i32) -> (i32, i32) {
    %c0_i32 = arith.constant 0 : i32
    %c0_i32_0 = arith.constant 0 : i32
    %c0_i32_1 = arith.constant 0 : i32
    return %c0_i32, %c0_i32_0 : i32, i32
  }
  func.func @transform_20(%arg0: i32) -> (i32, i32) {
    %c0_i32 = arith.constant 0 : i32
    %c0_i32_0 = arith.constant 0 : i32
    %c0_i32_1 = arith.constant 0 : i32
    return %c0_i32, %c0_i32_0 : i32, i32
  }
  func.func @transform_21(%arg0: i32) -> (i32, i32) {
    %c0_i32 = arith.constant 0 : i32
    %c0_i32_0 = arith.constant 0 : i32
    return %arg0, %c0_i32 : i32, i32
  }
}

</mosaic_0001>

<llo_original>
// kernel: mymodel_forward.1
$region0: #{mymodel_forward.1}
  #allocation0 [shape = 'u32[]', space=smem, size = 0x4, offset = 0x4, fixed_abs, tag = 'smem constant byte address 0x4 - core index']
  #allocation1 [shape = 'u32[144,128]{1,0:T(1,128)}', space=vmem, size = 0x12000, scoped, tag = 'internal scratch']
  #allocation2 [shape = 'f32[1,1]{1,0:T(1,128)S(1)}', space=vmem, size = 0x200, scoped, tag = 'scoped memory for mymodel_forward.1']
  #allocation3 [shape = 'f32[1,1]{1,0:T(1,128)S(1)}', space=vmem, size = 0x200, scoped, tag = 'scoped memory for mymodel_forward.1']
  %s0 = inlined_call_operand.vmem [shape: f32[512,13], index: 0, kind: input, shape index: {}]
  %s1 = inlined_call_operand.vmem [shape: f32[13,256], index: 1, kind: input, shape index: {}]
  %s2 = inlined_call_operand.vmem [shape: f32[1,256], index: 2, kind: input, shape index: {}]
  %s3 = inlined_call_operand.vmem [shape: f32[256,64], index: 3, kind: input, shape index: {}]
  %s4 = inlined_call_operand.vmem [shape: f32[1,64], index: 4, kind: input, shape index: {}]
  %s5 = inlined_call_operand.vmem [shape: f32[64,32], index: 5, kind: input, shape index: {}]
  %s6 = inlined_call_operand.vmem [shape: f32[1,32], index: 6, kind: input, shape index: {}]
  %s7 = inlined_call_operand.vmem [shape: f32[32,3], index: 7, kind: input, shape index: {}]
  %s8 = inlined_call_operand.vmem [shape: f32[1,3], index: 8, kind: input, shape index: {}]
  %s9 = inlined_call_operand.vmem [shape: f32[1,8], index: 9, kind: input, shape index: {}]
  %s10 = inlined_call_operand.vmem [shape: f32[1,8], index: 10, kind: input, shape index: {}]
  %s11 = inlined_call_operand.vmem [shape: f32[8,8], index: 11, kind: input, shape index: {}]
  %s12 = inlined_call_operand.vmem [shape: f32[1,8], index: 12, kind: input, shape index: {}]
  %s13 = inlined_call_operand.vmem [shape: f32[1,8], index: 13, kind: input, shape index: {}]
  %s14 = inlined_call_operand.<no memory space> [shape: f32[1,1], index: 14, kind: input, shape index: {}]
  %s15 = inlined_call_operand.vmem [shape: f32[10,256], index: 15, kind: input, shape index: {}]
  %s16 = inlined_call_operand.vmem [shape: f32[1,256], index: 16, kind: input, shape index: {}]
  %s17 = inlined_call_operand.vmem [shape: f32[256,64], index: 17, kind: input, shape index: {}]
  %s18 = inlined_call_operand.vmem [shape: f32[1,64], index: 18, kind: input, shape index: {}]
  %s19 = inlined_call_operand.vmem [shape: f32[64,1], index: 19, kind: input, shape index: {}]
  %s20 = inlined_call_operand.<no memory space> [shape: f32[1,1], index: 20, kind: input, shape index: {}]
  %s21 = inlined_call_operand.vmem [shape: f32[512,3], index: 21, kind: output, shape index: {}]
  %s22 = sld [smem:[#allocation0]]
  $region117: #{mymodel_forward.1} parent=0
    _
  %s24 = ssub.s32 1, %s22
  %s25 = scalar_select 0, %s24, %s22
  %v26 = vstv %s14
  %27 = vst [vmem:[#allocation2] sm:$0x1] %v26
  %v28 = vstv %s20
  %29 = vst [vmem:[#allocation3] sm:$0x1] %v28
  loop: start=0, step=1, limit=4
  $region2: #{mymodel_forward.1} parent=0 // loop_pre_header
    _
  $region3: #{mymodel_forward.1} parent=0 // loop_header
    %s31 = sphi 0, %s35
    %p32 = scmp.ge.s32.totalorder %s31, 4
    %s41 = sphi 0, %s43
    %s44 = sphi 0, %s41
    %s45 = sphi 0, %s44
    %s61 = sphi 0, %s45
    %s65 = sphi 0, %s65
    %s67 = sphi 0, %s65
    %s68 = sphi 0, %s67
    %s82 = sphi 0, %s68
    %s86 = sphi 0, %s86
    %s88 = sphi 0, %s86
    %s89 = sphi 0, %s88
    %s103 = sphi 0, %s89
    %s107 = sphi 0, %s107
    %s109 = sphi 0, %s107
    %s110 = sphi 0, %s109
    %s124 = sphi 0, %s110
    %s128 = sphi 0, %s128
    %s130 = sphi 0, %s128
    %s131 = sphi 0, %s130
    %s145 = sphi 0, %s131
    %s149 = sphi 0, %s149
    %s151 = sphi 0, %s149
    %s152 = sphi 0, %s151
    %s166 = sphi 0, %s152
    %s170 = sphi 0, %s170
    %s172 = sphi 0, %s170
    %s173 = sphi 0, %s172
    %s187 = sphi 0, %s173
    %s191 = sphi 0, %s191
    %s193 = sphi 0, %s191
    %s194 = sphi 0, %s193
    %s208 = sphi 0, %s194
    %s212 = sphi 0, %s212
    %s214 = sphi 0, %s212
    %s215 = sphi 0, %s214
    %s229 = sphi 0, %s215
    %s233 = sphi 0, %s233
    %s235 = sphi 0, %s233
    %s236 = sphi 0, %s235
    %s250 = sphi 0, %s236
    %s254 = sphi 0, %s254
    %s256 = sphi 0, %s254
    %s257 = sphi 0, %s256
    %s271 = sphi 0, %s257
    %s275 = sphi 0, %s275
    %s277 = sphi 0, %s275
    %s278 = sphi 0, %s277
    %s292 = sphi 0, %s278
    %s296 = sphi 0, %s296
    %s298 = sphi 0, %s296
    %s299 = sphi 0, %s298
    %s313 = sphi 0, %s299
    %s317 = sphi 0, %s317
    %s319 = sphi 0, %s317
    %s320 = sphi 0, %s319
    %s334 = sphi 0, %s320
    %s338 = sphi 0, %s338
    %s340 = sphi 0, %s338
    %s341 = sphi 0, %s340
    %s355 = sphi 0, %s341
    %s359 = sphi 0, %s359
    %s361 = sphi 0, %s359
    %s362 = sphi 0, %s361
    %s376 = sphi 0, %s362
    %s380 = sphi 0, %s380
    %s382 = sphi 0, %s380
    %s383 = sphi 0, %s382
    %s397 = sphi 0, %s383
    %s401 = sphi 0, %s401
    %s403 = sphi 0, %s401
    %s404 = sphi 0, %s403
    %s418 = sphi 0, %s404
    %s422 = sphi 0, %s422
    %s424 = sphi 0, %s422
    %s425 = sphi 0, %s424
    %s439 = sphi 0, %s425
    %s443 = sphi 0, %s443
    %s445 = sphi 0, %s443
    %s446 = sphi 0, %s445
    %s460 = sphi 0, %s446
    %s464 = sphi 0, %s464
    %s466 = sphi 0, %s464
    %s467 = sphi 0, %s466
    %s481 = sphi 0, %s467
    %s487 = sphi 0, %s489
    %s490 = sphi 0, %s487
    %s491 = sphi 0, %s490
    %s507 = sphi 0, %s491
  $region4: #{mymodel_forward.1} parent=0 // loop_header_branch
    %34 = sbr.rel (%p32) target = $region8
  $region5: #{mymodel_forward.1} parent=0 // loop_body
    %s36 = ssub.s32 %s31, 1
    %s37 = ssub.s32 %s31, 2
    %s38 = sadd.s32 %s31, 1
    %s39 = ssub.s32 %s31, %s38
    %p40 = scmp.eq.s32.totalorder %s39, 0
    %s42 = sadd.s32 %s41, 1
    %s43 = scalar_select %p40, %s41, %s42
    %p46 = pneg %p40
    %p47 = scmp.eq.s32.totalorder %s31, 1
    %p48 = por %p46, %p47
    %p49 = scmp.ne.s32.totalorder %s41, %s44
    %p50 = scmp.eq.s32.totalorder %s31, 0
    %p51 = por %p49, %p50
    %p52 = scmp.ne.s32.totalorder %s41, %s44
    %p53 = scmp.eq.s32.totalorder %s36, 1
    %p54 = por %p52, %p53
    %p55 = scmp.ne.s32.totalorder %s44, %s45
    %p56 = scmp.eq.s32.totalorder %s36, 0
    %p57 = por %p55, %p56
    %p58 = scmp.ne.s32.totalorder %s44, %s45
    %p59 = scmp.eq.s32.totalorder %s37, 1
    %p60 = por %p58, %p59
    %p62 = scmp.ne.s32.totalorder %s45, %s61
    %p63 = scmp.eq.s32.totalorder %s37, 0
    %p64 = por %p62, %p63
    %s66 = sadd.s32 %s65, 1
    %p69 = scmp.eq.s32.totalorder %s31, 1
    %p70 = scmp.ne.s32.totalorder %s65, %s67
    %p71 = scmp.eq.s32.totalorder %s31, 0
    %p72 = por %p70, %p71
    %p73 = scmp.ne.s32.totalorder %s65, %s67
    %p74 = scmp.eq.s32.totalorder %s36, 1
    %p75 = por %p73, %p74
    %p76 = scmp.ne.s32.totalorder %s67, %s68
    %p77 = scmp.eq.s32.totalorder %s36, 0
    %p78 = por %p76, %p77
    %p79 = scmp.ne.s32.totalorder %s67, %s68
    %p80 = scmp.eq.s32.totalorder %s37, 1
    %p81 = por %p79, %p80
    %p83 = scmp.ne.s32.totalorder %s68, %s82
    %p84 = scmp.eq.s32.totalorder %s37, 0
    %p85 = por %p83, %p84
    %s87 = sadd.s32 %s86, 1
    %p90 = scmp.eq.s32.totalorder %s31, 1
    %p91 = scmp.ne.s32.totalorder %s86, %s88
    %p92 = scmp.eq.s32.totalorder %s31, 0
    %p93 = por %p91, %p92
    %p94 = scmp.ne.s32.totalorder %s86, %s88
    %p95 = scmp.eq.s32.totalorder %s36, 1
    %p96 = por %p94, %p95
    %p97 = scmp.ne.s32.totalorder %s88, %s89
    %p98 = scmp.eq.s32.totalorder %s36, 0
    %p99 = por %p97, %p98
    %p100 = scmp.ne.s32.totalorder %s88, %s89
    %p101 = scmp.eq.s32.totalorder %s37, 1
    %p102 = por %p100, %p101
    %p104 = scmp.ne.s32.totalorder %s89, %s103
    %p105 = scmp.eq.s32.totalorder %s37, 0
    %p106 = por %p104, %p105
    %s108 = sadd.s32 %s107, 1
    %p111 = scmp.eq.s32.totalorder %s31, 1
    %p112 = scmp.ne.s32.totalorder %s107, %s109
    %p113 = scmp.eq.s32.totalorder %s31, 0
    %p114 = por %p112, %p113
    %p115 = scmp.ne.s32.totalorder %s107, %s109
    %p116 = scmp.eq.s32.totalorder %s36, 1
    %p117 = por %p115, %p116
    %p118 = scmp.ne.s32.totalorder %s109, %s110
    %p119 = scmp.eq.s32.totalorder %s36, 0
    %p120 = por %p118, %p119
    %p121 = scmp.ne.s32.totalorder %s109, %s110
    %p122 = scmp.eq.s32.totalorder %s37, 1
    %p123 = por %p121, %p122
    %p125 = scmp.ne.s32.totalorder %s110, %s124
    %p126 = scmp.eq.s32.totalorder %s37, 0
    %p127 = por %p125, %p126
    %s129 = sadd.s32 %s128, 1
    %p132 = scmp.eq.s32.totalorder %s31, 1
    %p133 = scmp.ne.s32.totalorder %s128, %s130
    %p134 = scmp.eq.s32.totalorder %s31, 0
    %p135 = por %p133, %p134
    %p136 = scmp.ne.s32.totalorder %s128, %s130
    %p137 = scmp.eq.s32.totalorder %s36, 1
    %p138 = por %p136, %p137
    %p139 = scmp.ne.s32.totalorder %s130, %s131
    %p140 = scmp.eq.s32.totalorder %s36, 0
    %p141 = por %p139, %p140
    %p142 = scmp.ne.s32.totalorder %s130, %s131
    %p143 = scmp.eq.s32.totalorder %s37, 1
    %p144 = por %p142, %p143
    %p146 = scmp.ne.s32.totalorder %s131, %s145
    %p147 = scmp.eq.s32.totalorder %s37, 0
    %p148 = por %p146, %p147
    %s150 = sadd.s32 %s149, 1
    %p153 = scmp.eq.s32.totalorder %s31, 1
    %p154 = scmp.ne.s32.totalorder %s149, %s151
    %p155 = scmp.eq.s32.totalorder %s31, 0
    %p156 = por %p154, %p155
    %p157 = scmp.ne.s32.totalorder %s149, %s151
    %p158 = scmp.eq.s32.totalorder %s36, 1
    %p159 = por %p157, %p158
    %p160 = scmp.ne.s32.totalorder %s151, %s152
    %p161 = scmp.eq.s32.totalorder %s36, 0
    %p162 = por %p160, %p161
    %p163 = scmp.ne.s32.totalorder %s151, %s152
    %p164 = scmp.eq.s32.totalorder %s37, 1
    %p165 = por %p163, %p164
    %p167 = scmp.ne.s32.totalorder %s152, %s166
    %p168 = scmp.eq.s32.totalorder %s37, 0
    %p169 = por %p167, %p168
    %s171 = sadd.s32 %s170, 1
    %p174 = scmp.eq.s32.totalorder %s31, 1
    %p175 = scmp.ne.s32.totalorder %s170, %s172
    %p176 = scmp.eq.s32.totalorder %s31, 0
    %p177 = por %p175, %p176
    %p178 = scmp.ne.s32.totalorder %s170, %s172
    %p179 = scmp.eq.s32.totalorder %s36, 1
    %p180 = por %p178, %p179
    %p181 = scmp.ne.s32.totalorder %s172, %s173
    %p182 = scmp.eq.s32.totalorder %s36, 0
    %p183 = por %p181, %p182
    %p184 = scmp.ne.s32.totalorder %s172, %s173
    %p185 = scmp.eq.s32.totalorder %s37, 1
    %p186 = por %p184, %p185
    %p188 = scmp.ne.s32.totalorder %s173, %s187
    %p189 = scmp.eq.s32.totalorder %s37, 0
    %p190 = por %p188, %p189
    %s192 = sadd.s32 %s191, 1
    %p195 = scmp.eq.s32.totalorder %s31, 1
    %p196 = scmp.ne.s32.totalorder %s191, %s193
    %p197 = scmp.eq.s32.totalorder %s31, 0
    %p198 = por %p196, %p197
    %p199 = scmp.ne.s32.totalorder %s191, %s193
    %p200 = scmp.eq.s32.totalorder %s36, 1
    %p201 = por %p199, %p200
    %p202 = scmp.ne.s32.totalorder %s193, %s194
    %p203 = scmp.eq.s32.totalorder %s36, 0
    %p204 = por %p202, %p203
    %p205 = scmp.ne.s32.totalorder %s193, %s194
    %p206 = scmp.eq.s32.totalorder %s37, 1
    %p207 = por %p205, %p206
    %p209 = scmp.ne.s32.totalorder %s194, %s208
    %p210 = scmp.eq.s32.totalorder %s37, 0
    %p211 = por %p209, %p210
    %s213 = sadd.s32 %s212, 1
    %p216 = scmp.eq.s32.totalorder %s31, 1
    %p217 = scmp.ne.s32.totalorder %s212, %s214
    %p218 = scmp.eq.s32.totalorder %s31, 0
    %p219 = por %p217, %p218
    %p220 = scmp.ne.s32.totalorder %s212, %s214
    %p221 = scmp.eq.s32.totalorder %s36, 1
    %p222 = por %p220, %p221
    %p223 = scmp.ne.s32.totalorder %s214, %s215
    %p224 = scmp.eq.s32.totalorder %s36, 0
    %p225 = por %p223, %p224
    %p226 = scmp.ne.s32.totalorder %s214, %s215
    %p227 = scmp.eq.s32.totalorder %s37, 1
    %p228 = por %p226, %p227
    %p230 = scmp.ne.s32.totalorder %s215, %s229
    %p231 = scmp.eq.s32.totalorder %s37, 0
    %p232 = por %p230, %p231
    %s234 = sadd.s32 %s233, 1
    %p237 = scmp.eq.s32.totalorder %s31, 1
    %p238 = scmp.ne.s32.totalorder %s233, %s235
    %p239 = scmp.eq.s32.totalorder %s31, 0
    %p240 = por %p238, %p239
    %p241 = scmp.ne.s32.totalorder %s233, %s235
    %p242 = scmp.eq.s32.totalorder %s36, 1
    %p243 = por %p241, %p242
    %p244 = scmp.ne.s32.totalorder %s235, %s236
    %p245 = scmp.eq.s32.totalorder %s36, 0
    %p246 = por %p244, %p245
    %p247 = scmp.ne.s32.totalorder %s235, %s236
    %p248 = scmp.eq.s32.totalorder %s37, 1
    %p249 = por %p247, %p248
    %p251 = scmp.ne.s32.totalorder %s236, %s250
    %p252 = scmp.eq.s32.totalorder %s37, 0
    %p253 = por %p251, %p252
    %s255 = sadd.s32 %s254, 1
    %p258 = scmp.eq.s32.totalorder %s31, 1
    %p259 = scmp.ne.s32.totalorder %s254, %s256
    %p260 = scmp.eq.s32.totalorder %s31, 0
    %p261 = por %p259, %p260
    %p262 = scmp.ne.s32.totalorder %s254, %s256
    %p263 = scmp.eq.s32.totalorder %s36, 1
    %p264 = por %p262, %p263
    %p265 = scmp.ne.s32.totalorder %s256, %s257
    %p266 = scmp.eq.s32.totalorder %s36, 0
    %p267 = por %p265, %p266
    %p268 = scmp.ne.s32.totalorder %s256, %s257
    %p269 = scmp.eq.s32.totalorder %s37, 1
    %p270 = por %p268, %p269
    %p272 = scmp.ne.s32.totalorder %s257, %s271
    %p273 = scmp.eq.s32.totalorder %s37, 0
    %p274 = por %p272, %p273
    %s276 = sadd.s32 %s275, 1
    %p279 = scmp.eq.s32.totalorder %s31, 1
    %p280 = scmp.ne.s32.totalorder %s275, %s277
    %p281 = scmp.eq.s32.totalorder %s31, 0
    %p282 = por %p280, %p281
    %p283 = scmp.ne.s32.totalorder %s275, %s277
    %p284 = scmp.eq.s32.totalorder %s36, 1
    %p285 = por %p283, %p284
    %p286 = scmp.ne.s32.totalorder %s277, %s278
    %p287 = scmp.eq.s32.totalorder %s36, 0
    %p288 = por %p286, %p287
    %p289 = scmp.ne.s32.totalorder %s277, %s278
    %p290 = scmp.eq.s32.totalorder %s37, 1
    %p291 = por %p289, %p290
    %p293 = scmp.ne.s32.totalorder %s278, %s292
    %p294 = scmp.eq.s32.totalorder %s37, 0
    %p295 = por %p293, %p294
    %s297 = sadd.s32 %s296, 1
    %p300 = scmp.eq.s32.totalorder %s31, 1
    %p301 = scmp.ne.s32.totalorder %s296, %s298
    %p302 = scmp.eq.s32.totalorder %s31, 0
    %p303 = por %p301, %p302
    %p304 = scmp.ne.s32.totalorder %s296, %s298
    %p305 = scmp.eq.s32.totalorder %s36, 1
    %p306 = por %p304, %p305
    %p307 = scmp.ne.s32.totalorder %s298, %s299
    %p308 = scmp.eq.s32.totalorder %s36, 0
    %p309 = por %p307, %p308
    %p310 = scmp.ne.s32.totalorder %s298, %s299
    %p311 = scmp.eq.s32.totalorder %s37, 1
    %p312 = por %p310, %p311
    %p314 = scmp.ne.s32.totalorder %s299, %s313
    %p315 = scmp.eq.s32.totalorder %s37, 0
    %p316 = por %p314, %p315
    %s318 = sadd.s32 %s317, 1
    %p321 = scmp.eq.s32.totalorder %s31, 1
    %p322 = scmp.ne.s32.totalorder %s317, %s319
    %p323 = scmp.eq.s32.totalorder %s31, 0
    %p324 = por %p322, %p323
    %p325 = scmp.ne.s32.totalorder %s317, %s319
    %p326 = scmp.eq.s32.totalorder %s36, 1
    %p327 = por %p325, %p326
    %p328 = scmp.ne.s32.totalorder %s319, %s320
    %p329 = scmp.eq.s32.totalorder %s36, 0
    %p330 = por %p328, %p329
    %p331 = scmp.ne.s32.totalorder %s319, %s320
    %p332 = scmp.eq.s32.totalorder %s37, 1
    %p333 = por %p331, %p332
    %p335 = scmp.ne.s32.totalorder %s320, %s334
    %p336 = scmp.eq.s32.totalorder %s37, 0
    %p337 = por %p335, %p336
    %s339 = sadd.s32 %s338, 1
    %p342 = scmp.eq.s32.totalorder %s31, 1
    %p343 = scmp.ne.s32.totalorder %s338, %s340
    %p344 = scmp.eq.s32.totalorder %s31, 0
    %p345 = por %p343, %p344
    %p346 = scmp.ne.s32.totalorder %s338, %s340
    %p347 = scmp.eq.s32.totalorder %s36, 1
    %p348 = por %p346, %p347
    %p349 = scmp.ne.s32.totalorder %s340, %s341
    %p350 = scmp.eq.s32.totalorder %s36, 0
    %p351 = por %p349, %p350
    %p352 = scmp.ne.s32.totalorder %s340, %s341
    %p353 = scmp.eq.s32.totalorder %s37, 1
    %p354 = por %p352, %p353
    %p356 = scmp.ne.s32.totalorder %s341, %s355
    %p357 = scmp.eq.s32.totalorder %s37, 0
    %p358 = por %p356, %p357
    %s360 = sadd.s32 %s359, 1
    %p363 = scmp.eq.s32.totalorder %s31, 1
    %p364 = scmp.ne.s32.totalorder %s359, %s361
    %p365 = scmp.eq.s32.totalorder %s31, 0
    %p366 = por %p364, %p365
    %p367 = scmp.ne.s32.totalorder %s359, %s361
    %p368 = scmp.eq.s32.totalorder %s36, 1
    %p369 = por %p367, %p368
    %p370 = scmp.ne.s32.totalorder %s361, %s362
    %p371 = scmp.eq.s32.totalorder %s36, 0
    %p372 = por %p370, %p371
    %p373 = scmp.ne.s32.totalorder %s361, %s362
    %p374 = scmp.eq.s32.totalorder %s37, 1
    %p375 = por %p373, %p374
    %p377 = scmp.ne.s32.totalorder %s362, %s376
    %p378 = scmp.eq.s32.totalorder %s37, 0
    %p379 = por %p377, %p378
    %s381 = sadd.s32 %s380, 1
    %p384 = scmp.eq.s32.totalorder %s31, 1
    %p385 = scmp.ne.s32.totalorder %s380, %s382
    %p386 = scmp.eq.s32.totalorder %s31, 0
    %p387 = por %p385, %p386
    %p388 = scmp.ne.s32.totalorder %s380, %s382
    %p389 = scmp.eq.s32.totalorder %s36, 1
    %p390 = por %p388, %p389
    %p391 = scmp.ne.s32.totalorder %s382, %s383
    %p392 = scmp.eq.s32.totalorder %s36, 0
    %p393 = por %p391, %p392
    %p394 = scmp.ne.s32.totalorder %s382, %s383
    %p395 = scmp.eq.s32.totalorder %s37, 1
    %p396 = por %p394, %p395
    %p398 = scmp.ne.s32.totalorder %s383, %s397
    %p399 = scmp.eq.s32.totalorder %s37, 0
    %p400 = por %p398, %p399
    %s402 = sadd.s32 %s401, 1
    %p405 = scmp.eq.s32.totalorder %s31, 1
    %p406 = scmp.ne.s32.totalorder %s401, %s403
    %p407 = scmp.eq.s32.totalorder %s31, 0
    %p408 = por %p406, %p407
    %p409 = scmp.ne.s32.totalorder %s401, %s403
    %p410 = scmp.eq.s32.totalorder %s36, 1
    %p411 = por %p409, %p410
    %p412 = scmp.ne.s32.totalorder %s403, %s404
    %p413 = scmp.eq.s32.totalorder %s36, 0
    %p414 = por %p412, %p413
    %p415 = scmp.ne.s32.totalorder %s403, %s404
    %p416 = scmp.eq.s32.totalorder %s37, 1
    %p417 = por %p415, %p416
    %p419 = scmp.ne.s32.totalorder %s404, %s418
    %p420 = scmp.eq.s32.totalorder %s37, 0
    %p421 = por %p419, %p420
    %s423 = sadd.s32 %s422, 1
    %p426 = scmp.eq.s32.totalorder %s31, 1
    %p427 = scmp.ne.s32.totalorder %s422, %s424
    %p428 = scmp.eq.s32.totalorder %s31, 0
    %p429 = por %p427, %p428
    %p430 = scmp.ne.s32.totalorder %s422, %s424
    %p431 = scmp.eq.s32.totalorder %s36, 1
    %p432 = por %p430, %p431
    %p433 = scmp.ne.s32.totalorder %s424, %s425
    %p434 = scmp.eq.s32.totalorder %s36, 0
    %p435 = por %p433, %p434
    %p436 = scmp.ne.s32.totalorder %s424, %s425
    %p437 = scmp.eq.s32.totalorder %s37, 1
    %p438 = por %p436, %p437
    %p440 = scmp.ne.s32.totalorder %s425, %s439
    %p441 = scmp.eq.s32.totalorder %s37, 0
    %p442 = por %p440, %p441
    %s444 = sadd.s32 %s443, 1
    %p447 = scmp.eq.s32.totalorder %s31, 1
    %p448 = scmp.ne.s32.totalorder %s443, %s445
    %p449 = scmp.eq.s32.totalorder %s31, 0
    %p450 = por %p448, %p449
    %p451 = scmp.ne.s32.totalorder %s443, %s445
    %p452 = scmp.eq.s32.totalorder %s36, 1
    %p453 = por %p451, %p452
    %p454 = scmp.ne.s32.totalorder %s445, %s446
    %p455 = scmp.eq.s32.totalorder %s36, 0
    %p456 = por %p454, %p455
    %p457 = scmp.ne.s32.totalorder %s445, %s446
    %p458 = scmp.eq.s32.totalorder %s37, 1
    %p459 = por %p457, %p458
    %p461 = scmp.ne.s32.totalorder %s446, %s460
    %p462 = scmp.eq.s32.totalorder %s37, 0
    %p463 = por %p461, %p462
    %s465 = sadd.s32 %s464, 1
    %p468 = scmp.eq.s32.totalorder %s31, 1
    %p469 = scmp.ne.s32.totalorder %s464, %s466
    %p470 = scmp.eq.s32.totalorder %s31, 0
    %p471 = por %p469, %p470
    %p472 = scmp.ne.s32.totalorder %s464, %s466
    %p473 = scmp.eq.s32.totalorder %s36, 1
    %p474 = por %p472, %p473
    %p475 = scmp.ne.s32.totalorder %s466, %s467
    %p476 = scmp.eq.s32.totalorder %s36, 0
    %p477 = por %p475, %p476
    %p478 = scmp.ne.s32.totalorder %s466, %s467
    %p479 = scmp.eq.s32.totalorder %s37, 1
    %p480 = por %p478, %p479
    %p482 = scmp.ne.s32.totalorder %s467, %s481
    %p483 = scmp.eq.s32.totalorder %s37, 0
    %p484 = por %p482, %p483
    %s485 = ssub.s32 %s31, %s38
    %p486 = scmp.eq.s32.totalorder %s485, 0
    %s488 = sadd.s32 %s487, 1
    %s489 = scalar_select %p486, %s487, %s488
    %p492 = pneg %p486
    %p493 = scmp.eq.s32.totalorder %s31, 1
    %p494 = por %p492, %p493
    %p495 = scmp.ne.s32.totalorder %s487, %s490
    %p496 = scmp.eq.s32.totalorder %s31, 0
    %p497 = por %p495, %p496
    %p498 = scmp.ne.s32.totalorder %s487, %s490
    %p499 = scmp.eq.s32.totalorder %s36, 1
    %p500 = por %p498, %p499
    %p501 = scmp.ne.s32.totalorder %s490, %s491
    %p502 = scmp.eq.s32.totalorder %s36, 0
    %p503 = por %p501, %p502
    %p504 = scmp.ne.s32.totalorder %s490, %s491
    %p505 = scmp.eq.s32.totalorder %s37, 1
    %p506 = por %p504, %p505
    %p508 = scmp.ne.s32.totalorder %s491, %s507
    %p509 = scmp.eq.s32.totalorder %s37, 0
    %p510 = por %p508, %p509
    %p511 = scmp.le.s32.totalorder 1, %s31
    %p512 = scmp.lt.s32.totalorder %s31, 3
    %p513 = pnand %p511, %p512
    %p514 = pneg %p513
    // Predicated region
    $region9: #{mymodel_forward.1} parent=5 // pred_check
      _
    $region10: #{mymodel_forward.1} parent=5 // pred_check_branch
      %516 = sbr.rel (%p513) target = $region12
    $region11: #{mymodel_forward.1} parent=5 // pred_region
      %s517 = ssub.s32 %s31, 1
      // Predicated region
      $region13: #{mymodel_forward.1} parent=11 // pred_check
        %p518 = pneg %p78
      $region14: #{mymodel_forward.1} parent=11 // pred_check_branch
        %520 = sbr.rel (%p518) target = $region16
      $region15: #{mymodel_forward.1} parent=11 // pred_region
        _
      $region16: #{mymodel_forward.1} parent=11 // pred_fallthru
        _
      // Predicated region
      $region17: #{mymodel_forward.1} parent=11 // pred_check
        %p521 = pneg %p99
      $region18: #{mymodel_forward.1} parent=11 // pred_check_branch
        %523 = sbr.rel (%p521) target = $region20
      $region19: #{mymodel_forward.1} parent=11 // pred_region
        _
      $region20: #{mymodel_forward.1} parent=11 // pred_fallthru
        _
      // Predicated region
      $region21: #{mymodel_forward.1} parent=11 // pred_check
        %p524 = pneg %p120
      $region22: #{mymodel_forward.1} parent=11 // pred_check_branch
        %526 = sbr.rel (%p524) target = $region24
      $region23: #{mymodel_forward.1} parent=11 // pred_region
        _
      $region24: #{mymodel_forward.1} parent=11 // pred_fallthru
        _
      // Predicated region
      $region25: #{mymodel_forward.1} parent=11 // pred_check
        %p527 = pneg %p141
      $region26: #{mymodel_forward.1} parent=11 // pred_check_branch
        %529 = sbr.rel (%p527) target = $region28
      $region27: #{mymodel_forward.1} parent=11 // pred_region
        _
      $region28: #{mymodel_forward.1} parent=11 // pred_fallthru
        _
      // Predicated region
      $region29: #{mymodel_forward.1} parent=11 // pred_check
        %p530 = pneg %p162
      $region30: #{mymodel_forward.1} parent=11 // pred_check_branch
        %532 = sbr.rel (%p530) target = $region32
      $region31: #{mymodel_forward.1} parent=11 // pred_region
        _
      $region32: #{mymodel_forward.1} parent=11 // pred_fallthru
        _
      // Predicated region
      $region33: #{mymodel_forward.1} parent=11 // pred_check
        %p533 = pneg %p183
      $region34: #{mymodel_forward.1} parent=11 // pred_check_branch
        %535 = sbr.rel (%p533) target = $region36
      $region35: #{mymodel_forward.1} parent=11 // pred_region
        _
      $region36: #{mymodel_forward.1} parent=11 // pred_fallthru
        _
      // Predicated region
      $region37: #{mymodel_forward.1} parent=11 // pred_check
        %p536 = pneg %p204
      $region38: #{mymodel_forward.1} parent=11 // pred_check_branch
        %538 = sbr.rel (%p536) target = $region40
      $region39: #{mymodel_forward.1} parent=11 // pred_region
        _
      $region40: #{mymodel_forward.1} parent=11 // pred_fallthru
        _
      // Predicated region
      $region41: #{mymodel_forward.1} parent=11 // pred_check
        %p539 = pneg %p225
      $region42: #{mymodel_forward.1} parent=11 // pred_check_branch
        %541 = sbr.rel (%p539) target = $region44
      $region43: #{mymodel_forward.1} parent=11 // pred_region
        _
      $region44: #{mymodel_forward.1} parent=11 // pred_fallthru
        _
      // Predicated region
      $region45: #{mymodel_forward.1} parent=11 // pred_check
        %p542 = pneg %p246
      $region46: #{mymodel_forward.1} parent=11 // pred_check_branch
        %544 = sbr.rel (%p542) target = $region48
      $region47: #{mymodel_forward.1} parent=11 // pred_region
        _
      $region48: #{mymodel_forward.1} parent=11 // pred_fallthru
        _
      // Predicated region
      $region49: #{mymodel_forward.1} parent=11 // pred_check
        %p545 = pneg %p267
      $region50: #{mymodel_forward.1} parent=11 // pred_check_branch
        %547 = sbr.rel (%p545) target = $region52
      $region51: #{mymodel_forward.1} parent=11 // pred_region
        _
      $region52: #{mymodel_forward.1} parent=11 // pred_fallthru
        _
      // Predicated region
      $region53: #{mymodel_forward.1} parent=11 // pred_check
        %p548 = pneg %p288
      $region54: #{mymodel_forward.1} parent=11 // pred_check_branch
        %550 = sbr.rel (%p548) target = $region56
      $region55: #{mymodel_forward.1} parent=11 // pred_region
        _
      $region56: #{mymodel_forward.1} parent=11 // pred_fallthru
        _
      // Predicated region
      $region57: #{mymodel_forward.1} parent=11 // pred_check
        %p551 = pneg %p309
      $region58: #{mymodel_forward.1} parent=11 // pred_check_branch
        %553 = sbr.rel (%p551) target = $region60
      $region59: #{mymodel_forward.1} parent=11 // pred_region
        _
      $region60: #{mymodel_forward.1} parent=11 // pred_fallthru
        _
      // Predicated region
      $region61: #{mymodel_forward.1} parent=11 // pred_check
        %p554 = pneg %p330
      $region62: #{mymodel_forward.1} parent=11 // pred_check_branch
        %556 = sbr.rel (%p554) target = $region64
      $region63: #{mymodel_forward.1} parent=11 // pred_region
        _
      $region64: #{mymodel_forward.1} parent=11 // pred_fallthru
        _
      // Predicated region
      $region65: #{mymodel_forward.1} parent=11 // pred_check
        %p557 = pneg %p351
      $region66: #{mymodel_forward.1} parent=11 // pred_check_branch
        %559 = sbr.rel (%p557) target = $region68
      $region67: #{mymodel_forward.1} parent=11 // pred_region
        _
      $region68: #{mymodel_forward.1} parent=11 // pred_fallthru
        _
      // Predicated region
      $region69: #{mymodel_forward.1} parent=11 // pred_check
        %p560 = pneg %p372
      $region70: #{mymodel_forward.1} parent=11 // pred_check_branch
        %562 = sbr.rel (%p560) target = $region72
      $region71: #{mymodel_forward.1} parent=11 // pred_region
        _
      $region72: #{mymodel_forward.1} parent=11 // pred_fallthru
        _
      // Predicated region
      $region73: #{mymodel_forward.1} parent=11 // pred_check
        %p563 = pneg %p393
      $region74: #{mymodel_forward.1} parent=11 // pred_check_branch
        %565 = sbr.rel (%p563) target = $region76
      $region75: #{mymodel_forward.1} parent=11 // pred_region
        _
      $region76: #{mymodel_forward.1} parent=11 // pred_fallthru
        _
      // Predicated region
      $region77: #{mymodel_forward.1} parent=11 // pred_check
        %p566 = pneg %p414
      $region78: #{mymodel_forward.1} parent=11 // pred_check_branch
        %568 = sbr.rel (%p566) target = $region80
      $region79: #{mymodel_forward.1} parent=11 // pred_region
        _
      $region80: #{mymodel_forward.1} parent=11 // pred_fallthru
        _
      // Predicated region
      $region81: #{mymodel_forward.1} parent=11 // pred_check
        %p569 = pneg %p435
      $region82: #{mymodel_forward.1} parent=11 // pred_check_branch
        %571 = sbr.rel (%p569) target = $region84
      $region83: #{mymodel_forward.1} parent=11 // pred_region
        _
      $region84: #{mymodel_forward.1} parent=11 // pred_fallthru
        _
      // Predicated region
      $region85: #{mymodel_forward.1} parent=11 // pred_check
        %p572 = pneg %p456
      $region86: #{mymodel_forward.1} parent=11 // pred_check_branch
        %574 = sbr.rel (%p572) target = $region88
      $region87: #{mymodel_forward.1} parent=11 // pred_region
        _
      $region88: #{mymodel_forward.1} parent=11 // pred_fallthru
        _
      // Predicated region
      $region89: #{mymodel_forward.1} parent=11 // pred_check
        %p575 = pneg %p477
      $region90: #{mymodel_forward.1} parent=11 // pred_check_branch
        %577 = sbr.rel (%p575) target = $region92
      $region91: #{mymodel_forward.1} parent=11 // pred_region
        _
      $region92: #{mymodel_forward.1} parent=11 // pred_fallthru
        _
    $region12: #{mymodel_forward.1} parent=5 // pred_fallthru
      _
    %p578 = scmp.lt.s32.totalorder %s31, 2
    // Predicated region
    $region93: #{mymodel_forward.1} parent=5 // pred_check
      %p579 = pneg %p578
    $region94: #{mymodel_forward.1} parent=5 // pred_check_branch
      %581 = sbr.rel (%p579) target = $region96
    $region95: #{mymodel_forward.1} parent=5 // pred_region
      // Predicated region
      $region97: #{mymodel_forward.1} parent=95 // pred_check
        %p582 = pneg %p51
      $region98: #{mymodel_forward.1} parent=95 // pred_check_branch
        %584 = sbr.rel (%p582) target = $region100
      $region99: #{mymodel_forward.1} parent=95 // pred_region
        %s585 = smul.u32 32, %s31
        %p586 = scmp.lt.s32.totalorder %s585, 63
        %s587 = scalar_select %p586, %s585, 63
        %s588 = smul.addr %s587, 8
        %s589 = scalar_lea.vmem %s0, %s588
        %s590 = smul.u32 32, %s31
      $region100: #{mymodel_forward.1} parent=95 // pred_fallthru
        _
    $region96: #{mymodel_forward.1} parent=5 // pred_fallthru
      _
    %p591 = scmp.le.s32.totalorder 1, %s31
    %p592 = scmp.lt.s32.totalorder %s31, 3
    %p593 = pnand %p591, %p592
    %p594 = pneg %p593
    // Predicated region
    $region101: #{mymodel_forward.1} parent=5 // pred_check
      _
    $region102: #{mymodel_forward.1} parent=5 // pred_check_branch
      %596 = sbr.rel (%p593) target = $region104
    $region103: #{mymodel_forward.1} parent=5 // pred_region
      %s597 = ssub.s32 %s31, 1
      %s598 = smul.u32 32, %s36
      %p599 = scmp.lt.s32.totalorder %s598, 63
      %s600 = scalar_select %p599, %s598, 63
      %s601 = smul.addr %s600, 8
      %s602 = scalar_lea.vmem %s0, %s601
      %p603 = pneg %p57
      %p604 = pneg %p54
      %p605 = pneg %p78
      %p606 = pneg %p75
      %p607 = pneg %p99
      %p608 = pneg %p96
      %p609 = pneg %p120
      %p610 = pneg %p117
      %p611 = pneg %p141
      %p612 = pneg %p138
      %p613 = pneg %p162
      %p614 = pneg %p159
      %p615 = pneg %p183
      %p616 = pneg %p180
      %p617 = pneg %p204
      %p618 = pneg %p201
      %p619 = pneg %p225
      %p620 = pneg %p222
      %p621 = pneg %p246
      %p622 = pneg %p243
      %p623 = pneg %p267
      %p624 = pneg %p264
      %p625 = pneg %p288
      %p626 = pneg %p285
      %p627 = pneg %p309
      %p628 = pneg %p306
      %p629 = pneg %p330
      %p630 = pneg %p327
      %p631 = pneg %p351
      %p632 = pneg %p348
      %p633 = pneg %p372
      %p634 = pneg %p369
      %p635 = pneg %p393
      %p636 = pneg %p390
      %p637 = pneg %p414
      %p638 = pneg %p411
      %p639 = pneg %p435
      %p640 = pneg %p432
      %p641 = pneg %p456
      %p642 = pneg %p453
      %p643 = pneg %p477
      %p644 = pneg %p474
      %p645 = pneg %p503
      %p646 = pneg %p500
      %s647 = smul.u32 32, %s36
      %p648 = scmp.lt.s32.totalorder %s647, 63
      %s649 = scalar_select %p648, %s647, 63
      %s650 = smul.addr %s649, 8
      %s651 = scalar_lea.vmem %s21, %s650
      %s652 = smul.u32 32, %s36
      %p653 = scmp.lt.s32.totalorder %s652, 63
      %s654 = scalar_select %p653, %s652, 63
      %s655 = smul.addr %s654, 8
      %s656 = scalar_lea.vmem %s0, %s655
      %s657 = smul.u32 32, %s36
      %s658 = smul.u32 32, %s36
      %p659 = scmp.lt.s32.totalorder %s658, 63
      %s660 = scalar_select %p659, %s658, 63
      %s661 = smul.addr %s660, 8
      %s662 = scalar_lea.vmem %s21, %s661
      %s663 = smul.u32 32, %s36
      %v664 = vld [vmem:[%s656] sm:$0xff]
      %v665 = vld [vmem:[%s656 + $0x8] sm:$0xff]
      %v666 = vld [vmem:[%s656 + $0x10] sm:$0xff]
      %v667 = vld [vmem:[%s656 + $0x18] sm:$0xff]
      %v668 = vld [vmem:[%s656 + $0x20] sm:$0xff]
      %v669 = vld [vmem:[%s656 + $0x28] sm:$0xff]
      %v670 = vld [vmem:[%s656 + $0x30] sm:$0xff]
      %v671 = vld [vmem:[%s656 + $0x38] sm:$0xff]
      %v672 = vld [vmem:[%s656 + $0x40] sm:$0xff]
      %v673 = vld [vmem:[%s656 + $0x48] sm:$0xff]
      %v674 = vld [vmem:[%s656 + $0x50] sm:$0xff]
      %v675 = vld [vmem:[%s656 + $0x58] sm:$0xff]
      %v676 = vld [vmem:[%s656 + $0x60] sm:$0xff]
      %v677 = vld [vmem:[%s656 + $0x68] sm:$0xff]
      %v678 = vld [vmem:[%s656 + $0x70] sm:$0xff]
      %v679 = vld [vmem:[%s656 + $0x78] sm:$0xff]
      %v680 = vld [vmem:[%s656 + $0x80] sm:$0xff]
      %v681 = vld [vmem:[%s656 + $0x88] sm:$0xff]
      %v682 = vld [vmem:[%s656 + $0x90] sm:$0xff]
      %v683 = vld [vmem:[%s656 + $0x98] sm:$0xff]
      %v684 = vld [vmem:[%s656 + $0xa0] sm:$0xff]
      %v685 = vld [vmem:[%s656 + $0xa8] sm:$0xff]
      %v686 = vld [vmem:[%s656 + $0xb0] sm:$0xff]
      %v687 = vld [vmem:[%s656 + $0xb8] sm:$0xff]
      %v688 = vld [vmem:[%s656 + $0xc0] sm:$0xff]
      %v689 = vld [vmem:[%s656 + $0xc8] sm:$0xff]
      %v690 = vld [vmem:[%s656 + $0xd0] sm:$0xff]
      %v691 = vld [vmem:[%s656 + $0xd8] sm:$0xff]
      %v692 = vld [vmem:[%s656 + $0xe0] sm:$0xff]
      %v693 = vld [vmem:[%s656 + $0xe8] sm:$0xff]
      %v694 = vld [vmem:[%s656 + $0xf0] sm:$0xff]
      %v695 = vld [vmem:[%s656 + $0xf8] sm:$0xff]
      %v696 = vld [vmem:[%s1] sm:$0xff]
      %v697 = vld [vmem:[%s1 + $0x8] sm:$0xff]
      %v698 = vld [vmem:[%s1 + $0x10] sm:$0x1f]
      %v699 = vld [vmem:[%s1 + $0x18] sm:$0x1f]
      %v700 = vld [vmem:[%s2] sm:$0x3]
      %v702 = vlaneseq
      %v703 = vshrl.u32 %v702, 7
      %v704 = vsub.s32 0, %v703
      %v705 = vrot.slane %v700, %v704
      %v706 = vlaneseq
      %v707 = vshrl.u32 %v706, 7
      %v708 = vsub.s32 1, %v707
      %v709 = vrot.slane %v700, %v708
      %vm712 = vcmask 105472
      %v714 = vsel %vm712, %v664, 0
      %v717 = vsel %vm712, %v665, 0
      %v720 = vsel %vm712, %v666, 0
      %v723 = vsel %vm712, %v667, 0
      %v726 = vsel %vm712, %v668, 0
      %v729 = vsel %vm712, %v669, 0
      %v732 = vsel %vm712, %v670, 0
      %v735 = vsel %vm712, %v671, 0
      %v738 = vsel %vm712, %v672, 0
      %v741 = vsel %vm712, %v673, 0
      %v744 = vsel %vm712, %v674, 0
      %v747 = vsel %vm712, %v675, 0
      %v750 = vsel %vm712, %v676, 0
      %v753 = vsel %vm712, %v677, 0
      %v756 = vsel %vm712, %v678, 0
      %v759 = vsel %vm712, %v679, 0
      %v762 = vsel %vm712, %v680, 0
      %v765 = vsel %vm712, %v681, 0
      %v768 = vsel %vm712, %v682, 0
      %v771 = vsel %vm712, %v683, 0
      %v774 = vsel %vm712, %v684, 0
      %v777 = vsel %vm712, %v685, 0
      %v780 = vsel %vm712, %v686, 0
      %v783 = vsel %vm712, %v687, 0
      %v786 = vsel %vm712, %v688, 0
      %v789 = vsel %vm712, %v689, 0
      %v792 = vsel %vm712, %v690, 0
      %v795 = vsel %vm712, %v691, 0
      %v798 = vsel %vm712, %v692, 0
      %v801 = vsel %vm712, %v693, 0
      %v804 = vsel %vm712, %v694, 0
      %v807 = vsel %vm712, %v695, 0
      %vm809 = vcmask 1044480
      %v811 = vsel %vm809, %v698, 0
      %v814 = vsel %vm809, %v699, 0
      %816 = vmatprep.subr.mxu0 0.0
      %817 = vmatpush1.msra.mxu0 0.0
      %818 = vmatprep.subr.mxu0 0.0
      %819 = vmatpush1.msra.mxu0 0.0
      %820 = vmatprep.subr.mxu0 0.0
      %821 = vmatpush1.msra.mxu0 0.0
      %822 = vmatprep.subr.mxu0 0.0
      %823 = vmatpush1.msra.mxu0 0.0
      %824 = vmatprep.subr.mxu0 0.0
      %825 = vmatpush1.msra.mxu0 0.0
      %826 = vmatprep.subr.mxu0 0.0
      %827 = vmatpush1.msra.mxu0 0.0
      %828 = vmatprep.subr.mxu0 0.0
      %829 = vmatpush1.msra.mxu0 0.0
      %830 = vmatprep.subr.mxu0 0.0
      %831 = vmatpush1.msra.mxu0 0.0
      %832 = vmatprep.subr.mxu0 0.0
      %833 = vmatpush1.msra.mxu0 0.0
      %834 = vmatprep.subr.mxu0 0.0
      %835 = vmatpush1.msra.mxu0 0.0
      %836 = vmatprep.subr.mxu0 0.0
      %837 = vmatpush1.msra.mxu0 0.0
      %838 = vmatprep.subr.mxu0 0.0
      %839 = vmatpush1.msra.mxu0 0.0
      %840 = vmatprep.subr.mxu0 0.0
      %841 = vmatpush1.msra.mxu0 0.0
      %842 = vmatprep.subr.mxu0 0.0
      %843 = vmatpush1.msra.mxu0 0.0
      %844 = vmatprep.subr.mxu0 %v814
      %845 = vmatpush1.msra.mxu0 %v811
      %846 = vmatprep.subr.mxu0 %v697
      %847 = vmatpush1.msra.mxu0 %v696
      %848 = vmatprep.subr.mxu0 0.0
      %849 = vmatpush2.msra.mxu0 0.0
      %850 = vmatprep.subr.mxu0 0.0
      %851 = vmatpush2.msra.mxu0 0.0
      %852 = vmatprep.subr.mxu0 0.0
      %853 = vmatpush2.msra.mxu0 0.0
      %854 = vmatprep.subr.mxu0 0.0
      %855 = vmatpush2.msra.mxu0 0.0
      %856 = vmatprep.subr.mxu0 0.0
      %857 = vmatpush2.msra.mxu0 0.0
      %858 = vmatprep.subr.mxu0 0.0
      %859 = vmatpush2.msra.mxu0 0.0
      %860 = vmatprep.subr.mxu0 0.0
      %861 = vmatpush2.msra.mxu0 0.0
      %862 = vmatprep.subr.mxu0 0.0
      %863 = vmatpush2.msra.mxu0 0.0
      %864 = vmatprep.subr.mxu0 0.0
      %865 = vmatpush2.msra.mxu0 0.0
      %866 = vmatprep.subr.mxu0 0.0
      %867 = vmatpush2.msra.mxu0 0.0
      %868 = vmatprep.subr.mxu0 0.0
      %869 = vmatpush2.msra.mxu0 0.0
      %870 = vmatprep.subr.mxu0 0.0
      %871 = vmatpush2.msra.mxu0 0.0
      %872 = vmatprep.subr.mxu0 0.0
      %873 = vmatpush2.msra.mxu0 0.0
      %874 = vmatprep.subr.mxu0 0.0
      %875 = vmatpush2.msra.mxu0 0.0
      %876 = vmatprep.subr.mxu0 0.0
      %877 = vmatpush2.msra.mxu0 0.0
      %878 = vmatprep.subr.mxu0 0.0
      %879 = vmatpush2.msra.mxu0 0.0
      %880 = vmatprep.mubr.f32.mxu0 0.0
      %881 = vmatmul.mubr.f32.gmra.mxu0 %v714
      %v882 = vpop.f32.mrf.mxu0
      %v883 = vadd.f32 %v705, %v882
      %v884 = vpop.f32.mrf.mxu0
      %v885 = vadd.f32 %v709, %v884
      %886 = vmatprep.mubr.f32.mxu0 0.0
      %887 = vmatmul.mubr.f32.gmra.mxu0 %v717
      %v888 = vpop.f32.mrf.mxu0
      %v889 = vadd.f32 %v705, %v888
      %v890 = vpop.f32.mrf.mxu0
      %v891 = vadd.f32 %v709, %v890
      %892 = vmatprep.mubr.f32.mxu0 0.0
      %893 = vmatmul.mubr.f32.gmra.mxu0 %v720
      %v894 = vpop.f32.mrf.mxu0
      %v895 = vadd.f32 %v705, %v894
      %v896 = vpop.f32.mrf.mxu0
      %v897 = vadd.f32 %v709, %v896
      %898 = vmatprep.mubr.f32.mxu0 0.0
      %899 = vmatmul.mubr.f32.gmra.mxu0 %v723
      %v900 = vpop.f32.mrf.mxu0
      %v901 = vadd.f32 %v705, %v900
      %v902 = vpop.f32.mrf.mxu0
      %v903 = vadd.f32 %v709, %v902
      %904 = vmatprep.mubr.f32.mxu0 0.0
      %905 = vmatmul.mubr.f32.gmra.mxu0 %v726
      %v906 = vpop.f32.mrf.mxu0
      %v907 = vadd.f32 %v705, %v906
      %v908 = vpop.f32.mrf.mxu0
      %v909 = vadd.f32 %v709, %v908
      %910 = vmatprep.mubr.f32.mxu0 0.0
      %911 = vmatmul.mubr.f32.gmra.mxu0 %v729
      %v912 = vpop.f32.mrf.mxu0
      %v913 = vadd.f32 %v705, %v912
      %v914 = vpop.f32.mrf.mxu0
      %v915 = vadd.f32 %v709, %v914
      %916 = vmatprep.mubr.f32.mxu0 0.0
      %917 = vmatmul.mubr.f32.gmra.mxu0 %v732
      %v918 = vpop.f32.mrf.mxu0
      %v919 = vadd.f32 %v705, %v918
      %v920 = vpop.f32.mrf.mxu0
      %v921 = vadd.f32 %v709, %v920
      %922 = vmatprep.mubr.f32.mxu0 0.0
      %923 = vmatmul.mubr.f32.gmra.mxu0 %v735
      %v924 = vpop.f32.mrf.mxu0
      %v925 = vadd.f32 %v705, %v924
      %v926 = vpop.f32.mrf.mxu0
      %v927 = vadd.f32 %v709, %v926
      %928 = vmatprep.mubr.f32.mxu0 0.0
      %929 = vmatmul.mubr.f32.gmra.mxu0 %v738
      %v930 = vpop.f32.mrf.mxu0
      %v931 = vadd.f32 %v705, %v930
      %v932 = vpop.f32.mrf.mxu0
      %v933 = vadd.f32 %v709, %v932
      %934 = vmatprep.mubr.f32.mxu0 0.0
      %935 = vmatmul.mubr.f32.gmra.mxu0 %v741
      %v936 = vpop.f32.mrf.mxu0
      %v937 = vadd.f32 %v705, %v936
      %v938 = vpop.f32.mrf.mxu0
      %v939 = vadd.f32 %v709, %v938
      %940 = vmatprep.mubr.f32.mxu0 0.0
      %941 = vmatmul.mubr.f32.gmra.mxu0 %v744
      %v942 = vpop.f32.mrf.mxu0
      %v943 = vadd.f32 %v705, %v942
      %v944 = vpop.f32.mrf.mxu0
      %v945 = vadd.f32 %v709, %v944
      %946 = vmatprep.mubr.f32.mxu0 0.0
      %947 = vmatmul.mubr.f32.gmra.mxu0 %v747
      %v948 = vpop.f32.mrf.mxu0
      %v949 = vadd.f32 %v705, %v948
      %v950 = vpop.f32.mrf.mxu0
      %v951 = vadd.f32 %v709, %v950
      %952 = vmatprep.mubr.f32.mxu0 0.0
      %953 = vmatmul.mubr.f32.gmra.mxu0 %v750
      %v954 = vpop.f32.mrf.mxu0
      %v955 = vadd.f32 %v705, %v954
      %v956 = vpop.f32.mrf.mxu0
      %v957 = vadd.f32 %v709, %v956
      %958 = vmatprep.mubr.f32.mxu0 0.0
      %959 = vmatmul.mubr.f32.gmra.mxu0 %v753
      %v960 = vpop.f32.mrf.mxu0
      %v961 = vadd.f32 %v705, %v960
      %v962 = vpop.f32.mrf.mxu0
      %v963 = vadd.f32 %v709, %v962
      %964 = vmatprep.mubr.f32.mxu0 0.0
      %965 = vmatmul.mubr.f32.gmra.mxu0 %v756
      %v966 = vpop.f32.mrf.mxu0
      %v967 = vadd.f32 %v705, %v966
      %v968 = vpop.f32.mrf.mxu0
      %v969 = vadd.f32 %v709, %v968
      %970 = vmatprep.mubr.f32.mxu0 0.0
      %971 = vmatmul.mubr.f32.gmra.mxu0 %v759
      %v972 = vpop.f32.mrf.mxu0
      %v973 = vadd.f32 %v705, %v972
      %v974 = vpop.f32.mrf.mxu0
      %v975 = vadd.f32 %v709, %v974
      %976 = vmatprep.mubr.f32.mxu0 0.0
      %977 = vmatmul.mubr.f32.gmra.mxu0 %v762
      %v978 = vpop.f32.mrf.mxu0
      %v979 = vadd.f32 %v705, %v978
      %v980 = vpop.f32.mrf.mxu0
      %v981 = vadd.f32 %v709, %v980
      %982 = vmatprep.mubr.f32.mxu0 0.0
      %983 = vmatmul.mubr.f32.gmra.mxu0 %v765
      %v984 = vpop.f32.mrf.mxu0
      %v985 = vadd.f32 %v705, %v984
      %v986 = vpop.f32.mrf.mxu0
      %v987 = vadd.f32 %v709, %v986
      %988 = vmatprep.mubr.f32.mxu0 0.0
      %989 = vmatmul.mubr.f32.gmra.mxu0 %v768
      %v990 = vpop.f32.mrf.mxu0
      %v991 = vadd.f32 %v705, %v990
      %v992 = vpop.f32.mrf.mxu0
      %v993 = vadd.f32 %v709, %v992
      %994 = vmatprep.mubr.f32.mxu0 0.0
      %995 = vmatmul.mubr.f32.gmra.mxu0 %v771
      %v996 = vpop.f32.mrf.mxu0
      %v997 = vadd.f32 %v705, %v996
      %v998 = vpop.f32.mrf.mxu0
      %v999 = vadd.f32 %v709, %v998
      %1000 = vmatprep.mubr.f32.mxu0 0.0
      %1001 = vmatmul.mubr.f32.gmra.mxu0 %v774
      %v1002 = vpop.f32.mrf.mxu0
      %v1003 = vadd.f32 %v705, %v1002
      %v1004 = vpop.f32.mrf.mxu0
      %v1005 = vadd.f32 %v709, %v1004
      %1006 = vmatprep.mubr.f32.mxu0 0.0
      %1007 = vmatmul.mubr.f32.gmra.mxu0 %v777
      %v1008 = vpop.f32.mrf.mxu0
      %v1009 = vadd.f32 %v705, %v1008
      %v1010 = vpop.f32.mrf.mxu0
      %v1011 = vadd.f32 %v709, %v1010
      %1012 = vmatprep.mubr.f32.mxu0 0.0
      %1013 = vmatmul.mubr.f32.gmra.mxu0 %v780
      %v1014 = vpop.f32.mrf.mxu0
      %v1015 = vadd.f32 %v705, %v1014
      %v1016 = vpop.f32.mrf.mxu0
      %v1017 = vadd.f32 %v709, %v1016
      %1018 = vmatprep.mubr.f32.mxu0 0.0
      %1019 = vmatmul.mubr.f32.gmra.mxu0 %v783
      %v1020 = vpop.f32.mrf.mxu0
      %v1021 = vadd.f32 %v705, %v1020
      %v1022 = vpop.f32.mrf.mxu0
      %v1023 = vadd.f32 %v709, %v1022
      %1024 = vmatprep.mubr.f32.mxu0 0.0
      %1025 = vmatmul.mubr.f32.gmra.mxu0 %v786
      %v1026 = vpop.f32.mrf.mxu0
      %v1027 = vadd.f32 %v705, %v1026
      %v1028 = vpop.f32.mrf.mxu0
      %v1029 = vadd.f32 %v709, %v1028
      %1030 = vmatprep.mubr.f32.mxu0 0.0
      %1031 = vmatmul.mubr.f32.gmra.mxu0 %v789
      %v1032 = vpop.f32.mrf.mxu0
      %v1033 = vadd.f32 %v705, %v1032
      %v1034 = vpop.f32.mrf.mxu0
      %v1035 = vadd.f32 %v709, %v1034
      %1036 = vmatprep.mubr.f32.mxu0 0.0
      %1037 = vmatmul.mubr.f32.gmra.mxu0 %v792
      %v1038 = vpop.f32.mrf.mxu0
      %v1039 = vadd.f32 %v705, %v1038
      %v1040 = vpop.f32.mrf.mxu0
      %v1041 = vadd.f32 %v709, %v1040
      %1042 = vmatprep.mubr.f32.mxu0 0.0
      %1043 = vmatmul.mubr.f32.gmra.mxu0 %v795
      %v1044 = vpop.f32.mrf.mxu0
      %v1045 = vadd.f32 %v705, %v1044
      %v1046 = vpop.f32.mrf.mxu0
      %v1047 = vadd.f32 %v709, %v1046
      %1048 = vmatprep.mubr.f32.mxu0 0.0
      %1049 = vmatmul.mubr.f32.gmra.mxu0 %v798
      %v1050 = vpop.f32.mrf.mxu0
      %v1051 = vadd.f32 %v705, %v1050
      %v1052 = vpop.f32.mrf.mxu0
      %v1053 = vadd.f32 %v709, %v1052
      %1054 = vmatprep.mubr.f32.mxu0 0.0
      %1055 = vmatmul.mubr.f32.gmra.mxu0 %v801
      %v1056 = vpop.f32.mrf.mxu0
      %v1057 = vadd.f32 %v705, %v1056
      %v1058 = vpop.f32.mrf.mxu0
      %v1059 = vadd.f32 %v709, %v1058
      %1060 = vmatprep.mubr.f32.mxu0 0.0
      %1061 = vmatmul.mubr.f32.gmra.mxu0 %v804
      %v1062 = vpop.f32.mrf.mxu0
      %v1063 = vadd.f32 %v705, %v1062
      %v1064 = vpop.f32.mrf.mxu0
      %v1065 = vadd.f32 %v709, %v1064
      %1066 = vmatprep.mubr.f32.mxu0 0.0
      %1067 = vmatmul.mubr.f32.gmra.mxu0 %v807
      %v1068 = vpop.f32.mrf.mxu0
      %v1069 = vadd.f32 %v705, %v1068
      %v1070 = vpop.f32.mrf.mxu0
      %v1071 = vadd.f32 %v709, %v1070
      %1072 = vdwg.mxu0
      %v1073 = vmax.f32 %v883, 0.0
      %v1074 = vmax.f32 %v885, 0.0
      %v1075 = vmax.f32 %v889, 0.0
      %v1076 = vmax.f32 %v891, 0.0
      %v1077 = vmax.f32 %v895, 0.0
      %v1078 = vmax.f32 %v897, 0.0
      %v1079 = vmax.f32 %v901, 0.0
      %v1080 = vmax.f32 %v903, 0.0
      %v1081 = vmax.f32 %v907, 0.0
      %v1082 = vmax.f32 %v909, 0.0
      %v1083 = vmax.f32 %v913, 0.0
      %v1084 = vmax.f32 %v915, 0.0
      %v1085 = vmax.f32 %v919, 0.0
      %v1086 = vmax.f32 %v921, 0.0
      %v1087 = vmax.f32 %v925, 0.0
      %v1088 = vmax.f32 %v927, 0.0
      %v1089 = vmax.f32 %v931, 0.0
      %v1090 = vmax.f32 %v933, 0.0
      %v1091 = vmax.f32 %v937, 0.0
      %v1092 = vmax.f32 %v939, 0.0
      %v1093 = vmax.f32 %v943, 0.0
      %v1094 = vmax.f32 %v945, 0.0
      %v1095 = vmax.f32 %v949, 0.0
      %v1096 = vmax.f32 %v951, 0.0
      %v1097 = vmax.f32 %v955, 0.0
      %v1098 = vmax.f32 %v957, 0.0
      %v1099 = vmax.f32 %v961, 0.0
      %v1100 = vmax.f32 %v963, 0.0
      %v1101 = vmax.f32 %v967, 0.0
      %v1102 = vmax.f32 %v969, 0.0
      %v1103 = vmax.f32 %v973, 0.0
      %v1104 = vmax.f32 %v975, 0.0
      %v1105 = vmax.f32 %v979, 0.0
      %v1106 = vmax.f32 %v981, 0.0
      %v1107 = vmax.f32 %v985, 0.0
      %v1108 = vmax.f32 %v987, 0.0
      %v1109 = vmax.f32 %v991, 0.0
      %v1110 = vmax.f32 %v993, 0.0
      %v1111 = vmax.f32 %v997, 0.0
      %v1112 = vmax.f32 %v999, 0.0
      %v1113 = vmax.f32 %v1003, 0.0
      %v1114 = vmax.f32 %v1005, 0.0
      %v1115 = vmax.f32 %v1009, 0.0
      %v1116 = vmax.f32 %v1011, 0.0
      %v1117 = vmax.f32 %v1015, 0.0
      %v1118 = vmax.f32 %v1017, 0.0
      %v1119 = vmax.f32 %v1021, 0.0
      %v1120 = vmax.f32 %v1023, 0.0
      %v1121 = vmax.f32 %v1027, 0.0
      %v1122 = vmax.f32 %v1029, 0.0
      %v1123 = vmax.f32 %v1033, 0.0
      %v1124 = vmax.f32 %v1035, 0.0
      %v1125 = vmax.f32 %v1039, 0.0
      %v1126 = vmax.f32 %v1041, 0.0
      %v1127 = vmax.f32 %v1045, 0.0
      %v1128 = vmax.f32 %v1047, 0.0
      %v1129 = vmax.f32 %v1051, 0.0
      %v1130 = vmax.f32 %v1053, 0.0
      %v1131 = vmax.f32 %v1057, 0.0
      %v1132 = vmax.f32 %v1059, 0.0
      %v1133 = vmax.f32 %v1063, 0.0
      %v1134 = vmax.f32 %v1065, 0.0
      %v1135 = vmax.f32 %v1069, 0.0
      %v1136 = vmax.f32 %v1071, 0.0
      %v1137 = vld [vmem:[%s3] sm:$0xff]
      %v1138 = vld [vmem:[%s3 + $0x8] sm:$0xff]
      %v1139 = vld [vmem:[%s3 + $0x10] sm:$0xff]
      %v1140 = vld [vmem:[%s3 + $0x18] sm:$0xff]
      %v1141 = vld [vmem:[%s3 + $0x20] sm:$0xff]
      %v1142 = vld [vmem:[%s3 + $0x28] sm:$0xff]
      %v1143 = vld [vmem:[%s3 + $0x30] sm:$0xff]
      %v1144 = vld [vmem:[%s3 + $0x38] sm:$0xff]
      %v1145 = vld [vmem:[%s3 + $0x40] sm:$0xff]
      %v1146 = vld [vmem:[%s3 + $0x48] sm:$0xff]
      %v1147 = vld [vmem:[%s3 + $0x50] sm:$0xff]
      %v1148 = vld [vmem:[%s3 + $0x58] sm:$0xff]
      %v1149 = vld [vmem:[%s3 + $0x60] sm:$0xff]
      %v1150 = vld [vmem:[%s3 + $0x68] sm:$0xff]
      %v1151 = vld [vmem:[%s3 + $0x70] sm:$0xff]
      %v1152 = vld [vmem:[%s3 + $0x78] sm:$0xff]
      %v1153 = vld [vmem:[%s3 + $0x80] sm:$0xff]
      %v1154 = vld [vmem:[%s3 + $0x88] sm:$0xff]
      %v1155 = vld [vmem:[%s3 + $0x90] sm:$0xff]
      %v1156 = vld [vmem:[%s3 + $0x98] sm:$0xff]
      %v1157 = vld [vmem:[%s3 + $0xa0] sm:$0xff]
      %v1158 = vld [vmem:[%s3 + $0xa8] sm:$0xff]
      %v1159 = vld [vmem:[%s3 + $0xb0] sm:$0xff]
      %v1160 = vld [vmem:[%s3 + $0xb8] sm:$0xff]
      %v1161 = vld [vmem:[%s3 + $0xc0] sm:$0xff]
      %v1162 = vld [vmem:[%s3 + $0xc8] sm:$0xff]
      %v1163 = vld [vmem:[%s3 + $0xd0] sm:$0xff]
      %v1164 = vld [vmem:[%s3 + $0xd8] sm:$0xff]
      %v1165 = vld [vmem:[%s3 + $0xe0] sm:$0xff]
      %v1166 = vld [vmem:[%s3 + $0xe8] sm:$0xff]
      %v1167 = vld [vmem:[%s3 + $0xf0] sm:$0xff]
      %v1168 = vld [vmem:[%s3 + $0xf8] sm:$0xff]
      %v1169 = vld [vmem:[%s4] sm:$0x1]
      %v1171 = vlaneseq
      %v1172 = vshrl.u32 %v1171, 7
      %v1173 = vsub.s32 0, %v1172
      %v1174 = vrot.slane %v1169, %v1173
      %1176 = vmatprep.subr.mxu0 0.0
      %1177 = vmatpush1.msra.mxu0 %v1152
      %1178 = vmatprep.subr.mxu0 0.0
      %1179 = vmatpush1.msra.mxu0 %v1151
      %1180 = vmatprep.subr.mxu0 0.0
      %1181 = vmatpush1.msra.mxu0 %v1150
      %1182 = vmatprep.subr.mxu0 0.0
      %1183 = vmatpush1.msra.mxu0 %v1149
      %1184 = vmatprep.subr.mxu0 0.0
      %1185 = vmatpush1.msra.mxu0 %v1148
      %1186 = vmatprep.subr.mxu0 0.0
      %1187 = vmatpush1.msra.mxu0 %v1147
      %1188 = vmatprep.subr.mxu0 0.0
      %1189 = vmatpush1.msra.mxu0 %v1146
      %1190 = vmatprep.subr.mxu0 0.0
      %1191 = vmatpush1.msra.mxu0 %v1145
      %1192 = vmatprep.subr.mxu0 0.0
      %1193 = vmatpush1.msra.mxu0 %v1144
      %1194 = vmatprep.subr.mxu0 0.0
      %1195 = vmatpush1.msra.mxu0 %v1143
      %1196 = vmatprep.subr.mxu0 0.0
      %1197 = vmatpush1.msra.mxu0 %v1142
      %1198 = vmatprep.subr.mxu0 0.0
      %1199 = vmatpush1.msra.mxu0 %v1141
      %1200 = vmatprep.subr.mxu0 0.0
      %1201 = vmatpush1.msra.mxu0 %v1140
      %1202 = vmatprep.subr.mxu0 0.0
      %1203 = vmatpush1.msra.mxu0 %v1139
      %1204 = vmatprep.subr.mxu0 0.0
      %1205 = vmatpush1.msra.mxu0 %v1138
      %1206 = vmatprep.subr.mxu0 0.0
      %1207 = vmatpush1.msra.mxu0 %v1137
      %1208 = vmatprep.subr.mxu0 0.0
      %1209 = vmatpush2.msra.mxu0 %v1168
      %1210 = vmatprep.subr.mxu0 0.0
      %1211 = vmatpush2.msra.mxu0 %v1167
      %1212 = vmatprep.subr.mxu0 0.0
      %1213 = vmatpush2.msra.mxu0 %v1166
      %1214 = vmatprep.subr.mxu0 0.0
      %1215 = vmatpush2.msra.mxu0 %v1165
      %1216 = vmatprep.subr.mxu0 0.0
      %1217 = vmatpush2.msra.mxu0 %v1164
      %1218 = vmatprep.subr.mxu0 0.0
      %1219 = vmatpush2.msra.mxu0 %v1163
      %1220 = vmatprep.subr.mxu0 0.0
      %1221 = vmatpush2.msra.mxu0 %v1162
      %1222 = vmatprep.subr.mxu0 0.0
      %1223 = vmatpush2.msra.mxu0 %v1161
      %1224 = vmatprep.subr.mxu0 0.0
      %1225 = vmatpush2.msra.mxu0 %v1160
      %1226 = vmatprep.subr.mxu0 0.0
      %1227 = vmatpush2.msra.mxu0 %v1159
      %1228 = vmatprep.subr.mxu0 0.0
      %1229 = vmatpush2.msra.mxu0 %v1158
      %1230 = vmatprep.subr.mxu0 0.0
      %1231 = vmatpush2.msra.mxu0 %v1157
      %1232 = vmatprep.subr.mxu0 0.0
      %1233 = vmatpush2.msra.mxu0 %v1156
      %1234 = vmatprep.subr.mxu0 0.0
      %1235 = vmatpush2.msra.mxu0 %v1155
      %1236 = vmatprep.subr.mxu0 0.0
      %1237 = vmatpush2.msra.mxu0 %v1154
      %1238 = vmatprep.subr.mxu0 0.0
      %1239 = vmatpush2.msra.mxu0 %v1153
      %1240 = vmatprep.mubr.f32.mxu0 %v1074
      %1241 = vmatmul.mubr.f32.gmra.mxu0 %v1073
      %v1242 = vpop.f32.mrf.mxu0
      %v1243 = vadd.f32 %v1174, %v1242
      %v1244 = vpop.f32.mrf.mxu0
      %1245 = vmatprep.mubr.f32.mxu0 %v1076
      %1246 = vmatmul.mubr.f32.gmra.mxu0 %v1075
      %v1247 = vpop.f32.mrf.mxu0
      %v1248 = vadd.f32 %v1174, %v1247
      %v1249 = vpop.f32.mrf.mxu0
      %1250 = vmatprep.mubr.f32.mxu0 %v1078
      %1251 = vmatmul.mubr.f32.gmra.mxu0 %v1077
      %v1252 = vpop.f32.mrf.mxu0
      %v1253 = vadd.f32 %v1174, %v1252
      %v1254 = vpop.f32.mrf.mxu0
      %1255 = vmatprep.mubr.f32.mxu0 %v1080
      %1256 = vmatmul.mubr.f32.gmra.mxu0 %v1079
      %v1257 = vpop.f32.mrf.mxu0
      %v1258 = vadd.f32 %v1174, %v1257
      %v1259 = vpop.f32.mrf.mxu0
      %1260 = vmatprep.mubr.f32.mxu0 %v1082
      %1261 = vmatmul.mubr.f32.gmra.mxu0 %v1081
      %v1262 = vpop.f32.mrf.mxu0
      %v1263 = vadd.f32 %v1174, %v1262
      %v1264 = vpop.f32.mrf.mxu0
      %1265 = vmatprep.mubr.f32.mxu0 %v1084
      %1266 = vmatmul.mubr.f32.gmra.mxu0 %v1083
      %v1267 = vpop.f32.mrf.mxu0
      %v1268 = vadd.f32 %v1174, %v1267
      %v1269 = vpop.f32.mrf.mxu0
      %1270 = vmatprep.mubr.f32.mxu0 %v1086
      %1271 = vmatmul.mubr.f32.gmra.mxu0 %v1085
      %v1272 = vpop.f32.mrf.mxu0
      %v1273 = vadd.f32 %v1174, %v1272
      %v1274 = vpop.f32.mrf.mxu0
      %1275 = vmatprep.mubr.f32.mxu0 %v1088
      %1276 = vmatmul.mubr.f32.gmra.mxu0 %v1087
      %v1277 = vpop.f32.mrf.mxu0
      %v1278 = vadd.f32 %v1174, %v1277
      %v1279 = vpop.f32.mrf.mxu0
      %1280 = vmatprep.mubr.f32.mxu0 %v1090
      %1281 = vmatmul.mubr.f32.gmra.mxu0 %v1089
      %v1282 = vpop.f32.mrf.mxu0
      %v1283 = vadd.f32 %v1174, %v1282
      %v1284 = vpop.f32.mrf.mxu0
      %1285 = vmatprep.mubr.f32.mxu0 %v1092
      %1286 = vmatmul.mubr.f32.gmra.mxu0 %v1091
      %v1287 = vpop.f32.mrf.mxu0
      %v1288 = vadd.f32 %v1174, %v1287
      %v1289 = vpop.f32.mrf.mxu0
      %1290 = vmatprep.mubr.f32.mxu0 %v1094
      %1291 = vmatmul.mubr.f32.gmra.mxu0 %v1093
      %v1292 = vpop.f32.mrf.mxu0
      %v1293 = vadd.f32 %v1174, %v1292
      %v1294 = vpop.f32.mrf.mxu0
      %1295 = vmatprep.mubr.f32.mxu0 %v1096
      %1296 = vmatmul.mubr.f32.gmra.mxu0 %v1095
      %v1297 = vpop.f32.mrf.mxu0
      %v1298 = vadd.f32 %v1174, %v1297
      %v1299 = vpop.f32.mrf.mxu0
      %1300 = vmatprep.mubr.f32.mxu0 %v1098
      %1301 = vmatmul.mubr.f32.gmra.mxu0 %v1097
      %v1302 = vpop.f32.mrf.mxu0
      %v1303 = vadd.f32 %v1174, %v1302
      %v1304 = vpop.f32.mrf.mxu0
      %1305 = vmatprep.mubr.f32.mxu0 %v1100
      %1306 = vmatmul.mubr.f32.gmra.mxu0 %v1099
      %v1307 = vpop.f32.mrf.mxu0
      %v1308 = vadd.f32 %v1174, %v1307
      %v1309 = vpop.f32.mrf.mxu0
      %1310 = vmatprep.mubr.f32.mxu0 %v1102
      %1311 = vmatmul.mubr.f32.gmra.mxu0 %v1101
      %v1312 = vpop.f32.mrf.mxu0
      %v1313 = vadd.f32 %v1174, %v1312
      %v1314 = vpop.f32.mrf.mxu0
      %1315 = vmatprep.mubr.f32.mxu0 %v1104
      %1316 = vmatmul.mubr.f32.gmra.mxu0 %v1103
      %v1317 = vpop.f32.mrf.mxu0
      %v1318 = vadd.f32 %v1174, %v1317
      %v1319 = vpop.f32.mrf.mxu0
      %1320 = vmatprep.mubr.f32.mxu0 %v1106
      %1321 = vmatmul.mubr.f32.gmra.mxu0 %v1105
      %v1322 = vpop.f32.mrf.mxu0
      %v1323 = vadd.f32 %v1174, %v1322
      %v1324 = vpop.f32.mrf.mxu0
      %1325 = vmatprep.mubr.f32.mxu0 %v1108
      %1326 = vmatmul.mubr.f32.gmra.mxu0 %v1107
      %v1327 = vpop.f32.mrf.mxu0
      %v1328 = vadd.f32 %v1174, %v1327
      %v1329 = vpop.f32.mrf.mxu0
      %1330 = vmatprep.mubr.f32.mxu0 %v1110
      %1331 = vmatmul.mubr.f32.gmra.mxu0 %v1109
      %v1332 = vpop.f32.mrf.mxu0
      %v1333 = vadd.f32 %v1174, %v1332
      %v1334 = vpop.f32.mrf.mxu0
      %1335 = vmatprep.mubr.f32.mxu0 %v1112
      %1336 = vmatmul.mubr.f32.gmra.mxu0 %v1111
      %v1337 = vpop.f32.mrf.mxu0
      %v1338 = vadd.f32 %v1174, %v1337
      %v1339 = vpop.f32.mrf.mxu0
      %1340 = vmatprep.mubr.f32.mxu0 %v1114
      %1341 = vmatmul.mubr.f32.gmra.mxu0 %v1113
      %v1342 = vpop.f32.mrf.mxu0
      %v1343 = vadd.f32 %v1174, %v1342
      %v1344 = vpop.f32.mrf.mxu0
      %1345 = vmatprep.mubr.f32.mxu0 %v1116
      %1346 = vmatmul.mubr.f32.gmra.mxu0 %v1115
      %v1347 = vpop.f32.mrf.mxu0
      %v1348 = vadd.f32 %v1174, %v1347
      %v1349 = vpop.f32.mrf.mxu0
      %1350 = vmatprep.mubr.f32.mxu0 %v1118
      %1351 = vmatmul.mubr.f32.gmra.mxu0 %v1117
      %v1352 = vpop.f32.mrf.mxu0
      %v1353 = vadd.f32 %v1174, %v1352
      %v1354 = vpop.f32.mrf.mxu0
      %1355 = vmatprep.mubr.f32.mxu0 %v1120
      %1356 = vmatmul.mubr.f32.gmra.mxu0 %v1119
      %v1357 = vpop.f32.mrf.mxu0
      %v1358 = vadd.f32 %v1174, %v1357
      %v1359 = vpop.f32.mrf.mxu0
      %1360 = vmatprep.mubr.f32.mxu0 %v1122
      %1361 = vmatmul.mubr.f32.gmra.mxu0 %v1121
      %v1362 = vpop.f32.mrf.mxu0
      %v1363 = vadd.f32 %v1174, %v1362
      %v1364 = vpop.f32.mrf.mxu0
      %1365 = vmatprep.mubr.f32.mxu0 %v1124
      %1366 = vmatmul.mubr.f32.gmra.mxu0 %v1123
      %v1367 = vpop.f32.mrf.mxu0
      %v1368 = vadd.f32 %v1174, %v1367
      %v1369 = vpop.f32.mrf.mxu0
      %1370 = vmatprep.mubr.f32.mxu0 %v1126
      %1371 = vmatmul.mubr.f32.gmra.mxu0 %v1125
      %v1372 = vpop.f32.mrf.mxu0
      %v1373 = vadd.f32 %v1174, %v1372
      %v1374 = vpop.f32.mrf.mxu0
      %1375 = vmatprep.mubr.f32.mxu0 %v1128
      %1376 = vmatmul.mubr.f32.gmra.mxu0 %v1127
      %v1377 = vpop.f32.mrf.mxu0
      %v1378 = vadd.f32 %v1174, %v1377
      %v1379 = vpop.f32.mrf.mxu0
      %1380 = vmatprep.mubr.f32.mxu0 %v1130
      %1381 = vmatmul.mubr.f32.gmra.mxu0 %v1129
      %v1382 = vpop.f32.mrf.mxu0
      %v1383 = vadd.f32 %v1174, %v1382
      %v1384 = vpop.f32.mrf.mxu0
      %1385 = vmatprep.mubr.f32.mxu0 %v1132
      %1386 = vmatmul.mubr.f32.gmra.mxu0 %v1131
      %v1387 = vpop.f32.mrf.mxu0
      %v1388 = vadd.f32 %v1174, %v1387
      %v1389 = vpop.f32.mrf.mxu0
      %1390 = vmatprep.mubr.f32.mxu0 %v1134
      %1391 = vmatmul.mubr.f32.gmra.mxu0 %v1133
      %v1392 = vpop.f32.mrf.mxu0
      %v1393 = vadd.f32 %v1174, %v1392
      %v1394 = vpop.f32.mrf.mxu0
      %1395 = vmatprep.mubr.f32.mxu0 %v1136
      %1396 = vmatmul.mubr.f32.gmra.mxu0 %v1135
      %v1397 = vpop.f32.mrf.mxu0
      %v1398 = vadd.f32 %v1174, %v1397
      %v1399 = vpop.f32.mrf.mxu0
      %1400 = vdwg.mxu0
      %v1401 = vmax.f32 %v1243, 0.0
      %v1402 = vmax.f32 %v1248, 0.0
      %v1403 = vmax.f32 %v1253, 0.0
      %v1404 = vmax.f32 %v1258, 0.0
      %v1405 = vmax.f32 %v1263, 0.0
      %v1406 = vmax.f32 %v1268, 0.0
      %v1407 = vmax.f32 %v1273, 0.0
      %v1408 = vmax.f32 %v1278, 0.0
      %v1409 = vmax.f32 %v1283, 0.0
      %v1410 = vmax.f32 %v1288, 0.0
      %v1411 = vmax.f32 %v1293, 0.0
      %v1412 = vmax.f32 %v1298, 0.0
      %v1413 = vmax.f32 %v1303, 0.0
      %v1414 = vmax.f32 %v1308, 0.0
      %v1415 = vmax.f32 %v1313, 0.0
      %v1416 = vmax.f32 %v1318, 0.0
      %v1417 = vmax.f32 %v1323, 0.0
      %v1418 = vmax.f32 %v1328, 0.0
      %v1419 = vmax.f32 %v1333, 0.0
      %v1420 = vmax.f32 %v1338, 0.0
      %v1421 = vmax.f32 %v1343, 0.0
      %v1422 = vmax.f32 %v1348, 0.0
      %v1423 = vmax.f32 %v1353, 0.0
      %v1424 = vmax.f32 %v1358, 0.0
      %v1425 = vmax.f32 %v1363, 0.0
      %v1426 = vmax.f32 %v1368, 0.0
      %v1427 = vmax.f32 %v1373, 0.0
      %v1428 = vmax.f32 %v1378, 0.0
      %v1429 = vmax.f32 %v1383, 0.0
      %v1430 = vmax.f32 %v1388, 0.0
      %v1431 = vmax.f32 %v1393, 0.0
      %v1432 = vmax.f32 %v1398, 0.0
      %v1433 = vld [vmem:[%s5] sm:$0xff]
      %v1434 = vld [vmem:[%s5 + $0x8] sm:$0xff]
      %v1435 = vld [vmem:[%s5 + $0x10] sm:$0xff]
      %v1436 = vld [vmem:[%s5 + $0x18] sm:$0xff]
      %v1437 = vld [vmem:[%s5 + $0x20] sm:$0xff]
      %v1438 = vld [vmem:[%s5 + $0x28] sm:$0xff]
      %v1439 = vld [vmem:[%s5 + $0x30] sm:$0xff]
      %v1440 = vld [vmem:[%s5 + $0x38] sm:$0xff]
      %v1441 = vld [vmem:[%s6] sm:$0x1]
      %v1443 = vlaneseq
      %v1444 = vshrl.u32 %v1443, 7
      %v1445 = vsub.s32 0, %v1444
      %v1446 = vrot.slane %v1441, %v1445
      %vm1448 = vcmask 523264
      %v1450 = vsel %vm1448, %v1401, 0
      %v1453 = vsel %vm1448, %v1402, 0
      %v1456 = vsel %vm1448, %v1403, 0
      %v1459 = vsel %vm1448, %v1404, 0
      %v1462 = vsel %vm1448, %v1405, 0
      %v1465 = vsel %vm1448, %v1406, 0
      %v1468 = vsel %vm1448, %v1407, 0
      %v1471 = vsel %vm1448, %v1408, 0
      %v1474 = vsel %vm1448, %v1409, 0
      %v1477 = vsel %vm1448, %v1410, 0
      %v1480 = vsel %vm1448, %v1411, 0
      %v1483 = vsel %vm1448, %v1412, 0
      %v1486 = vsel %vm1448, %v1413, 0
      %v1489 = vsel %vm1448, %v1414, 0
      %v1492 = vsel %vm1448, %v1415, 0
      %v1495 = vsel %vm1448, %v1416, 0
      %v1498 = vsel %vm1448, %v1417, 0
      %v1501 = vsel %vm1448, %v1418, 0
      %v1504 = vsel %vm1448, %v1419, 0
      %v1507 = vsel %vm1448, %v1420, 0
      %v1510 = vsel %vm1448, %v1421, 0
      %v1513 = vsel %vm1448, %v1422, 0
      %v1516 = vsel %vm1448, %v1423, 0
      %v1519 = vsel %vm1448, %v1424, 0
      %v1522 = vsel %vm1448, %v1425, 0
      %v1525 = vsel %vm1448, %v1426, 0
      %v1528 = vsel %vm1448, %v1427, 0
      %v1531 = vsel %vm1448, %v1428, 0
      %v1534 = vsel %vm1448, %v1429, 0
      %v1537 = vsel %vm1448, %v1430, 0
      %v1540 = vsel %vm1448, %v1431, 0
      %v1543 = vsel %vm1448, %v1432, 0
      %1545 = vmatprep.subr.mxu0 0.0
      %1546 = vmatpush1.msra.mxu0 0.0
      %1547 = vmatprep.subr.mxu0 0.0
      %1548 = vmatpush1.msra.mxu0 0.0
      %1549 = vmatprep.subr.mxu0 0.0
      %1550 = vmatpush1.msra.mxu0 0.0
      %1551 = vmatprep.subr.mxu0 0.0
      %1552 = vmatpush1.msra.mxu0 0.0
      %1553 = vmatprep.subr.mxu0 0.0
      %1554 = vmatpush1.msra.mxu0 0.0
      %1555 = vmatprep.subr.mxu0 0.0
      %1556 = vmatpush1.msra.mxu0 0.0
      %1557 = vmatprep.subr.mxu0 0.0
      %1558 = vmatpush1.msra.mxu0 0.0
      %1559 = vmatprep.subr.mxu0 0.0
      %1560 = vmatpush1.msra.mxu0 0.0
      %1561 = vmatprep.subr.mxu0 0.0
      %1562 = vmatpush1.msra.mxu0 %v1440
      %1563 = vmatprep.subr.mxu0 0.0
      %1564 = vmatpush1.msra.mxu0 %v1439
      %1565 = vmatprep.subr.mxu0 0.0
      %1566 = vmatpush1.msra.mxu0 %v1438
      %1567 = vmatprep.subr.mxu0 0.0
      %1568 = vmatpush1.msra.mxu0 %v1437
      %1569 = vmatprep.subr.mxu0 0.0
      %1570 = vmatpush1.msra.mxu0 %v1436
      %1571 = vmatprep.subr.mxu0 0.0
      %1572 = vmatpush1.msra.mxu0 %v1435
      %1573 = vmatprep.subr.mxu0 0.0
      %1574 = vmatpush1.msra.mxu0 %v1434
      %1575 = vmatprep.subr.mxu0 0.0
      %1576 = vmatpush1.msra.mxu0 %v1433
      %1577 = vmatprep.subr.mxu0 0.0
      %1578 = vmatpush2.msra.mxu0 0.0
      %1579 = vmatprep.subr.mxu0 0.0
      %1580 = vmatpush2.msra.mxu0 0.0
      %1581 = vmatprep.subr.mxu0 0.0
      %1582 = vmatpush2.msra.mxu0 0.0
      %1583 = vmatprep.subr.mxu0 0.0
      %1584 = vmatpush2.msra.mxu0 0.0
      %1585 = vmatprep.subr.mxu0 0.0
      %1586 = vmatpush2.msra.mxu0 0.0
      %1587 = vmatprep.subr.mxu0 0.0
      %1588 = vmatpush2.msra.mxu0 0.0
      %1589 = vmatprep.subr.mxu0 0.0
      %1590 = vmatpush2.msra.mxu0 0.0
      %1591 = vmatprep.subr.mxu0 0.0
      %1592 = vmatpush2.msra.mxu0 0.0
      %1593 = vmatprep.subr.mxu0 0.0
      %1594 = vmatpush2.msra.mxu0 0.0
      %1595 = vmatprep.subr.mxu0 0.0
      %1596 = vmatpush2.msra.mxu0 0.0
      %1597 = vmatprep.subr.mxu0 0.0
      %1598 = vmatpush2.msra.mxu0 0.0
      %1599 = vmatprep.subr.mxu0 0.0
      %1600 = vmatpush2.msra.mxu0 0.0
      %1601 = vmatprep.subr.mxu0 0.0
      %1602 = vmatpush2.msra.mxu0 0.0
      %1603 = vmatprep.subr.mxu0 0.0
      %1604 = vmatpush2.msra.mxu0 0.0
      %1605 = vmatprep.subr.mxu0 0.0
      %1606 = vmatpush2.msra.mxu0 0.0
      %1607 = vmatprep.subr.mxu0 0.0
      %1608 = vmatpush2.msra.mxu0 0.0
      %1609 = vmatprep.mubr.f32.mxu0 0.0
      %1610 = vmatmul.mubr.f32.gmra.mxu0 %v1450
      %v1611 = vpop.f32.mrf.mxu0
      %v1612 = vadd.f32 %v1446, %v1611
      %v1613 = vpop.f32.mrf.mxu0
      %1614 = vmatprep.mubr.f32.mxu0 0.0
      %1615 = vmatmul.mubr.f32.gmra.mxu0 %v1453
      %v1616 = vpop.f32.mrf.mxu0
      %v1617 = vadd.f32 %v1446, %v1616
      %v1618 = vpop.f32.mrf.mxu0
      %1619 = vmatprep.mubr.f32.mxu0 0.0
      %1620 = vmatmul.mubr.f32.gmra.mxu0 %v1456
      %v1621 = vpop.f32.mrf.mxu0
      %v1622 = vadd.f32 %v1446, %v1621
      %v1623 = vpop.f32.mrf.mxu0
      %1624 = vmatprep.mubr.f32.mxu0 0.0
      %1625 = vmatmul.mubr.f32.gmra.mxu0 %v1459
      %v1626 = vpop.f32.mrf.mxu0
      %v1627 = vadd.f32 %v1446, %v1626
      %v1628 = vpop.f32.mrf.mxu0
      %1629 = vmatprep.mubr.f32.mxu0 0.0
      %1630 = vmatmul.mubr.f32.gmra.mxu0 %v1462
      %v1631 = vpop.f32.mrf.mxu0
      %v1632 = vadd.f32 %v1446, %v1631
      %v1633 = vpop.f32.mrf.mxu0
      %1634 = vmatprep.mubr.f32.mxu0 0.0
      %1635 = vmatmul.mubr.f32.gmra.mxu0 %v1465
      %v1636 = vpop.f32.mrf.mxu0
      %v1637 = vadd.f32 %v1446, %v1636
      %v1638 = vpop.f32.mrf.mxu0
      %1639 = vmatprep.mubr.f32.mxu0 0.0
      %1640 = vmatmul.mubr.f32.gmra.mxu0 %v1468
      %v1641 = vpop.f32.mrf.mxu0
      %v1642 = vadd.f32 %v1446, %v1641
      %v1643 = vpop.f32.mrf.mxu0
      %1644 = vmatprep.mubr.f32.mxu0 0.0
      %1645 = vmatmul.mubr.f32.gmra.mxu0 %v1471
      %v1646 = vpop.f32.mrf.mxu0
      %v1647 = vadd.f32 %v1446, %v1646
      %v1648 = vpop.f32.mrf.mxu0
      %1649 = vmatprep.mubr.f32.mxu0 0.0
      %1650 = vmatmul.mubr.f32.gmra.mxu0 %v1474
      %v1651 = vpop.f32.mrf.mxu0
      %v1652 = vadd.f32 %v1446, %v1651
      %v1653 = vpop.f32.mrf.mxu0
      %1654 = vmatprep.mubr.f32.mxu0 0.0
      %1655 = vmatmul.mubr.f32.gmra.mxu0 %v1477
      %v1656 = vpop.f32.mrf.mxu0
      %v1657 = vadd.f32 %v1446, %v1656
      %v1658 = vpop.f32.mrf.mxu0
      %1659 = vmatprep.mubr.f32.mxu0 0.0
      %1660 = vmatmul.mubr.f32.gmra.mxu0 %v1480
      %v1661 = vpop.f32.mrf.mxu0
      %v1662 = vadd.f32 %v1446, %v1661
      %v1663 = vpop.f32.mrf.mxu0
      %1664 = vmatprep.mubr.f32.mxu0 0.0
      %1665 = vmatmul.mubr.f32.gmra.mxu0 %v1483
      %v1666 = vpop.f32.mrf.mxu0
      %v1667 = vadd.f32 %v1446, %v1666
      %v1668 = vpop.f32.mrf.mxu0
      %1669 = vmatprep.mubr.f32.mxu0 0.0
      %1670 = vmatmul.mubr.f32.gmra.mxu0 %v1486
      %v1671 = vpop.f32.mrf.mxu0
      %v1672 = vadd.f32 %v1446, %v1671
      %v1673 = vpop.f32.mrf.mxu0
      %1674 = vmatprep.mubr.f32.mxu0 0.0
      %1675 = vmatmul.mubr.f32.gmra.mxu0 %v1489
      %v1676 = vpop.f32.mrf.mxu0
      %v1677 = vadd.f32 %v1446, %v1676
      %v1678 = vpop.f32.mrf.mxu0
      %1679 = vmatprep.mubr.f32.mxu0 0.0
      %1680 = vmatmul.mubr.f32.gmra.mxu0 %v1492
      %v1681 = vpop.f32.mrf.mxu0
      %v1682 = vadd.f32 %v1446, %v1681
      %v1683 = vpop.f32.mrf.mxu0
      %1684 = vmatprep.mubr.f32.mxu0 0.0
      %1685 = vmatmul.mubr.f32.gmra.mxu0 %v1495
      %v1686 = vpop.f32.mrf.mxu0
      %v1687 = vadd.f32 %v1446, %v1686
      %v1688 = vpop.f32.mrf.mxu0
      %1689 = vmatprep.mubr.f32.mxu0 0.0
      %1690 = vmatmul.mubr.f32.gmra.mxu0 %v1498
      %v1691 = vpop.f32.mrf.mxu0
      %v1692 = vadd.f32 %v1446, %v1691
      %v1693 = vpop.f32.mrf.mxu0
      %1694 = vmatprep.mubr.f32.mxu0 0.0
      %1695 = vmatmul.mubr.f32.gmra.mxu0 %v1501
      %v1696 = vpop.f32.mrf.mxu0
      %v1697 = vadd.f32 %v1446, %v1696
      %v1698 = vpop.f32.mrf.mxu0
      %1699 = vmatprep.mubr.f32.mxu0 0.0
      %1700 = vmatmul.mubr.f32.gmra.mxu0 %v1504
      %v1701 = vpop.f32.mrf.mxu0
      %v1702 = vadd.f32 %v1446, %v1701
      %v1703 = vpop.f32.mrf.mxu0
      %1704 = vmatprep.mubr.f32.mxu0 0.0
      %1705 = vmatmul.mubr.f32.gmra.mxu0 %v1507
      %v1706 = vpop.f32.mrf.mxu0
      %v1707 = vadd.f32 %v1446, %v1706
      %v1708 = vpop.f32.mrf.mxu0
      %1709 = vmatprep.mubr.f32.mxu0 0.0
      %1710 = vmatmul.mubr.f32.gmra.mxu0 %v1510
      %v1711 = vpop.f32.mrf.mxu0
      %v1712 = vadd.f32 %v1446, %v1711
      %v1713 = vpop.f32.mrf.mxu0
      %1714 = vmatprep.mubr.f32.mxu0 0.0
      %1715 = vmatmul.mubr.f32.gmra.mxu0 %v1513
      %v1716 = vpop.f32.mrf.mxu0
      %v1717 = vadd.f32 %v1446, %v1716
      %v1718 = vpop.f32.mrf.mxu0
      %1719 = vmatprep.mubr.f32.mxu0 0.0
      %1720 = vmatmul.mubr.f32.gmra.mxu0 %v1516
      %v1721 = vpop.f32.mrf.mxu0
      %v1722 = vadd.f32 %v1446, %v1721
      %v1723 = vpop.f32.mrf.mxu0
      %1724 = vmatprep.mubr.f32.mxu0 0.0
      %1725 = vmatmul.mubr.f32.gmra.mxu0 %v1519
      %v1726 = vpop.f32.mrf.mxu0
      %v1727 = vadd.f32 %v1446, %v1726
      %v1728 = vpop.f32.mrf.mxu0
      %1729 = vmatprep.mubr.f32.mxu0 0.0
      %1730 = vmatmul.mubr.f32.gmra.mxu0 %v1522
      %v1731 = vpop.f32.mrf.mxu0
      %v1732 = vadd.f32 %v1446, %v1731
      %v1733 = vpop.f32.mrf.mxu0
      %1734 = vmatprep.mubr.f32.mxu0 0.0
      %1735 = vmatmul.mubr.f32.gmra.mxu0 %v1525
      %v1736 = vpop.f32.mrf.mxu0
      %v1737 = vadd.f32 %v1446, %v1736
      %v1738 = vpop.f32.mrf.mxu0
      %1739 = vmatprep.mubr.f32.mxu0 0.0
      %1740 = vmatmul.mubr.f32.gmra.mxu0 %v1528
      %v1741 = vpop.f32.mrf.mxu0
      %v1742 = vadd.f32 %v1446, %v1741
      %v1743 = vpop.f32.mrf.mxu0
      %1744 = vmatprep.mubr.f32.mxu0 0.0
      %1745 = vmatmul.mubr.f32.gmra.mxu0 %v1531
      %v1746 = vpop.f32.mrf.mxu0
      %v1747 = vadd.f32 %v1446, %v1746
      %v1748 = vpop.f32.mrf.mxu0
      %1749 = vmatprep.mubr.f32.mxu0 0.0
      %1750 = vmatmul.mubr.f32.gmra.mxu0 %v1534
      %v1751 = vpop.f32.mrf.mxu0
      %v1752 = vadd.f32 %v1446, %v1751
      %v1753 = vpop.f32.mrf.mxu0
      %1754 = vmatprep.mubr.f32.mxu0 0.0
      %1755 = vmatmul.mubr.f32.gmra.mxu0 %v1537
      %v1756 = vpop.f32.mrf.mxu0
      %v1757 = vadd.f32 %v1446, %v1756
      %v1758 = vpop.f32.mrf.mxu0
      %1759 = vmatprep.mubr.f32.mxu0 0.0
      %1760 = vmatmul.mubr.f32.gmra.mxu0 %v1540
      %v1761 = vpop.f32.mrf.mxu0
      %v1762 = vadd.f32 %v1446, %v1761
      %v1763 = vpop.f32.mrf.mxu0
      %1764 = vmatprep.mubr.f32.mxu0 0.0
      %1765 = vmatmul.mubr.f32.gmra.mxu0 %v1543
      %v1766 = vpop.f32.mrf.mxu0
      %v1767 = vadd.f32 %v1446, %v1766
      %v1768 = vpop.f32.mrf.mxu0
      %1769 = vdwg.mxu0
      %v1770 = vmax.f32 %v1612, 0.0
      %v1771 = vmax.f32 %v1617, 0.0
      %v1772 = vmax.f32 %v1622, 0.0
      %v1773 = vmax.f32 %v1627, 0.0
      %v1774 = vmax.f32 %v1632, 0.0
      %v1775 = vmax.f32 %v1637, 0.0
      %v1776 = vmax.f32 %v1642, 0.0
      %v1777 = vmax.f32 %v1647, 0.0
      %v1778 = vmax.f32 %v1652, 0.0
      %v1779 = vmax.f32 %v1657, 0.0
      %v1780 = vmax.f32 %v1662, 0.0
      %v1781 = vmax.f32 %v1667, 0.0
      %v1782 = vmax.f32 %v1672, 0.0
      %v1783 = vmax.f32 %v1677, 0.0
      %v1784 = vmax.f32 %v1682, 0.0
      %v1785 = vmax.f32 %v1687, 0.0
      %v1786 = vmax.f32 %v1692, 0.0
      %v1787 = vmax.f32 %v1697, 0.0
      %v1788 = vmax.f32 %v1702, 0.0
      %v1789 = vmax.f32 %v1707, 0.0
      %v1790 = vmax.f32 %v1712, 0.0
      %v1791 = vmax.f32 %v1717, 0.0
      %v1792 = vmax.f32 %v1722, 0.0
      %v1793 = vmax.f32 %v1727, 0.0
      %v1794 = vmax.f32 %v1732, 0.0
      %v1795 = vmax.f32 %v1737, 0.0
      %v1796 = vmax.f32 %v1742, 0.0
      %v1797 = vmax.f32 %v1747, 0.0
      %v1798 = vmax.f32 %v1752, 0.0
      %v1799 = vmax.f32 %v1757, 0.0
      %v1800 = vmax.f32 %v1762, 0.0
      %v1801 = vmax.f32 %v1767, 0.0
      %v1802 = vld [vmem:[%s7] sm:$0xff]
      %v1803 = vld [vmem:[%s7 + $0x8] sm:$0xff]
      %v1804 = vld [vmem:[%s7 + $0x10] sm:$0xff]
      %v1805 = vld [vmem:[%s7 + $0x18] sm:$0xff]
      %v1806 = vld [vmem:[%s8] sm:$0x1]
      %v1808 = vlaneseq
      %v1809 = vshrl.u32 %v1808, 7
      %v1810 = vsub.s32 0, %v1809
      %v1811 = vrot.slane %v1806, %v1810
      %vm1813 = vcmask 261120
      %v1815 = vsel %vm1813, %v1770, 0
      %v1818 = vsel %vm1813, %v1771, 0
      %v1821 = vsel %vm1813, %v1772, 0
      %v1824 = vsel %vm1813, %v1773, 0
      %v1827 = vsel %vm1813, %v1774, 0
      %v1830 = vsel %vm1813, %v1775, 0
      %v1833 = vsel %vm1813, %v1776, 0
      %v1836 = vsel %vm1813, %v1777, 0
      %v1839 = vsel %vm1813, %v1778, 0
      %v1842 = vsel %vm1813, %v1779, 0
      %v1845 = vsel %vm1813, %v1780, 0
      %v1848 = vsel %vm1813, %v1781, 0
      %v1851 = vsel %vm1813, %v1782, 0
      %v1854 = vsel %vm1813, %v1783, 0
      %v1857 = vsel %vm1813, %v1784, 0
      %v1860 = vsel %vm1813, %v1785, 0
      %v1863 = vsel %vm1813, %v1786, 0
      %v1866 = vsel %vm1813, %v1787, 0
      %v1869 = vsel %vm1813, %v1788, 0
      %v1872 = vsel %vm1813, %v1789, 0
      %v1875 = vsel %vm1813, %v1790, 0
      %v1878 = vsel %vm1813, %v1791, 0
      %v1881 = vsel %vm1813, %v1792, 0
      %v1884 = vsel %vm1813, %v1793, 0
      %v1887 = vsel %vm1813, %v1794, 0
      %v1890 = vsel %vm1813, %v1795, 0
      %v1893 = vsel %vm1813, %v1796, 0
      %v1896 = vsel %vm1813, %v1797, 0
      %v1899 = vsel %vm1813, %v1798, 0
      %v1902 = vsel %vm1813, %v1799, 0
      %v1905 = vsel %vm1813, %v1800, 0
      %v1908 = vsel %vm1813, %v1801, 0
      %1910 = vmatprep.subr.mxu0 0.0
      %1911 = vmatpush1.msra.mxu0 0.0
      %1912 = vmatprep.subr.mxu0 0.0
      %1913 = vmatpush1.msra.mxu0 0.0
      %1914 = vmatprep.subr.mxu0 0.0
      %1915 = vmatpush1.msra.mxu0 0.0
      %1916 = vmatprep.subr.mxu0 0.0
      %1917 = vmatpush1.msra.mxu0 0.0
      %1918 = vmatprep.subr.mxu0 0.0
      %1919 = vmatpush1.msra.mxu0 0.0
      %1920 = vmatprep.subr.mxu0 0.0
      %1921 = vmatpush1.msra.mxu0 0.0
      %1922 = vmatprep.subr.mxu0 0.0
      %1923 = vmatpush1.msra.mxu0 0.0
      %1924 = vmatprep.subr.mxu0 0.0
      %1925 = vmatpush1.msra.mxu0 0.0
      %1926 = vmatprep.subr.mxu0 0.0
      %1927 = vmatpush1.msra.mxu0 0.0
      %1928 = vmatprep.subr.mxu0 0.0
      %1929 = vmatpush1.msra.mxu0 0.0
      %1930 = vmatprep.subr.mxu0 0.0
      %1931 = vmatpush1.msra.mxu0 0.0
      %1932 = vmatprep.subr.mxu0 0.0
      %1933 = vmatpush1.msra.mxu0 0.0
      %1934 = vmatprep.subr.mxu0 0.0
      %1935 = vmatpush1.msra.mxu0 %v1805
      %1936 = vmatprep.subr.mxu0 0.0
      %1937 = vmatpush1.msra.mxu0 %v1804
      %1938 = vmatprep.subr.mxu0 0.0
      %1939 = vmatpush1.msra.mxu0 %v1803
      %1940 = vmatprep.subr.mxu0 0.0
      %1941 = vmatpush1.msra.mxu0 %v1802
      %1942 = vmatprep.subr.mxu0 0.0
      %1943 = vmatpush2.msra.mxu0 0.0
      %1944 = vmatprep.subr.mxu0 0.0
      %1945 = vmatpush2.msra.mxu0 0.0
      %1946 = vmatprep.subr.mxu0 0.0
      %1947 = vmatpush2.msra.mxu0 0.0
      %1948 = vmatprep.subr.mxu0 0.0
      %1949 = vmatpush2.msra.mxu0 0.0
      %1950 = vmatprep.subr.mxu0 0.0
      %1951 = vmatpush2.msra.mxu0 0.0
      %1952 = vmatprep.subr.mxu0 0.0
      %1953 = vmatpush2.msra.mxu0 0.0
      %1954 = vmatprep.subr.mxu0 0.0
      %1955 = vmatpush2.msra.mxu0 0.0
      %1956 = vmatprep.subr.mxu0 0.0
      %1957 = vmatpush2.msra.mxu0 0.0
      %1958 = vmatprep.subr.mxu0 0.0
      %1959 = vmatpush2.msra.mxu0 0.0
      %1960 = vmatprep.subr.mxu0 0.0
      %1961 = vmatpush2.msra.mxu0 0.0
      %1962 = vmatprep.subr.mxu0 0.0
      %1963 = vmatpush2.msra.mxu0 0.0
      %1964 = vmatprep.subr.mxu0 0.0
      %1965 = vmatpush2.msra.mxu0 0.0
      %1966 = vmatprep.subr.mxu0 0.0
      %1967 = vmatpush2.msra.mxu0 0.0
      %1968 = vmatprep.subr.mxu0 0.0
      %1969 = vmatpush2.msra.mxu0 0.0
      %1970 = vmatprep.subr.mxu0 0.0
      %1971 = vmatpush2.msra.mxu0 0.0
      %1972 = vmatprep.subr.mxu0 0.0
      %1973 = vmatpush2.msra.mxu0 0.0
      %1974 = vmatprep.mubr.f32.mxu0 0.0
      %1975 = vmatmul.mubr.f32.gmra.mxu0 %v1815
      %v1976 = vpop.f32.mrf.mxu0
      %v1977 = vadd.f32 %v1811, %v1976
      %v1978 = vpop.f32.mrf.mxu0
      %1979 = vmatprep.mubr.f32.mxu0 0.0
      %1980 = vmatmul.mubr.f32.gmra.mxu0 %v1818
      %v1981 = vpop.f32.mrf.mxu0
      %v1982 = vadd.f32 %v1811, %v1981
      %v1983 = vpop.f32.mrf.mxu0
      %1984 = vmatprep.mubr.f32.mxu0 0.0
      %1985 = vmatmul.mubr.f32.gmra.mxu0 %v1821
      %v1986 = vpop.f32.mrf.mxu0
      %v1987 = vadd.f32 %v1811, %v1986
      %v1988 = vpop.f32.mrf.mxu0
      %1989 = vmatprep.mubr.f32.mxu0 0.0
      %1990 = vmatmul.mubr.f32.gmra.mxu0 %v1824
      %v1991 = vpop.f32.mrf.mxu0
      %v1992 = vadd.f32 %v1811, %v1991
      %v1993 = vpop.f32.mrf.mxu0
      %1994 = vmatprep.mubr.f32.mxu0 0.0
      %1995 = vmatmul.mubr.f32.gmra.mxu0 %v1827
      %v1996 = vpop.f32.mrf.mxu0
      %v1997 = vadd.f32 %v1811, %v1996
      %v1998 = vpop.f32.mrf.mxu0
      %1999 = vmatprep.mubr.f32.mxu0 0.0
      %2000 = vmatmul.mubr.f32.gmra.mxu0 %v1830
      %v2001 = vpop.f32.mrf.mxu0
      %v2002 = vadd.f32 %v1811, %v2001
      %v2003 = vpop.f32.mrf.mxu0
      %2004 = vmatprep.mubr.f32.mxu0 0.0
      %2005 = vmatmul.mubr.f32.gmra.mxu0 %v1833
      %v2006 = vpop.f32.mrf.mxu0
      %v2007 = vadd.f32 %v1811, %v2006
      %v2008 = vpop.f32.mrf.mxu0
      %2009 = vmatprep.mubr.f32.mxu0 0.0
      %2010 = vmatmul.mubr.f32.gmra.mxu0 %v1836
      %v2011 = vpop.f32.mrf.mxu0
      %v2012 = vadd.f32 %v1811, %v2011
      %v2013 = vpop.f32.mrf.mxu0
      %2014 = vmatprep.mubr.f32.mxu0 0.0
      %2015 = vmatmul.mubr.f32.gmra.mxu0 %v1839
      %v2016 = vpop.f32.mrf.mxu0
      %v2017 = vadd.f32 %v1811, %v2016
      %v2018 = vpop.f32.mrf.mxu0
      %2019 = vmatprep.mubr.f32.mxu0 0.0
      %2020 = vmatmul.mubr.f32.gmra.mxu0 %v1842
      %v2021 = vpop.f32.mrf.mxu0
      %v2022 = vadd.f32 %v1811, %v2021
      %v2023 = vpop.f32.mrf.mxu0
      %2024 = vmatprep.mubr.f32.mxu0 0.0
      %2025 = vmatmul.mubr.f32.gmra.mxu0 %v1845
      %v2026 = vpop.f32.mrf.mxu0
      %v2027 = vadd.f32 %v1811, %v2026
      %v2028 = vpop.f32.mrf.mxu0
      %2029 = vmatprep.mubr.f32.mxu0 0.0
      %2030 = vmatmul.mubr.f32.gmra.mxu0 %v1848
      %v2031 = vpop.f32.mrf.mxu0
      %v2032 = vadd.f32 %v1811, %v2031
      %v2033 = vpop.f32.mrf.mxu0
      %2034 = vmatprep.mubr.f32.mxu0 0.0
      %2035 = vmatmul.mubr.f32.gmra.mxu0 %v1851
      %v2036 = vpop.f32.mrf.mxu0
      %v2037 = vadd.f32 %v1811, %v2036
      %v2038 = vpop.f32.mrf.mxu0
      %2039 = vmatprep.mubr.f32.mxu0 0.0
      %2040 = vmatmul.mubr.f32.gmra.mxu0 %v1854
      %v2041 = vpop.f32.mrf.mxu0
      %v2042 = vadd.f32 %v1811, %v2041
      %v2043 = vpop.f32.mrf.mxu0
      %2044 = vmatprep.mubr.f32.mxu0 0.0
      %2045 = vmatmul.mubr.f32.gmra.mxu0 %v1857
      %v2046 = vpop.f32.mrf.mxu0
      %v2047 = vadd.f32 %v1811, %v2046
      %v2048 = vpop.f32.mrf.mxu0
      %2049 = vmatprep.mubr.f32.mxu0 0.0
      %2050 = vmatmul.mubr.f32.gmra.mxu0 %v1860
      %v2051 = vpop.f32.mrf.mxu0
      %v2052 = vadd.f32 %v1811, %v2051
      %v2053 = vpop.f32.mrf.mxu0
      %2054 = vmatprep.mubr.f32.mxu0 0.0
      %2055 = vmatmul.mubr.f32.gmra.mxu0 %v1863
      %v2056 = vpop.f32.mrf.mxu0
      %v2057 = vadd.f32 %v1811, %v2056
      %v2058 = vpop.f32.mrf.mxu0
      %2059 = vmatprep.mubr.f32.mxu0 0.0
      %2060 = vmatmul.mubr.f32.gmra.mxu0 %v1866
      %v2061 = vpop.f32.mrf.mxu0
      %v2062 = vadd.f32 %v1811, %v2061
      %v2063 = vpop.f32.mrf.mxu0
      %2064 = vmatprep.mubr.f32.mxu0 0.0
      %2065 = vmatmul.mubr.f32.gmra.mxu0 %v1869
      %v2066 = vpop.f32.mrf.mxu0
      %v2067 = vadd.f32 %v1811, %v2066
      %v2068 = vpop.f32.mrf.mxu0
      %2069 = vmatprep.mubr.f32.mxu0 0.0
      %2070 = vmatmul.mubr.f32.gmra.mxu0 %v1872
      %v2071 = vpop.f32.mrf.mxu0
      %v2072 = vadd.f32 %v1811, %v2071
      %v2073 = vpop.f32.mrf.mxu0
      %2074 = vmatprep.mubr.f32.mxu0 0.0
      %2075 = vmatmul.mubr.f32.gmra.mxu0 %v1875
      %v2076 = vpop.f32.mrf.mxu0
      %v2077 = vadd.f32 %v1811, %v2076
      %v2078 = vpop.f32.mrf.mxu0
      %2079 = vmatprep.mubr.f32.mxu0 0.0
      %2080 = vmatmul.mubr.f32.gmra.mxu0 %v1878
      %v2081 = vpop.f32.mrf.mxu0
      %v2082 = vadd.f32 %v1811, %v2081
      %v2083 = vpop.f32.mrf.mxu0
      %2084 = vmatprep.mubr.f32.mxu0 0.0
      %2085 = vmatmul.mubr.f32.gmra.mxu0 %v1881
      %v2086 = vpop.f32.mrf.mxu0
      %v2087 = vadd.f32 %v1811, %v2086
      %v2088 = vpop.f32.mrf.mxu0
      %2089 = vmatprep.mubr.f32.mxu0 0.0
      %2090 = vmatmul.mubr.f32.gmra.mxu0 %v1884
      %v2091 = vpop.f32.mrf.mxu0
      %v2092 = vadd.f32 %v1811, %v2091
      %v2093 = vpop.f32.mrf.mxu0
      %2094 = vmatprep.mubr.f32.mxu0 0.0
      %2095 = vmatmul.mubr.f32.gmra.mxu0 %v1887
      %v2096 = vpop.f32.mrf.mxu0
      %v2097 = vadd.f32 %v1811, %v2096
      %v2098 = vpop.f32.mrf.mxu0
      %2099 = vmatprep.mubr.f32.mxu0 0.0
      %2100 = vmatmul.mubr.f32.gmra.mxu0 %v1890
      %v2101 = vpop.f32.mrf.mxu0
      %v2102 = vadd.f32 %v1811, %v2101
      %v2103 = vpop.f32.mrf.mxu0
      %2104 = vmatprep.mubr.f32.mxu0 0.0
      %2105 = vmatmul.mubr.f32.gmra.mxu0 %v1893
      %v2106 = vpop.f32.mrf.mxu0
      %v2107 = vadd.f32 %v1811, %v2106
      %v2108 = vpop.f32.mrf.mxu0
      %2109 = vmatprep.mubr.f32.mxu0 0.0
      %2110 = vmatmul.mubr.f32.gmra.mxu0 %v1896
      %v2111 = vpop.f32.mrf.mxu0
      %v2112 = vadd.f32 %v1811, %v2111
      %v2113 = vpop.f32.mrf.mxu0
      %2114 = vmatprep.mubr.f32.mxu0 0.0
      %2115 = vmatmul.mubr.f32.gmra.mxu0 %v1899
      %v2116 = vpop.f32.mrf.mxu0
      %v2117 = vadd.f32 %v1811, %v2116
      %v2118 = vpop.f32.mrf.mxu0
      %2119 = vmatprep.mubr.f32.mxu0 0.0
      %2120 = vmatmul.mubr.f32.gmra.mxu0 %v1902
      %v2121 = vpop.f32.mrf.mxu0
      %v2122 = vadd.f32 %v1811, %v2121
      %v2123 = vpop.f32.mrf.mxu0
      %2124 = vmatprep.mubr.f32.mxu0 0.0
      %2125 = vmatmul.mubr.f32.gmra.mxu0 %v1905
      %v2126 = vpop.f32.mrf.mxu0
      %v2127 = vadd.f32 %v1811, %v2126
      %v2128 = vpop.f32.mrf.mxu0
      %2129 = vmatprep.mubr.f32.mxu0 0.0
      %2130 = vmatmul.mubr.f32.gmra.mxu0 %v1908
      %v2131 = vpop.f32.mrf.mxu0
      %v2132 = vadd.f32 %v1811, %v2131
      %v2133 = vpop.f32.mrf.mxu0
      %2134 = vdwg.mxu0
      %v2135 = vmax.f32 %v1977, 0.0
      %v2136 = vmax.f32 %v1982, 0.0
      %v2137 = vmax.f32 %v1987, 0.0
      %v2138 = vmax.f32 %v1992, 0.0
      %v2139 = vmax.f32 %v1997, 0.0
      %v2140 = vmax.f32 %v2002, 0.0
      %v2141 = vmax.f32 %v2007, 0.0
      %v2142 = vmax.f32 %v2012, 0.0
      %v2143 = vmax.f32 %v2017, 0.0
      %v2144 = vmax.f32 %v2022, 0.0
      %v2145 = vmax.f32 %v2027, 0.0
      %v2146 = vmax.f32 %v2032, 0.0
      %v2147 = vmax.f32 %v2037, 0.0
      %v2148 = vmax.f32 %v2042, 0.0
      %v2149 = vmax.f32 %v2047, 0.0
      %v2150 = vmax.f32 %v2052, 0.0
      %v2151 = vmax.f32 %v2057, 0.0
      %v2152 = vmax.f32 %v2062, 0.0
      %v2153 = vmax.f32 %v2067, 0.0
      %v2154 = vmax.f32 %v2072, 0.0
      %v2155 = vmax.f32 %v2077, 0.0
      %v2156 = vmax.f32 %v2082, 0.0
      %v2157 = vmax.f32 %v2087, 0.0
      %v2158 = vmax.f32 %v2092, 0.0
      %v2159 = vmax.f32 %v2097, 0.0
      %v2160 = vmax.f32 %v2102, 0.0
      %v2161 = vmax.f32 %v2107, 0.0
      %v2162 = vmax.f32 %v2112, 0.0
      %v2163 = vmax.f32 %v2117, 0.0
      %v2164 = vmax.f32 %v2122, 0.0
      %v2165 = vmax.f32 %v2127, 0.0
      %v2166 = vmax.f32 %v2132, 0.0
      %2167 = vrot.lane.b32.xlu0 %v664, 119
      %v2168 = vpop.permute.xlu0 %2167
      %2169 = vrot.lane.b32.xlu0 %v665, 119
      %v2170 = vpop.permute.xlu0 %2169
      %2171 = vrot.lane.b32.xlu0 %v666, 119
      %v2172 = vpop.permute.xlu0 %2171
      %2173 = vrot.lane.b32.xlu0 %v667, 119
      %v2174 = vpop.permute.xlu0 %2173
      %2175 = vrot.lane.b32.xlu0 %v668, 119
      %v2176 = vpop.permute.xlu0 %2175
      %2177 = vrot.lane.b32.xlu0 %v669, 119
      %v2178 = vpop.permute.xlu0 %2177
      %2179 = vrot.lane.b32.xlu0 %v670, 119
      %v2180 = vpop.permute.xlu0 %2179
      %2181 = vrot.lane.b32.xlu0 %v671, 119
      %v2182 = vpop.permute.xlu0 %2181
      %2183 = vrot.lane.b32.xlu0 %v672, 119
      %v2184 = vpop.permute.xlu0 %2183
      %2185 = vrot.lane.b32.xlu0 %v673, 119
      %v2186 = vpop.permute.xlu0 %2185
      %2187 = vrot.lane.b32.xlu0 %v674, 119
      %v2188 = vpop.permute.xlu0 %2187
      %2189 = vrot.lane.b32.xlu0 %v675, 119
      %v2190 = vpop.permute.xlu0 %2189
      %2191 = vrot.lane.b32.xlu0 %v676, 119
      %v2192 = vpop.permute.xlu0 %2191
      %2193 = vrot.lane.b32.xlu0 %v677, 119
      %v2194 = vpop.permute.xlu0 %2193
      %2195 = vrot.lane.b32.xlu0 %v678, 119
      %v2196 = vpop.permute.xlu0 %2195
      %2197 = vrot.lane.b32.xlu0 %v679, 119
      %v2198 = vpop.permute.xlu0 %2197
      %2199 = vrot.lane.b32.xlu0 %v680, 119
      %v2200 = vpop.permute.xlu0 %2199
      %2201 = vrot.lane.b32.xlu0 %v681, 119
      %v2202 = vpop.permute.xlu0 %2201
      %2203 = vrot.lane.b32.xlu0 %v682, 119
      %v2204 = vpop.permute.xlu0 %2203
      %2205 = vrot.lane.b32.xlu0 %v683, 119
      %v2206 = vpop.permute.xlu0 %2205
      %2207 = vrot.lane.b32.xlu0 %v684, 119
      %v2208 = vpop.permute.xlu0 %2207
      %2209 = vrot.lane.b32.xlu0 %v685, 119
      %v2210 = vpop.permute.xlu0 %2209
      %2211 = vrot.lane.b32.xlu0 %v686, 119
      %v2212 = vpop.permute.xlu0 %2211
      %2213 = vrot.lane.b32.xlu0 %v687, 119
      %v2214 = vpop.permute.xlu0 %2213
      %2215 = vrot.lane.b32.xlu0 %v688, 119
      %v2216 = vpop.permute.xlu0 %2215
      %2217 = vrot.lane.b32.xlu0 %v689, 119
      %v2218 = vpop.permute.xlu0 %2217
      %2219 = vrot.lane.b32.xlu0 %v690, 119
      %v2220 = vpop.permute.xlu0 %2219
      %2221 = vrot.lane.b32.xlu0 %v691, 119
      %v2222 = vpop.permute.xlu0 %2221
      %2223 = vrot.lane.b32.xlu0 %v692, 119
      %v2224 = vpop.permute.xlu0 %2223
      %2225 = vrot.lane.b32.xlu0 %v693, 119
      %v2226 = vpop.permute.xlu0 %2225
      %2227 = vrot.lane.b32.xlu0 %v694, 119
      %v2228 = vpop.permute.xlu0 %2227
      %2229 = vrot.lane.b32.xlu0 %v695, 119
      %v2230 = vpop.permute.xlu0 %2229
      %v2263 = vsub.f32 %v664, %v2168
      %v2264 = vsub.f32 %v665, %v2170
      %v2265 = vsub.f32 %v666, %v2172
      %v2266 = vsub.f32 %v667, %v2174
      %v2267 = vsub.f32 %v668, %v2176
      %v2268 = vsub.f32 %v669, %v2178
      %v2269 = vsub.f32 %v670, %v2180
      %v2270 = vsub.f32 %v671, %v2182
      %v2271 = vsub.f32 %v672, %v2184
      %v2272 = vsub.f32 %v673, %v2186
      %v2273 = vsub.f32 %v674, %v2188
      %v2274 = vsub.f32 %v675, %v2190
      %v2275 = vsub.f32 %v676, %v2192
      %v2276 = vsub.f32 %v677, %v2194
      %v2277 = vsub.f32 %v678, %v2196
      %v2278 = vsub.f32 %v679, %v2198
      %v2279 = vsub.f32 %v680, %v2200
      %v2280 = vsub.f32 %v681, %v2202
      %v2281 = vsub.f32 %v682, %v2204
      %v2282 = vsub.f32 %v683, %v2206
      %v2283 = vsub.f32 %v684, %v2208
      %v2284 = vsub.f32 %v685, %v2210
      %v2285 = vsub.f32 %v686, %v2212
      %v2286 = vsub.f32 %v687, %v2214
      %v2287 = vsub.f32 %v688, %v2216
      %v2288 = vsub.f32 %v689, %v2218
      %v2289 = vsub.f32 %v690, %v2220
      %v2290 = vsub.f32 %v691, %v2222
      %v2291 = vsub.f32 %v692, %v2224
      %v2292 = vsub.f32 %v693, %v2226
      %v2293 = vsub.f32 %v694, %v2228
      %v2294 = vsub.f32 %v695, %v2230
      %2295 = vrot.lane.b32.xlu0 %v664, 125
      %v2296 = vpop.permute.xlu0 %2295
      %2297 = vrot.lane.b32.xlu0 %v665, 125
      %v2298 = vpop.permute.xlu0 %2297
      %2299 = vrot.lane.b32.xlu0 %v666, 125
      %v2300 = vpop.permute.xlu0 %2299
      %2301 = vrot.lane.b32.xlu0 %v667, 125
      %v2302 = vpop.permute.xlu0 %2301
      %2303 = vrot.lane.b32.xlu0 %v668, 125
      %v2304 = vpop.permute.xlu0 %2303
      %2305 = vrot.lane.b32.xlu0 %v669, 125
      %v2306 = vpop.permute.xlu0 %2305
      %2307 = vrot.lane.b32.xlu0 %v670, 125
      %v2308 = vpop.permute.xlu0 %2307
      %2309 = vrot.lane.b32.xlu0 %v671, 125
      %v2310 = vpop.permute.xlu0 %2309
      %2311 = vrot.lane.b32.xlu0 %v672, 125
      %v2312 = vpop.permute.xlu0 %2311
      %2313 = vrot.lane.b32.xlu0 %v673, 125
      %v2314 = vpop.permute.xlu0 %2313
      %2315 = vrot.lane.b32.xlu0 %v674, 125
      %v2316 = vpop.permute.xlu0 %2315
      %2317 = vrot.lane.b32.xlu0 %v675, 125
      %v2318 = vpop.permute.xlu0 %2317
      %2319 = vrot.lane.b32.xlu0 %v676, 125
      %v2320 = vpop.permute.xlu0 %2319
      %2321 = vrot.lane.b32.xlu0 %v677, 125
      %v2322 = vpop.permute.xlu0 %2321
      %2323 = vrot.lane.b32.xlu0 %v678, 125
      %v2324 = vpop.permute.xlu0 %2323
      %2325 = vrot.lane.b32.xlu0 %v679, 125
      %v2326 = vpop.permute.xlu0 %2325
      %2327 = vrot.lane.b32.xlu0 %v680, 125
      %v2328 = vpop.permute.xlu0 %2327
      %2329 = vrot.lane.b32.xlu0 %v681, 125
      %v2330 = vpop.permute.xlu0 %2329
      %2331 = vrot.lane.b32.xlu0 %v682, 125
      %v2332 = vpop.permute.xlu0 %2331
      %2333 = vrot.lane.b32.xlu0 %v683, 125
      %v2334 = vpop.permute.xlu0 %2333
      %2335 = vrot.lane.b32.xlu0 %v684, 125
      %v2336 = vpop.permute.xlu0 %2335
      %2337 = vrot.lane.b32.xlu0 %v685, 125
      %v2338 = vpop.permute.xlu0 %2337
      %2339 = vrot.lane.b32.xlu0 %v686, 125
      %v2340 = vpop.permute.xlu0 %2339
      %2341 = vrot.lane.b32.xlu0 %v687, 125
      %v2342 = vpop.permute.xlu0 %2341
      %2343 = vrot.lane.b32.xlu0 %v688, 125
      %v2344 = vpop.permute.xlu0 %2343
      %2345 = vrot.lane.b32.xlu0 %v689, 125
      %v2346 = vpop.permute.xlu0 %2345
      %2347 = vrot.lane.b32.xlu0 %v690, 125
      %v2348 = vpop.permute.xlu0 %2347
      %2349 = vrot.lane.b32.xlu0 %v691, 125
      %v2350 = vpop.permute.xlu0 %2349
      %2351 = vrot.lane.b32.xlu0 %v692, 125
      %v2352 = vpop.permute.xlu0 %2351
      %2353 = vrot.lane.b32.xlu0 %v693, 125
      %v2354 = vpop.permute.xlu0 %2353
      %2355 = vrot.lane.b32.xlu0 %v694, 125
      %v2356 = vpop.permute.xlu0 %2355
      %2357 = vrot.lane.b32.xlu0 %v695, 125
      %v2358 = vpop.permute.xlu0 %2357
      %v2391 = vrcp.pop %v2296
      %v2392 = vmul.f32 %v2135, %v2391
      %v2393 = vrcp.pop %v2298
      %v2394 = vmul.f32 %v2136, %v2393
      %v2395 = vrcp.pop %v2300
      %v2396 = vmul.f32 %v2137, %v2395
      %v2397 = vrcp.pop %v2302
      %v2398 = vmul.f32 %v2138, %v2397
      %v2399 = vrcp.pop %v2304
      %v2400 = vmul.f32 %v2139, %v2399
      %v2401 = vrcp.pop %v2306
      %v2402 = vmul.f32 %v2140, %v2401
      %v2403 = vrcp.pop %v2308
      %v2404 = vmul.f32 %v2141, %v2403
      %v2405 = vrcp.pop %v2310
      %v2406 = vmul.f32 %v2142, %v2405
      %v2407 = vrcp.pop %v2312
      %v2408 = vmul.f32 %v2143, %v2407
      %v2409 = vrcp.pop %v2314
      %v2410 = vmul.f32 %v2144, %v2409
      %v2411 = vrcp.pop %v2316
      %v2412 = vmul.f32 %v2145, %v2411
      %v2413 = vrcp.pop %v2318
      %v2414 = vmul.f32 %v2146, %v2413
      %v2415 = vrcp.pop %v2320
      %v2416 = vmul.f32 %v2147, %v2415
      %v2417 = vrcp.pop %v2322
      %v2418 = vmul.f32 %v2148, %v2417
      %v2419 = vrcp.pop %v2324
      %v2420 = vmul.f32 %v2149, %v2419
      %v2421 = vrcp.pop %v2326
      %v2422 = vmul.f32 %v2150, %v2421
      %v2423 = vrcp.pop %v2328
      %v2424 = vmul.f32 %v2151, %v2423
      %v2425 = vrcp.pop %v2330
      %v2426 = vmul.f32 %v2152, %v2425
      %v2427 = vrcp.pop %v2332
      %v2428 = vmul.f32 %v2153, %v2427
      %v2429 = vrcp.pop %v2334
      %v2430 = vmul.f32 %v2154, %v2429
      %v2431 = vrcp.pop %v2336
      %v2432 = vmul.f32 %v2155, %v2431
      %v2433 = vrcp.pop %v2338
      %v2434 = vmul.f32 %v2156, %v2433
      %v2435 = vrcp.pop %v2340
      %v2436 = vmul.f32 %v2157, %v2435
      %v2437 = vrcp.pop %v2342
      %v2438 = vmul.f32 %v2158, %v2437
      %v2439 = vrcp.pop %v2344
      %v2440 = vmul.f32 %v2159, %v2439
      %v2441 = vrcp.pop %v2346
      %v2442 = vmul.f32 %v2160, %v2441
      %v2443 = vrcp.pop %v2348
      %v2444 = vmul.f32 %v2161, %v2443
      %v2445 = vrcp.pop %v2350
      %v2446 = vmul.f32 %v2162, %v2445
      %v2447 = vrcp.pop %v2352
      %v2448 = vmul.f32 %v2163, %v2447
      %v2449 = vrcp.pop %v2354
      %v2450 = vmul.f32 %v2164, %v2449
      %v2451 = vrcp.pop %v2356
      %v2452 = vmul.f32 %v2165, %v2451
      %v2453 = vrcp.pop %v2358
      %v2454 = vmul.f32 %v2166, %v2453
      %v2455 = vmax.f32 %v2392, 3.0
      %v2456 = vmax.f32 %v2394, 3.0
      %v2457 = vmax.f32 %v2396, 3.0
      %v2458 = vmax.f32 %v2398, 3.0
      %v2459 = vmax.f32 %v2400, 3.0
      %v2460 = vmax.f32 %v2402, 3.0
      %v2461 = vmax.f32 %v2404, 3.0
      %v2462 = vmax.f32 %v2406, 3.0
      %v2463 = vmax.f32 %v2408, 3.0
      %v2464 = vmax.f32 %v2410, 3.0
      %v2465 = vmax.f32 %v2412, 3.0
      %v2466 = vmax.f32 %v2414, 3.0
      %v2467 = vmax.f32 %v2416, 3.0
      %v2468 = vmax.f32 %v2418, 3.0
      %v2469 = vmax.f32 %v2420, 3.0
      %v2470 = vmax.f32 %v2422, 3.0
      %v2471 = vmax.f32 %v2424, 3.0
      %v2472 = vmax.f32 %v2426, 3.0
      %v2473 = vmax.f32 %v2428, 3.0
      %v2474 = vmax.f32 %v2430, 3.0
      %v2475 = vmax.f32 %v2432, 3.0
      %v2476 = vmax.f32 %v2434, 3.0
      %v2477 = vmax.f32 %v2436, 3.0
      %v2478 = vmax.f32 %v2438, 3.0
      %v2479 = vmax.f32 %v2440, 3.0
      %v2480 = vmax.f32 %v2442, 3.0
      %v2481 = vmax.f32 %v2444, 3.0
      %v2482 = vmax.f32 %v2446, 3.0
      %v2483 = vmax.f32 %v2448, 3.0
      %v2484 = vmax.f32 %v2450, 3.0
      %v2485 = vmax.f32 %v2452, 3.0
      %v2486 = vmax.f32 %v2454, 3.0
      %v2487 = vmin.f32 %v2455, 100.0
      %v2488 = vmin.f32 %v2456, 100.0
      %v2489 = vmin.f32 %v2457, 100.0
      %v2490 = vmin.f32 %v2458, 100.0
      %v2491 = vmin.f32 %v2459, 100.0
      %v2492 = vmin.f32 %v2460, 100.0
      %v2493 = vmin.f32 %v2461, 100.0
      %v2494 = vmin.f32 %v2462, 100.0
      %v2495 = vmin.f32 %v2463, 100.0
      %v2496 = vmin.f32 %v2464, 100.0
      %v2497 = vmin.f32 %v2465, 100.0
      %v2498 = vmin.f32 %v2466, 100.0
      %v2499 = vmin.f32 %v2467, 100.0
      %v2500 = vmin.f32 %v2468, 100.0
      %v2501 = vmin.f32 %v2469, 100.0
      %v2502 = vmin.f32 %v2470, 100.0
      %v2503 = vmin.f32 %v2471, 100.0
      %v2504 = vmin.f32 %v2472, 100.0
      %v2505 = vmin.f32 %v2473, 100.0
      %v2506 = vmin.f32 %v2474, 100.0
      %v2507 = vmin.f32 %v2475, 100.0
      %v2508 = vmin.f32 %v2476, 100.0
      %v2509 = vmin.f32 %v2477, 100.0
      %v2510 = vmin.f32 %v2478, 100.0
      %v2511 = vmin.f32 %v2479, 100.0
      %v2512 = vmin.f32 %v2480, 100.0
      %v2513 = vmin.f32 %v2481, 100.0
      %v2514 = vmin.f32 %v2482, 100.0
      %v2515 = vmin.f32 %v2483, 100.0
      %v2516 = vmin.f32 %v2484, 100.0
      %v2517 = vmin.f32 %v2485, 100.0
      %v2518 = vmin.f32 %v2486, 100.0
      %2519 = vrot.lane.b32.xlu0 %v664, 121
      %v2520 = vpop.permute.xlu0 %2519
      %2521 = vrot.lane.b32.xlu0 %v665, 121
      %v2522 = vpop.permute.xlu0 %2521
      %2523 = vrot.lane.b32.xlu0 %v666, 121
      %v2524 = vpop.permute.xlu0 %2523
      %2525 = vrot.lane.b32.xlu0 %v667, 121
      %v2526 = vpop.permute.xlu0 %2525
      %2527 = vrot.lane.b32.xlu0 %v668, 121
      %v2528 = vpop.permute.xlu0 %2527
      %2529 = vrot.lane.b32.xlu0 %v669, 121
      %v2530 = vpop.permute.xlu0 %2529
      %2531 = vrot.lane.b32.xlu0 %v670, 121
      %v2532 = vpop.permute.xlu0 %2531
      %2533 = vrot.lane.b32.xlu0 %v671, 121
      %v2534 = vpop.permute.xlu0 %2533
      %2535 = vrot.lane.b32.xlu0 %v672, 121
      %v2536 = vpop.permute.xlu0 %2535
      %2537 = vrot.lane.b32.xlu0 %v673, 121
      %v2538 = vpop.permute.xlu0 %2537
      %2539 = vrot.lane.b32.xlu0 %v674, 121
      %v2540 = vpop.permute.xlu0 %2539
      %2541 = vrot.lane.b32.xlu0 %v675, 121
      %v2542 = vpop.permute.xlu0 %2541
      %2543 = vrot.lane.b32.xlu0 %v676, 121
      %v2544 = vpop.permute.xlu0 %2543
      %2545 = vrot.lane.b32.xlu0 %v677, 121
      %v2546 = vpop.permute.xlu0 %2545
      %2547 = vrot.lane.b32.xlu0 %v678, 121
      %v2548 = vpop.permute.xlu0 %2547
      %2549 = vrot.lane.b32.xlu0 %v679, 121
      %v2550 = vpop.permute.xlu0 %2549
      %2551 = vrot.lane.b32.xlu0 %v680, 121
      %v2552 = vpop.permute.xlu0 %2551
      %2553 = vrot.lane.b32.xlu0 %v681, 121
      %v2554 = vpop.permute.xlu0 %2553
      %2555 = vrot.lane.b32.xlu0 %v682, 121
      %v2556 = vpop.permute.xlu0 %2555
      %2557 = vrot.lane.b32.xlu0 %v683, 121
      %v2558 = vpop.permute.xlu0 %2557
      %2559 = vrot.lane.b32.xlu0 %v684, 121
      %v2560 = vpop.permute.xlu0 %2559
      %2561 = vrot.lane.b32.xlu0 %v685, 121
      %v2562 = vpop.permute.xlu0 %2561
      %2563 = vrot.lane.b32.xlu0 %v686, 121
      %v2564 = vpop.permute.xlu0 %2563
      %2565 = vrot.lane.b32.xlu0 %v687, 121
      %v2566 = vpop.permute.xlu0 %2565
      %2567 = vrot.lane.b32.xlu0 %v688, 121
      %v2568 = vpop.permute.xlu0 %2567
      %2569 = vrot.lane.b32.xlu0 %v689, 121
      %v2570 = vpop.permute.xlu0 %2569
      %2571 = vrot.lane.b32.xlu0 %v690, 121
      %v2572 = vpop.permute.xlu0 %2571
      %2573 = vrot.lane.b32.xlu0 %v691, 121
      %v2574 = vpop.permute.xlu0 %2573
      %2575 = vrot.lane.b32.xlu0 %v692, 121
      %v2576 = vpop.permute.xlu0 %2575
      %2577 = vrot.lane.b32.xlu0 %v693, 121
      %v2578 = vpop.permute.xlu0 %2577
      %2579 = vrot.lane.b32.xlu0 %v694, 121
      %v2580 = vpop.permute.xlu0 %2579
      %2581 = vrot.lane.b32.xlu0 %v695, 121
      %v2582 = vpop.permute.xlu0 %2581
      %v2615 = vmul.f32 %v664, %v2520
      %v2616 = vmul.f32 %v665, %v2522
      %v2617 = vmul.f32 %v666, %v2524
      %v2618 = vmul.f32 %v667, %v2526
      %v2619 = vmul.f32 %v668, %v2528
      %v2620 = vmul.f32 %v669, %v2530
      %v2621 = vmul.f32 %v670, %v2532
      %v2622 = vmul.f32 %v671, %v2534
      %v2623 = vmul.f32 %v672, %v2536
      %v2624 = vmul.f32 %v673, %v2538
      %v2625 = vmul.f32 %v674, %v2540
      %v2626 = vmul.f32 %v675, %v2542
      %v2627 = vmul.f32 %v676, %v2544
      %v2628 = vmul.f32 %v677, %v2546
      %v2629 = vmul.f32 %v678, %v2548
      %v2630 = vmul.f32 %v679, %v2550
      %v2631 = vmul.f32 %v680, %v2552
      %v2632 = vmul.f32 %v681, %v2554
      %v2633 = vmul.f32 %v682, %v2556
      %v2634 = vmul.f32 %v683, %v2558
      %v2635 = vmul.f32 %v684, %v2560
      %v2636 = vmul.f32 %v685, %v2562
      %v2637 = vmul.f32 %v686, %v2564
      %v2638 = vmul.f32 %v687, %v2566
      %v2639 = vmul.f32 %v688, %v2568
      %v2640 = vmul.f32 %v689, %v2570
      %v2641 = vmul.f32 %v690, %v2572
      %v2642 = vmul.f32 %v691, %v2574
      %v2643 = vmul.f32 %v692, %v2576
      %v2644 = vmul.f32 %v693, %v2578
      %v2645 = vmul.f32 %v694, %v2580
      %v2646 = vmul.f32 %v695, %v2582
      %2679 = vrot.lane.b32.xlu0 %v2135, 8
      %v2680 = vpop.permute.xlu0 %2679
      %2681 = vrot.lane.b32.xlu0 %v2136, 8
      %v2682 = vpop.permute.xlu0 %2681
      %2683 = vrot.lane.b32.xlu0 %v2137, 8
      %v2684 = vpop.permute.xlu0 %2683
      %2685 = vrot.lane.b32.xlu0 %v2138, 8
      %v2686 = vpop.permute.xlu0 %2685
      %2687 = vrot.lane.b32.xlu0 %v2139, 8
      %v2688 = vpop.permute.xlu0 %2687
      %2689 = vrot.lane.b32.xlu0 %v2140, 8
      %v2690 = vpop.permute.xlu0 %2689
      %2691 = vrot.lane.b32.xlu0 %v2141, 8
      %v2692 = vpop.permute.xlu0 %2691
      %2693 = vrot.lane.b32.xlu0 %v2142, 8
      %v2694 = vpop.permute.xlu0 %2693
      %2695 = vrot.lane.b32.xlu0 %v2143, 8
      %v2696 = vpop.permute.xlu0 %2695
      %2697 = vrot.lane.b32.xlu0 %v2144, 8
      %v2698 = vpop.permute.xlu0 %2697
      %2699 = vrot.lane.b32.xlu0 %v2145, 8
      %v2700 = vpop.permute.xlu0 %2699
      %2701 = vrot.lane.b32.xlu0 %v2146, 8
      %v2702 = vpop.permute.xlu0 %2701
      %2703 = vrot.lane.b32.xlu0 %v2147, 8
      %v2704 = vpop.permute.xlu0 %2703
      %2705 = vrot.lane.b32.xlu0 %v2148, 8
      %v2706 = vpop.permute.xlu0 %2705
      %2707 = vrot.lane.b32.xlu0 %v2149, 8
      %v2708 = vpop.permute.xlu0 %2707
      %2709 = vrot.lane.b32.xlu0 %v2150, 8
      %v2710 = vpop.permute.xlu0 %2709
      %2711 = vrot.lane.b32.xlu0 %v2151, 8
      %v2712 = vpop.permute.xlu0 %2711
      %2713 = vrot.lane.b32.xlu0 %v2152, 8
      %v2714 = vpop.permute.xlu0 %2713
      %2715 = vrot.lane.b32.xlu0 %v2153, 8
      %v2716 = vpop.permute.xlu0 %2715
      %2717 = vrot.lane.b32.xlu0 %v2154, 8
      %v2718 = vpop.permute.xlu0 %2717
      %2719 = vrot.lane.b32.xlu0 %v2155, 8
      %v2720 = vpop.permute.xlu0 %2719
      %2721 = vrot.lane.b32.xlu0 %v2156, 8
      %v2722 = vpop.permute.xlu0 %2721
      %2723 = vrot.lane.b32.xlu0 %v2157, 8
      %v2724 = vpop.permute.xlu0 %2723
      %2725 = vrot.lane.b32.xlu0 %v2158, 8
      %v2726 = vpop.permute.xlu0 %2725
      %2727 = vrot.lane.b32.xlu0 %v2159, 8
      %v2728 = vpop.permute.xlu0 %2727
      %2729 = vrot.lane.b32.xlu0 %v2160, 8
      %v2730 = vpop.permute.xlu0 %2729
      %2731 = vrot.lane.b32.xlu0 %v2161, 8
      %v2732 = vpop.permute.xlu0 %2731
      %2733 = vrot.lane.b32.xlu0 %v2162, 8
      %v2734 = vpop.permute.xlu0 %2733
      %2735 = vrot.lane.b32.xlu0 %v2163, 8
      %v2736 = vpop.permute.xlu0 %2735
      %2737 = vrot.lane.b32.xlu0 %v2164, 8
      %v2738 = vpop.permute.xlu0 %2737
      %2739 = vrot.lane.b32.xlu0 %v2165, 8
      %v2740 = vpop.permute.xlu0 %2739
      %2741 = vrot.lane.b32.xlu0 %v2166, 8
      %v2742 = vpop.permute.xlu0 %2741
      %v2775 = vsub.f32 %v664, %v2680
      %v2776 = vsub.f32 %v665, %v2682
      %v2777 = vsub.f32 %v666, %v2684
      %v2778 = vsub.f32 %v667, %v2686
      %v2779 = vsub.f32 %v668, %v2688
      %v2780 = vsub.f32 %v669, %v2690
      %v2781 = vsub.f32 %v670, %v2692
      %v2782 = vsub.f32 %v671, %v2694
      %v2783 = vsub.f32 %v672, %v2696
      %v2784 = vsub.f32 %v673, %v2698
      %v2785 = vsub.f32 %v674, %v2700
      %v2786 = vsub.f32 %v675, %v2702
      %v2787 = vsub.f32 %v676, %v2704
      %v2788 = vsub.f32 %v677, %v2706
      %v2789 = vsub.f32 %v678, %v2708
      %v2790 = vsub.f32 %v679, %v2710
      %v2791 = vsub.f32 %v680, %v2712
      %v2792 = vsub.f32 %v681, %v2714
      %v2793 = vsub.f32 %v682, %v2716
      %v2794 = vsub.f32 %v683, %v2718
      %v2795 = vsub.f32 %v684, %v2720
      %v2796 = vsub.f32 %v685, %v2722
      %v2797 = vsub.f32 %v686, %v2724
      %v2798 = vsub.f32 %v687, %v2726
      %v2799 = vsub.f32 %v688, %v2728
      %v2800 = vsub.f32 %v689, %v2730
      %v2801 = vsub.f32 %v690, %v2732
      %v2802 = vsub.f32 %v691, %v2734
      %v2803 = vsub.f32 %v692, %v2736
      %v2804 = vsub.f32 %v693, %v2738
      %v2805 = vsub.f32 %v694, %v2740
      %v2806 = vsub.f32 %v695, %v2742
      %v2807 = vsub.f32 %v664, %v2520
      %v2808 = vsub.f32 %v665, %v2522
      %v2809 = vsub.f32 %v666, %v2524
      %v2810 = vsub.f32 %v667, %v2526
      %v2811 = vsub.f32 %v668, %v2528
      %v2812 = vsub.f32 %v669, %v2530
      %v2813 = vsub.f32 %v670, %v2532
      %v2814 = vsub.f32 %v671, %v2534
      %v2815 = vsub.f32 %v672, %v2536
      %v2816 = vsub.f32 %v673, %v2538
      %v2817 = vsub.f32 %v674, %v2540
      %v2818 = vsub.f32 %v675, %v2542
      %v2819 = vsub.f32 %v676, %v2544
      %v2820 = vsub.f32 %v677, %v2546
      %v2821 = vsub.f32 %v678, %v2548
      %v2822 = vsub.f32 %v679, %v2550
      %v2823 = vsub.f32 %v680, %v2552
      %v2824 = vsub.f32 %v681, %v2554
      %v2825 = vsub.f32 %v682, %v2556
      %v2826 = vsub.f32 %v683, %v2558
      %v2827 = vsub.f32 %v684, %v2560
      %v2828 = vsub.f32 %v685, %v2562
      %v2829 = vsub.f32 %v686, %v2564
      %v2830 = vsub.f32 %v687, %v2566
      %v2831 = vsub.f32 %v688, %v2568
      %v2832 = vsub.f32 %v689, %v2570
      %v2833 = vsub.f32 %v690, %v2572
      %v2834 = vsub.f32 %v691, %v2574
      %v2835 = vsub.f32 %v692, %v2576
      %v2836 = vsub.f32 %v693, %v2578
      %v2837 = vsub.f32 %v694, %v2580
      %v2838 = vsub.f32 %v695, %v2582
      %v2839 = vld [vmem:[%s15] sm:$0xff]
      %v2840 = vld [vmem:[%s15 + $0x8] sm:$0xff]
      %v2841 = vld [vmem:[%s15 + $0x10] sm:$0x3]
      %v2842 = vld [vmem:[%s15 + $0x18] sm:$0x3]
      %v2843 = vld [vmem:[%s16] sm:$0x3]
      %v2845 = vlaneseq
      %v2846 = vshrl.u32 %v2845, 7
      %v2847 = vsub.s32 0, %v2846
      %v2848 = vrot.slane %v2843, %v2847
      %v2849 = vlaneseq
      %v2850 = vshrl.u32 %v2849, 7
      %v2851 = vsub.s32 1, %v2850
      %v2852 = vrot.slane %v2843, %v2851
      %2855 = vset.pattern.permute.xlu0 2
      %2856 = vperm.xlu0 %2855, %v2135
      %v2857 = vpop.permute.xlu0 %2856
      %2859 = vset.pattern.permute.xlu0 2
      %2860 = vperm.xlu0 %2859, %v2136
      %v2861 = vpop.permute.xlu0 %2860
      %2863 = vset.pattern.permute.xlu0 2
      %2864 = vperm.xlu0 %2863, %v2137
      %v2865 = vpop.permute.xlu0 %2864
      %2867 = vset.pattern.permute.xlu0 2
      %2868 = vperm.xlu0 %2867, %v2138
      %v2869 = vpop.permute.xlu0 %2868
      %2871 = vset.pattern.permute.xlu0 2
      %2872 = vperm.xlu0 %2871, %v2139
      %v2873 = vpop.permute.xlu0 %2872
      %2875 = vset.pattern.permute.xlu0 2
      %2876 = vperm.xlu0 %2875, %v2140
      %v2877 = vpop.permute.xlu0 %2876
      %2879 = vset.pattern.permute.xlu0 2
      %2880 = vperm.xlu0 %2879, %v2141
      %v2881 = vpop.permute.xlu0 %2880
      %2883 = vset.pattern.permute.xlu0 2
      %2884 = vperm.xlu0 %2883, %v2142
      %v2885 = vpop.permute.xlu0 %2884
      %2887 = vset.pattern.permute.xlu0 2
      %2888 = vperm.xlu0 %2887, %v2143
      %v2889 = vpop.permute.xlu0 %2888
      %2891 = vset.pattern.permute.xlu0 2
      %2892 = vperm.xlu0 %2891, %v2144
      %v2893 = vpop.permute.xlu0 %2892
      %2895 = vset.pattern.permute.xlu0 2
      %2896 = vperm.xlu0 %2895, %v2145
      %v2897 = vpop.permute.xlu0 %2896
      %2899 = vset.pattern.permute.xlu0 2
      %2900 = vperm.xlu0 %2899, %v2146
      %v2901 = vpop.permute.xlu0 %2900
      %2903 = vset.pattern.permute.xlu0 2
      %2904 = vperm.xlu0 %2903, %v2147
      %v2905 = vpop.permute.xlu0 %2904
      %2907 = vset.pattern.permute.xlu0 2
      %2908 = vperm.xlu0 %2907, %v2148
      %v2909 = vpop.permute.xlu0 %2908
      %2911 = vset.pattern.permute.xlu0 2
      %2912 = vperm.xlu0 %2911, %v2149
      %v2913 = vpop.permute.xlu0 %2912
      %2915 = vset.pattern.permute.xlu0 2
      %2916 = vperm.xlu0 %2915, %v2150
      %v2917 = vpop.permute.xlu0 %2916
      %2919 = vset.pattern.permute.xlu0 2
      %2920 = vperm.xlu0 %2919, %v2151
      %v2921 = vpop.permute.xlu0 %2920
      %2923 = vset.pattern.permute.xlu0 2
      %2924 = vperm.xlu0 %2923, %v2152
      %v2925 = vpop.permute.xlu0 %2924
      %2927 = vset.pattern.permute.xlu0 2
      %2928 = vperm.xlu0 %2927, %v2153
      %v2929 = vpop.permute.xlu0 %2928
      %2931 = vset.pattern.permute.xlu0 2
      %2932 = vperm.xlu0 %2931, %v2154
      %v2933 = vpop.permute.xlu0 %2932
      %2935 = vset.pattern.permute.xlu0 2
      %2936 = vperm.xlu0 %2935, %v2155
      %v2937 = vpop.permute.xlu0 %2936
      %2939 = vset.pattern.permute.xlu0 2
      %2940 = vperm.xlu0 %2939, %v2156
      %v2941 = vpop.permute.xlu0 %2940
      %2943 = vset.pattern.permute.xlu0 2
      %2944 = vperm.xlu0 %2943, %v2157
      %v2945 = vpop.permute.xlu0 %2944
      %2947 = vset.pattern.permute.xlu0 2
      %2948 = vperm.xlu0 %2947, %v2158
      %v2949 = vpop.permute.xlu0 %2948
      %2951 = vset.pattern.permute.xlu0 2
      %2952 = vperm.xlu0 %2951, %v2159
      %v2953 = vpop.permute.xlu0 %2952
      %2955 = vset.pattern.permute.xlu0 2
      %2956 = vperm.xlu0 %2955, %v2160
      %v2957 = vpop.permute.xlu0 %2956
      %2959 = vset.pattern.permute.xlu0 2
      %2960 = vperm.xlu0 %2959, %v2161
      %v2961 = vpop.permute.xlu0 %2960
      %2963 = vset.pattern.permute.xlu0 2
      %2964 = vperm.xlu0 %2963, %v2162
      %v2965 = vpop.permute.xlu0 %2964
      %2967 = vset.pattern.permute.xlu0 2
      %2968 = vperm.xlu0 %2967, %v2163
      %v2969 = vpop.permute.xlu0 %2968
      %2971 = vset.pattern.permute.xlu0 2
      %2972 = vperm.xlu0 %2971, %v2164
      %v2973 = vpop.permute.xlu0 %2972
      %2975 = vset.pattern.permute.xlu0 2
      %2976 = vperm.xlu0 %2975, %v2165
      %v2977 = vpop.permute.xlu0 %2976
      %2979 = vset.pattern.permute.xlu0 2
      %2980 = vperm.xlu0 %2979, %v2166
      %v2981 = vpop.permute.xlu0 %2980
      %v2983 = vlaneseq
      %v2984 = vshrl.u32 %v2983, 7
      %v2985 = vsub.s32 0, %v2984
      %v2986 = vrot.slane %v2839, %v2985
      %v2987 = vlaneseq
      %v2988 = vshrl.u32 %v2987, 7
      %v2989 = vsub.s32 0, %v2988
      %v2990 = vrot.slane %v2840, %v2989
      %v2991 = vmul.f32 %v2857, %v2986
      %v2992 = vmul.f32 %v2857, %v2990
      %v2993 = vmul.f32 %v2861, %v2986
      %v2994 = vmul.f32 %v2861, %v2990
      %v2995 = vmul.f32 %v2865, %v2986
      %v2996 = vmul.f32 %v2865, %v2990
      %v2997 = vmul.f32 %v2869, %v2986
      %v2998 = vmul.f32 %v2869, %v2990
      %v2999 = vmul.f32 %v2873, %v2986
      %v3000 = vmul.f32 %v2873, %v2990
      %v3001 = vmul.f32 %v2877, %v2986
      %v3002 = vmul.f32 %v2877, %v2990
      %v3003 = vmul.f32 %v2881, %v2986
      %v3004 = vmul.f32 %v2881, %v2990
      %v3005 = vmul.f32 %v2885, %v2986
      %v3006 = vmul.f32 %v2885, %v2990
      %v3007 = vmul.f32 %v2889, %v2986
      %v3008 = vmul.f32 %v2889, %v2990
      %v3009 = vmul.f32 %v2893, %v2986
      %v3010 = vmul.f32 %v2893, %v2990
      %v3011 = vmul.f32 %v2897, %v2986
      %v3012 = vmul.f32 %v2897, %v2990
      %v3013 = vmul.f32 %v2901, %v2986
      %v3014 = vmul.f32 %v2901, %v2990
      %v3015 = vmul.f32 %v2905, %v2986
      %v3016 = vmul.f32 %v2905, %v2990
      %v3017 = vmul.f32 %v2909, %v2986
      %v3018 = vmul.f32 %v2909, %v2990
      %v3019 = vmul.f32 %v2913, %v2986
      %v3020 = vmul.f32 %v2913, %v2990
      %v3021 = vmul.f32 %v2917, %v2986
      %v3022 = vmul.f32 %v2917, %v2990
      %v3023 = vmul.f32 %v2921, %v2986
      %v3024 = vmul.f32 %v2921, %v2990
      %v3025 = vmul.f32 %v2925, %v2986
      %v3026 = vmul.f32 %v2925, %v2990
      %v3027 = vmul.f32 %v2929, %v2986
      %v3028 = vmul.f32 %v2929, %v2990
      %v3029 = vmul.f32 %v2933, %v2986
      %v3030 = vmul.f32 %v2933, %v2990
      %v3031 = vmul.f32 %v2937, %v2986
      %v3032 = vmul.f32 %v2937, %v2990
      %v3033 = vmul.f32 %v2941, %v2986
      %v3034 = vmul.f32 %v2941, %v2990
      %v3035 = vmul.f32 %v2945, %v2986
      %v3036 = vmul.f32 %v2945, %v2990
      %v3037 = vmul.f32 %v2949, %v2986
      %v3038 = vmul.f32 %v2949, %v2990
      %v3039 = vmul.f32 %v2953, %v2986
      %v3040 = vmul.f32 %v2953, %v2990
      %v3041 = vmul.f32 %v2957, %v2986
      %v3042 = vmul.f32 %v2957, %v2990
      %v3043 = vmul.f32 %v2961, %v2986
      %v3044 = vmul.f32 %v2961, %v2990
      %v3045 = vmul.f32 %v2965, %v2986
      %v3046 = vmul.f32 %v2965, %v2990
      %v3047 = vmul.f32 %v2969, %v2986
      %v3048 = vmul.f32 %v2969, %v2990
      %v3049 = vmul.f32 %v2973, %v2986
      %v3050 = vmul.f32 %v2973, %v2990
      %v3051 = vmul.f32 %v2977, %v2986
      %v3052 = vmul.f32 %v2977, %v2990
      %v3053 = vmul.f32 %v2981, %v2986
      %v3054 = vmul.f32 %v2981, %v2990
      %v3055 = vadd.f32 %v2848, %v2991
      %v3056 = vadd.f32 %v2852, %v2992
      %v3057 = vadd.f32 %v2848, %v2993
      %v3058 = vadd.f32 %v2852, %v2994
      %v3059 = vadd.f32 %v2848, %v2995
      %v3060 = vadd.f32 %v2852, %v2996
      %v3061 = vadd.f32 %v2848, %v2997
      %v3062 = vadd.f32 %v2852, %v2998
      %v3063 = vadd.f32 %v2848, %v2999
      %v3064 = vadd.f32 %v2852, %v3000
      %v3065 = vadd.f32 %v2848, %v3001
      %v3066 = vadd.f32 %v2852, %v3002
      %v3067 = vadd.f32 %v2848, %v3003
      %v3068 = vadd.f32 %v2852, %v3004
      %v3069 = vadd.f32 %v2848, %v3005
      %v3070 = vadd.f32 %v2852, %v3006
      %v3071 = vadd.f32 %v2848, %v3007
      %v3072 = vadd.f32 %v2852, %v3008
      %v3073 = vadd.f32 %v2848, %v3009
      %v3074 = vadd.f32 %v2852, %v3010
      %v3075 = vadd.f32 %v2848, %v3011
      %v3076 = vadd.f32 %v2852, %v3012
      %v3077 = vadd.f32 %v2848, %v3013
      %v3078 = vadd.f32 %v2852, %v3014
      %v3079 = vadd.f32 %v2848, %v3015
      %v3080 = vadd.f32 %v2852, %v3016
      %v3081 = vadd.f32 %v2848, %v3017
      %v3082 = vadd.f32 %v2852, %v3018
      %v3083 = vadd.f32 %v2848, %v3019
      %v3084 = vadd.f32 %v2852, %v3020
      %v3085 = vadd.f32 %v2848, %v3021
      %v3086 = vadd.f32 %v2852, %v3022
      %v3087 = vadd.f32 %v2848, %v3023
      %v3088 = vadd.f32 %v2852, %v3024
      %v3089 = vadd.f32 %v2848, %v3025
      %v3090 = vadd.f32 %v2852, %v3026
      %v3091 = vadd.f32 %v2848, %v3027
      %v3092 = vadd.f32 %v2852, %v3028
      %v3093 = vadd.f32 %v2848, %v3029
      %v3094 = vadd.f32 %v2852, %v3030
      %v3095 = vadd.f32 %v2848, %v3031
      %v3096 = vadd.f32 %v2852, %v3032
      %v3097 = vadd.f32 %v2848, %v3033
      %v3098 = vadd.f32 %v2852, %v3034
      %v3099 = vadd.f32 %v2848, %v3035
      %v3100 = vadd.f32 %v2852, %v3036
      %v3101 = vadd.f32 %v2848, %v3037
      %v3102 = vadd.f32 %v2852, %v3038
      %v3103 = vadd.f32 %v2848, %v3039
      %v3104 = vadd.f32 %v2852, %v3040
      %v3105 = vadd.f32 %v2848, %v3041
      %v3106 = vadd.f32 %v2852, %v3042
      %v3107 = vadd.f32 %v2848, %v3043
      %v3108 = vadd.f32 %v2852, %v3044
      %v3109 = vadd.f32 %v2848, %v3045
      %v3110 = vadd.f32 %v2852, %v3046
      %v3111 = vadd.f32 %v2848, %v3047
      %v3112 = vadd.f32 %v2852, %v3048
      %v3113 = vadd.f32 %v2848, %v3049
      %v3114 = vadd.f32 %v2852, %v3050
      %v3115 = vadd.f32 %v2848, %v3051
      %v3116 = vadd.f32 %v2852, %v3052
      %v3117 = vadd.f32 %v2848, %v3053
      %v3118 = vadd.f32 %v2852, %v3054
      %3119 = vset.pattern.permute.xlu0 2
      %3120 = vperm.xlu0 %3119, %v664
      %v3121 = vpop.permute.xlu0 %3120
      %3123 = vset.pattern.permute.xlu0 2
      %3124 = vperm.xlu0 %3123, %v665
      %v3125 = vpop.permute.xlu0 %3124
      %3127 = vset.pattern.permute.xlu0 2
      %3128 = vperm.xlu0 %3127, %v666
      %v3129 = vpop.permute.xlu0 %3128
      %3131 = vset.pattern.permute.xlu0 2
      %3132 = vperm.xlu0 %3131, %v667
      %v3133 = vpop.permute.xlu0 %3132
      %3135 = vset.pattern.permute.xlu0 2
      %3136 = vperm.xlu0 %3135, %v668
      %v3137 = vpop.permute.xlu0 %3136
      %3139 = vset.pattern.permute.xlu0 2
      %3140 = vperm.xlu0 %3139, %v669
      %v3141 = vpop.permute.xlu0 %3140
      %3143 = vset.pattern.permute.xlu0 2
      %3144 = vperm.xlu0 %3143, %v670
      %v3145 = vpop.permute.xlu0 %3144
      %3147 = vset.pattern.permute.xlu0 2
      %3148 = vperm.xlu0 %3147, %v671
      %v3149 = vpop.permute.xlu0 %3148
      %3151 = vset.pattern.permute.xlu0 2
      %3152 = vperm.xlu0 %3151, %v672
      %v3153 = vpop.permute.xlu0 %3152
      %3155 = vset.pattern.permute.xlu0 2
      %3156 = vperm.xlu0 %3155, %v673
      %v3157 = vpop.permute.xlu0 %3156
      %3159 = vset.pattern.permute.xlu0 2
      %3160 = vperm.xlu0 %3159, %v674
      %v3161 = vpop.permute.xlu0 %3160
      %3163 = vset.pattern.permute.xlu0 2
      %3164 = vperm.xlu0 %3163, %v675
      %v3165 = vpop.permute.xlu0 %3164
      %3167 = vset.pattern.permute.xlu0 2
      %3168 = vperm.xlu0 %3167, %v676
      %v3169 = vpop.permute.xlu0 %3168
      %3171 = vset.pattern.permute.xlu0 2
      %3172 = vperm.xlu0 %3171, %v677
      %v3173 = vpop.permute.xlu0 %3172
      %3175 = vset.pattern.permute.xlu0 2
      %3176 = vperm.xlu0 %3175, %v678
      %v3177 = vpop.permute.xlu0 %3176
      %3179 = vset.pattern.permute.xlu0 2
      %3180 = vperm.xlu0 %3179, %v679
      %v3181 = vpop.permute.xlu0 %3180
      %3183 = vset.pattern.permute.xlu0 2
      %3184 = vperm.xlu0 %3183, %v680
      %v3185 = vpop.permute.xlu0 %3184
      %3187 = vset.pattern.permute.xlu0 2
      %3188 = vperm.xlu0 %3187, %v681
      %v3189 = vpop.permute.xlu0 %3188
      %3191 = vset.pattern.permute.xlu0 2
      %3192 = vperm.xlu0 %3191, %v682
      %v3193 = vpop.permute.xlu0 %3192
      %3195 = vset.pattern.permute.xlu0 2
      %3196 = vperm.xlu0 %3195, %v683
      %v3197 = vpop.permute.xlu0 %3196
      %3199 = vset.pattern.permute.xlu0 2
      %3200 = vperm.xlu0 %3199, %v684
      %v3201 = vpop.permute.xlu0 %3200
      %3203 = vset.pattern.permute.xlu0 2
      %3204 = vperm.xlu0 %3203, %v685
      %v3205 = vpop.permute.xlu0 %3204
      %3207 = vset.pattern.permute.xlu0 2
      %3208 = vperm.xlu0 %3207, %v686
      %v3209 = vpop.permute.xlu0 %3208
      %3211 = vset.pattern.permute.xlu0 2
      %3212 = vperm.xlu0 %3211, %v687
      %v3213 = vpop.permute.xlu0 %3212
      %3215 = vset.pattern.permute.xlu0 2
      %3216 = vperm.xlu0 %3215, %v688
      %v3217 = vpop.permute.xlu0 %3216
      %3219 = vset.pattern.permute.xlu0 2
      %3220 = vperm.xlu0 %3219, %v689
      %v3221 = vpop.permute.xlu0 %3220
      %3223 = vset.pattern.permute.xlu0 2
      %3224 = vperm.xlu0 %3223, %v690
      %v3225 = vpop.permute.xlu0 %3224
      %3227 = vset.pattern.permute.xlu0 2
      %3228 = vperm.xlu0 %3227, %v691
      %v3229 = vpop.permute.xlu0 %3228
      %3231 = vset.pattern.permute.xlu0 2
      %3232 = vperm.xlu0 %3231, %v692
      %v3233 = vpop.permute.xlu0 %3232
      %3235 = vset.pattern.permute.xlu0 2
      %3236 = vperm.xlu0 %3235, %v693
      %v3237 = vpop.permute.xlu0 %3236
      %3239 = vset.pattern.permute.xlu0 2
      %3240 = vperm.xlu0 %3239, %v694
      %v3241 = vpop.permute.xlu0 %3240
      %3243 = vset.pattern.permute.xlu0 2
      %3244 = vperm.xlu0 %3243, %v695
      %v3245 = vpop.permute.xlu0 %3244
      %v3247 = vlaneseq
      %v3248 = vshrl.u32 %v3247, 7
      %v3249 = vsub.s32 1, %v3248
      %v3250 = vrot.slane %v2839, %v3249
      %v3251 = vlaneseq
      %v3252 = vshrl.u32 %v3251, 7
      %v3253 = vsub.s32 1, %v3252
      %v3254 = vrot.slane %v2840, %v3253
      %v3255 = vmul.f32 %v3121, %v3250
      %v3256 = vmul.f32 %v3121, %v3254
      %v3257 = vmul.f32 %v3125, %v3250
      %v3258 = vmul.f32 %v3125, %v3254
      %v3259 = vmul.f32 %v3129, %v3250
      %v3260 = vmul.f32 %v3129, %v3254
      %v3261 = vmul.f32 %v3133, %v3250
      %v3262 = vmul.f32 %v3133, %v3254
      %v3263 = vmul.f32 %v3137, %v3250
      %v3264 = vmul.f32 %v3137, %v3254
      %v3265 = vmul.f32 %v3141, %v3250
      %v3266 = vmul.f32 %v3141, %v3254
      %v3267 = vmul.f32 %v3145, %v3250
      %v3268 = vmul.f32 %v3145, %v3254
      %v3269 = vmul.f32 %v3149, %v3250
      %v3270 = vmul.f32 %v3149, %v3254
      %v3271 = vmul.f32 %v3153, %v3250
      %v3272 = vmul.f32 %v3153, %v3254
      %v3273 = vmul.f32 %v3157, %v3250
      %v3274 = vmul.f32 %v3157, %v3254
      %v3275 = vmul.f32 %v3161, %v3250
      %v3276 = vmul.f32 %v3161, %v3254
      %v3277 = vmul.f32 %v3165, %v3250
      %v3278 = vmul.f32 %v3165, %v3254
      %v3279 = vmul.f32 %v3169, %v3250
      %v3280 = vmul.f32 %v3169, %v3254
      %v3281 = vmul.f32 %v3173, %v3250
      %v3282 = vmul.f32 %v3173, %v3254
      %v3283 = vmul.f32 %v3177, %v3250
      %v3284 = vmul.f32 %v3177, %v3254
      %v3285 = vmul.f32 %v3181, %v3250
      %v3286 = vmul.f32 %v3181, %v3254
      %v3287 = vmul.f32 %v3185, %v3250
      %v3288 = vmul.f32 %v3185, %v3254
      %v3289 = vmul.f32 %v3189, %v3250
      %v3290 = vmul.f32 %v3189, %v3254
      %v3291 = vmul.f32 %v3193, %v3250
      %v3292 = vmul.f32 %v3193, %v3254
      %v3293 = vmul.f32 %v3197, %v3250
      %v3294 = vmul.f32 %v3197, %v3254
      %v3295 = vmul.f32 %v3201, %v3250
      %v3296 = vmul.f32 %v3201, %v3254
      %v3297 = vmul.f32 %v3205, %v3250
      %v3298 = vmul.f32 %v3205, %v3254
      %v3299 = vmul.f32 %v3209, %v3250
      %v3300 = vmul.f32 %v3209, %v3254
      %v3301 = vmul.f32 %v3213, %v3250
      %v3302 = vmul.f32 %v3213, %v3254
      %v3303 = vmul.f32 %v3217, %v3250
      %v3304 = vmul.f32 %v3217, %v3254
      %v3305 = vmul.f32 %v3221, %v3250
      %v3306 = vmul.f32 %v3221, %v3254
      %v3307 = vmul.f32 %v3225, %v3250
      %v3308 = vmul.f32 %v3225, %v3254
      %v3309 = vmul.f32 %v3229, %v3250
      %v3310 = vmul.f32 %v3229, %v3254
      %v3311 = vmul.f32 %v3233, %v3250
      %v3312 = vmul.f32 %v3233, %v3254
      %v3313 = vmul.f32 %v3237, %v3250
      %v3314 = vmul.f32 %v3237, %v3254
      %v3315 = vmul.f32 %v3241, %v3250
      %v3316 = vmul.f32 %v3241, %v3254
      %v3317 = vmul.f32 %v3245, %v3250
      %v3318 = vmul.f32 %v3245, %v3254
      %v3319 = vadd.f32 %v3055, %v3255
      %v3320 = vadd.f32 %v3056, %v3256
      %v3321 = vadd.f32 %v3057, %v3257
      %v3322 = vadd.f32 %v3058, %v3258
      %v3323 = vadd.f32 %v3059, %v3259
      %v3324 = vadd.f32 %v3060, %v3260
      %v3325 = vadd.f32 %v3061, %v3261
      %v3326 = vadd.f32 %v3062, %v3262
      %v3327 = vadd.f32 %v3063, %v3263
      %v3328 = vadd.f32 %v3064, %v3264
      %v3329 = vadd.f32 %v3065, %v3265
      %v3330 = vadd.f32 %v3066, %v3266
      %v3331 = vadd.f32 %v3067, %v3267
      %v3332 = vadd.f32 %v3068, %v3268
      %v3333 = vadd.f32 %v3069, %v3269
      %v3334 = vadd.f32 %v3070, %v3270
      %v3335 = vadd.f32 %v3071, %v3271
      %v3336 = vadd.f32 %v3072, %v3272
      %v3337 = vadd.f32 %v3073, %v3273
      %v3338 = vadd.f32 %v3074, %v3274
      %v3339 = vadd.f32 %v3075, %v3275
      %v3340 = vadd.f32 %v3076, %v3276
      %v3341 = vadd.f32 %v3077, %v3277
      %v3342 = vadd.f32 %v3078, %v3278
      %v3343 = vadd.f32 %v3079, %v3279
      %v3344 = vadd.f32 %v3080, %v3280
      %v3345 = vadd.f32 %v3081, %v3281
      %v3346 = vadd.f32 %v3082, %v3282
      %v3347 = vadd.f32 %v3083, %v3283
      %v3348 = vadd.f32 %v3084, %v3284
      %v3349 = vadd.f32 %v3085, %v3285
      %v3350 = vadd.f32 %v3086, %v3286
      %v3351 = vadd.f32 %v3087, %v3287
      %v3352 = vadd.f32 %v3088, %v3288
      %v3353 = vadd.f32 %v3089, %v3289
      %v3354 = vadd.f32 %v3090, %v3290
      %v3355 = vadd.f32 %v3091, %v3291
      %v3356 = vadd.f32 %v3092, %v3292
      %v3357 = vadd.f32 %v3093, %v3293
      %v3358 = vadd.f32 %v3094, %v3294
      %v3359 = vadd.f32 %v3095, %v3295
      %v3360 = vadd.f32 %v3096, %v3296
      %v3361 = vadd.f32 %v3097, %v3297
      %v3362 = vadd.f32 %v3098, %v3298
      %v3363 = vadd.f32 %v3099, %v3299
      %v3364 = vadd.f32 %v3100, %v3300
      %v3365 = vadd.f32 %v3101, %v3301
      %v3366 = vadd.f32 %v3102, %v3302
      %v3367 = vadd.f32 %v3103, %v3303
      %v3368 = vadd.f32 %v3104, %v3304
      %v3369 = vadd.f32 %v3105, %v3305
      %v3370 = vadd.f32 %v3106, %v3306
      %v3371 = vadd.f32 %v3107, %v3307
      %v3372 = vadd.f32 %v3108, %v3308
      %v3373 = vadd.f32 %v3109, %v3309
      %v3374 = vadd.f32 %v3110, %v3310
      %v3375 = vadd.f32 %v3111, %v3311
      %v3376 = vadd.f32 %v3112, %v3312
      %v3377 = vadd.f32 %v3113, %v3313
      %v3378 = vadd.f32 %v3114, %v3314
      %v3379 = vadd.f32 %v3115, %v3315
      %v3380 = vadd.f32 %v3116, %v3316
      %v3381 = vadd.f32 %v3117, %v3317
      %v3382 = vadd.f32 %v3118, %v3318
      %3383 = vset.pattern.permute.xlu0 4
      %3384 = vperm.xlu0 %3383, %v664
      %v3385 = vpop.permute.xlu0 %3384
      %3387 = vset.pattern.permute.xlu0 4
      %3388 = vperm.xlu0 %3387, %v665
      %v3389 = vpop.permute.xlu0 %3388
      %3391 = vset.pattern.permute.xlu0 4
      %3392 = vperm.xlu0 %3391, %v666
      %v3393 = vpop.permute.xlu0 %3392
      %3395 = vset.pattern.permute.xlu0 4
      %3396 = vperm.xlu0 %3395, %v667
      %v3397 = vpop.permute.xlu0 %3396
      %3399 = vset.pattern.permute.xlu0 4
      %3400 = vperm.xlu0 %3399, %v668
      %v3401 = vpop.permute.xlu0 %3400
      %3403 = vset.pattern.permute.xlu0 4
      %3404 = vperm.xlu0 %3403, %v669
      %v3405 = vpop.permute.xlu0 %3404
      %3407 = vset.pattern.permute.xlu0 4
      %3408 = vperm.xlu0 %3407, %v670
      %v3409 = vpop.permute.xlu0 %3408
      %3411 = vset.pattern.permute.xlu0 4
      %3412 = vperm.xlu0 %3411, %v671
      %v3413 = vpop.permute.xlu0 %3412
      %3415 = vset.pattern.permute.xlu0 4
      %3416 = vperm.xlu0 %3415, %v672
      %v3417 = vpop.permute.xlu0 %3416
      %3419 = vset.pattern.permute.xlu0 4
      %3420 = vperm.xlu0 %3419, %v673
      %v3421 = vpop.permute.xlu0 %3420
      %3423 = vset.pattern.permute.xlu0 4
      %3424 = vperm.xlu0 %3423, %v674
      %v3425 = vpop.permute.xlu0 %3424
      %3427 = vset.pattern.permute.xlu0 4
      %3428 = vperm.xlu0 %3427, %v675
      %v3429 = vpop.permute.xlu0 %3428
      %3431 = vset.pattern.permute.xlu0 4
      %3432 = vperm.xlu0 %3431, %v676
      %v3433 = vpop.permute.xlu0 %3432
      %3435 = vset.pattern.permute.xlu0 4
      %3436 = vperm.xlu0 %3435, %v677
      %v3437 = vpop.permute.xlu0 %3436
      %3439 = vset.pattern.permute.xlu0 4
      %3440 = vperm.xlu0 %3439, %v678
      %v3441 = vpop.permute.xlu0 %3440
      %3443 = vset.pattern.permute.xlu0 4
      %3444 = vperm.xlu0 %3443, %v679
      %v3445 = vpop.permute.xlu0 %3444
      %3447 = vset.pattern.permute.xlu0 4
      %3448 = vperm.xlu0 %3447, %v680
      %v3449 = vpop.permute.xlu0 %3448
      %3451 = vset.pattern.permute.xlu0 4
      %3452 = vperm.xlu0 %3451, %v681
      %v3453 = vpop.permute.xlu0 %3452
      %3455 = vset.pattern.permute.xlu0 4
      %3456 = vperm.xlu0 %3455, %v682
      %v3457 = vpop.permute.xlu0 %3456
      %3459 = vset.pattern.permute.xlu0 4
      %3460 = vperm.xlu0 %3459, %v683
      %v3461 = vpop.permute.xlu0 %3460
      %3463 = vset.pattern.permute.xlu0 4
      %3464 = vperm.xlu0 %3463, %v684
      %v3465 = vpop.permute.xlu0 %3464
      %3467 = vset.pattern.permute.xlu0 4
      %3468 = vperm.xlu0 %3467, %v685
      %v3469 = vpop.permute.xlu0 %3468
      %3471 = vset.pattern.permute.xlu0 4
      %3472 = vperm.xlu0 %3471, %v686
      %v3473 = vpop.permute.xlu0 %3472
      %3475 = vset.pattern.permute.xlu0 4
      %3476 = vperm.xlu0 %3475, %v687
      %v3477 = vpop.permute.xlu0 %3476
      %3479 = vset.pattern.permute.xlu0 4
      %3480 = vperm.xlu0 %3479, %v688
      %v3481 = vpop.permute.xlu0 %3480
      %3483 = vset.pattern.permute.xlu0 4
      %3484 = vperm.xlu0 %3483, %v689
      %v3485 = vpop.permute.xlu0 %3484
      %3487 = vset.pattern.permute.xlu0 4
      %3488 = vperm.xlu0 %3487, %v690
      %v3489 = vpop.permute.xlu0 %3488
      %3491 = vset.pattern.permute.xlu0 4
      %3492 = vperm.xlu0 %3491, %v691
      %v3493 = vpop.permute.xlu0 %3492
      %3495 = vset.pattern.permute.xlu0 4
      %3496 = vperm.xlu0 %3495, %v692
      %v3497 = vpop.permute.xlu0 %3496
      %3499 = vset.pattern.permute.xlu0 4
      %3500 = vperm.xlu0 %3499, %v693
      %v3501 = vpop.permute.xlu0 %3500
      %3503 = vset.pattern.permute.xlu0 4
      %3504 = vperm.xlu0 %3503, %v694
      %v3505 = vpop.permute.xlu0 %3504
      %3507 = vset.pattern.permute.xlu0 4
      %3508 = vperm.xlu0 %3507, %v695
      %v3509 = vpop.permute.xlu0 %3508
      %v3511 = vlaneseq
      %v3512 = vshrl.u32 %v3511, 7
      %v3513 = vsub.s32 2, %v3512
      %v3514 = vrot.slane %v2839, %v3513
      %v3515 = vlaneseq
      %v3516 = vshrl.u32 %v3515, 7
      %v3517 = vsub.s32 2, %v3516
      %v3518 = vrot.slane %v2840, %v3517
      %v3519 = vmul.f32 %v3385, %v3514
      %v3520 = vmul.f32 %v3385, %v3518
      %v3521 = vmul.f32 %v3389, %v3514
      %v3522 = vmul.f32 %v3389, %v3518
      %v3523 = vmul.f32 %v3393, %v3514
      %v3524 = vmul.f32 %v3393, %v3518
      %v3525 = vmul.f32 %v3397, %v3514
      %v3526 = vmul.f32 %v3397, %v3518
      %v3527 = vmul.f32 %v3401, %v3514
      %v3528 = vmul.f32 %v3401, %v3518
      %v3529 = vmul.f32 %v3405, %v3514
      %v3530 = vmul.f32 %v3405, %v3518
      %v3531 = vmul.f32 %v3409, %v3514
      %v3532 = vmul.f32 %v3409, %v3518
      %v3533 = vmul.f32 %v3413, %v3514
      %v3534 = vmul.f32 %v3413, %v3518
      %v3535 = vmul.f32 %v3417, %v3514
      %v3536 = vmul.f32 %v3417, %v3518
      %v3537 = vmul.f32 %v3421, %v3514
      %v3538 = vmul.f32 %v3421, %v3518
      %v3539 = vmul.f32 %v3425, %v3514
      %v3540 = vmul.f32 %v3425, %v3518
      %v3541 = vmul.f32 %v3429, %v3514
      %v3542 = vmul.f32 %v3429, %v3518
      %v3543 = vmul.f32 %v3433, %v3514
      %v3544 = vmul.f32 %v3433, %v3518
      %v3545 = vmul.f32 %v3437, %v3514
      %v3546 = vmul.f32 %v3437, %v3518
      %v3547 = vmul.f32 %v3441, %v3514
      %v3548 = vmul.f32 %v3441, %v3518
      %v3549 = vmul.f32 %v3445, %v3514
      %v3550 = vmul.f32 %v3445, %v3518
      %v3551 = vmul.f32 %v3449, %v3514
      %v3552 = vmul.f32 %v3449, %v3518
      %v3553 = vmul.f32 %v3453, %v3514
      %v3554 = vmul.f32 %v3453, %v3518
      %v3555 = vmul.f32 %v3457, %v3514
      %v3556 = vmul.f32 %v3457, %v3518
      %v3557 = vmul.f32 %v3461, %v3514
      %v3558 = vmul.f32 %v3461, %v3518
      %v3559 = vmul.f32 %v3465, %v3514
      %v3560 = vmul.f32 %v3465, %v3518
      %v3561 = vmul.f32 %v3469, %v3514
      %v3562 = vmul.f32 %v3469, %v3518
      %v3563 = vmul.f32 %v3473, %v3514
      %v3564 = vmul.f32 %v3473, %v3518
      %v3565 = vmul.f32 %v3477, %v3514
      %v3566 = vmul.f32 %v3477, %v3518
      %v3567 = vmul.f32 %v3481, %v3514
      %v3568 = vmul.f32 %v3481, %v3518
      %v3569 = vmul.f32 %v3485, %v3514
      %v3570 = vmul.f32 %v3485, %v3518
      %v3571 = vmul.f32 %v3489, %v3514
      %v3572 = vmul.f32 %v3489, %v3518
      %v3573 = vmul.f32 %v3493, %v3514
      %v3574 = vmul.f32 %v3493, %v3518
      %v3575 = vmul.f32 %v3497, %v3514
      %v3576 = vmul.f32 %v3497, %v3518
      %v3577 = vmul.f32 %v3501, %v3514
      %v3578 = vmul.f32 %v3501, %v3518
      %v3579 = vmul.f32 %v3505, %v3514
      %v3580 = vmul.f32 %v3505, %v3518
      %v3581 = vmul.f32 %v3509, %v3514
      %v3582 = vmul.f32 %v3509, %v3518
      %v3583 = vadd.f32 %v3319, %v3519
      %v3584 = vadd.f32 %v3320, %v3520
      %v3585 = vadd.f32 %v3321, %v3521
      %v3586 = vadd.f32 %v3322, %v3522
      %v3587 = vadd.f32 %v3323, %v3523
      %v3588 = vadd.f32 %v3324, %v3524
      %v3589 = vadd.f32 %v3325, %v3525
      %v3590 = vadd.f32 %v3326, %v3526
      %v3591 = vadd.f32 %v3327, %v3527
      %v3592 = vadd.f32 %v3328, %v3528
      %v3593 = vadd.f32 %v3329, %v3529
      %v3594 = vadd.f32 %v3330, %v3530
      %v3595 = vadd.f32 %v3331, %v3531
      %v3596 = vadd.f32 %v3332, %v3532
      %v3597 = vadd.f32 %v3333, %v3533
      %v3598 = vadd.f32 %v3334, %v3534
      %v3599 = vadd.f32 %v3335, %v3535
      %v3600 = vadd.f32 %v3336, %v3536
      %v3601 = vadd.f32 %v3337, %v3537
      %v3602 = vadd.f32 %v3338, %v3538
      %v3603 = vadd.f32 %v3339, %v3539
      %v3604 = vadd.f32 %v3340, %v3540
      %v3605 = vadd.f32 %v3341, %v3541
      %v3606 = vadd.f32 %v3342, %v3542
      %v3607 = vadd.f32 %v3343, %v3543
      %v3608 = vadd.f32 %v3344, %v3544
      %v3609 = vadd.f32 %v3345, %v3545
      %v3610 = vadd.f32 %v3346, %v3546
      %v3611 = vadd.f32 %v3347, %v3547
      %v3612 = vadd.f32 %v3348, %v3548
      %v3613 = vadd.f32 %v3349, %v3549
      %v3614 = vadd.f32 %v3350, %v3550
      %v3615 = vadd.f32 %v3351, %v3551
      %v3616 = vadd.f32 %v3352, %v3552
      %v3617 = vadd.f32 %v3353, %v3553
      %v3618 = vadd.f32 %v3354, %v3554
      %v3619 = vadd.f32 %v3355, %v3555
      %v3620 = vadd.f32 %v3356, %v3556
      %v3621 = vadd.f32 %v3357, %v3557
      %v3622 = vadd.f32 %v3358, %v3558
      %v3623 = vadd.f32 %v3359, %v3559
      %v3624 = vadd.f32 %v3360, %v3560
      %v3625 = vadd.f32 %v3361, %v3561
      %v3626 = vadd.f32 %v3362, %v3562
      %v3627 = vadd.f32 %v3363, %v3563
      %v3628 = vadd.f32 %v3364, %v3564
      %v3629 = vadd.f32 %v3365, %v3565
      %v3630 = vadd.f32 %v3366, %v3566
      %v3631 = vadd.f32 %v3367, %v3567
      %v3632 = vadd.f32 %v3368, %v3568
      %v3633 = vadd.f32 %v3369, %v3569
      %v3634 = vadd.f32 %v3370, %v3570
      %v3635 = vadd.f32 %v3371, %v3571
      %v3636 = vadd.f32 %v3372, %v3572
      %v3637 = vadd.f32 %v3373, %v3573
      %v3638 = vadd.f32 %v3374, %v3574
      %v3639 = vadd.f32 %v3375, %v3575
      %v3640 = vadd.f32 %v3376, %v3576
      %v3641 = vadd.f32 %v3377, %v3577
      %v3642 = vadd.f32 %v3378, %v3578
      %v3643 = vadd.f32 %v3379, %v3579
      %v3644 = vadd.f32 %v3380, %v3580
      %v3645 = vadd.f32 %v3381, %v3581
      %v3646 = vadd.f32 %v3382, %v3582
      %3647 = vset.pattern.permute.xlu0 5
      %3648 = vperm.xlu0 %3647, %v664
      %v3649 = vpop.permute.xlu0 %3648
      %3651 = vset.pattern.permute.xlu0 5
      %3652 = vperm.xlu0 %3651, %v665
      %v3653 = vpop.permute.xlu0 %3652
      %3655 = vset.pattern.permute.xlu0 5
      %3656 = vperm.xlu0 %3655, %v666
      %v3657 = vpop.permute.xlu0 %3656
      %3659 = vset.pattern.permute.xlu0 5
      %3660 = vperm.xlu0 %3659, %v667
      %v3661 = vpop.permute.xlu0 %3660
      %3663 = vset.pattern.permute.xlu0 5
      %3664 = vperm.xlu0 %3663, %v668
      %v3665 = vpop.permute.xlu0 %3664
      %3667 = vset.pattern.permute.xlu0 5
      %3668 = vperm.xlu0 %3667, %v669
      %v3669 = vpop.permute.xlu0 %3668
      %3671 = vset.pattern.permute.xlu0 5
      %3672 = vperm.xlu0 %3671, %v670
      %v3673 = vpop.permute.xlu0 %3672
      %3675 = vset.pattern.permute.xlu0 5
      %3676 = vperm.xlu0 %3675, %v671
      %v3677 = vpop.permute.xlu0 %3676
      %3679 = vset.pattern.permute.xlu0 5
      %3680 = vperm.xlu0 %3679, %v672
      %v3681 = vpop.permute.xlu0 %3680
      %3683 = vset.pattern.permute.xlu0 5
      %3684 = vperm.xlu0 %3683, %v673
      %v3685 = vpop.permute.xlu0 %3684
      %3687 = vset.pattern.permute.xlu0 5
      %3688 = vperm.xlu0 %3687, %v674
      %v3689 = vpop.permute.xlu0 %3688
      %3691 = vset.pattern.permute.xlu0 5
      %3692 = vperm.xlu0 %3691, %v675
      %v3693 = vpop.permute.xlu0 %3692
      %3695 = vset.pattern.permute.xlu0 5
      %3696 = vperm.xlu0 %3695, %v676
      %v3697 = vpop.permute.xlu0 %3696
      %3699 = vset.pattern.permute.xlu0 5
      %3700 = vperm.xlu0 %3699, %v677
      %v3701 = vpop.permute.xlu0 %3700
      %3703 = vset.pattern.permute.xlu0 5
      %3704 = vperm.xlu0 %3703, %v678
      %v3705 = vpop.permute.xlu0 %3704
      %3707 = vset.pattern.permute.xlu0 5
      %3708 = vperm.xlu0 %3707, %v679
      %v3709 = vpop.permute.xlu0 %3708
      %3711 = vset.pattern.permute.xlu0 5
      %3712 = vperm.xlu0 %3711, %v680
      %v3713 = vpop.permute.xlu0 %3712
      %3715 = vset.pattern.permute.xlu0 5
      %3716 = vperm.xlu0 %3715, %v681
      %v3717 = vpop.permute.xlu0 %3716
      %3719 = vset.pattern.permute.xlu0 5
      %3720 = vperm.xlu0 %3719, %v682
      %v3721 = vpop.permute.xlu0 %3720
      %3723 = vset.pattern.permute.xlu0 5
      %3724 = vperm.xlu0 %3723, %v683
      %v3725 = vpop.permute.xlu0 %3724
      %3727 = vset.pattern.permute.xlu0 5
      %3728 = vperm.xlu0 %3727, %v684
      %v3729 = vpop.permute.xlu0 %3728
      %3731 = vset.pattern.permute.xlu0 5
      %3732 = vperm.xlu0 %3731, %v685
      %v3733 = vpop.permute.xlu0 %3732
      %3735 = vset.pattern.permute.xlu0 5
      %3736 = vperm.xlu0 %3735, %v686
      %v3737 = vpop.permute.xlu0 %3736
      %3739 = vset.pattern.permute.xlu0 5
      %3740 = vperm.xlu0 %3739, %v687
      %v3741 = vpop.permute.xlu0 %3740
      %3743 = vset.pattern.permute.xlu0 5
      %3744 = vperm.xlu0 %3743, %v688
      %v3745 = vpop.permute.xlu0 %3744
      %3747 = vset.pattern.permute.xlu0 5
      %3748 = vperm.xlu0 %3747, %v689
      %v3749 = vpop.permute.xlu0 %3748
      %3751 = vset.pattern.permute.xlu0 5
      %3752 = vperm.xlu0 %3751, %v690
      %v3753 = vpop.permute.xlu0 %3752
      %3755 = vset.pattern.permute.xlu0 5
      %3756 = vperm.xlu0 %3755, %v691
      %v3757 = vpop.permute.xlu0 %3756
      %3759 = vset.pattern.permute.xlu0 5
      %3760 = vperm.xlu0 %3759, %v692
      %v3761 = vpop.permute.xlu0 %3760
      %3763 = vset.pattern.permute.xlu0 5
      %3764 = vperm.xlu0 %3763, %v693
      %v3765 = vpop.permute.xlu0 %3764
      %3767 = vset.pattern.permute.xlu0 5
      %3768 = vperm.xlu0 %3767, %v694
      %v3769 = vpop.permute.xlu0 %3768
      %3771 = vset.pattern.permute.xlu0 5
      %3772 = vperm.xlu0 %3771, %v695
      %v3773 = vpop.permute.xlu0 %3772
      %v3775 = vlaneseq
      %v3776 = vshrl.u32 %v3775, 7
      %v3777 = vsub.s32 3, %v3776
      %v3778 = vrot.slane %v2839, %v3777
      %v3779 = vlaneseq
      %v3780 = vshrl.u32 %v3779, 7
      %v3781 = vsub.s32 3, %v3780
      %v3782 = vrot.slane %v2840, %v3781
      %v3783 = vmul.f32 %v3649, %v3778
      %v3784 = vmul.f32 %v3649, %v3782
      %v3785 = vmul.f32 %v3653, %v3778
      %v3786 = vmul.f32 %v3653, %v3782
      %v3787 = vmul.f32 %v3657, %v3778
      %v3788 = vmul.f32 %v3657, %v3782
      %v3789 = vmul.f32 %v3661, %v3778
      %v3790 = vmul.f32 %v3661, %v3782
      %v3791 = vmul.f32 %v3665, %v3778
      %v3792 = vmul.f32 %v3665, %v3782
      %v3793 = vmul.f32 %v3669, %v3778
      %v3794 = vmul.f32 %v3669, %v3782
      %v3795 = vmul.f32 %v3673, %v3778
      %v3796 = vmul.f32 %v3673, %v3782
      %v3797 = vmul.f32 %v3677, %v3778
      %v3798 = vmul.f32 %v3677, %v3782
      %v3799 = vmul.f32 %v3681, %v3778
      %v3800 = vmul.f32 %v3681, %v3782
      %v3801 = vmul.f32 %v3685, %v3778
      %v3802 = vmul.f32 %v3685, %v3782
      %v3803 = vmul.f32 %v3689, %v3778
      %v3804 = vmul.f32 %v3689, %v3782
      %v3805 = vmul.f32 %v3693, %v3778
      %v3806 = vmul.f32 %v3693, %v3782
      %v3807 = vmul.f32 %v3697, %v3778
      %v3808 = vmul.f32 %v3697, %v3782
      %v3809 = vmul.f32 %v3701, %v3778
      %v3810 = vmul.f32 %v3701, %v3782
      %v3811 = vmul.f32 %v3705, %v3778
      %v3812 = vmul.f32 %v3705, %v3782
      %v3813 = vmul.f32 %v3709, %v3778
      %v3814 = vmul.f32 %v3709, %v3782
      %v3815 = vmul.f32 %v3713, %v3778
      %v3816 = vmul.f32 %v3713, %v3782
      %v3817 = vmul.f32 %v3717, %v3778
      %v3818 = vmul.f32 %v3717, %v3782
      %v3819 = vmul.f32 %v3721, %v3778
      %v3820 = vmul.f32 %v3721, %v3782
      %v3821 = vmul.f32 %v3725, %v3778
      %v3822 = vmul.f32 %v3725, %v3782
      %v3823 = vmul.f32 %v3729, %v3778
      %v3824 = vmul.f32 %v3729, %v3782
      %v3825 = vmul.f32 %v3733, %v3778
      %v3826 = vmul.f32 %v3733, %v3782
      %v3827 = vmul.f32 %v3737, %v3778
      %v3828 = vmul.f32 %v3737, %v3782
      %v3829 = vmul.f32 %v3741, %v3778
      %v3830 = vmul.f32 %v3741, %v3782
      %v3831 = vmul.f32 %v3745, %v3778
      %v3832 = vmul.f32 %v3745, %v3782
      %v3833 = vmul.f32 %v3749, %v3778
      %v3834 = vmul.f32 %v3749, %v3782
      %v3835 = vmul.f32 %v3753, %v3778
      %v3836 = vmul.f32 %v3753, %v3782
      %v3837 = vmul.f32 %v3757, %v3778
      %v3838 = vmul.f32 %v3757, %v3782
      %v3839 = vmul.f32 %v3761, %v3778
      %v3840 = vmul.f32 %v3761, %v3782
      %v3841 = vmul.f32 %v3765, %v3778
      %v3842 = vmul.f32 %v3765, %v3782
      %v3843 = vmul.f32 %v3769, %v3778
      %v3844 = vmul.f32 %v3769, %v3782
      %v3845 = vmul.f32 %v3773, %v3778
      %v3846 = vmul.f32 %v3773, %v3782
      %v3847 = vadd.f32 %v3583, %v3783
      %v3848 = vadd.f32 %v3584, %v3784
      %v3849 = vadd.f32 %v3585, %v3785
      %v3850 = vadd.f32 %v3586, %v3786
      %v3851 = vadd.f32 %v3587, %v3787
      %v3852 = vadd.f32 %v3588, %v3788
      %v3853 = vadd.f32 %v3589, %v3789
      %v3854 = vadd.f32 %v3590, %v3790
      %v3855 = vadd.f32 %v3591, %v3791
      %v3856 = vadd.f32 %v3592, %v3792
      %v3857 = vadd.f32 %v3593, %v3793
      %v3858 = vadd.f32 %v3594, %v3794
      %v3859 = vadd.f32 %v3595, %v3795
      %v3860 = vadd.f32 %v3596, %v3796
      %v3861 = vadd.f32 %v3597, %v3797
      %v3862 = vadd.f32 %v3598, %v3798
      %v3863 = vadd.f32 %v3599, %v3799
      %v3864 = vadd.f32 %v3600, %v3800
      %v3865 = vadd.f32 %v3601, %v3801
      %v3866 = vadd.f32 %v3602, %v3802
      %v3867 = vadd.f32 %v3603, %v3803
      %v3868 = vadd.f32 %v3604, %v3804
      %v3869 = vadd.f32 %v3605, %v3805
      %v3870 = vadd.f32 %v3606, %v3806
      %v3871 = vadd.f32 %v3607, %v3807
      %v3872 = vadd.f32 %v3608, %v3808
      %v3873 = vadd.f32 %v3609, %v3809
      %v3874 = vadd.f32 %v3610, %v3810
      %v3875 = vadd.f32 %v3611, %v3811
      %v3876 = vadd.f32 %v3612, %v3812
      %v3877 = vadd.f32 %v3613, %v3813
      %v3878 = vadd.f32 %v3614, %v3814
      %v3879 = vadd.f32 %v3615, %v3815
      %v3880 = vadd.f32 %v3616, %v3816
      %v3881 = vadd.f32 %v3617, %v3817
      %v3882 = vadd.f32 %v3618, %v3818
      %v3883 = vadd.f32 %v3619, %v3819
      %v3884 = vadd.f32 %v3620, %v3820
      %v3885 = vadd.f32 %v3621, %v3821
      %v3886 = vadd.f32 %v3622, %v3822
      %v3887 = vadd.f32 %v3623, %v3823
      %v3888 = vadd.f32 %v3624, %v3824
      %v3889 = vadd.f32 %v3625, %v3825
      %v3890 = vadd.f32 %v3626, %v3826
      %v3891 = vadd.f32 %v3627, %v3827
      %v3892 = vadd.f32 %v3628, %v3828
      %v3893 = vadd.f32 %v3629, %v3829
      %v3894 = vadd.f32 %v3630, %v3830
      %v3895 = vadd.f32 %v3631, %v3831
      %v3896 = vadd.f32 %v3632, %v3832
      %v3897 = vadd.f32 %v3633, %v3833
      %v3898 = vadd.f32 %v3634, %v3834
      %v3899 = vadd.f32 %v3635, %v3835
      %v3900 = vadd.f32 %v3636, %v3836
      %v3901 = vadd.f32 %v3637, %v3837
      %v3902 = vadd.f32 %v3638, %v3838
      %v3903 = vadd.f32 %v3639, %v3839
      %v3904 = vadd.f32 %v3640, %v3840
      %v3905 = vadd.f32 %v3641, %v3841
      %v3906 = vadd.f32 %v3642, %v3842
      %v3907 = vadd.f32 %v3643, %v3843
      %v3908 = vadd.f32 %v3644, %v3844
      %v3909 = vadd.f32 %v3645, %v3845
      %v3910 = vadd.f32 %v3646, %v3846
      %3911 = vset.pattern.permute.xlu0 3
      %3912 = vperm.xlu0 %3911, %v664
      %v3913 = vpop.permute.xlu0 %3912
      %3915 = vset.pattern.permute.xlu0 3
      %3916 = vperm.xlu0 %3915, %v665
      %v3917 = vpop.permute.xlu0 %3916
      %3919 = vset.pattern.permute.xlu0 3
      %3920 = vperm.xlu0 %3919, %v666
      %v3921 = vpop.permute.xlu0 %3920
      %3923 = vset.pattern.permute.xlu0 3
      %3924 = vperm.xlu0 %3923, %v667
      %v3925 = vpop.permute.xlu0 %3924
      %3927 = vset.pattern.permute.xlu0 3
      %3928 = vperm.xlu0 %3927, %v668
      %v3929 = vpop.permute.xlu0 %3928
      %3931 = vset.pattern.permute.xlu0 3
      %3932 = vperm.xlu0 %3931, %v669
      %v3933 = vpop.permute.xlu0 %3932
      %3935 = vset.pattern.permute.xlu0 3
      %3936 = vperm.xlu0 %3935, %v670
      %v3937 = vpop.permute.xlu0 %3936
      %3939 = vset.pattern.permute.xlu0 3
      %3940 = vperm.xlu0 %3939, %v671
      %v3941 = vpop.permute.xlu0 %3940
      %3943 = vset.pattern.permute.xlu0 3
      %3944 = vperm.xlu0 %3943, %v672
      %v3945 = vpop.permute.xlu0 %3944
      %3947 = vset.pattern.permute.xlu0 3
      %3948 = vperm.xlu0 %3947, %v673
      %v3949 = vpop.permute.xlu0 %3948
      %3951 = vset.pattern.permute.xlu0 3
      %3952 = vperm.xlu0 %3951, %v674
      %v3953 = vpop.permute.xlu0 %3952
      %3955 = vset.pattern.permute.xlu0 3
      %3956 = vperm.xlu0 %3955, %v675
      %v3957 = vpop.permute.xlu0 %3956
      %3959 = vset.pattern.permute.xlu0 3
      %3960 = vperm.xlu0 %3959, %v676
      %v3961 = vpop.permute.xlu0 %3960
      %3963 = vset.pattern.permute.xlu0 3
      %3964 = vperm.xlu0 %3963, %v677
      %v3965 = vpop.permute.xlu0 %3964
      %3967 = vset.pattern.permute.xlu0 3
      %3968 = vperm.xlu0 %3967, %v678
      %v3969 = vpop.permute.xlu0 %3968
      %3971 = vset.pattern.permute.xlu0 3
      %3972 = vperm.xlu0 %3971, %v679
      %v3973 = vpop.permute.xlu0 %3972
      %3975 = vset.pattern.permute.xlu0 3
      %3976 = vperm.xlu0 %3975, %v680
      %v3977 = vpop.permute.xlu0 %3976
      %3979 = vset.pattern.permute.xlu0 3
      %3980 = vperm.xlu0 %3979, %v681
      %v3981 = vpop.permute.xlu0 %3980
      %3983 = vset.pattern.permute.xlu0 3
      %3984 = vperm.xlu0 %3983, %v682
      %v3985 = vpop.permute.xlu0 %3984
      %3987 = vset.pattern.permute.xlu0 3
      %3988 = vperm.xlu0 %3987, %v683
      %v3989 = vpop.permute.xlu0 %3988
      %3991 = vset.pattern.permute.xlu0 3
      %3992 = vperm.xlu0 %3991, %v684
      %v3993 = vpop.permute.xlu0 %3992
      %3995 = vset.pattern.permute.xlu0 3
      %3996 = vperm.xlu0 %3995, %v685
      %v3997 = vpop.permute.xlu0 %3996
      %3999 = vset.pattern.permute.xlu0 3
      %4000 = vperm.xlu0 %3999, %v686
      %v4001 = vpop.permute.xlu0 %4000
      %4003 = vset.pattern.permute.xlu0 3
      %4004 = vperm.xlu0 %4003, %v687
      %v4005 = vpop.permute.xlu0 %4004
      %4007 = vset.pattern.permute.xlu0 3
      %4008 = vperm.xlu0 %4007, %v688
      %v4009 = vpop.permute.xlu0 %4008
      %4011 = vset.pattern.permute.xlu0 3
      %4012 = vperm.xlu0 %4011, %v689
      %v4013 = vpop.permute.xlu0 %4012
      %4015 = vset.pattern.permute.xlu0 3
      %4016 = vperm.xlu0 %4015, %v690
      %v4017 = vpop.permute.xlu0 %4016
      %4019 = vset.pattern.permute.xlu0 3
      %4020 = vperm.xlu0 %4019, %v691
      %v4021 = vpop.permute.xlu0 %4020
      %4023 = vset.pattern.permute.xlu0 3
      %4024 = vperm.xlu0 %4023, %v692
      %v4025 = vpop.permute.xlu0 %4024
      %4027 = vset.pattern.permute.xlu0 3
      %4028 = vperm.xlu0 %4027, %v693
      %v4029 = vpop.permute.xlu0 %4028
      %4031 = vset.pattern.permute.xlu0 3
      %4032 = vperm.xlu0 %4031, %v694
      %v4033 = vpop.permute.xlu0 %4032
      %4035 = vset.pattern.permute.xlu0 3
      %4036 = vperm.xlu0 %4035, %v695
      %v4037 = vpop.permute.xlu0 %4036
      %v4039 = vlaneseq
      %v4040 = vshrl.u32 %v4039, 7
      %v4041 = vsub.s32 4, %v4040
      %v4042 = vrot.slane %v2839, %v4041
      %v4043 = vlaneseq
      %v4044 = vshrl.u32 %v4043, 7
      %v4045 = vsub.s32 4, %v4044
      %v4046 = vrot.slane %v2840, %v4045
      %v4047 = vmul.f32 %v3913, %v4042
      %v4048 = vmul.f32 %v3913, %v4046
      %v4049 = vmul.f32 %v3917, %v4042
      %v4050 = vmul.f32 %v3917, %v4046
      %v4051 = vmul.f32 %v3921, %v4042
      %v4052 = vmul.f32 %v3921, %v4046
      %v4053 = vmul.f32 %v3925, %v4042
      %v4054 = vmul.f32 %v3925, %v4046
      %v4055 = vmul.f32 %v3929, %v4042
      %v4056 = vmul.f32 %v3929, %v4046
      %v4057 = vmul.f32 %v3933, %v4042
      %v4058 = vmul.f32 %v3933, %v4046
      %v4059 = vmul.f32 %v3937, %v4042
      %v4060 = vmul.f32 %v3937, %v4046
      %v4061 = vmul.f32 %v3941, %v4042
      %v4062 = vmul.f32 %v3941, %v4046
      %v4063 = vmul.f32 %v3945, %v4042
      %v4064 = vmul.f32 %v3945, %v4046
      %v4065 = vmul.f32 %v3949, %v4042
      %v4066 = vmul.f32 %v3949, %v4046
      %v4067 = vmul.f32 %v3953, %v4042
      %v4068 = vmul.f32 %v3953, %v4046
      %v4069 = vmul.f32 %v3957, %v4042
      %v4070 = vmul.f32 %v3957, %v4046
      %v4071 = vmul.f32 %v3961, %v4042
      %v4072 = vmul.f32 %v3961, %v4046
      %v4073 = vmul.f32 %v3965, %v4042
      %v4074 = vmul.f32 %v3965, %v4046
      %v4075 = vmul.f32 %v3969, %v4042
      %v4076 = vmul.f32 %v3969, %v4046
      %v4077 = vmul.f32 %v3973, %v4042
      %v4078 = vmul.f32 %v3973, %v4046
      %v4079 = vmul.f32 %v3977, %v4042
      %v4080 = vmul.f32 %v3977, %v4046
      %v4081 = vmul.f32 %v3981, %v4042
      %v4082 = vmul.f32 %v3981, %v4046
      %v4083 = vmul.f32 %v3985, %v4042
      %v4084 = vmul.f32 %v3985, %v4046
      %v4085 = vmul.f32 %v3989, %v4042
      %v4086 = vmul.f32 %v3989, %v4046
      %v4087 = vmul.f32 %v3993, %v4042
      %v4088 = vmul.f32 %v3993, %v4046
      %v4089 = vmul.f32 %v3997, %v4042
      %v4090 = vmul.f32 %v3997, %v4046
      %v4091 = vmul.f32 %v4001, %v4042
      %v4092 = vmul.f32 %v4001, %v4046
      %v4093 = vmul.f32 %v4005, %v4042
      %v4094 = vmul.f32 %v4005, %v4046
      %v4095 = vmul.f32 %v4009, %v4042
      %v4096 = vmul.f32 %v4009, %v4046
      %v4097 = vmul.f32 %v4013, %v4042
      %v4098 = vmul.f32 %v4013, %v4046
      %v4099 = vmul.f32 %v4017, %v4042
      %v4100 = vmul.f32 %v4017, %v4046
      %v4101 = vmul.f32 %v4021, %v4042
      %v4102 = vmul.f32 %v4021, %v4046
      %v4103 = vmul.f32 %v4025, %v4042
      %v4104 = vmul.f32 %v4025, %v4046
      %v4105 = vmul.f32 %v4029, %v4042
      %v4106 = vmul.f32 %v4029, %v4046
      %v4107 = vmul.f32 %v4033, %v4042
      %v4108 = vmul.f32 %v4033, %v4046
      %v4109 = vmul.f32 %v4037, %v4042
      %v4110 = vmul.f32 %v4037, %v4046
      %v4111 = vadd.f32 %v3847, %v4047
      %v4112 = vadd.f32 %v3848, %v4048
      %v4113 = vadd.f32 %v3849, %v4049
      %v4114 = vadd.f32 %v3850, %v4050
      %v4115 = vadd.f32 %v3851, %v4051
      %v4116 = vadd.f32 %v3852, %v4052
      %v4117 = vadd.f32 %v3853, %v4053
      %v4118 = vadd.f32 %v3854, %v4054
      %v4119 = vadd.f32 %v3855, %v4055
      %v4120 = vadd.f32 %v3856, %v4056
      %v4121 = vadd.f32 %v3857, %v4057
      %v4122 = vadd.f32 %v3858, %v4058
      %v4123 = vadd.f32 %v3859, %v4059
      %v4124 = vadd.f32 %v3860, %v4060
      %v4125 = vadd.f32 %v3861, %v4061
      %v4126 = vadd.f32 %v3862, %v4062
      %v4127 = vadd.f32 %v3863, %v4063
      %v4128 = vadd.f32 %v3864, %v4064
      %v4129 = vadd.f32 %v3865, %v4065
      %v4130 = vadd.f32 %v3866, %v4066
      %v4131 = vadd.f32 %v3867, %v4067
      %v4132 = vadd.f32 %v3868, %v4068
      %v4133 = vadd.f32 %v3869, %v4069
      %v4134 = vadd.f32 %v3870, %v4070
      %v4135 = vadd.f32 %v3871, %v4071
      %v4136 = vadd.f32 %v3872, %v4072
      %v4137 = vadd.f32 %v3873, %v4073
      %v4138 = vadd.f32 %v3874, %v4074
      %v4139 = vadd.f32 %v3875, %v4075
      %v4140 = vadd.f32 %v3876, %v4076
      %v4141 = vadd.f32 %v3877, %v4077
      %v4142 = vadd.f32 %v3878, %v4078
      %v4143 = vadd.f32 %v3879, %v4079
      %v4144 = vadd.f32 %v3880, %v4080
      %v4145 = vadd.f32 %v3881, %v4081
      %v4146 = vadd.f32 %v3882, %v4082
      %v4147 = vadd.f32 %v3883, %v4083
      %v4148 = vadd.f32 %v3884, %v4084
      %v4149 = vadd.f32 %v3885, %v4085
      %v4150 = vadd.f32 %v3886, %v4086
      %v4151 = vadd.f32 %v3887, %v4087
      %v4152 = vadd.f32 %v3888, %v4088
      %v4153 = vadd.f32 %v3889, %v4089
      %v4154 = vadd.f32 %v3890, %v4090
      %v4155 = vadd.f32 %v3891, %v4091
      %v4156 = vadd.f32 %v3892, %v4092
      %v4157 = vadd.f32 %v3893, %v4093
      %v4158 = vadd.f32 %v3894, %v4094
      %v4159 = vadd.f32 %v3895, %v4095
      %v4160 = vadd.f32 %v3896, %v4096
      %v4161 = vadd.f32 %v3897, %v4097
      %v4162 = vadd.f32 %v3898, %v4098
      %v4163 = vadd.f32 %v3899, %v4099
      %v4164 = vadd.f32 %v3900, %v4100
      %v4165 = vadd.f32 %v3901, %v4101
      %v4166 = vadd.f32 %v3902, %v4102
      %v4167 = vadd.f32 %v3903, %v4103
      %v4168 = vadd.f32 %v3904, %v4104
      %v4169 = vadd.f32 %v3905, %v4105
      %v4170 = vadd.f32 %v3906, %v4106
      %v4171 = vadd.f32 %v3907, %v4107
      %v4172 = vadd.f32 %v3908, %v4108
      %v4173 = vadd.f32 %v3909, %v4109
      %v4174 = vadd.f32 %v3910, %v4110
      %4175 = vset.pattern.permute.xlu0 0
      %4176 = vperm.xlu0 %4175, %v2135
      %v4177 = vpop.permute.xlu0 %4176
      %4179 = vset.pattern.permute.xlu0 0
      %4180 = vperm.xlu0 %4179, %v2136
      %v4181 = vpop.permute.xlu0 %4180
      %4183 = vset.pattern.permute.xlu0 0
      %4184 = vperm.xlu0 %4183, %v2137
      %v4185 = vpop.permute.xlu0 %4184
      %4187 = vset.pattern.permute.xlu0 0
      %4188 = vperm.xlu0 %4187, %v2138
      %v4189 = vpop.permute.xlu0 %4188
      %4191 = vset.pattern.permute.xlu0 0
      %4192 = vperm.xlu0 %4191, %v2139
      %v4193 = vpop.permute.xlu0 %4192
      %4195 = vset.pattern.permute.xlu0 0
      %4196 = vperm.xlu0 %4195, %v2140
      %v4197 = vpop.permute.xlu0 %4196
      %4199 = vset.pattern.permute.xlu0 0
      %4200 = vperm.xlu0 %4199, %v2141
      %v4201 = vpop.permute.xlu0 %4200
      %4203 = vset.pattern.permute.xlu0 0
      %4204 = vperm.xlu0 %4203, %v2142
      %v4205 = vpop.permute.xlu0 %4204
      %4207 = vset.pattern.permute.xlu0 0
      %4208 = vperm.xlu0 %4207, %v2143
      %v4209 = vpop.permute.xlu0 %4208
      %4211 = vset.pattern.permute.xlu0 0
      %4212 = vperm.xlu0 %4211, %v2144
      %v4213 = vpop.permute.xlu0 %4212
      %4215 = vset.pattern.permute.xlu0 0
      %4216 = vperm.xlu0 %4215, %v2145
      %v4217 = vpop.permute.xlu0 %4216
      %4219 = vset.pattern.permute.xlu0 0
      %4220 = vperm.xlu0 %4219, %v2146
      %v4221 = vpop.permute.xlu0 %4220
      %4223 = vset.pattern.permute.xlu0 0
      %4224 = vperm.xlu0 %4223, %v2147
      %v4225 = vpop.permute.xlu0 %4224
      %4227 = vset.pattern.permute.xlu0 0
      %4228 = vperm.xlu0 %4227, %v2148
      %v4229 = vpop.permute.xlu0 %4228
      %4231 = vset.pattern.permute.xlu0 0
      %4232 = vperm.xlu0 %4231, %v2149
      %v4233 = vpop.permute.xlu0 %4232
      %4235 = vset.pattern.permute.xlu0 0
      %4236 = vperm.xlu0 %4235, %v2150
      %v4237 = vpop.permute.xlu0 %4236
      %4239 = vset.pattern.permute.xlu0 0
      %4240 = vperm.xlu0 %4239, %v2151
      %v4241 = vpop.permute.xlu0 %4240
      %4243 = vset.pattern.permute.xlu0 0
      %4244 = vperm.xlu0 %4243, %v2152
      %v4245 = vpop.permute.xlu0 %4244
      %4247 = vset.pattern.permute.xlu0 0
      %4248 = vperm.xlu0 %4247, %v2153
      %v4249 = vpop.permute.xlu0 %4248
      %4251 = vset.pattern.permute.xlu0 0
      %4252 = vperm.xlu0 %4251, %v2154
      %v4253 = vpop.permute.xlu0 %4252
      %4255 = vset.pattern.permute.xlu0 0
      %4256 = vperm.xlu0 %4255, %v2155
      %v4257 = vpop.permute.xlu0 %4256
      %4259 = vset.pattern.permute.xlu0 0
      %4260 = vperm.xlu0 %4259, %v2156
      %v4261 = vpop.permute.xlu0 %4260
      %4263 = vset.pattern.permute.xlu0 0
      %4264 = vperm.xlu0 %4263, %v2157
      %v4265 = vpop.permute.xlu0 %4264
      %4267 = vset.pattern.permute.xlu0 0
      %4268 = vperm.xlu0 %4267, %v2158
      %v4269 = vpop.permute.xlu0 %4268
      %4271 = vset.pattern.permute.xlu0 0
      %4272 = vperm.xlu0 %4271, %v2159
      %v4273 = vpop.permute.xlu0 %4272
      %4275 = vset.pattern.permute.xlu0 0
      %4276 = vperm.xlu0 %4275, %v2160
      %v4277 = vpop.permute.xlu0 %4276
      %4279 = vset.pattern.permute.xlu0 0
      %4280 = vperm.xlu0 %4279, %v2161
      %v4281 = vpop.permute.xlu0 %4280
      %4283 = vset.pattern.permute.xlu0 0
      %4284 = vperm.xlu0 %4283, %v2162
      %v4285 = vpop.permute.xlu0 %4284
      %4287 = vset.pattern.permute.xlu0 0
      %4288 = vperm.xlu0 %4287, %v2163
      %v4289 = vpop.permute.xlu0 %4288
      %4291 = vset.pattern.permute.xlu0 0
      %4292 = vperm.xlu0 %4291, %v2164
      %v4293 = vpop.permute.xlu0 %4292
      %4295 = vset.pattern.permute.xlu0 0
      %4296 = vperm.xlu0 %4295, %v2165
      %v4297 = vpop.permute.xlu0 %4296
      %4299 = vset.pattern.permute.xlu0 0
      %4300 = vperm.xlu0 %4299, %v2166
      %v4301 = vpop.permute.xlu0 %4300
      %v4303 = vlaneseq
      %v4304 = vshrl.u32 %v4303, 7
      %v4305 = vsub.s32 5, %v4304
      %v4306 = vrot.slane %v2839, %v4305
      %v4307 = vlaneseq
      %v4308 = vshrl.u32 %v4307, 7
      %v4309 = vsub.s32 5, %v4308
      %v4310 = vrot.slane %v2840, %v4309
      %v4311 = vmul.f32 %v4177, %v4306
      %v4312 = vmul.f32 %v4177, %v4310
      %v4313 = vmul.f32 %v4181, %v4306
      %v4314 = vmul.f32 %v4181, %v4310
      %v4315 = vmul.f32 %v4185, %v4306
      %v4316 = vmul.f32 %v4185, %v4310
      %v4317 = vmul.f32 %v4189, %v4306
      %v4318 = vmul.f32 %v4189, %v4310
      %v4319 = vmul.f32 %v4193, %v4306
      %v4320 = vmul.f32 %v4193, %v4310
      %v4321 = vmul.f32 %v4197, %v4306
      %v4322 = vmul.f32 %v4197, %v4310
      %v4323 = vmul.f32 %v4201, %v4306
      %v4324 = vmul.f32 %v4201, %v4310
      %v4325 = vmul.f32 %v4205, %v4306
      %v4326 = vmul.f32 %v4205, %v4310
      %v4327 = vmul.f32 %v4209, %v4306
      %v4328 = vmul.f32 %v4209, %v4310
      %v4329 = vmul.f32 %v4213, %v4306
      %v4330 = vmul.f32 %v4213, %v4310
      %v4331 = vmul.f32 %v4217, %v4306
      %v4332 = vmul.f32 %v4217, %v4310
      %v4333 = vmul.f32 %v4221, %v4306
      %v4334 = vmul.f32 %v4221, %v4310
      %v4335 = vmul.f32 %v4225, %v4306
      %v4336 = vmul.f32 %v4225, %v4310
      %v4337 = vmul.f32 %v4229, %v4306
      %v4338 = vmul.f32 %v4229, %v4310
      %v4339 = vmul.f32 %v4233, %v4306
      %v4340 = vmul.f32 %v4233, %v4310
      %v4341 = vmul.f32 %v4237, %v4306
      %v4342 = vmul.f32 %v4237, %v4310
      %v4343 = vmul.f32 %v4241, %v4306
      %v4344 = vmul.f32 %v4241, %v4310
      %v4345 = vmul.f32 %v4245, %v4306
      %v4346 = vmul.f32 %v4245, %v4310
      %v4347 = vmul.f32 %v4249, %v4306
      %v4348 = vmul.f32 %v4249, %v4310
      %v4349 = vmul.f32 %v4253, %v4306
      %v4350 = vmul.f32 %v4253, %v4310
      %v4351 = vmul.f32 %v4257, %v4306
      %v4352 = vmul.f32 %v4257, %v4310
      %v4353 = vmul.f32 %v4261, %v4306
      %v4354 = vmul.f32 %v4261, %v4310
      %v4355 = vmul.f32 %v4265, %v4306
      %v4356 = vmul.f32 %v4265, %v4310
      %v4357 = vmul.f32 %v4269, %v4306
      %v4358 = vmul.f32 %v4269, %v4310
      %v4359 = vmul.f32 %v4273, %v4306
      %v4360 = vmul.f32 %v4273, %v4310
      %v4361 = vmul.f32 %v4277, %v4306
      %v4362 = vmul.f32 %v4277, %v4310
      %v4363 = vmul.f32 %v4281, %v4306
      %v4364 = vmul.f32 %v4281, %v4310
      %v4365 = vmul.f32 %v4285, %v4306
      %v4366 = vmul.f32 %v4285, %v4310
      %v4367 = vmul.f32 %v4289, %v4306
      %v4368 = vmul.f32 %v4289, %v4310
      %v4369 = vmul.f32 %v4293, %v4306
      %v4370 = vmul.f32 %v4293, %v4310
      %v4371 = vmul.f32 %v4297, %v4306
      %v4372 = vmul.f32 %v4297, %v4310
      %v4373 = vmul.f32 %v4301, %v4306
      %v4374 = vmul.f32 %v4301, %v4310
      %v4375 = vadd.f32 %v4111, %v4311
      %v4376 = vadd.f32 %v4112, %v4312
      %v4377 = vadd.f32 %v4113, %v4313
      %v4378 = vadd.f32 %v4114, %v4314
      %v4379 = vadd.f32 %v4115, %v4315
      %v4380 = vadd.f32 %v4116, %v4316
      %v4381 = vadd.f32 %v4117, %v4317
      %v4382 = vadd.f32 %v4118, %v4318
      %v4383 = vadd.f32 %v4119, %v4319
      %v4384 = vadd.f32 %v4120, %v4320
      %v4385 = vadd.f32 %v4121, %v4321
      %v4386 = vadd.f32 %v4122, %v4322
      %v4387 = vadd.f32 %v4123, %v4323
      %v4388 = vadd.f32 %v4124, %v4324
      %v4389 = vadd.f32 %v4125, %v4325
      %v4390 = vadd.f32 %v4126, %v4326
      %v4391 = vadd.f32 %v4127, %v4327
      %v4392 = vadd.f32 %v4128, %v4328
      %v4393 = vadd.f32 %v4129, %v4329
      %v4394 = vadd.f32 %v4130, %v4330
      %v4395 = vadd.f32 %v4131, %v4331
      %v4396 = vadd.f32 %v4132, %v4332
      %v4397 = vadd.f32 %v4133, %v4333
      %v4398 = vadd.f32 %v4134, %v4334
      %v4399 = vadd.f32 %v4135, %v4335
      %v4400 = vadd.f32 %v4136, %v4336
      %v4401 = vadd.f32 %v4137, %v4337
      %v4402 = vadd.f32 %v4138, %v4338
      %v4403 = vadd.f32 %v4139, %v4339
      %v4404 = vadd.f32 %v4140, %v4340
      %v4405 = vadd.f32 %v4141, %v4341
      %v4406 = vadd.f32 %v4142, %v4342
      %v4407 = vadd.f32 %v4143, %v4343
      %v4408 = vadd.f32 %v4144, %v4344
      %v4409 = vadd.f32 %v4145, %v4345
      %v4410 = vadd.f32 %v4146, %v4346
      %v4411 = vadd.f32 %v4147, %v4347
      %v4412 = vadd.f32 %v4148, %v4348
      %v4413 = vadd.f32 %v4149, %v4349
      %v4414 = vadd.f32 %v4150, %v4350
      %v4415 = vadd.f32 %v4151, %v4351
      %v4416 = vadd.f32 %v4152, %v4352
      %v4417 = vadd.f32 %v4153, %v4353
      %v4418 = vadd.f32 %v4154, %v4354
      %v4419 = vadd.f32 %v4155, %v4355
      %v4420 = vadd.f32 %v4156, %v4356
      %v4421 = vadd.f32 %v4157, %v4357
      %v4422 = vadd.f32 %v4158, %v4358
      %v4423 = vadd.f32 %v4159, %v4359
      %v4424 = vadd.f32 %v4160, %v4360
      %v4425 = vadd.f32 %v4161, %v4361
      %v4426 = vadd.f32 %v4162, %v4362
      %v4427 = vadd.f32 %v4163, %v4363
      %v4428 = vadd.f32 %v4164, %v4364
      %v4429 = vadd.f32 %v4165, %v4365
      %v4430 = vadd.f32 %v4166, %v4366
      %v4431 = vadd.f32 %v4167, %v4367
      %v4432 = vadd.f32 %v4168, %v4368
      %v4433 = vadd.f32 %v4169, %v4369
      %v4434 = vadd.f32 %v4170, %v4370
      %v4435 = vadd.f32 %v4171, %v4371
      %v4436 = vadd.f32 %v4172, %v4372
      %v4437 = vadd.f32 %v4173, %v4373
      %v4438 = vadd.f32 %v4174, %v4374
      %4440 = vset.pattern.permute.xlu0 2
      %4441 = vperm.xlu0 %4440, %v2487
      %v4442 = vpop.permute.xlu0 %4441
      %4445 = vset.pattern.permute.xlu0 2
      %4446 = vperm.xlu0 %4445, %v2488
      %v4447 = vpop.permute.xlu0 %4446
      %4450 = vset.pattern.permute.xlu0 2
      %4451 = vperm.xlu0 %4450, %v2489
      %v4452 = vpop.permute.xlu0 %4451
      %4455 = vset.pattern.permute.xlu0 2
      %4456 = vperm.xlu0 %4455, %v2490
      %v4457 = vpop.permute.xlu0 %4456
      %4460 = vset.pattern.permute.xlu0 2
      %4461 = vperm.xlu0 %4460, %v2491
      %v4462 = vpop.permute.xlu0 %4461
      %4465 = vset.pattern.permute.xlu0 2
      %4466 = vperm.xlu0 %4465, %v2492
      %v4467 = vpop.permute.xlu0 %4466
      %4470 = vset.pattern.permute.xlu0 2
      %4471 = vperm.xlu0 %4470, %v2493
      %v4472 = vpop.permute.xlu0 %4471
      %4475 = vset.pattern.permute.xlu0 2
      %4476 = vperm.xlu0 %4475, %v2494
      %v4477 = vpop.permute.xlu0 %4476
      %4480 = vset.pattern.permute.xlu0 2
      %4481 = vperm.xlu0 %4480, %v2495
      %v4482 = vpop.permute.xlu0 %4481
      %4485 = vset.pattern.permute.xlu0 2
      %4486 = vperm.xlu0 %4485, %v2496
      %v4487 = vpop.permute.xlu0 %4486
      %4490 = vset.pattern.permute.xlu0 2
      %4491 = vperm.xlu0 %4490, %v2497
      %v4492 = vpop.permute.xlu0 %4491
      %4495 = vset.pattern.permute.xlu0 2
      %4496 = vperm.xlu0 %4495, %v2498
      %v4497 = vpop.permute.xlu0 %4496
      %4500 = vset.pattern.permute.xlu0 2
      %4501 = vperm.xlu0 %4500, %v2499
      %v4502 = vpop.permute.xlu0 %4501
      %4505 = vset.pattern.permute.xlu0 2
      %4506 = vperm.xlu0 %4505, %v2500
      %v4507 = vpop.permute.xlu0 %4506
      %4510 = vset.pattern.permute.xlu0 2
      %4511 = vperm.xlu0 %4510, %v2501
      %v4512 = vpop.permute.xlu0 %4511
      %4515 = vset.pattern.permute.xlu0 2
      %4516 = vperm.xlu0 %4515, %v2502
      %v4517 = vpop.permute.xlu0 %4516
      %4520 = vset.pattern.permute.xlu0 2
      %4521 = vperm.xlu0 %4520, %v2503
      %v4522 = vpop.permute.xlu0 %4521
      %4525 = vset.pattern.permute.xlu0 2
      %4526 = vperm.xlu0 %4525, %v2504
      %v4527 = vpop.permute.xlu0 %4526
      %4530 = vset.pattern.permute.xlu0 2
      %4531 = vperm.xlu0 %4530, %v2505
      %v4532 = vpop.permute.xlu0 %4531
      %4535 = vset.pattern.permute.xlu0 2
      %4536 = vperm.xlu0 %4535, %v2506
      %v4537 = vpop.permute.xlu0 %4536
      %4540 = vset.pattern.permute.xlu0 2
      %4541 = vperm.xlu0 %4540, %v2507
      %v4542 = vpop.permute.xlu0 %4541
      %4545 = vset.pattern.permute.xlu0 2
      %4546 = vperm.xlu0 %4545, %v2508
      %v4547 = vpop.permute.xlu0 %4546
      %4550 = vset.pattern.permute.xlu0 2
      %4551 = vperm.xlu0 %4550, %v2509
      %v4552 = vpop.permute.xlu0 %4551
      %4555 = vset.pattern.permute.xlu0 2
      %4556 = vperm.xlu0 %4555, %v2510
      %v4557 = vpop.permute.xlu0 %4556
      %4560 = vset.pattern.permute.xlu0 2
      %4561 = vperm.xlu0 %4560, %v2511
      %v4562 = vpop.permute.xlu0 %4561
      %4565 = vset.pattern.permute.xlu0 2
      %4566 = vperm.xlu0 %4565, %v2512
      %v4567 = vpop.permute.xlu0 %4566
      %4570 = vset.pattern.permute.xlu0 2
      %4571 = vperm.xlu0 %4570, %v2513
      %v4572 = vpop.permute.xlu0 %4571
      %4575 = vset.pattern.permute.xlu0 2
      %4576 = vperm.xlu0 %4575, %v2514
      %v4577 = vpop.permute.xlu0 %4576
      %4580 = vset.pattern.permute.xlu0 2
      %4581 = vperm.xlu0 %4580, %v2515
      %v4582 = vpop.permute.xlu0 %4581
      %4585 = vset.pattern.permute.xlu0 2
      %4586 = vperm.xlu0 %4585, %v2516
      %v4587 = vpop.permute.xlu0 %4586
      %4590 = vset.pattern.permute.xlu0 2
      %4591 = vperm.xlu0 %4590, %v2517
      %v4592 = vpop.permute.xlu0 %4591
      %4595 = vset.pattern.permute.xlu0 2
      %4596 = vperm.xlu0 %4595, %v2518
      %v4597 = vpop.permute.xlu0 %4596
      %v4599 = vlaneseq
      %v4600 = vshrl.u32 %v4599, 7
      %v4601 = vsub.s32 6, %v4600
      %v4602 = vrot.slane %v2839, %v4601
      %v4603 = vlaneseq
      %v4604 = vshrl.u32 %v4603, 7
      %v4605 = vsub.s32 6, %v4604
      %v4606 = vrot.slane %v2840, %v4605
      %v4607 = vmul.f32 %v4442, %v4602
      %v4608 = vmul.f32 %v4442, %v4606
      %v4609 = vmul.f32 %v4447, %v4602
      %v4610 = vmul.f32 %v4447, %v4606
      %v4611 = vmul.f32 %v4452, %v4602
      %v4612 = vmul.f32 %v4452, %v4606
      %v4613 = vmul.f32 %v4457, %v4602
      %v4614 = vmul.f32 %v4457, %v4606
      %v4615 = vmul.f32 %v4462, %v4602
      %v4616 = vmul.f32 %v4462, %v4606
      %v4617 = vmul.f32 %v4467, %v4602
      %v4618 = vmul.f32 %v4467, %v4606
      %v4619 = vmul.f32 %v4472, %v4602
      %v4620 = vmul.f32 %v4472, %v4606
      %v4621 = vmul.f32 %v4477, %v4602
      %v4622 = vmul.f32 %v4477, %v4606
      %v4623 = vmul.f32 %v4482, %v4602
      %v4624 = vmul.f32 %v4482, %v4606
      %v4625 = vmul.f32 %v4487, %v4602
      %v4626 = vmul.f32 %v4487, %v4606
      %v4627 = vmul.f32 %v4492, %v4602
      %v4628 = vmul.f32 %v4492, %v4606
      %v4629 = vmul.f32 %v4497, %v4602
      %v4630 = vmul.f32 %v4497, %v4606
      %v4631 = vmul.f32 %v4502, %v4602
      %v4632 = vmul.f32 %v4502, %v4606
      %v4633 = vmul.f32 %v4507, %v4602
      %v4634 = vmul.f32 %v4507, %v4606
      %v4635 = vmul.f32 %v4512, %v4602
      %v4636 = vmul.f32 %v4512, %v4606
      %v4637 = vmul.f32 %v4517, %v4602
      %v4638 = vmul.f32 %v4517, %v4606
      %v4639 = vmul.f32 %v4522, %v4602
      %v4640 = vmul.f32 %v4522, %v4606
      %v4641 = vmul.f32 %v4527, %v4602
      %v4642 = vmul.f32 %v4527, %v4606
      %v4643 = vmul.f32 %v4532, %v4602
      %v4644 = vmul.f32 %v4532, %v4606
      %v4645 = vmul.f32 %v4537, %v4602
      %v4646 = vmul.f32 %v4537, %v4606
      %v4647 = vmul.f32 %v4542, %v4602
      %v4648 = vmul.f32 %v4542, %v4606
      %v4649 = vmul.f32 %v4547, %v4602
      %v4650 = vmul.f32 %v4547, %v4606
      %v4651 = vmul.f32 %v4552, %v4602
      %v4652 = vmul.f32 %v4552, %v4606
      %v4653 = vmul.f32 %v4557, %v4602
      %v4654 = vmul.f32 %v4557, %v4606
      %v4655 = vmul.f32 %v4562, %v4602
      %v4656 = vmul.f32 %v4562, %v4606
      %v4657 = vmul.f32 %v4567, %v4602
      %v4658 = vmul.f32 %v4567, %v4606
      %v4659 = vmul.f32 %v4572, %v4602
      %v4660 = vmul.f32 %v4572, %v4606
      %v4661 = vmul.f32 %v4577, %v4602
      %v4662 = vmul.f32 %v4577, %v4606
      %v4663 = vmul.f32 %v4582, %v4602
      %v4664 = vmul.f32 %v4582, %v4606
      %v4665 = vmul.f32 %v4587, %v4602
      %v4666 = vmul.f32 %v4587, %v4606
      %v4667 = vmul.f32 %v4592, %v4602
      %v4668 = vmul.f32 %v4592, %v4606
      %v4669 = vmul.f32 %v4597, %v4602
      %v4670 = vmul.f32 %v4597, %v4606
      %v4671 = vadd.f32 %v4375, %v4607
      %v4672 = vadd.f32 %v4376, %v4608
      %v4673 = vadd.f32 %v4377, %v4609
      %v4674 = vadd.f32 %v4378, %v4610
      %v4675 = vadd.f32 %v4379, %v4611
      %v4676 = vadd.f32 %v4380, %v4612
      %v4677 = vadd.f32 %v4381, %v4613
      %v4678 = vadd.f32 %v4382, %v4614
      %v4679 = vadd.f32 %v4383, %v4615
      %v4680 = vadd.f32 %v4384, %v4616
      %v4681 = vadd.f32 %v4385, %v4617
      %v4682 = vadd.f32 %v4386, %v4618
      %v4683 = vadd.f32 %v4387, %v4619
      %v4684 = vadd.f32 %v4388, %v4620
      %v4685 = vadd.f32 %v4389, %v4621
      %v4686 = vadd.f32 %v4390, %v4622
      %v4687 = vadd.f32 %v4391, %v4623
      %v4688 = vadd.f32 %v4392, %v4624
      %v4689 = vadd.f32 %v4393, %v4625
      %v4690 = vadd.f32 %v4394, %v4626
      %v4691 = vadd.f32 %v4395, %v4627
      %v4692 = vadd.f32 %v4396, %v4628
      %v4693 = vadd.f32 %v4397, %v4629
      %v4694 = vadd.f32 %v4398, %v4630
      %v4695 = vadd.f32 %v4399, %v4631
      %v4696 = vadd.f32 %v4400, %v4632
      %v4697 = vadd.f32 %v4401, %v4633
      %v4698 = vadd.f32 %v4402, %v4634
      %v4699 = vadd.f32 %v4403, %v4635
      %v4700 = vadd.f32 %v4404, %v4636
      %v4701 = vadd.f32 %v4405, %v4637
      %v4702 = vadd.f32 %v4406, %v4638
      %v4703 = vadd.f32 %v4407, %v4639
      %v4704 = vadd.f32 %v4408, %v4640
      %v4705 = vadd.f32 %v4409, %v4641
      %v4706 = vadd.f32 %v4410, %v4642
      %v4707 = vadd.f32 %v4411, %v4643
      %v4708 = vadd.f32 %v4412, %v4644
      %v4709 = vadd.f32 %v4413, %v4645
      %v4710 = vadd.f32 %v4414, %v4646
      %v4711 = vadd.f32 %v4415, %v4647
      %v4712 = vadd.f32 %v4416, %v4648
      %v4713 = vadd.f32 %v4417, %v4649
      %v4714 = vadd.f32 %v4418, %v4650
      %v4715 = vadd.f32 %v4419, %v4651
      %v4716 = vadd.f32 %v4420, %v4652
      %v4717 = vadd.f32 %v4421, %v4653
      %v4718 = vadd.f32 %v4422, %v4654
      %v4719 = vadd.f32 %v4423, %v4655
      %v4720 = vadd.f32 %v4424, %v4656
      %v4721 = vadd.f32 %v4425, %v4657
      %v4722 = vadd.f32 %v4426, %v4658
      %v4723 = vadd.f32 %v4427, %v4659
      %v4724 = vadd.f32 %v4428, %v4660
      %v4725 = vadd.f32 %v4429, %v4661
      %v4726 = vadd.f32 %v4430, %v4662
      %v4727 = vadd.f32 %v4431, %v4663
      %v4728 = vadd.f32 %v4432, %v4664
      %v4729 = vadd.f32 %v4433, %v4665
      %v4730 = vadd.f32 %v4434, %v4666
      %v4731 = vadd.f32 %v4435, %v4667
      %v4732 = vadd.f32 %v4436, %v4668
      %v4733 = vadd.f32 %v4437, %v4669
      %v4734 = vadd.f32 %v4438, %v4670
      %4736 = vset.pattern.permute.xlu0 0
      %4737 = vperm.xlu0 %4736, %v2615
      %v4738 = vpop.permute.xlu0 %4737
      %4741 = vset.pattern.permute.xlu0 0
      %4742 = vperm.xlu0 %4741, %v2616
      %v4743 = vpop.permute.xlu0 %4742
      %4746 = vset.pattern.permute.xlu0 0
      %4747 = vperm.xlu0 %4746, %v2617
      %v4748 = vpop.permute.xlu0 %4747
      %4751 = vset.pattern.permute.xlu0 0
      %4752 = vperm.xlu0 %4751, %v2618
      %v4753 = vpop.permute.xlu0 %4752
      %4756 = vset.pattern.permute.xlu0 0
      %4757 = vperm.xlu0 %4756, %v2619
      %v4758 = vpop.permute.xlu0 %4757
      %4761 = vset.pattern.permute.xlu0 0
      %4762 = vperm.xlu0 %4761, %v2620
      %v4763 = vpop.permute.xlu0 %4762
      %4766 = vset.pattern.permute.xlu0 0
      %4767 = vperm.xlu0 %4766, %v2621
      %v4768 = vpop.permute.xlu0 %4767
      %4771 = vset.pattern.permute.xlu0 0
      %4772 = vperm.xlu0 %4771, %v2622
      %v4773 = vpop.permute.xlu0 %4772
      %4776 = vset.pattern.permute.xlu0 0
      %4777 = vperm.xlu0 %4776, %v2623
      %v4778 = vpop.permute.xlu0 %4777
      %4781 = vset.pattern.permute.xlu0 0
      %4782 = vperm.xlu0 %4781, %v2624
      %v4783 = vpop.permute.xlu0 %4782
      %4786 = vset.pattern.permute.xlu0 0
      %4787 = vperm.xlu0 %4786, %v2625
      %v4788 = vpop.permute.xlu0 %4787
      %4791 = vset.pattern.permute.xlu0 0
      %4792 = vperm.xlu0 %4791, %v2626
      %v4793 = vpop.permute.xlu0 %4792
      %4796 = vset.pattern.permute.xlu0 0
      %4797 = vperm.xlu0 %4796, %v2627
      %v4798 = vpop.permute.xlu0 %4797
      %4801 = vset.pattern.permute.xlu0 0
      %4802 = vperm.xlu0 %4801, %v2628
      %v4803 = vpop.permute.xlu0 %4802
      %4806 = vset.pattern.permute.xlu0 0
      %4807 = vperm.xlu0 %4806, %v2629
      %v4808 = vpop.permute.xlu0 %4807
      %4811 = vset.pattern.permute.xlu0 0
      %4812 = vperm.xlu0 %4811, %v2630
      %v4813 = vpop.permute.xlu0 %4812
      %4816 = vset.pattern.permute.xlu0 0
      %4817 = vperm.xlu0 %4816, %v2631
      %v4818 = vpop.permute.xlu0 %4817
      %4821 = vset.pattern.permute.xlu0 0
      %4822 = vperm.xlu0 %4821, %v2632
      %v4823 = vpop.permute.xlu0 %4822
      %4826 = vset.pattern.permute.xlu0 0
      %4827 = vperm.xlu0 %4826, %v2633
      %v4828 = vpop.permute.xlu0 %4827
      %4831 = vset.pattern.permute.xlu0 0
      %4832 = vperm.xlu0 %4831, %v2634
      %v4833 = vpop.permute.xlu0 %4832
      %4836 = vset.pattern.permute.xlu0 0
      %4837 = vperm.xlu0 %4836, %v2635
      %v4838 = vpop.permute.xlu0 %4837
      %4841 = vset.pattern.permute.xlu0 0
      %4842 = vperm.xlu0 %4841, %v2636
      %v4843 = vpop.permute.xlu0 %4842
      %4846 = vset.pattern.permute.xlu0 0
      %4847 = vperm.xlu0 %4846, %v2637
      %v4848 = vpop.permute.xlu0 %4847
      %4851 = vset.pattern.permute.xlu0 0
      %4852 = vperm.xlu0 %4851, %v2638
      %v4853 = vpop.permute.xlu0 %4852
      %4856 = vset.pattern.permute.xlu0 0
      %4857 = vperm.xlu0 %4856, %v2639
      %v4858 = vpop.permute.xlu0 %4857
      %4861 = vset.pattern.permute.xlu0 0
      %4862 = vperm.xlu0 %4861, %v2640
      %v4863 = vpop.permute.xlu0 %4862
      %4866 = vset.pattern.permute.xlu0 0
      %4867 = vperm.xlu0 %4866, %v2641
      %v4868 = vpop.permute.xlu0 %4867
      %4871 = vset.pattern.permute.xlu0 0
      %4872 = vperm.xlu0 %4871, %v2642
      %v4873 = vpop.permute.xlu0 %4872
      %4876 = vset.pattern.permute.xlu0 0
      %4877 = vperm.xlu0 %4876, %v2643
      %v4878 = vpop.permute.xlu0 %4877
      %4881 = vset.pattern.permute.xlu0 0
      %4882 = vperm.xlu0 %4881, %v2644
      %v4883 = vpop.permute.xlu0 %4882
      %4886 = vset.pattern.permute.xlu0 0
      %4887 = vperm.xlu0 %4886, %v2645
      %v4888 = vpop.permute.xlu0 %4887
      %4891 = vset.pattern.permute.xlu0 0
      %4892 = vperm.xlu0 %4891, %v2646
      %v4893 = vpop.permute.xlu0 %4892
      %v4895 = vlaneseq
      %v4896 = vshrl.u32 %v4895, 7
      %v4897 = vsub.s32 7, %v4896
      %v4898 = vrot.slane %v2839, %v4897
      %v4899 = vlaneseq
      %v4900 = vshrl.u32 %v4899, 7
      %v4901 = vsub.s32 7, %v4900
      %v4902 = vrot.slane %v2840, %v4901
      %v4903 = vmul.f32 %v4738, %v4898
      %v4904 = vmul.f32 %v4738, %v4902
      %v4905 = vmul.f32 %v4743, %v4898
      %v4906 = vmul.f32 %v4743, %v4902
      %v4907 = vmul.f32 %v4748, %v4898
      %v4908 = vmul.f32 %v4748, %v4902
      %v4909 = vmul.f32 %v4753, %v4898
      %v4910 = vmul.f32 %v4753, %v4902
      %v4911 = vmul.f32 %v4758, %v4898
      %v4912 = vmul.f32 %v4758, %v4902
      %v4913 = vmul.f32 %v4763, %v4898
      %v4914 = vmul.f32 %v4763, %v4902
      %v4915 = vmul.f32 %v4768, %v4898
      %v4916 = vmul.f32 %v4768, %v4902
      %v4917 = vmul.f32 %v4773, %v4898
      %v4918 = vmul.f32 %v4773, %v4902
      %v4919 = vmul.f32 %v4778, %v4898
      %v4920 = vmul.f32 %v4778, %v4902
      %v4921 = vmul.f32 %v4783, %v4898
      %v4922 = vmul.f32 %v4783, %v4902
      %v4923 = vmul.f32 %v4788, %v4898
      %v4924 = vmul.f32 %v4788, %v4902
      %v4925 = vmul.f32 %v4793, %v4898
      %v4926 = vmul.f32 %v4793, %v4902
      %v4927 = vmul.f32 %v4798, %v4898
      %v4928 = vmul.f32 %v4798, %v4902
      %v4929 = vmul.f32 %v4803, %v4898
      %v4930 = vmul.f32 %v4803, %v4902
      %v4931 = vmul.f32 %v4808, %v4898
      %v4932 = vmul.f32 %v4808, %v4902
      %v4933 = vmul.f32 %v4813, %v4898
      %v4934 = vmul.f32 %v4813, %v4902
      %v4935 = vmul.f32 %v4818, %v4898
      %v4936 = vmul.f32 %v4818, %v4902
      %v4937 = vmul.f32 %v4823, %v4898
      %v4938 = vmul.f32 %v4823, %v4902
      %v4939 = vmul.f32 %v4828, %v4898
      %v4940 = vmul.f32 %v4828, %v4902
      %v4941 = vmul.f32 %v4833, %v4898
      %v4942 = vmul.f32 %v4833, %v4902
      %v4943 = vmul.f32 %v4838, %v4898
      %v4944 = vmul.f32 %v4838, %v4902
      %v4945 = vmul.f32 %v4843, %v4898
      %v4946 = vmul.f32 %v4843, %v4902
      %v4947 = vmul.f32 %v4848, %v4898
      %v4948 = vmul.f32 %v4848, %v4902
      %v4949 = vmul.f32 %v4853, %v4898
      %v4950 = vmul.f32 %v4853, %v4902
      %v4951 = vmul.f32 %v4858, %v4898
      %v4952 = vmul.f32 %v4858, %v4902
      %v4953 = vmul.f32 %v4863, %v4898
      %v4954 = vmul.f32 %v4863, %v4902
      %v4955 = vmul.f32 %v4868, %v4898
      %v4956 = vmul.f32 %v4868, %v4902
      %v4957 = vmul.f32 %v4873, %v4898
      %v4958 = vmul.f32 %v4873, %v4902
      %v4959 = vmul.f32 %v4878, %v4898
      %v4960 = vmul.f32 %v4878, %v4902
      %v4961 = vmul.f32 %v4883, %v4898
      %v4962 = vmul.f32 %v4883, %v4902
      %v4963 = vmul.f32 %v4888, %v4898
      %v4964 = vmul.f32 %v4888, %v4902
      %v4965 = vmul.f32 %v4893, %v4898
      %v4966 = vmul.f32 %v4893, %v4902
      %v4967 = vadd.f32 %v4671, %v4903
      %v4968 = vadd.f32 %v4672, %v4904
      %v4969 = vadd.f32 %v4673, %v4905
      %v4970 = vadd.f32 %v4674, %v4906
      %v4971 = vadd.f32 %v4675, %v4907
      %v4972 = vadd.f32 %v4676, %v4908
      %v4973 = vadd.f32 %v4677, %v4909
      %v4974 = vadd.f32 %v4678, %v4910
      %v4975 = vadd.f32 %v4679, %v4911
      %v4976 = vadd.f32 %v4680, %v4912
      %v4977 = vadd.f32 %v4681, %v4913
      %v4978 = vadd.f32 %v4682, %v4914
      %v4979 = vadd.f32 %v4683, %v4915
      %v4980 = vadd.f32 %v4684, %v4916
      %v4981 = vadd.f32 %v4685, %v4917
      %v4982 = vadd.f32 %v4686, %v4918
      %v4983 = vadd.f32 %v4687, %v4919
      %v4984 = vadd.f32 %v4688, %v4920
      %v4985 = vadd.f32 %v4689, %v4921
      %v4986 = vadd.f32 %v4690, %v4922
      %v4987 = vadd.f32 %v4691, %v4923
      %v4988 = vadd.f32 %v4692, %v4924
      %v4989 = vadd.f32 %v4693, %v4925
      %v4990 = vadd.f32 %v4694, %v4926
      %v4991 = vadd.f32 %v4695, %v4927
      %v4992 = vadd.f32 %v4696, %v4928
      %v4993 = vadd.f32 %v4697, %v4929
      %v4994 = vadd.f32 %v4698, %v4930
      %v4995 = vadd.f32 %v4699, %v4931
      %v4996 = vadd.f32 %v4700, %v4932
      %v4997 = vadd.f32 %v4701, %v4933
      %v4998 = vadd.f32 %v4702, %v4934
      %v4999 = vadd.f32 %v4703, %v4935
      %v5000 = vadd.f32 %v4704, %v4936
      %v5001 = vadd.f32 %v4705, %v4937
      %v5002 = vadd.f32 %v4706, %v4938
      %v5003 = vadd.f32 %v4707, %v4939
      %v5004 = vadd.f32 %v4708, %v4940
      %v5005 = vadd.f32 %v4709, %v4941
      %v5006 = vadd.f32 %v4710, %v4942
      %v5007 = vadd.f32 %v4711, %v4943
      %v5008 = vadd.f32 %v4712, %v4944
      %v5009 = vadd.f32 %v4713, %v4945
      %v5010 = vadd.f32 %v4714, %v4946
      %v5011 = vadd.f32 %v4715, %v4947
      %v5012 = vadd.f32 %v4716, %v4948
      %v5013 = vadd.f32 %v4717, %v4949
      %v5014 = vadd.f32 %v4718, %v4950
      %v5015 = vadd.f32 %v4719, %v4951
      %v5016 = vadd.f32 %v4720, %v4952
      %v5017 = vadd.f32 %v4721, %v4953
      %v5018 = vadd.f32 %v4722, %v4954
      %v5019 = vadd.f32 %v4723, %v4955
      %v5020 = vadd.f32 %v4724, %v4956
      %v5021 = vadd.f32 %v4725, %v4957
      %v5022 = vadd.f32 %v4726, %v4958
      %v5023 = vadd.f32 %v4727, %v4959
      %v5024 = vadd.f32 %v4728, %v4960
      %v5025 = vadd.f32 %v4729, %v4961
      %v5026 = vadd.f32 %v4730, %v4962
      %v5027 = vadd.f32 %v4731, %v4963
      %v5028 = vadd.f32 %v4732, %v4964
      %v5029 = vadd.f32 %v4733, %v4965
      %v5030 = vadd.f32 %v4734, %v4966
      %5032 = vset.pattern.permute.xlu0 10
      %5033 = vperm.xlu0 %5032, %v2775
      %v5034 = vpop.permute.xlu0 %5033
      %5037 = vset.pattern.permute.xlu0 10
      %5038 = vperm.xlu0 %5037, %v2776
      %v5039 = vpop.permute.xlu0 %5038
      %5042 = vset.pattern.permute.xlu0 10
      %5043 = vperm.xlu0 %5042, %v2777
      %v5044 = vpop.permute.xlu0 %5043
      %5047 = vset.pattern.permute.xlu0 10
      %5048 = vperm.xlu0 %5047, %v2778
      %v5049 = vpop.permute.xlu0 %5048
      %5052 = vset.pattern.permute.xlu0 10
      %5053 = vperm.xlu0 %5052, %v2779
      %v5054 = vpop.permute.xlu0 %5053
      %5057 = vset.pattern.permute.xlu0 10
      %5058 = vperm.xlu0 %5057, %v2780
      %v5059 = vpop.permute.xlu0 %5058
      %5062 = vset.pattern.permute.xlu0 10
      %5063 = vperm.xlu0 %5062, %v2781
      %v5064 = vpop.permute.xlu0 %5063
      %5067 = vset.pattern.permute.xlu0 10
      %5068 = vperm.xlu0 %5067, %v2782
      %v5069 = vpop.permute.xlu0 %5068
      %5072 = vset.pattern.permute.xlu0 10
      %5073 = vperm.xlu0 %5072, %v2783
      %v5074 = vpop.permute.xlu0 %5073
      %5077 = vset.pattern.permute.xlu0 10
      %5078 = vperm.xlu0 %5077, %v2784
      %v5079 = vpop.permute.xlu0 %5078
      %5082 = vset.pattern.permute.xlu0 10
      %5083 = vperm.xlu0 %5082, %v2785
      %v5084 = vpop.permute.xlu0 %5083
      %5087 = vset.pattern.permute.xlu0 10
      %5088 = vperm.xlu0 %5087, %v2786
      %v5089 = vpop.permute.xlu0 %5088
      %5092 = vset.pattern.permute.xlu0 10
      %5093 = vperm.xlu0 %5092, %v2787
      %v5094 = vpop.permute.xlu0 %5093
      %5097 = vset.pattern.permute.xlu0 10
      %5098 = vperm.xlu0 %5097, %v2788
      %v5099 = vpop.permute.xlu0 %5098
      %5102 = vset.pattern.permute.xlu0 10
      %5103 = vperm.xlu0 %5102, %v2789
      %v5104 = vpop.permute.xlu0 %5103
      %5107 = vset.pattern.permute.xlu0 10
      %5108 = vperm.xlu0 %5107, %v2790
      %v5109 = vpop.permute.xlu0 %5108
      %5112 = vset.pattern.permute.xlu0 10
      %5113 = vperm.xlu0 %5112, %v2791
      %v5114 = vpop.permute.xlu0 %5113
      %5117 = vset.pattern.permute.xlu0 10
      %5118 = vperm.xlu0 %5117, %v2792
      %v5119 = vpop.permute.xlu0 %5118
      %5122 = vset.pattern.permute.xlu0 10
      %5123 = vperm.xlu0 %5122, %v2793
      %v5124 = vpop.permute.xlu0 %5123
      %5127 = vset.pattern.permute.xlu0 10
      %5128 = vperm.xlu0 %5127, %v2794
      %v5129 = vpop.permute.xlu0 %5128
      %5132 = vset.pattern.permute.xlu0 10
      %5133 = vperm.xlu0 %5132, %v2795
      %v5134 = vpop.permute.xlu0 %5133
      %5137 = vset.pattern.permute.xlu0 10
      %5138 = vperm.xlu0 %5137, %v2796
      %v5139 = vpop.permute.xlu0 %5138
      %5142 = vset.pattern.permute.xlu0 10
      %5143 = vperm.xlu0 %5142, %v2797
      %v5144 = vpop.permute.xlu0 %5143
      %5147 = vset.pattern.permute.xlu0 10
      %5148 = vperm.xlu0 %5147, %v2798
      %v5149 = vpop.permute.xlu0 %5148
      %5152 = vset.pattern.permute.xlu0 10
      %5153 = vperm.xlu0 %5152, %v2799
      %v5154 = vpop.permute.xlu0 %5153
      %5157 = vset.pattern.permute.xlu0 10
      %5158 = vperm.xlu0 %5157, %v2800
      %v5159 = vpop.permute.xlu0 %5158
      %5162 = vset.pattern.permute.xlu0 10
      %5163 = vperm.xlu0 %5162, %v2801
      %v5164 = vpop.permute.xlu0 %5163
      %5167 = vset.pattern.permute.xlu0 10
      %5168 = vperm.xlu0 %5167, %v2802
      %v5169 = vpop.permute.xlu0 %5168
      %5172 = vset.pattern.permute.xlu0 10
      %5173 = vperm.xlu0 %5172, %v2803
      %v5174 = vpop.permute.xlu0 %5173
      %5177 = vset.pattern.permute.xlu0 10
      %5178 = vperm.xlu0 %5177, %v2804
      %v5179 = vpop.permute.xlu0 %5178
      %5182 = vset.pattern.permute.xlu0 10
      %5183 = vperm.xlu0 %5182, %v2805
      %v5184 = vpop.permute.xlu0 %5183
      %5187 = vset.pattern.permute.xlu0 10
      %5188 = vperm.xlu0 %5187, %v2806
      %v5189 = vpop.permute.xlu0 %5188
      %v5191 = vlaneseq
      %v5192 = vshrl.u32 %v5191, 7
      %v5193 = vsub.s32 0, %v5192
      %v5194 = vrot.slane %v2841, %v5193
      %v5195 = vlaneseq
      %v5196 = vshrl.u32 %v5195, 7
      %v5197 = vsub.s32 0, %v5196
      %v5198 = vrot.slane %v2842, %v5197
      %v5199 = vmul.f32 %v5034, %v5194
      %v5200 = vmul.f32 %v5034, %v5198
      %v5201 = vmul.f32 %v5039, %v5194
      %v5202 = vmul.f32 %v5039, %v5198
      %v5203 = vmul.f32 %v5044, %v5194
      %v5204 = vmul.f32 %v5044, %v5198
      %v5205 = vmul.f32 %v5049, %v5194
      %v5206 = vmul.f32 %v5049, %v5198
      %v5207 = vmul.f32 %v5054, %v5194
      %v5208 = vmul.f32 %v5054, %v5198
      %v5209 = vmul.f32 %v5059, %v5194
      %v5210 = vmul.f32 %v5059, %v5198
      %v5211 = vmul.f32 %v5064, %v5194
      %v5212 = vmul.f32 %v5064, %v5198
      %v5213 = vmul.f32 %v5069, %v5194
      %v5214 = vmul.f32 %v5069, %v5198
      %v5215 = vmul.f32 %v5074, %v5194
      %v5216 = vmul.f32 %v5074, %v5198
      %v5217 = vmul.f32 %v5079, %v5194
      %v5218 = vmul.f32 %v5079, %v5198
      %v5219 = vmul.f32 %v5084, %v5194
      %v5220 = vmul.f32 %v5084, %v5198
      %v5221 = vmul.f32 %v5089, %v5194
      %v5222 = vmul.f32 %v5089, %v5198
      %v5223 = vmul.f32 %v5094, %v5194
      %v5224 = vmul.f32 %v5094, %v5198
      %v5225 = vmul.f32 %v5099, %v5194
      %v5226 = vmul.f32 %v5099, %v5198
      %v5227 = vmul.f32 %v5104, %v5194
      %v5228 = vmul.f32 %v5104, %v5198
      %v5229 = vmul.f32 %v5109, %v5194
      %v5230 = vmul.f32 %v5109, %v5198
      %v5231 = vmul.f32 %v5114, %v5194
      %v5232 = vmul.f32 %v5114, %v5198
      %v5233 = vmul.f32 %v5119, %v5194
      %v5234 = vmul.f32 %v5119, %v5198
      %v5235 = vmul.f32 %v5124, %v5194
      %v5236 = vmul.f32 %v5124, %v5198
      %v5237 = vmul.f32 %v5129, %v5194
      %v5238 = vmul.f32 %v5129, %v5198
      %v5239 = vmul.f32 %v5134, %v5194
      %v5240 = vmul.f32 %v5134, %v5198
      %v5241 = vmul.f32 %v5139, %v5194
      %v5242 = vmul.f32 %v5139, %v5198
      %v5243 = vmul.f32 %v5144, %v5194
      %v5244 = vmul.f32 %v5144, %v5198
      %v5245 = vmul.f32 %v5149, %v5194
      %v5246 = vmul.f32 %v5149, %v5198
      %v5247 = vmul.f32 %v5154, %v5194
      %v5248 = vmul.f32 %v5154, %v5198
      %v5249 = vmul.f32 %v5159, %v5194
      %v5250 = vmul.f32 %v5159, %v5198
      %v5251 = vmul.f32 %v5164, %v5194
      %v5252 = vmul.f32 %v5164, %v5198
      %v5253 = vmul.f32 %v5169, %v5194
      %v5254 = vmul.f32 %v5169, %v5198
      %v5255 = vmul.f32 %v5174, %v5194
      %v5256 = vmul.f32 %v5174, %v5198
      %v5257 = vmul.f32 %v5179, %v5194
      %v5258 = vmul.f32 %v5179, %v5198
      %v5259 = vmul.f32 %v5184, %v5194
      %v5260 = vmul.f32 %v5184, %v5198
      %v5261 = vmul.f32 %v5189, %v5194
      %v5262 = vmul.f32 %v5189, %v5198
      %v5263 = vadd.f32 %v4967, %v5199
      %v5264 = vadd.f32 %v4968, %v5200
      %v5265 = vadd.f32 %v4969, %v5201
      %v5266 = vadd.f32 %v4970, %v5202
      %v5267 = vadd.f32 %v4971, %v5203
      %v5268 = vadd.f32 %v4972, %v5204
      %v5269 = vadd.f32 %v4973, %v5205
      %v5270 = vadd.f32 %v4974, %v5206
      %v5271 = vadd.f32 %v4975, %v5207
      %v5272 = vadd.f32 %v4976, %v5208
      %v5273 = vadd.f32 %v4977, %v5209
      %v5274 = vadd.f32 %v4978, %v5210
      %v5275 = vadd.f32 %v4979, %v5211
      %v5276 = vadd.f32 %v4980, %v5212
      %v5277 = vadd.f32 %v4981, %v5213
      %v5278 = vadd.f32 %v4982, %v5214
      %v5279 = vadd.f32 %v4983, %v5215
      %v5280 = vadd.f32 %v4984, %v5216
      %v5281 = vadd.f32 %v4985, %v5217
      %v5282 = vadd.f32 %v4986, %v5218
      %v5283 = vadd.f32 %v4987, %v5219
      %v5284 = vadd.f32 %v4988, %v5220
      %v5285 = vadd.f32 %v4989, %v5221
      %v5286 = vadd.f32 %v4990, %v5222
      %v5287 = vadd.f32 %v4991, %v5223
      %v5288 = vadd.f32 %v4992, %v5224
      %v5289 = vadd.f32 %v4993, %v5225
      %v5290 = vadd.f32 %v4994, %v5226
      %v5291 = vadd.f32 %v4995, %v5227
      %v5292 = vadd.f32 %v4996, %v5228
      %v5293 = vadd.f32 %v4997, %v5229
      %v5294 = vadd.f32 %v4998, %v5230
      %v5295 = vadd.f32 %v4999, %v5231
      %v5296 = vadd.f32 %v5000, %v5232
      %v5297 = vadd.f32 %v5001, %v5233
      %v5298 = vadd.f32 %v5002, %v5234
      %v5299 = vadd.f32 %v5003, %v5235
      %v5300 = vadd.f32 %v5004, %v5236
      %v5301 = vadd.f32 %v5005, %v5237
      %v5302 = vadd.f32 %v5006, %v5238
      %v5303 = vadd.f32 %v5007, %v5239
      %v5304 = vadd.f32 %v5008, %v5240
      %v5305 = vadd.f32 %v5009, %v5241
      %v5306 = vadd.f32 %v5010, %v5242
      %v5307 = vadd.f32 %v5011, %v5243
      %v5308 = vadd.f32 %v5012, %v5244
      %v5309 = vadd.f32 %v5013, %v5245
      %v5310 = vadd.f32 %v5014, %v5246
      %v5311 = vadd.f32 %v5015, %v5247
      %v5312 = vadd.f32 %v5016, %v5248
      %v5313 = vadd.f32 %v5017, %v5249
      %v5314 = vadd.f32 %v5018, %v5250
      %v5315 = vadd.f32 %v5019, %v5251
      %v5316 = vadd.f32 %v5020, %v5252
      %v5317 = vadd.f32 %v5021, %v5253
      %v5318 = vadd.f32 %v5022, %v5254
      %v5319 = vadd.f32 %v5023, %v5255
      %v5320 = vadd.f32 %v5024, %v5256
      %v5321 = vadd.f32 %v5025, %v5257
      %v5322 = vadd.f32 %v5026, %v5258
      %v5323 = vadd.f32 %v5027, %v5259
      %v5324 = vadd.f32 %v5028, %v5260
      %v5325 = vadd.f32 %v5029, %v5261
      %v5326 = vadd.f32 %v5030, %v5262
      %5328 = vset.pattern.permute.xlu0 5
      %5329 = vperm.xlu0 %5328, %v2807
      %v5330 = vpop.permute.xlu0 %5329
      %5333 = vset.pattern.permute.xlu0 5
      %5334 = vperm.xlu0 %5333, %v2808
      %v5335 = vpop.permute.xlu0 %5334
      %5338 = vset.pattern.permute.xlu0 5
      %5339 = vperm.xlu0 %5338, %v2809
      %v5340 = vpop.permute.xlu0 %5339
      %5343 = vset.pattern.permute.xlu0 5
      %5344 = vperm.xlu0 %5343, %v2810
      %v5345 = vpop.permute.xlu0 %5344
      %5348 = vset.pattern.permute.xlu0 5
      %5349 = vperm.xlu0 %5348, %v2811
      %v5350 = vpop.permute.xlu0 %5349
      %5353 = vset.pattern.permute.xlu0 5
      %5354 = vperm.xlu0 %5353, %v2812
      %v5355 = vpop.permute.xlu0 %5354
      %5358 = vset.pattern.permute.xlu0 5
      %5359 = vperm.xlu0 %5358, %v2813
      %v5360 = vpop.permute.xlu0 %5359
      %5363 = vset.pattern.permute.xlu0 5
      %5364 = vperm.xlu0 %5363, %v2814
      %v5365 = vpop.permute.xlu0 %5364
      %5368 = vset.pattern.permute.xlu0 5
      %5369 = vperm.xlu0 %5368, %v2815
      %v5370 = vpop.permute.xlu0 %5369
      %5373 = vset.pattern.permute.xlu0 5
      %5374 = vperm.xlu0 %5373, %v2816
      %v5375 = vpop.permute.xlu0 %5374
      %5378 = vset.pattern.permute.xlu0 5
      %5379 = vperm.xlu0 %5378, %v2817
      %v5380 = vpop.permute.xlu0 %5379
      %5383 = vset.pattern.permute.xlu0 5
      %5384 = vperm.xlu0 %5383, %v2818
      %v5385 = vpop.permute.xlu0 %5384
      %5388 = vset.pattern.permute.xlu0 5
      %5389 = vperm.xlu0 %5388, %v2819
      %v5390 = vpop.permute.xlu0 %5389
      %5393 = vset.pattern.permute.xlu0 5
      %5394 = vperm.xlu0 %5393, %v2820
      %v5395 = vpop.permute.xlu0 %5394
      %5398 = vset.pattern.permute.xlu0 5
      %5399 = vperm.xlu0 %5398, %v2821
      %v5400 = vpop.permute.xlu0 %5399
      %5403 = vset.pattern.permute.xlu0 5
      %5404 = vperm.xlu0 %5403, %v2822
      %v5405 = vpop.permute.xlu0 %5404
      %5408 = vset.pattern.permute.xlu0 5
      %5409 = vperm.xlu0 %5408, %v2823
      %v5410 = vpop.permute.xlu0 %5409
      %5413 = vset.pattern.permute.xlu0 5
      %5414 = vperm.xlu0 %5413, %v2824
      %v5415 = vpop.permute.xlu0 %5414
      %5418 = vset.pattern.permute.xlu0 5
      %5419 = vperm.xlu0 %5418, %v2825
      %v5420 = vpop.permute.xlu0 %5419
      %5423 = vset.pattern.permute.xlu0 5
      %5424 = vperm.xlu0 %5423, %v2826
      %v5425 = vpop.permute.xlu0 %5424
      %5428 = vset.pattern.permute.xlu0 5
      %5429 = vperm.xlu0 %5428, %v2827
      %v5430 = vpop.permute.xlu0 %5429
      %5433 = vset.pattern.permute.xlu0 5
      %5434 = vperm.xlu0 %5433, %v2828
      %v5435 = vpop.permute.xlu0 %5434
      %5438 = vset.pattern.permute.xlu0 5
      %5439 = vperm.xlu0 %5438, %v2829
      %v5440 = vpop.permute.xlu0 %5439
      %5443 = vset.pattern.permute.xlu0 5
      %5444 = vperm.xlu0 %5443, %v2830
      %v5445 = vpop.permute.xlu0 %5444
      %5448 = vset.pattern.permute.xlu0 5
      %5449 = vperm.xlu0 %5448, %v2831
      %v5450 = vpop.permute.xlu0 %5449
      %5453 = vset.pattern.permute.xlu0 5
      %5454 = vperm.xlu0 %5453, %v2832
      %v5455 = vpop.permute.xlu0 %5454
      %5458 = vset.pattern.permute.xlu0 5
      %5459 = vperm.xlu0 %5458, %v2833
      %v5460 = vpop.permute.xlu0 %5459
      %5463 = vset.pattern.permute.xlu0 5
      %5464 = vperm.xlu0 %5463, %v2834
      %v5465 = vpop.permute.xlu0 %5464
      %5468 = vset.pattern.permute.xlu0 5
      %5469 = vperm.xlu0 %5468, %v2835
      %v5470 = vpop.permute.xlu0 %5469
      %5473 = vset.pattern.permute.xlu0 5
      %5474 = vperm.xlu0 %5473, %v2836
      %v5475 = vpop.permute.xlu0 %5474
      %5478 = vset.pattern.permute.xlu0 5
      %5479 = vperm.xlu0 %5478, %v2837
      %v5480 = vpop.permute.xlu0 %5479
      %5483 = vset.pattern.permute.xlu0 5
      %5484 = vperm.xlu0 %5483, %v2838
      %v5485 = vpop.permute.xlu0 %5484
      %v5487 = vlaneseq
      %v5488 = vshrl.u32 %v5487, 7
      %v5489 = vsub.s32 1, %v5488
      %v5490 = vrot.slane %v2841, %v5489
      %v5491 = vlaneseq
      %v5492 = vshrl.u32 %v5491, 7
      %v5493 = vsub.s32 1, %v5492
      %v5494 = vrot.slane %v2842, %v5493
      %v5495 = vmul.f32 %v5330, %v5490
      %v5496 = vmul.f32 %v5330, %v5494
      %v5497 = vmul.f32 %v5335, %v5490
      %v5498 = vmul.f32 %v5335, %v5494
      %v5499 = vmul.f32 %v5340, %v5490
      %v5500 = vmul.f32 %v5340, %v5494
      %v5501 = vmul.f32 %v5345, %v5490
      %v5502 = vmul.f32 %v5345, %v5494
      %v5503 = vmul.f32 %v5350, %v5490
      %v5504 = vmul.f32 %v5350, %v5494
      %v5505 = vmul.f32 %v5355, %v5490
      %v5506 = vmul.f32 %v5355, %v5494
      %v5507 = vmul.f32 %v5360, %v5490
      %v5508 = vmul.f32 %v5360, %v5494
      %v5509 = vmul.f32 %v5365, %v5490
      %v5510 = vmul.f32 %v5365, %v5494
      %v5511 = vmul.f32 %v5370, %v5490
      %v5512 = vmul.f32 %v5370, %v5494
      %v5513 = vmul.f32 %v5375, %v5490
      %v5514 = vmul.f32 %v5375, %v5494
      %v5515 = vmul.f32 %v5380, %v5490
      %v5516 = vmul.f32 %v5380, %v5494
      %v5517 = vmul.f32 %v5385, %v5490
      %v5518 = vmul.f32 %v5385, %v5494
      %v5519 = vmul.f32 %v5390, %v5490
      %v5520 = vmul.f32 %v5390, %v5494
      %v5521 = vmul.f32 %v5395, %v5490
      %v5522 = vmul.f32 %v5395, %v5494
      %v5523 = vmul.f32 %v5400, %v5490
      %v5524 = vmul.f32 %v5400, %v5494
      %v5525 = vmul.f32 %v5405, %v5490
      %v5526 = vmul.f32 %v5405, %v5494
      %v5527 = vmul.f32 %v5410, %v5490
      %v5528 = vmul.f32 %v5410, %v5494
      %v5529 = vmul.f32 %v5415, %v5490
      %v5530 = vmul.f32 %v5415, %v5494
      %v5531 = vmul.f32 %v5420, %v5490
      %v5532 = vmul.f32 %v5420, %v5494
      %v5533 = vmul.f32 %v5425, %v5490
      %v5534 = vmul.f32 %v5425, %v5494
      %v5535 = vmul.f32 %v5430, %v5490
      %v5536 = vmul.f32 %v5430, %v5494
      %v5537 = vmul.f32 %v5435, %v5490
      %v5538 = vmul.f32 %v5435, %v5494
      %v5539 = vmul.f32 %v5440, %v5490
      %v5540 = vmul.f32 %v5440, %v5494
      %v5541 = vmul.f32 %v5445, %v5490
      %v5542 = vmul.f32 %v5445, %v5494
      %v5543 = vmul.f32 %v5450, %v5490
      %v5544 = vmul.f32 %v5450, %v5494
      %v5545 = vmul.f32 %v5455, %v5490
      %v5546 = vmul.f32 %v5455, %v5494
      %v5547 = vmul.f32 %v5460, %v5490
      %v5548 = vmul.f32 %v5460, %v5494
      %v5549 = vmul.f32 %v5465, %v5490
      %v5550 = vmul.f32 %v5465, %v5494
      %v5551 = vmul.f32 %v5470, %v5490
      %v5552 = vmul.f32 %v5470, %v5494
      %v5553 = vmul.f32 %v5475, %v5490
      %v5554 = vmul.f32 %v5475, %v5494
      %v5555 = vmul.f32 %v5480, %v5490
      %v5556 = vmul.f32 %v5480, %v5494
      %v5557 = vmul.f32 %v5485, %v5490
      %v5558 = vmul.f32 %v5485, %v5494
      %v5559 = vadd.f32 %v5263, %v5495
      %v5560 = vadd.f32 %v5264, %v5496
      %v5561 = vadd.f32 %v5265, %v5497
      %v5562 = vadd.f32 %v5266, %v5498
      %v5563 = vadd.f32 %v5267, %v5499
      %v5564 = vadd.f32 %v5268, %v5500
      %v5565 = vadd.f32 %v5269, %v5501
      %v5566 = vadd.f32 %v5270, %v5502
      %v5567 = vadd.f32 %v5271, %v5503
      %v5568 = vadd.f32 %v5272, %v5504
      %v5569 = vadd.f32 %v5273, %v5505
      %v5570 = vadd.f32 %v5274, %v5506
      %v5571 = vadd.f32 %v5275, %v5507
      %v5572 = vadd.f32 %v5276, %v5508
      %v5573 = vadd.f32 %v5277, %v5509
      %v5574 = vadd.f32 %v5278, %v5510
      %v5575 = vadd.f32 %v5279, %v5511
      %v5576 = vadd.f32 %v5280, %v5512
      %v5577 = vadd.f32 %v5281, %v5513
      %v5578 = vadd.f32 %v5282, %v5514
      %v5579 = vadd.f32 %v5283, %v5515
      %v5580 = vadd.f32 %v5284, %v5516
      %v5581 = vadd.f32 %v5285, %v5517
      %v5582 = vadd.f32 %v5286, %v5518
      %v5583 = vadd.f32 %v5287, %v5519
      %v5584 = vadd.f32 %v5288, %v5520
      %v5585 = vadd.f32 %v5289, %v5521
      %v5586 = vadd.f32 %v5290, %v5522
      %v5587 = vadd.f32 %v5291, %v5523
      %v5588 = vadd.f32 %v5292, %v5524
      %v5589 = vadd.f32 %v5293, %v5525
      %v5590 = vadd.f32 %v5294, %v5526
      %v5591 = vadd.f32 %v5295, %v5527
      %v5592 = vadd.f32 %v5296, %v5528
      %v5593 = vadd.f32 %v5297, %v5529
      %v5594 = vadd.f32 %v5298, %v5530
      %v5595 = vadd.f32 %v5299, %v5531
      %v5596 = vadd.f32 %v5300, %v5532
      %v5597 = vadd.f32 %v5301, %v5533
      %v5598 = vadd.f32 %v5302, %v5534
      %v5599 = vadd.f32 %v5303, %v5535
      %v5600 = vadd.f32 %v5304, %v5536
      %v5601 = vadd.f32 %v5305, %v5537
      %v5602 = vadd.f32 %v5306, %v5538
      %v5603 = vadd.f32 %v5307, %v5539
      %v5604 = vadd.f32 %v5308, %v5540
      %v5605 = vadd.f32 %v5309, %v5541
      %v5606 = vadd.f32 %v5310, %v5542
      %v5607 = vadd.f32 %v5311, %v5543
      %v5608 = vadd.f32 %v5312, %v5544
      %v5609 = vadd.f32 %v5313, %v5545
      %v5610 = vadd.f32 %v5314, %v5546
      %v5611 = vadd.f32 %v5315, %v5547
      %v5612 = vadd.f32 %v5316, %v5548
      %v5613 = vadd.f32 %v5317, %v5549
      %v5614 = vadd.f32 %v5318, %v5550
      %v5615 = vadd.f32 %v5319, %v5551
      %v5616 = vadd.f32 %v5320, %v5552
      %v5617 = vadd.f32 %v5321, %v5553
      %v5618 = vadd.f32 %v5322, %v5554
      %v5619 = vadd.f32 %v5323, %v5555
      %v5620 = vadd.f32 %v5324, %v5556
      %v5621 = vadd.f32 %v5325, %v5557
      %v5622 = vadd.f32 %v5326, %v5558
      %v5623 = vtanh.pop %v5559
      %v5624 = vtanh.pop %v5560
      %v5625 = vtanh.pop %v5561
      %v5626 = vtanh.pop %v5562
      %v5627 = vtanh.pop %v5563
      %v5628 = vtanh.pop %v5564
      %v5629 = vtanh.pop %v5565
      %v5630 = vtanh.pop %v5566
      %v5631 = vtanh.pop %v5567
      %v5632 = vtanh.pop %v5568
      %v5633 = vtanh.pop %v5569
      %v5634 = vtanh.pop %v5570
      %v5635 = vtanh.pop %v5571
      %v5636 = vtanh.pop %v5572
      %v5637 = vtanh.pop %v5573
      %v5638 = vtanh.pop %v5574
      %v5639 = vtanh.pop %v5575
      %v5640 = vtanh.pop %v5576
      %v5641 = vtanh.pop %v5577
      %v5642 = vtanh.pop %v5578
      %v5643 = vtanh.pop %v5579
      %v5644 = vtanh.pop %v5580
      %v5645 = vtanh.pop %v5581
      %v5646 = vtanh.pop %v5582
      %v5647 = vtanh.pop %v5583
      %v5648 = vtanh.pop %v5584
      %v5649 = vtanh.pop %v5585
      %v5650 = vtanh.pop %v5586
      %v5651 = vtanh.pop %v5587
      %v5652 = vtanh.pop %v5588
      %v5653 = vtanh.pop %v5589
      %v5654 = vtanh.pop %v5590
      %v5655 = vtanh.pop %v5591
      %v5656 = vtanh.pop %v5592
      %v5657 = vtanh.pop %v5593
      %v5658 = vtanh.pop %v5594
      %v5659 = vtanh.pop %v5595
      %v5660 = vtanh.pop %v5596
      %v5661 = vtanh.pop %v5597
      %v5662 = vtanh.pop %v5598
      %v5663 = vtanh.pop %v5599
      %v5664 = vtanh.pop %v5600
      %v5665 = vtanh.pop %v5601
      %v5666 = vtanh.pop %v5602
      %v5667 = vtanh.pop %v5603
      %v5668 = vtanh.pop %v5604
      %v5669 = vtanh.pop %v5605
      %v5670 = vtanh.pop %v5606
      %v5671 = vtanh.pop %v5607
      %v5672 = vtanh.pop %v5608
      %v5673 = vtanh.pop %v5609
      %v5674 = vtanh.pop %v5610
      %v5675 = vtanh.pop %v5611
      %v5676 = vtanh.pop %v5612
      %v5677 = vtanh.pop %v5613
      %v5678 = vtanh.pop %v5614
      %v5679 = vtanh.pop %v5615
      %v5680 = vtanh.pop %v5616
      %v5681 = vtanh.pop %v5617
      %v5682 = vtanh.pop %v5618
      %v5683 = vtanh.pop %v5619
      %v5684 = vtanh.pop %v5620
      %v5685 = vtanh.pop %v5621
      %v5686 = vtanh.pop %v5622
      %v5687 = vld [vmem:[%s17] sm:$0xff]
      %v5688 = vld [vmem:[%s17 + $0x8] sm:$0xff]
      %v5689 = vld [vmem:[%s17 + $0x10] sm:$0xff]
      %v5690 = vld [vmem:[%s17 + $0x18] sm:$0xff]
      %v5691 = vld [vmem:[%s17 + $0x20] sm:$0xff]
      %v5692 = vld [vmem:[%s17 + $0x28] sm:$0xff]
      %v5693 = vld [vmem:[%s17 + $0x30] sm:$0xff]
      %v5694 = vld [vmem:[%s17 + $0x38] sm:$0xff]
      %v5695 = vld [vmem:[%s17 + $0x40] sm:$0xff]
      %v5696 = vld [vmem:[%s17 + $0x48] sm:$0xff]
      %v5697 = vld [vmem:[%s17 + $0x50] sm:$0xff]
      %v5698 = vld [vmem:[%s17 + $0x58] sm:$0xff]
      %v5699 = vld [vmem:[%s17 + $0x60] sm:$0xff]
      %v5700 = vld [vmem:[%s17 + $0x68] sm:$0xff]
      %v5701 = vld [vmem:[%s17 + $0x70] sm:$0xff]
      %v5702 = vld [vmem:[%s17 + $0x78] sm:$0xff]
      %v5703 = vld [vmem:[%s17 + $0x80] sm:$0xff]
      %v5704 = vld [vmem:[%s17 + $0x88] sm:$0xff]
      %v5705 = vld [vmem:[%s17 + $0x90] sm:$0xff]
      %v5706 = vld [vmem:[%s17 + $0x98] sm:$0xff]
      %v5707 = vld [vmem:[%s17 + $0xa0] sm:$0xff]
      %v5708 = vld [vmem:[%s17 + $0xa8] sm:$0xff]
      %v5709 = vld [vmem:[%s17 + $0xb0] sm:$0xff]
      %v5710 = vld [vmem:[%s17 + $0xb8] sm:$0xff]
      %v5711 = vld [vmem:[%s17 + $0xc0] sm:$0xff]
      %v5712 = vld [vmem:[%s17 + $0xc8] sm:$0xff]
      %v5713 = vld [vmem:[%s17 + $0xd0] sm:$0xff]
      %v5714 = vld [vmem:[%s17 + $0xd8] sm:$0xff]
      %v5715 = vld [vmem:[%s17 + $0xe0] sm:$0xff]
      %v5716 = vld [vmem:[%s17 + $0xe8] sm:$0xff]
      %v5717 = vld [vmem:[%s17 + $0xf0] sm:$0xff]
      %v5718 = vld [vmem:[%s17 + $0xf8] sm:$0xff]
      %v5719 = vld [vmem:[%s18] sm:$0x1]
      %v5721 = vlaneseq
      %v5722 = vshrl.u32 %v5721, 7
      %v5723 = vsub.s32 0, %v5722
      %v5724 = vrot.slane %v5719, %v5723
      %5726 = vmatprep.subr.mxu0 0.0
      %5727 = vmatpush1.msra.mxu0 %v5702
      %5728 = vmatprep.subr.mxu0 0.0
      %5729 = vmatpush1.msra.mxu0 %v5701
      %5730 = vmatprep.subr.mxu0 0.0
      %5731 = vmatpush1.msra.mxu0 %v5700
      %5732 = vmatprep.subr.mxu0 0.0
      %5733 = vmatpush1.msra.mxu0 %v5699
      %5734 = vmatprep.subr.mxu0 0.0
      %5735 = vmatpush1.msra.mxu0 %v5698
      %5736 = vmatprep.subr.mxu0 0.0
      %5737 = vmatpush1.msra.mxu0 %v5697
      %5738 = vmatprep.subr.mxu0 0.0
      %5739 = vmatpush1.msra.mxu0 %v5696
      %5740 = vmatprep.subr.mxu0 0.0
      %5741 = vmatpush1.msra.mxu0 %v5695
      %5742 = vmatprep.subr.mxu0 0.0
      %5743 = vmatpush1.msra.mxu0 %v5694
      %5744 = vmatprep.subr.mxu0 0.0
      %5745 = vmatpush1.msra.mxu0 %v5693
      %5746 = vmatprep.subr.mxu0 0.0
      %5747 = vmatpush1.msra.mxu0 %v5692
      %5748 = vmatprep.subr.mxu0 0.0
      %5749 = vmatpush1.msra.mxu0 %v5691
      %5750 = vmatprep.subr.mxu0 0.0
      %5751 = vmatpush1.msra.mxu0 %v5690
      %5752 = vmatprep.subr.mxu0 0.0
      %5753 = vmatpush1.msra.mxu0 %v5689
      %5754 = vmatprep.subr.mxu0 0.0
      %5755 = vmatpush1.msra.mxu0 %v5688
      %5756 = vmatprep.subr.mxu0 0.0
      %5757 = vmatpush1.msra.mxu0 %v5687
      %5758 = vmatprep.subr.mxu0 0.0
      %5759 = vmatpush2.msra.mxu0 %v5718
      %5760 = vmatprep.subr.mxu0 0.0
      %5761 = vmatpush2.msra.mxu0 %v5717
      %5762 = vmatprep.subr.mxu0 0.0
      %5763 = vmatpush2.msra.mxu0 %v5716
      %5764 = vmatprep.subr.mxu0 0.0
      %5765 = vmatpush2.msra.mxu0 %v5715
      %5766 = vmatprep.subr.mxu0 0.0
      %5767 = vmatpush2.msra.mxu0 %v5714
      %5768 = vmatprep.subr.mxu0 0.0
      %5769 = vmatpush2.msra.mxu0 %v5713
      %5770 = vmatprep.subr.mxu0 0.0
      %5771 = vmatpush2.msra.mxu0 %v5712
      %5772 = vmatprep.subr.mxu0 0.0
      %5773 = vmatpush2.msra.mxu0 %v5711
      %5774 = vmatprep.subr.mxu0 0.0
      %5775 = vmatpush2.msra.mxu0 %v5710
      %5776 = vmatprep.subr.mxu0 0.0
      %5777 = vmatpush2.msra.mxu0 %v5709
      %5778 = vmatprep.subr.mxu0 0.0
      %5779 = vmatpush2.msra.mxu0 %v5708
      %5780 = vmatprep.subr.mxu0 0.0
      %5781 = vmatpush2.msra.mxu0 %v5707
      %5782 = vmatprep.subr.mxu0 0.0
      %5783 = vmatpush2.msra.mxu0 %v5706
      %5784 = vmatprep.subr.mxu0 0.0
      %5785 = vmatpush2.msra.mxu0 %v5705
      %5786 = vmatprep.subr.mxu0 0.0
      %5787 = vmatpush2.msra.mxu0 %v5704
      %5788 = vmatprep.subr.mxu0 0.0
      %5789 = vmatpush2.msra.mxu0 %v5703
      %5790 = vmatprep.mubr.f32.mxu0 %v5624
      %5791 = vmatmul.mubr.f32.gmra.mxu0 %v5623
      %v5792 = vpop.f32.mrf.mxu0
      %v5793 = vadd.f32 %v5724, %v5792
      %v5794 = vpop.f32.mrf.mxu0
      %5795 = vmatprep.mubr.f32.mxu0 %v5626
      %5796 = vmatmul.mubr.f32.gmra.mxu0 %v5625
      %v5797 = vpop.f32.mrf.mxu0
      %v5798 = vadd.f32 %v5724, %v5797
      %v5799 = vpop.f32.mrf.mxu0
      %5800 = vmatprep.mubr.f32.mxu0 %v5628
      %5801 = vmatmul.mubr.f32.gmra.mxu0 %v5627
      %v5802 = vpop.f32.mrf.mxu0
      %v5803 = vadd.f32 %v5724, %v5802
      %v5804 = vpop.f32.mrf.mxu0
      %5805 = vmatprep.mubr.f32.mxu0 %v5630
      %5806 = vmatmul.mubr.f32.gmra.mxu0 %v5629
      %v5807 = vpop.f32.mrf.mxu0
      %v5808 = vadd.f32 %v5724, %v5807
      %v5809 = vpop.f32.mrf.mxu0
      %5810 = vmatprep.mubr.f32.mxu0 %v5632
      %5811 = vmatmul.mubr.f32.gmra.mxu0 %v5631
      %v5812 = vpop.f32.mrf.mxu0
      %v5813 = vadd.f32 %v5724, %v5812
      %v5814 = vpop.f32.mrf.mxu0
      %5815 = vmatprep.mubr.f32.mxu0 %v5634
      %5816 = vmatmul.mubr.f32.gmra.mxu0 %v5633
      %v5817 = vpop.f32.mrf.mxu0
      %v5818 = vadd.f32 %v5724, %v5817
      %v5819 = vpop.f32.mrf.mxu0
      %5820 = vmatprep.mubr.f32.mxu0 %v5636
      %5821 = vmatmul.mubr.f32.gmra.mxu0 %v5635
      %v5822 = vpop.f32.mrf.mxu0
      %v5823 = vadd.f32 %v5724, %v5822
      %v5824 = vpop.f32.mrf.mxu0
      %5825 = vmatprep.mubr.f32.mxu0 %v5638
      %5826 = vmatmul.mubr.f32.gmra.mxu0 %v5637
      %v5827 = vpop.f32.mrf.mxu0
      %v5828 = vadd.f32 %v5724, %v5827
      %v5829 = vpop.f32.mrf.mxu0
      %5830 = vmatprep.mubr.f32.mxu0 %v5640
      %5831 = vmatmul.mubr.f32.gmra.mxu0 %v5639
      %v5832 = vpop.f32.mrf.mxu0
      %v5833 = vadd.f32 %v5724, %v5832
      %v5834 = vpop.f32.mrf.mxu0
      %5835 = vmatprep.mubr.f32.mxu0 %v5642
      %5836 = vmatmul.mubr.f32.gmra.mxu0 %v5641
      %v5837 = vpop.f32.mrf.mxu0
      %v5838 = vadd.f32 %v5724, %v5837
      %v5839 = vpop.f32.mrf.mxu0
      %5840 = vmatprep.mubr.f32.mxu0 %v5644
      %5841 = vmatmul.mubr.f32.gmra.mxu0 %v5643
      %v5842 = vpop.f32.mrf.mxu0
      %v5843 = vadd.f32 %v5724, %v5842
      %v5844 = vpop.f32.mrf.mxu0
      %5845 = vmatprep.mubr.f32.mxu0 %v5646
      %5846 = vmatmul.mubr.f32.gmra.mxu0 %v5645
      %v5847 = vpop.f32.mrf.mxu0
      %v5848 = vadd.f32 %v5724, %v5847
      %v5849 = vpop.f32.mrf.mxu0
      %5850 = vmatprep.mubr.f32.mxu0 %v5648
      %5851 = vmatmul.mubr.f32.gmra.mxu0 %v5647
      %v5852 = vpop.f32.mrf.mxu0
      %v5853 = vadd.f32 %v5724, %v5852
      %v5854 = vpop.f32.mrf.mxu0
      %5855 = vmatprep.mubr.f32.mxu0 %v5650
      %5856 = vmatmul.mubr.f32.gmra.mxu0 %v5649
      %v5857 = vpop.f32.mrf.mxu0
      %v5858 = vadd.f32 %v5724, %v5857
      %v5859 = vpop.f32.mrf.mxu0
      %5860 = vmatprep.mubr.f32.mxu0 %v5652
      %5861 = vmatmul.mubr.f32.gmra.mxu0 %v5651
      %v5862 = vpop.f32.mrf.mxu0
      %v5863 = vadd.f32 %v5724, %v5862
      %v5864 = vpop.f32.mrf.mxu0
      %5865 = vmatprep.mubr.f32.mxu0 %v5654
      %5866 = vmatmul.mubr.f32.gmra.mxu0 %v5653
      %v5867 = vpop.f32.mrf.mxu0
      %v5868 = vadd.f32 %v5724, %v5867
      %v5869 = vpop.f32.mrf.mxu0
      %5870 = vmatprep.mubr.f32.mxu0 %v5656
      %5871 = vmatmul.mubr.f32.gmra.mxu0 %v5655
      %v5872 = vpop.f32.mrf.mxu0
      %v5873 = vadd.f32 %v5724, %v5872
      %v5874 = vpop.f32.mrf.mxu0
      %5875 = vmatprep.mubr.f32.mxu0 %v5658
      %5876 = vmatmul.mubr.f32.gmra.mxu0 %v5657
      %v5877 = vpop.f32.mrf.mxu0
      %v5878 = vadd.f32 %v5724, %v5877
      %v5879 = vpop.f32.mrf.mxu0
      %5880 = vmatprep.mubr.f32.mxu0 %v5660
      %5881 = vmatmul.mubr.f32.gmra.mxu0 %v5659
      %v5882 = vpop.f32.mrf.mxu0
      %v5883 = vadd.f32 %v5724, %v5882
      %v5884 = vpop.f32.mrf.mxu0
      %5885 = vmatprep.mubr.f32.mxu0 %v5662
      %5886 = vmatmul.mubr.f32.gmra.mxu0 %v5661
      %v5887 = vpop.f32.mrf.mxu0
      %v5888 = vadd.f32 %v5724, %v5887
      %v5889 = vpop.f32.mrf.mxu0
      %5890 = vmatprep.mubr.f32.mxu0 %v5664
      %5891 = vmatmul.mubr.f32.gmra.mxu0 %v5663
      %v5892 = vpop.f32.mrf.mxu0
      %v5893 = vadd.f32 %v5724, %v5892
      %v5894 = vpop.f32.mrf.mxu0
      %5895 = vmatprep.mubr.f32.mxu0 %v5666
      %5896 = vmatmul.mubr.f32.gmra.mxu0 %v5665
      %v5897 = vpop.f32.mrf.mxu0
      %v5898 = vadd.f32 %v5724, %v5897
      %v5899 = vpop.f32.mrf.mxu0
      %5900 = vmatprep.mubr.f32.mxu0 %v5668
      %5901 = vmatmul.mubr.f32.gmra.mxu0 %v5667
      %v5902 = vpop.f32.mrf.mxu0
      %v5903 = vadd.f32 %v5724, %v5902
      %v5904 = vpop.f32.mrf.mxu0
      %5905 = vmatprep.mubr.f32.mxu0 %v5670
      %5906 = vmatmul.mubr.f32.gmra.mxu0 %v5669
      %v5907 = vpop.f32.mrf.mxu0
      %v5908 = vadd.f32 %v5724, %v5907
      %v5909 = vpop.f32.mrf.mxu0
      %5910 = vmatprep.mubr.f32.mxu0 %v5672
      %5911 = vmatmul.mubr.f32.gmra.mxu0 %v5671
      %v5912 = vpop.f32.mrf.mxu0
      %v5913 = vadd.f32 %v5724, %v5912
      %v5914 = vpop.f32.mrf.mxu0
      %5915 = vmatprep.mubr.f32.mxu0 %v5674
      %5916 = vmatmul.mubr.f32.gmra.mxu0 %v5673
      %v5917 = vpop.f32.mrf.mxu0
      %v5918 = vadd.f32 %v5724, %v5917
      %v5919 = vpop.f32.mrf.mxu0
      %5920 = vmatprep.mubr.f32.mxu0 %v5676
      %5921 = vmatmul.mubr.f32.gmra.mxu0 %v5675
      %v5922 = vpop.f32.mrf.mxu0
      %v5923 = vadd.f32 %v5724, %v5922
      %v5924 = vpop.f32.mrf.mxu0
      %5925 = vmatprep.mubr.f32.mxu0 %v5678
      %5926 = vmatmul.mubr.f32.gmra.mxu0 %v5677
      %v5927 = vpop.f32.mrf.mxu0
      %v5928 = vadd.f32 %v5724, %v5927
      %v5929 = vpop.f32.mrf.mxu0
      %5930 = vmatprep.mubr.f32.mxu0 %v5680
      %5931 = vmatmul.mubr.f32.gmra.mxu0 %v5679
      %v5932 = vpop.f32.mrf.mxu0
      %v5933 = vadd.f32 %v5724, %v5932
      %v5934 = vpop.f32.mrf.mxu0
      %5935 = vmatprep.mubr.f32.mxu0 %v5682
      %5936 = vmatmul.mubr.f32.gmra.mxu0 %v5681
      %v5937 = vpop.f32.mrf.mxu0
      %v5938 = vadd.f32 %v5724, %v5937
      %v5939 = vpop.f32.mrf.mxu0
      %5940 = vmatprep.mubr.f32.mxu0 %v5684
      %5941 = vmatmul.mubr.f32.gmra.mxu0 %v5683
      %v5942 = vpop.f32.mrf.mxu0
      %v5943 = vadd.f32 %v5724, %v5942
      %v5944 = vpop.f32.mrf.mxu0
      %5945 = vmatprep.mubr.f32.mxu0 %v5686
      %5946 = vmatmul.mubr.f32.gmra.mxu0 %v5685
      %v5947 = vpop.f32.mrf.mxu0
      %v5948 = vadd.f32 %v5724, %v5947
      %v5949 = vpop.f32.mrf.mxu0
      %5950 = vdwg.mxu0
      %v5951 = vtanh.pop %v5793
      %v5952 = vtanh.pop %v5798
      %v5953 = vtanh.pop %v5803
      %v5954 = vtanh.pop %v5808
      %v5955 = vtanh.pop %v5813
      %v5956 = vtanh.pop %v5818
      %v5957 = vtanh.pop %v5823
      %v5958 = vtanh.pop %v5828
      %v5959 = vtanh.pop %v5833
      %v5960 = vtanh.pop %v5838
      %v5961 = vtanh.pop %v5843
      %v5962 = vtanh.pop %v5848
      %v5963 = vtanh.pop %v5853
      %v5964 = vtanh.pop %v5858
      %v5965 = vtanh.pop %v5863
      %v5966 = vtanh.pop %v5868
      %v5967 = vtanh.pop %v5873
      %v5968 = vtanh.pop %v5878
      %v5969 = vtanh.pop %v5883
      %v5970 = vtanh.pop %v5888
      %v5971 = vtanh.pop %v5893
      %v5972 = vtanh.pop %v5898
      %v5973 = vtanh.pop %v5903
      %v5974 = vtanh.pop %v5908
      %v5975 = vtanh.pop %v5913
      %v5976 = vtanh.pop %v5918
      %v5977 = vtanh.pop %v5923
      %v5978 = vtanh.pop %v5928
      %v5979 = vtanh.pop %v5933
      %v5980 = vtanh.pop %v5938
      %v5981 = vtanh.pop %v5943
      %v5982 = vtanh.pop %v5948
      %v5983 = vld [vmem:[%s19] sm:$0xff]
      %v5984 = vld [vmem:[%s19 + $0x8] sm:$0xff]
      %v5985 = vld [vmem:[%s19 + $0x10] sm:$0xff]
      %v5986 = vld [vmem:[%s19 + $0x18] sm:$0xff]
      %v5987 = vld [vmem:[%s19 + $0x20] sm:$0xff]
      %v5988 = vld [vmem:[%s19 + $0x28] sm:$0xff]
      %v5989 = vld [vmem:[%s19 + $0x30] sm:$0xff]
      %v5990 = vld [vmem:[%s19 + $0x38] sm:$0xff]
      %v5991 = vld [vmem:[#allocation3] sm:$0x1]
      %v5993 = vlaneseq
      %v5994 = vshrl.u32 %v5993, 7
      %v5995 = vsub.s32 0, %v5994
      %v5996 = vrot.slane %v5991, %v5995
      %v5999 = vsel %vm1448, %v5951, 0
      %v6002 = vsel %vm1448, %v5952, 0
      %v6005 = vsel %vm1448, %v5953, 0
      %v6008 = vsel %vm1448, %v5954, 0
      %v6011 = vsel %vm1448, %v5955, 0
      %v6014 = vsel %vm1448, %v5956, 0
      %v6017 = vsel %vm1448, %v5957, 0
      %v6020 = vsel %vm1448, %v5958, 0
      %v6023 = vsel %vm1448, %v5959, 0
      %v6026 = vsel %vm1448, %v5960, 0
      %v6029 = vsel %vm1448, %v5961, 0
      %v6032 = vsel %vm1448, %v5962, 0
      %v6035 = vsel %vm1448, %v5963, 0
      %v6038 = vsel %vm1448, %v5964, 0
      %v6041 = vsel %vm1448, %v5965, 0
      %v6044 = vsel %vm1448, %v5966, 0
      %v6047 = vsel %vm1448, %v5967, 0
      %v6050 = vsel %vm1448, %v5968, 0
      %v6053 = vsel %vm1448, %v5969, 0
      %v6056 = vsel %vm1448, %v5970, 0
      %v6059 = vsel %vm1448, %v5971, 0
      %v6062 = vsel %vm1448, %v5972, 0
      %v6065 = vsel %vm1448, %v5973, 0
      %v6068 = vsel %vm1448, %v5974, 0
      %v6071 = vsel %vm1448, %v5975, 0
      %v6074 = vsel %vm1448, %v5976, 0
      %v6077 = vsel %vm1448, %v5977, 0
      %v6080 = vsel %vm1448, %v5978, 0
      %v6083 = vsel %vm1448, %v5979, 0
      %v6086 = vsel %vm1448, %v5980, 0
      %v6089 = vsel %vm1448, %v5981, 0
      %v6092 = vsel %vm1448, %v5982, 0
      %6094 = vmatprep.subr.mxu0 0.0
      %6095 = vmatpush1.msra.mxu0 0.0
      %6096 = vmatprep.subr.mxu0 0.0
      %6097 = vmatpush1.msra.mxu0 0.0
      %6098 = vmatprep.subr.mxu0 0.0
      %6099 = vmatpush1.msra.mxu0 0.0
      %6100 = vmatprep.subr.mxu0 0.0
      %6101 = vmatpush1.msra.mxu0 0.0
      %6102 = vmatprep.subr.mxu0 0.0
      %6103 = vmatpush1.msra.mxu0 0.0
      %6104 = vmatprep.subr.mxu0 0.0
      %6105 = vmatpush1.msra.mxu0 0.0
      %6106 = vmatprep.subr.mxu0 0.0
      %6107 = vmatpush1.msra.mxu0 0.0
      %6108 = vmatprep.subr.mxu0 0.0
      %6109 = vmatpush1.msra.mxu0 0.0
      %6110 = vmatprep.subr.mxu0 0.0
      %6111 = vmatpush1.msra.mxu0 %v5990
      %6112 = vmatprep.subr.mxu0 0.0
      %6113 = vmatpush1.msra.mxu0 %v5989
      %6114 = vmatprep.subr.mxu0 0.0
      %6115 = vmatpush1.msra.mxu0 %v5988
      %6116 = vmatprep.subr.mxu0 0.0
      %6117 = vmatpush1.msra.mxu0 %v5987
      %6118 = vmatprep.subr.mxu0 0.0
      %6119 = vmatpush1.msra.mxu0 %v5986
      %6120 = vmatprep.subr.mxu0 0.0
      %6121 = vmatpush1.msra.mxu0 %v5985
      %6122 = vmatprep.subr.mxu0 0.0
      %6123 = vmatpush1.msra.mxu0 %v5984
      %6124 = vmatprep.subr.mxu0 0.0
      %6125 = vmatpush1.msra.mxu0 %v5983
      %6126 = vmatprep.subr.mxu0 0.0
      %6127 = vmatpush2.msra.mxu0 0.0
      %6128 = vmatprep.subr.mxu0 0.0
      %6129 = vmatpush2.msra.mxu0 0.0
      %6130 = vmatprep.subr.mxu0 0.0
      %6131 = vmatpush2.msra.mxu0 0.0
      %6132 = vmatprep.subr.mxu0 0.0
      %6133 = vmatpush2.msra.mxu0 0.0
      %6134 = vmatprep.subr.mxu0 0.0
      %6135 = vmatpush2.msra.mxu0 0.0
      %6136 = vmatprep.subr.mxu0 0.0
      %6137 = vmatpush2.msra.mxu0 0.0
      %6138 = vmatprep.subr.mxu0 0.0
      %6139 = vmatpush2.msra.mxu0 0.0
      %6140 = vmatprep.subr.mxu0 0.0
      %6141 = vmatpush2.msra.mxu0 0.0
      %6142 = vmatprep.subr.mxu0 0.0
      %6143 = vmatpush2.msra.mxu0 0.0
      %6144 = vmatprep.subr.mxu0 0.0
      %6145 = vmatpush2.msra.mxu0 0.0
      %6146 = vmatprep.subr.mxu0 0.0
      %6147 = vmatpush2.msra.mxu0 0.0
      %6148 = vmatprep.subr.mxu0 0.0
      %6149 = vmatpush2.msra.mxu0 0.0
      %6150 = vmatprep.subr.mxu0 0.0
      %6151 = vmatpush2.msra.mxu0 0.0
      %6152 = vmatprep.subr.mxu0 0.0
      %6153 = vmatpush2.msra.mxu0 0.0
      %6154 = vmatprep.subr.mxu0 0.0
      %6155 = vmatpush2.msra.mxu0 0.0
      %6156 = vmatprep.subr.mxu0 0.0
      %6157 = vmatpush2.msra.mxu0 0.0
      %6158 = vmatprep.mubr.f32.mxu0 0.0
      %6159 = vmatmul.mubr.f32.gmra.mxu0 %v5999
      %v6160 = vpop.f32.mrf.mxu0
      %v6161 = vadd.f32 %v5996, %v6160
      %v6162 = vpop.f32.mrf.mxu0
      %6163 = vmatprep.mubr.f32.mxu0 0.0
      %6164 = vmatmul.mubr.f32.gmra.mxu0 %v6002
      %v6165 = vpop.f32.mrf.mxu0
      %v6166 = vadd.f32 %v5996, %v6165
      %v6167 = vpop.f32.mrf.mxu0
      %6168 = vmatprep.mubr.f32.mxu0 0.0
      %6169 = vmatmul.mubr.f32.gmra.mxu0 %v6005
      %v6170 = vpop.f32.mrf.mxu0
      %v6171 = vadd.f32 %v5996, %v6170
      %v6172 = vpop.f32.mrf.mxu0
      %6173 = vmatprep.mubr.f32.mxu0 0.0
      %6174 = vmatmul.mubr.f32.gmra.mxu0 %v6008
      %v6175 = vpop.f32.mrf.mxu0
      %v6176 = vadd.f32 %v5996, %v6175
      %v6177 = vpop.f32.mrf.mxu0
      %6178 = vmatprep.mubr.f32.mxu0 0.0
      %6179 = vmatmul.mubr.f32.gmra.mxu0 %v6011
      %v6180 = vpop.f32.mrf.mxu0
      %v6181 = vadd.f32 %v5996, %v6180
      %v6182 = vpop.f32.mrf.mxu0
      %6183 = vmatprep.mubr.f32.mxu0 0.0
      %6184 = vmatmul.mubr.f32.gmra.mxu0 %v6014
      %v6185 = vpop.f32.mrf.mxu0
      %v6186 = vadd.f32 %v5996, %v6185
      %v6187 = vpop.f32.mrf.mxu0
      %6188 = vmatprep.mubr.f32.mxu0 0.0
      %6189 = vmatmul.mubr.f32.gmra.mxu0 %v6017
      %v6190 = vpop.f32.mrf.mxu0
      %v6191 = vadd.f32 %v5996, %v6190
      %v6192 = vpop.f32.mrf.mxu0
      %6193 = vmatprep.mubr.f32.mxu0 0.0
      %6194 = vmatmul.mubr.f32.gmra.mxu0 %v6020
      %v6195 = vpop.f32.mrf.mxu0
      %v6196 = vadd.f32 %v5996, %v6195
      %v6197 = vpop.f32.mrf.mxu0
      %6198 = vmatprep.mubr.f32.mxu0 0.0
      %6199 = vmatmul.mubr.f32.gmra.mxu0 %v6023
      %v6200 = vpop.f32.mrf.mxu0
      %v6201 = vadd.f32 %v5996, %v6200
      %v6202 = vpop.f32.mrf.mxu0
      %6203 = vmatprep.mubr.f32.mxu0 0.0
      %6204 = vmatmul.mubr.f32.gmra.mxu0 %v6026
      %v6205 = vpop.f32.mrf.mxu0
      %v6206 = vadd.f32 %v5996, %v6205
      %v6207 = vpop.f32.mrf.mxu0
      %6208 = vmatprep.mubr.f32.mxu0 0.0
      %6209 = vmatmul.mubr.f32.gmra.mxu0 %v6029
      %v6210 = vpop.f32.mrf.mxu0
      %v6211 = vadd.f32 %v5996, %v6210
      %v6212 = vpop.f32.mrf.mxu0
      %6213 = vmatprep.mubr.f32.mxu0 0.0
      %6214 = vmatmul.mubr.f32.gmra.mxu0 %v6032
      %v6215 = vpop.f32.mrf.mxu0
      %v6216 = vadd.f32 %v5996, %v6215
      %v6217 = vpop.f32.mrf.mxu0
      %6218 = vmatprep.mubr.f32.mxu0 0.0
      %6219 = vmatmul.mubr.f32.gmra.mxu0 %v6035
      %v6220 = vpop.f32.mrf.mxu0
      %v6221 = vadd.f32 %v5996, %v6220
      %v6222 = vpop.f32.mrf.mxu0
      %6223 = vmatprep.mubr.f32.mxu0 0.0
      %6224 = vmatmul.mubr.f32.gmra.mxu0 %v6038
      %v6225 = vpop.f32.mrf.mxu0
      %v6226 = vadd.f32 %v5996, %v6225
      %v6227 = vpop.f32.mrf.mxu0
      %6228 = vmatprep.mubr.f32.mxu0 0.0
      %6229 = vmatmul.mubr.f32.gmra.mxu0 %v6041
      %v6230 = vpop.f32.mrf.mxu0
      %v6231 = vadd.f32 %v5996, %v6230
      %v6232 = vpop.f32.mrf.mxu0
      %6233 = vmatprep.mubr.f32.mxu0 0.0
      %6234 = vmatmul.mubr.f32.gmra.mxu0 %v6044
      %v6235 = vpop.f32.mrf.mxu0
      %v6236 = vadd.f32 %v5996, %v6235
      %v6237 = vpop.f32.mrf.mxu0
      %6238 = vmatprep.mubr.f32.mxu0 0.0
      %6239 = vmatmul.mubr.f32.gmra.mxu0 %v6047
      %v6240 = vpop.f32.mrf.mxu0
      %v6241 = vadd.f32 %v5996, %v6240
      %v6242 = vpop.f32.mrf.mxu0
      %6243 = vmatprep.mubr.f32.mxu0 0.0
      %6244 = vmatmul.mubr.f32.gmra.mxu0 %v6050
      %v6245 = vpop.f32.mrf.mxu0
      %v6246 = vadd.f32 %v5996, %v6245
      %v6247 = vpop.f32.mrf.mxu0
      %6248 = vmatprep.mubr.f32.mxu0 0.0
      %6249 = vmatmul.mubr.f32.gmra.mxu0 %v6053
      %v6250 = vpop.f32.mrf.mxu0
      %v6251 = vadd.f32 %v5996, %v6250
      %v6252 = vpop.f32.mrf.mxu0
      %6253 = vmatprep.mubr.f32.mxu0 0.0
      %6254 = vmatmul.mubr.f32.gmra.mxu0 %v6056
      %v6255 = vpop.f32.mrf.mxu0
      %v6256 = vadd.f32 %v5996, %v6255
      %v6257 = vpop.f32.mrf.mxu0
      %6258 = vmatprep.mubr.f32.mxu0 0.0
      %6259 = vmatmul.mubr.f32.gmra.mxu0 %v6059
      %v6260 = vpop.f32.mrf.mxu0
      %v6261 = vadd.f32 %v5996, %v6260
      %v6262 = vpop.f32.mrf.mxu0
      %6263 = vmatprep.mubr.f32.mxu0 0.0
      %6264 = vmatmul.mubr.f32.gmra.mxu0 %v6062
      %v6265 = vpop.f32.mrf.mxu0
      %v6266 = vadd.f32 %v5996, %v6265
      %v6267 = vpop.f32.mrf.mxu0
      %6268 = vmatprep.mubr.f32.mxu0 0.0
      %6269 = vmatmul.mubr.f32.gmra.mxu0 %v6065
      %v6270 = vpop.f32.mrf.mxu0
      %v6271 = vadd.f32 %v5996, %v6270
      %v6272 = vpop.f32.mrf.mxu0
      %6273 = vmatprep.mubr.f32.mxu0 0.0
      %6274 = vmatmul.mubr.f32.gmra.mxu0 %v6068
      %v6275 = vpop.f32.mrf.mxu0
      %v6276 = vadd.f32 %v5996, %v6275
      %v6277 = vpop.f32.mrf.mxu0
      %6278 = vmatprep.mubr.f32.mxu0 0.0
      %6279 = vmatmul.mubr.f32.gmra.mxu0 %v6071
      %v6280 = vpop.f32.mrf.mxu0
      %v6281 = vadd.f32 %v5996, %v6280
      %v6282 = vpop.f32.mrf.mxu0
      %6283 = vmatprep.mubr.f32.mxu0 0.0
      %6284 = vmatmul.mubr.f32.gmra.mxu0 %v6074
      %v6285 = vpop.f32.mrf.mxu0
      %v6286 = vadd.f32 %v5996, %v6285
      %v6287 = vpop.f32.mrf.mxu0
      %6288 = vmatprep.mubr.f32.mxu0 0.0
      %6289 = vmatmul.mubr.f32.gmra.mxu0 %v6077
      %v6290 = vpop.f32.mrf.mxu0
      %v6291 = vadd.f32 %v5996, %v6290
      %v6292 = vpop.f32.mrf.mxu0
      %6293 = vmatprep.mubr.f32.mxu0 0.0
      %6294 = vmatmul.mubr.f32.gmra.mxu0 %v6080
      %v6295 = vpop.f32.mrf.mxu0
      %v6296 = vadd.f32 %v5996, %v6295
      %v6297 = vpop.f32.mrf.mxu0
      %6298 = vmatprep.mubr.f32.mxu0 0.0
      %6299 = vmatmul.mubr.f32.gmra.mxu0 %v6083
      %v6300 = vpop.f32.mrf.mxu0
      %v6301 = vadd.f32 %v5996, %v6300
      %v6302 = vpop.f32.mrf.mxu0
      %6303 = vmatprep.mubr.f32.mxu0 0.0
      %6304 = vmatmul.mubr.f32.gmra.mxu0 %v6086
      %v6305 = vpop.f32.mrf.mxu0
      %v6306 = vadd.f32 %v5996, %v6305
      %v6307 = vpop.f32.mrf.mxu0
      %6308 = vmatprep.mubr.f32.mxu0 0.0
      %6309 = vmatmul.mubr.f32.gmra.mxu0 %v6089
      %v6310 = vpop.f32.mrf.mxu0
      %v6311 = vadd.f32 %v5996, %v6310
      %v6312 = vpop.f32.mrf.mxu0
      %6313 = vmatprep.mubr.f32.mxu0 0.0
      %6314 = vmatmul.mubr.f32.gmra.mxu0 %v6092
      %v6315 = vpop.f32.mrf.mxu0
      %v6316 = vadd.f32 %v5996, %v6315
      %v6317 = vpop.f32.mrf.mxu0
      %6318 = vdwg.mxu0
      %v6319 = vld [vmem:[%s9] sm:$0x1]
      %6321 = vset.pattern.permute.xlu0 2
      %6322 = vperm.xlu0 %6321, %v2263
      %v6323 = vpop.permute.xlu0 %6322
      %6326 = vset.pattern.permute.xlu0 2
      %6327 = vperm.xlu0 %6326, %v2264
      %v6328 = vpop.permute.xlu0 %6327
      %6331 = vset.pattern.permute.xlu0 2
      %6332 = vperm.xlu0 %6331, %v2265
      %v6333 = vpop.permute.xlu0 %6332
      %6336 = vset.pattern.permute.xlu0 2
      %6337 = vperm.xlu0 %6336, %v2266
      %v6338 = vpop.permute.xlu0 %6337
      %6341 = vset.pattern.permute.xlu0 2
      %6342 = vperm.xlu0 %6341, %v2267
      %v6343 = vpop.permute.xlu0 %6342
      %6346 = vset.pattern.permute.xlu0 2
      %6347 = vperm.xlu0 %6346, %v2268
      %v6348 = vpop.permute.xlu0 %6347
      %6351 = vset.pattern.permute.xlu0 2
      %6352 = vperm.xlu0 %6351, %v2269
      %v6353 = vpop.permute.xlu0 %6352
      %6356 = vset.pattern.permute.xlu0 2
      %6357 = vperm.xlu0 %6356, %v2270
      %v6358 = vpop.permute.xlu0 %6357
      %6361 = vset.pattern.permute.xlu0 2
      %6362 = vperm.xlu0 %6361, %v2271
      %v6363 = vpop.permute.xlu0 %6362
      %6366 = vset.pattern.permute.xlu0 2
      %6367 = vperm.xlu0 %6366, %v2272
      %v6368 = vpop.permute.xlu0 %6367
      %6371 = vset.pattern.permute.xlu0 2
      %6372 = vperm.xlu0 %6371, %v2273
      %v6373 = vpop.permute.xlu0 %6372
      %6376 = vset.pattern.permute.xlu0 2
      %6377 = vperm.xlu0 %6376, %v2274
      %v6378 = vpop.permute.xlu0 %6377
      %6381 = vset.pattern.permute.xlu0 2
      %6382 = vperm.xlu0 %6381, %v2275
      %v6383 = vpop.permute.xlu0 %6382
      %6386 = vset.pattern.permute.xlu0 2
      %6387 = vperm.xlu0 %6386, %v2276
      %v6388 = vpop.permute.xlu0 %6387
      %6391 = vset.pattern.permute.xlu0 2
      %6392 = vperm.xlu0 %6391, %v2277
      %v6393 = vpop.permute.xlu0 %6392
      %6396 = vset.pattern.permute.xlu0 2
      %6397 = vperm.xlu0 %6396, %v2278
      %v6398 = vpop.permute.xlu0 %6397
      %6401 = vset.pattern.permute.xlu0 2
      %6402 = vperm.xlu0 %6401, %v2279
      %v6403 = vpop.permute.xlu0 %6402
      %6406 = vset.pattern.permute.xlu0 2
      %6407 = vperm.xlu0 %6406, %v2280
      %v6408 = vpop.permute.xlu0 %6407
      %6411 = vset.pattern.permute.xlu0 2
      %6412 = vperm.xlu0 %6411, %v2281
      %v6413 = vpop.permute.xlu0 %6412
      %6416 = vset.pattern.permute.xlu0 2
      %6417 = vperm.xlu0 %6416, %v2282
      %v6418 = vpop.permute.xlu0 %6417
      %6421 = vset.pattern.permute.xlu0 2
      %6422 = vperm.xlu0 %6421, %v2283
      %v6423 = vpop.permute.xlu0 %6422
      %6426 = vset.pattern.permute.xlu0 2
      %6427 = vperm.xlu0 %6426, %v2284
      %v6428 = vpop.permute.xlu0 %6427
      %6431 = vset.pattern.permute.xlu0 2
      %6432 = vperm.xlu0 %6431, %v2285
      %v6433 = vpop.permute.xlu0 %6432
      %6436 = vset.pattern.permute.xlu0 2
      %6437 = vperm.xlu0 %6436, %v2286
      %v6438 = vpop.permute.xlu0 %6437
      %6441 = vset.pattern.permute.xlu0 2
      %6442 = vperm.xlu0 %6441, %v2287
      %v6443 = vpop.permute.xlu0 %6442
      %6446 = vset.pattern.permute.xlu0 2
      %6447 = vperm.xlu0 %6446, %v2288
      %v6448 = vpop.permute.xlu0 %6447
      %6451 = vset.pattern.permute.xlu0 2
      %6452 = vperm.xlu0 %6451, %v2289
      %v6453 = vpop.permute.xlu0 %6452
      %6456 = vset.pattern.permute.xlu0 2
      %6457 = vperm.xlu0 %6456, %v2290
      %v6458 = vpop.permute.xlu0 %6457
      %6461 = vset.pattern.permute.xlu0 2
      %6462 = vperm.xlu0 %6461, %v2291
      %v6463 = vpop.permute.xlu0 %6462
      %6466 = vset.pattern.permute.xlu0 2
      %6467 = vperm.xlu0 %6466, %v2292
      %v6468 = vpop.permute.xlu0 %6467
      %6471 = vset.pattern.permute.xlu0 2
      %6472 = vperm.xlu0 %6471, %v2293
      %v6473 = vpop.permute.xlu0 %6472
      %6476 = vset.pattern.permute.xlu0 2
      %6477 = vperm.xlu0 %6476, %v2294
      %v6478 = vpop.permute.xlu0 %6477
      %v6481 = vlaneseq
      %v6482 = vshrl.u32 %v6481, 7
      %v6483 = vsub.s32 0, %v6482
      %v6484 = vrot.slane %v6319, %v6483
      %v6486 = vmul.f32 %v6323, %v6484
      %v6487 = vmul.f32 %v6328, %v6484
      %v6488 = vmul.f32 %v6333, %v6484
      %v6489 = vmul.f32 %v6338, %v6484
      %v6490 = vmul.f32 %v6343, %v6484
      %v6491 = vmul.f32 %v6348, %v6484
      %v6492 = vmul.f32 %v6353, %v6484
      %v6493 = vmul.f32 %v6358, %v6484
      %v6494 = vmul.f32 %v6363, %v6484
      %v6495 = vmul.f32 %v6368, %v6484
      %v6496 = vmul.f32 %v6373, %v6484
      %v6497 = vmul.f32 %v6378, %v6484
      %v6498 = vmul.f32 %v6383, %v6484
      %v6499 = vmul.f32 %v6388, %v6484
      %v6500 = vmul.f32 %v6393, %v6484
      %v6501 = vmul.f32 %v6398, %v6484
      %v6502 = vmul.f32 %v6403, %v6484
      %v6503 = vmul.f32 %v6408, %v6484
      %v6504 = vmul.f32 %v6413, %v6484
      %v6505 = vmul.f32 %v6418, %v6484
      %v6506 = vmul.f32 %v6423, %v6484
      %v6507 = vmul.f32 %v6428, %v6484
      %v6508 = vmul.f32 %v6433, %v6484
      %v6509 = vmul.f32 %v6438, %v6484
      %v6510 = vmul.f32 %v6443, %v6484
      %v6511 = vmul.f32 %v6448, %v6484
      %v6512 = vmul.f32 %v6453, %v6484
      %v6513 = vmul.f32 %v6458, %v6484
      %v6514 = vmul.f32 %v6463, %v6484
      %v6515 = vmul.f32 %v6468, %v6484
      %v6516 = vmul.f32 %v6473, %v6484
      %v6517 = vmul.f32 %v6478, %v6484
      %v6518 = vld [vmem:[%s10] sm:$0x1]
      %v6520 = vlaneseq
      %v6521 = vshrl.u32 %v6520, 7
      %v6522 = vsub.s32 0, %v6521
      %v6523 = vrot.slane %v6518, %v6522
      %v6525 = vadd.f32 %v6486, %v6523
      %v6526 = vadd.f32 %v6487, %v6523
      %v6527 = vadd.f32 %v6488, %v6523
      %v6528 = vadd.f32 %v6489, %v6523
      %v6529 = vadd.f32 %v6490, %v6523
      %v6530 = vadd.f32 %v6491, %v6523
      %v6531 = vadd.f32 %v6492, %v6523
      %v6532 = vadd.f32 %v6493, %v6523
      %v6533 = vadd.f32 %v6494, %v6523
      %v6534 = vadd.f32 %v6495, %v6523
      %v6535 = vadd.f32 %v6496, %v6523
      %v6536 = vadd.f32 %v6497, %v6523
      %v6537 = vadd.f32 %v6498, %v6523
      %v6538 = vadd.f32 %v6499, %v6523
      %v6539 = vadd.f32 %v6500, %v6523
      %v6540 = vadd.f32 %v6501, %v6523
      %v6541 = vadd.f32 %v6502, %v6523
      %v6542 = vadd.f32 %v6503, %v6523
      %v6543 = vadd.f32 %v6504, %v6523
      %v6544 = vadd.f32 %v6505, %v6523
      %v6545 = vadd.f32 %v6506, %v6523
      %v6546 = vadd.f32 %v6507, %v6523
      %v6547 = vadd.f32 %v6508, %v6523
      %v6548 = vadd.f32 %v6509, %v6523
      %v6549 = vadd.f32 %v6510, %v6523
      %v6550 = vadd.f32 %v6511, %v6523
      %v6551 = vadd.f32 %v6512, %v6523
      %v6552 = vadd.f32 %v6513, %v6523
      %v6553 = vadd.f32 %v6514, %v6523
      %v6554 = vadd.f32 %v6515, %v6523
      %v6555 = vadd.f32 %v6516, %v6523
      %v6556 = vadd.f32 %v6517, %v6523
      %v6557 = vtanh.pop %v6525
      %v6558 = vtanh.pop %v6526
      %v6559 = vtanh.pop %v6527
      %v6560 = vtanh.pop %v6528
      %v6561 = vtanh.pop %v6529
      %v6562 = vtanh.pop %v6530
      %v6563 = vtanh.pop %v6531
      %v6564 = vtanh.pop %v6532
      %v6565 = vtanh.pop %v6533
      %v6566 = vtanh.pop %v6534
      %v6567 = vtanh.pop %v6535
      %v6568 = vtanh.pop %v6536
      %v6569 = vtanh.pop %v6537
      %v6570 = vtanh.pop %v6538
      %v6571 = vtanh.pop %v6539
      %v6572 = vtanh.pop %v6540
      %v6573 = vtanh.pop %v6541
      %v6574 = vtanh.pop %v6542
      %v6575 = vtanh.pop %v6543
      %v6576 = vtanh.pop %v6544
      %v6577 = vtanh.pop %v6545
      %v6578 = vtanh.pop %v6546
      %v6579 = vtanh.pop %v6547
      %v6580 = vtanh.pop %v6548
      %v6581 = vtanh.pop %v6549
      %v6582 = vtanh.pop %v6550
      %v6583 = vtanh.pop %v6551
      %v6584 = vtanh.pop %v6552
      %v6585 = vtanh.pop %v6553
      %v6586 = vtanh.pop %v6554
      %v6587 = vtanh.pop %v6555
      %v6588 = vtanh.pop %v6556
      %v6589 = vld [vmem:[%s11] sm:$0xff]
      %v6590 = vld [vmem:[%s12] sm:$0x1]
      %v6592 = vlaneseq
      %v6593 = vshrl.u32 %v6592, 7
      %v6594 = vsub.s32 0, %v6593
      %v6595 = vrot.slane %v6590, %v6594
      %6598 = vset.pattern.permute.xlu0 0
      %6599 = vperm.xlu0 %6598, %v6557
      %v6600 = vpop.permute.xlu0 %6599
      %6603 = vset.pattern.permute.xlu0 0
      %6604 = vperm.xlu0 %6603, %v6558
      %v6605 = vpop.permute.xlu0 %6604
      %6608 = vset.pattern.permute.xlu0 0
      %6609 = vperm.xlu0 %6608, %v6559
      %v6610 = vpop.permute.xlu0 %6609
      %6613 = vset.pattern.permute.xlu0 0
      %6614 = vperm.xlu0 %6613, %v6560
      %v6615 = vpop.permute.xlu0 %6614
      %6618 = vset.pattern.permute.xlu0 0
      %6619 = vperm.xlu0 %6618, %v6561
      %v6620 = vpop.permute.xlu0 %6619
      %6623 = vset.pattern.permute.xlu0 0
      %6624 = vperm.xlu0 %6623, %v6562
      %v6625 = vpop.permute.xlu0 %6624
      %6628 = vset.pattern.permute.xlu0 0
      %6629 = vperm.xlu0 %6628, %v6563
      %v6630 = vpop.permute.xlu0 %6629
      %6633 = vset.pattern.permute.xlu0 0
      %6634 = vperm.xlu0 %6633, %v6564
      %v6635 = vpop.permute.xlu0 %6634
      %6638 = vset.pattern.permute.xlu0 0
      %6639 = vperm.xlu0 %6638, %v6565
      %v6640 = vpop.permute.xlu0 %6639
      %6643 = vset.pattern.permute.xlu0 0
      %6644 = vperm.xlu0 %6643, %v6566
      %v6645 = vpop.permute.xlu0 %6644
      %6648 = vset.pattern.permute.xlu0 0
      %6649 = vperm.xlu0 %6648, %v6567
      %v6650 = vpop.permute.xlu0 %6649
      %6653 = vset.pattern.permute.xlu0 0
      %6654 = vperm.xlu0 %6653, %v6568
      %v6655 = vpop.permute.xlu0 %6654
      %6658 = vset.pattern.permute.xlu0 0
      %6659 = vperm.xlu0 %6658, %v6569
      %v6660 = vpop.permute.xlu0 %6659
      %6663 = vset.pattern.permute.xlu0 0
      %6664 = vperm.xlu0 %6663, %v6570
      %v6665 = vpop.permute.xlu0 %6664
      %6668 = vset.pattern.permute.xlu0 0
      %6669 = vperm.xlu0 %6668, %v6571
      %v6670 = vpop.permute.xlu0 %6669
      %6673 = vset.pattern.permute.xlu0 0
      %6674 = vperm.xlu0 %6673, %v6572
      %v6675 = vpop.permute.xlu0 %6674
      %6678 = vset.pattern.permute.xlu0 0
      %6679 = vperm.xlu0 %6678, %v6573
      %v6680 = vpop.permute.xlu0 %6679
      %6683 = vset.pattern.permute.xlu0 0
      %6684 = vperm.xlu0 %6683, %v6574
      %v6685 = vpop.permute.xlu0 %6684
      %6688 = vset.pattern.permute.xlu0 0
      %6689 = vperm.xlu0 %6688, %v6575
      %v6690 = vpop.permute.xlu0 %6689
      %6693 = vset.pattern.permute.xlu0 0
      %6694 = vperm.xlu0 %6693, %v6576
      %v6695 = vpop.permute.xlu0 %6694
      %6698 = vset.pattern.permute.xlu0 0
      %6699 = vperm.xlu0 %6698, %v6577
      %v6700 = vpop.permute.xlu0 %6699
      %6703 = vset.pattern.permute.xlu0 0
      %6704 = vperm.xlu0 %6703, %v6578
      %v6705 = vpop.permute.xlu0 %6704
      %6708 = vset.pattern.permute.xlu0 0
      %6709 = vperm.xlu0 %6708, %v6579
      %v6710 = vpop.permute.xlu0 %6709
      %6713 = vset.pattern.permute.xlu0 0
      %6714 = vperm.xlu0 %6713, %v6580
      %v6715 = vpop.permute.xlu0 %6714
      %6718 = vset.pattern.permute.xlu0 0
      %6719 = vperm.xlu0 %6718, %v6581
      %v6720 = vpop.permute.xlu0 %6719
      %6723 = vset.pattern.permute.xlu0 0
      %6724 = vperm.xlu0 %6723, %v6582
      %v6725 = vpop.permute.xlu0 %6724
      %6728 = vset.pattern.permute.xlu0 0
      %6729 = vperm.xlu0 %6728, %v6583
      %v6730 = vpop.permute.xlu0 %6729
      %6733 = vset.pattern.permute.xlu0 0
      %6734 = vperm.xlu0 %6733, %v6584
      %v6735 = vpop.permute.xlu0 %6734
      %6738 = vset.pattern.permute.xlu0 0
      %6739 = vperm.xlu0 %6738, %v6585
      %v6740 = vpop.permute.xlu0 %6739
      %6743 = vset.pattern.permute.xlu0 0
      %6744 = vperm.xlu0 %6743, %v6586
      %v6745 = vpop.permute.xlu0 %6744
      %6748 = vset.pattern.permute.xlu0 0
      %6749 = vperm.xlu0 %6748, %v6587
      %v6750 = vpop.permute.xlu0 %6749
      %6753 = vset.pattern.permute.xlu0 0
      %6754 = vperm.xlu0 %6753, %v6588
      %v6755 = vpop.permute.xlu0 %6754
      %v6757 = vlaneseq
      %v6758 = vshrl.u32 %v6757, 7
      %v6759 = vsub.s32 0, %v6758
      %v6760 = vrot.slane %v6589, %v6759
      %v6761 = vmul.f32 %v6600, %v6760
      %v6762 = vmul.f32 %v6605, %v6760
      %v6763 = vmul.f32 %v6610, %v6760
      %v6764 = vmul.f32 %v6615, %v6760
      %v6765 = vmul.f32 %v6620, %v6760
      %v6766 = vmul.f32 %v6625, %v6760
      %v6767 = vmul.f32 %v6630, %v6760
      %v6768 = vmul.f32 %v6635, %v6760
      %v6769 = vmul.f32 %v6640, %v6760
      %v6770 = vmul.f32 %v6645, %v6760
      %v6771 = vmul.f32 %v6650, %v6760
      %v6772 = vmul.f32 %v6655, %v6760
      %v6773 = vmul.f32 %v6660, %v6760
      %v6774 = vmul.f32 %v6665, %v6760
      %v6775 = vmul.f32 %v6670, %v6760
      %v6776 = vmul.f32 %v6675, %v6760
      %v6777 = vmul.f32 %v6680, %v6760
      %v6778 = vmul.f32 %v6685, %v6760
      %v6779 = vmul.f32 %v6690, %v6760
      %v6780 = vmul.f32 %v6695, %v6760
      %v6781 = vmul.f32 %v6700, %v6760
      %v6782 = vmul.f32 %v6705, %v6760
      %v6783 = vmul.f32 %v6710, %v6760
      %v6784 = vmul.f32 %v6715, %v6760
      %v6785 = vmul.f32 %v6720, %v6760
      %v6786 = vmul.f32 %v6725, %v6760
      %v6787 = vmul.f32 %v6730, %v6760
      %v6788 = vmul.f32 %v6735, %v6760
      %v6789 = vmul.f32 %v6740, %v6760
      %v6790 = vmul.f32 %v6745, %v6760
      %v6791 = vmul.f32 %v6750, %v6760
      %v6792 = vmul.f32 %v6755, %v6760
      %v6793 = vadd.f32 %v6595, %v6761
      %v6794 = vadd.f32 %v6595, %v6762
      %v6795 = vadd.f32 %v6595, %v6763
      %v6796 = vadd.f32 %v6595, %v6764
      %v6797 = vadd.f32 %v6595, %v6765
      %v6798 = vadd.f32 %v6595, %v6766
      %v6799 = vadd.f32 %v6595, %v6767
      %v6800 = vadd.f32 %v6595, %v6768
      %v6801 = vadd.f32 %v6595, %v6769
      %v6802 = vadd.f32 %v6595, %v6770
      %v6803 = vadd.f32 %v6595, %v6771
      %v6804 = vadd.f32 %v6595, %v6772
      %v6805 = vadd.f32 %v6595, %v6773
      %v6806 = vadd.f32 %v6595, %v6774
      %v6807 = vadd.f32 %v6595, %v6775
      %v6808 = vadd.f32 %v6595, %v6776
      %v6809 = vadd.f32 %v6595, %v6777
      %v6810 = vadd.f32 %v6595, %v6778
      %v6811 = vadd.f32 %v6595, %v6779
      %v6812 = vadd.f32 %v6595, %v6780
      %v6813 = vadd.f32 %v6595, %v6781
      %v6814 = vadd.f32 %v6595, %v6782
      %v6815 = vadd.f32 %v6595, %v6783
      %v6816 = vadd.f32 %v6595, %v6784
      %v6817 = vadd.f32 %v6595, %v6785
      %v6818 = vadd.f32 %v6595, %v6786
      %v6819 = vadd.f32 %v6595, %v6787
      %v6820 = vadd.f32 %v6595, %v6788
      %v6821 = vadd.f32 %v6595, %v6789
      %v6822 = vadd.f32 %v6595, %v6790
      %v6823 = vadd.f32 %v6595, %v6791
      %v6824 = vadd.f32 %v6595, %v6792
      %6825 = vset.pattern.permute.xlu0 1
      %6826 = vperm.xlu0 %6825, %v6557
      %v6827 = vpop.permute.xlu0 %6826
      %6829 = vset.pattern.permute.xlu0 1
      %6830 = vperm.xlu0 %6829, %v6558
      %v6831 = vpop.permute.xlu0 %6830
      %6833 = vset.pattern.permute.xlu0 1
      %6834 = vperm.xlu0 %6833, %v6559
      %v6835 = vpop.permute.xlu0 %6834
      %6837 = vset.pattern.permute.xlu0 1
      %6838 = vperm.xlu0 %6837, %v6560
      %v6839 = vpop.permute.xlu0 %6838
      %6841 = vset.pattern.permute.xlu0 1
      %6842 = vperm.xlu0 %6841, %v6561
      %v6843 = vpop.permute.xlu0 %6842
      %6845 = vset.pattern.permute.xlu0 1
      %6846 = vperm.xlu0 %6845, %v6562
      %v6847 = vpop.permute.xlu0 %6846
      %6849 = vset.pattern.permute.xlu0 1
      %6850 = vperm.xlu0 %6849, %v6563
      %v6851 = vpop.permute.xlu0 %6850
      %6853 = vset.pattern.permute.xlu0 1
      %6854 = vperm.xlu0 %6853, %v6564
      %v6855 = vpop.permute.xlu0 %6854
      %6857 = vset.pattern.permute.xlu0 1
      %6858 = vperm.xlu0 %6857, %v6565
      %v6859 = vpop.permute.xlu0 %6858
      %6861 = vset.pattern.permute.xlu0 1
      %6862 = vperm.xlu0 %6861, %v6566
      %v6863 = vpop.permute.xlu0 %6862
      %6865 = vset.pattern.permute.xlu0 1
      %6866 = vperm.xlu0 %6865, %v6567
      %v6867 = vpop.permute.xlu0 %6866
      %6869 = vset.pattern.permute.xlu0 1
      %6870 = vperm.xlu0 %6869, %v6568
      %v6871 = vpop.permute.xlu0 %6870
      %6873 = vset.pattern.permute.xlu0 1
      %6874 = vperm.xlu0 %6873, %v6569
      %v6875 = vpop.permute.xlu0 %6874
      %6877 = vset.pattern.permute.xlu0 1
      %6878 = vperm.xlu0 %6877, %v6570
      %v6879 = vpop.permute.xlu0 %6878
      %6881 = vset.pattern.permute.xlu0 1
      %6882 = vperm.xlu0 %6881, %v6571
      %v6883 = vpop.permute.xlu0 %6882
      %6885 = vset.pattern.permute.xlu0 1
      %6886 = vperm.xlu0 %6885, %v6572
      %v6887 = vpop.permute.xlu0 %6886
      %6889 = vset.pattern.permute.xlu0 1
      %6890 = vperm.xlu0 %6889, %v6573
      %v6891 = vpop.permute.xlu0 %6890
      %6893 = vset.pattern.permute.xlu0 1
      %6894 = vperm.xlu0 %6893, %v6574
      %v6895 = vpop.permute.xlu0 %6894
      %6897 = vset.pattern.permute.xlu0 1
      %6898 = vperm.xlu0 %6897, %v6575
      %v6899 = vpop.permute.xlu0 %6898
      %6901 = vset.pattern.permute.xlu0 1
      %6902 = vperm.xlu0 %6901, %v6576
      %v6903 = vpop.permute.xlu0 %6902
      %6905 = vset.pattern.permute.xlu0 1
      %6906 = vperm.xlu0 %6905, %v6577
      %v6907 = vpop.permute.xlu0 %6906
      %6909 = vset.pattern.permute.xlu0 1
      %6910 = vperm.xlu0 %6909, %v6578
      %v6911 = vpop.permute.xlu0 %6910
      %6913 = vset.pattern.permute.xlu0 1
      %6914 = vperm.xlu0 %6913, %v6579
      %v6915 = vpop.permute.xlu0 %6914
      %6917 = vset.pattern.permute.xlu0 1
      %6918 = vperm.xlu0 %6917, %v6580
      %v6919 = vpop.permute.xlu0 %6918
      %6921 = vset.pattern.permute.xlu0 1
      %6922 = vperm.xlu0 %6921, %v6581
      %v6923 = vpop.permute.xlu0 %6922
      %6925 = vset.pattern.permute.xlu0 1
      %6926 = vperm.xlu0 %6925, %v6582
      %v6927 = vpop.permute.xlu0 %6926
      %6929 = vset.pattern.permute.xlu0 1
      %6930 = vperm.xlu0 %6929, %v6583
      %v6931 = vpop.permute.xlu0 %6930
      %6933 = vset.pattern.permute.xlu0 1
      %6934 = vperm.xlu0 %6933, %v6584
      %v6935 = vpop.permute.xlu0 %6934
      %6937 = vset.pattern.permute.xlu0 1
      %6938 = vperm.xlu0 %6937, %v6585
      %v6939 = vpop.permute.xlu0 %6938
      %6941 = vset.pattern.permute.xlu0 1
      %6942 = vperm.xlu0 %6941, %v6586
      %v6943 = vpop.permute.xlu0 %6942
      %6945 = vset.pattern.permute.xlu0 1
      %6946 = vperm.xlu0 %6945, %v6587
      %v6947 = vpop.permute.xlu0 %6946
      %6949 = vset.pattern.permute.xlu0 1
      %6950 = vperm.xlu0 %6949, %v6588
      %v6951 = vpop.permute.xlu0 %6950
      %v6953 = vlaneseq
      %v6954 = vshrl.u32 %v6953, 7
      %v6955 = vsub.s32 1, %v6954
      %v6956 = vrot.slane %v6589, %v6955
      %v6957 = vmul.f32 %v6827, %v6956
      %v6958 = vmul.f32 %v6831, %v6956
      %v6959 = vmul.f32 %v6835, %v6956
      %v6960 = vmul.f32 %v6839, %v6956
      %v6961 = vmul.f32 %v6843, %v6956
      %v6962 = vmul.f32 %v6847, %v6956
      %v6963 = vmul.f32 %v6851, %v6956
      %v6964 = vmul.f32 %v6855, %v6956
      %v6965 = vmul.f32 %v6859, %v6956
      %v6966 = vmul.f32 %v6863, %v6956
      %v6967 = vmul.f32 %v6867, %v6956
      %v6968 = vmul.f32 %v6871, %v6956
      %v6969 = vmul.f32 %v6875, %v6956
      %v6970 = vmul.f32 %v6879, %v6956
      %v6971 = vmul.f32 %v6883, %v6956
      %v6972 = vmul.f32 %v6887, %v6956
      %v6973 = vmul.f32 %v6891, %v6956
      %v6974 = vmul.f32 %v6895, %v6956
      %v6975 = vmul.f32 %v6899, %v6956
      %v6976 = vmul.f32 %v6903, %v6956
      %v6977 = vmul.f32 %v6907, %v6956
      %v6978 = vmul.f32 %v6911, %v6956
      %v6979 = vmul.f32 %v6915, %v6956
      %v6980 = vmul.f32 %v6919, %v6956
      %v6981 = vmul.f32 %v6923, %v6956
      %v6982 = vmul.f32 %v6927, %v6956
      %v6983 = vmul.f32 %v6931, %v6956
      %v6984 = vmul.f32 %v6935, %v6956
      %v6985 = vmul.f32 %v6939, %v6956
      %v6986 = vmul.f32 %v6943, %v6956
      %v6987 = vmul.f32 %v6947, %v6956
      %v6988 = vmul.f32 %v6951, %v6956
      %v6989 = vadd.f32 %v6793, %v6957
      %v6990 = vadd.f32 %v6794, %v6958
      %v6991 = vadd.f32 %v6795, %v6959
      %v6992 = vadd.f32 %v6796, %v6960
      %v6993 = vadd.f32 %v6797, %v6961
      %v6994 = vadd.f32 %v6798, %v6962
      %v6995 = vadd.f32 %v6799, %v6963
      %v6996 = vadd.f32 %v6800, %v6964
      %v6997 = vadd.f32 %v6801, %v6965
      %v6998 = vadd.f32 %v6802, %v6966
      %v6999 = vadd.f32 %v6803, %v6967
      %v7000 = vadd.f32 %v6804, %v6968
      %v7001 = vadd.f32 %v6805, %v6969
      %v7002 = vadd.f32 %v6806, %v6970
      %v7003 = vadd.f32 %v6807, %v6971
      %v7004 = vadd.f32 %v6808, %v6972
      %v7005 = vadd.f32 %v6809, %v6973
      %v7006 = vadd.f32 %v6810, %v6974
      %v7007 = vadd.f32 %v6811, %v6975
      %v7008 = vadd.f32 %v6812, %v6976
      %v7009 = vadd.f32 %v6813, %v6977
      %v7010 = vadd.f32 %v6814, %v6978
      %v7011 = vadd.f32 %v6815, %v6979
      %v7012 = vadd.f32 %v6816, %v6980
      %v7013 = vadd.f32 %v6817, %v6981
      %v7014 = vadd.f32 %v6818, %v6982
      %v7015 = vadd.f32 %v6819, %v6983
      %v7016 = vadd.f32 %v6820, %v6984
      %v7017 = vadd.f32 %v6821, %v6985
      %v7018 = vadd.f32 %v6822, %v6986
      %v7019 = vadd.f32 %v6823, %v6987
      %v7020 = vadd.f32 %v6824, %v6988
      %7021 = vset.pattern.permute.xlu0 2
      %7022 = vperm.xlu0 %7021, %v6557
      %v7023 = vpop.permute.xlu0 %7022
      %7025 = vset.pattern.permute.xlu0 2
      %7026 = vperm.xlu0 %7025, %v6558
      %v7027 = vpop.permute.xlu0 %7026
      %7029 = vset.pattern.permute.xlu0 2
      %7030 = vperm.xlu0 %7029, %v6559
      %v7031 = vpop.permute.xlu0 %7030
      %7033 = vset.pattern.permute.xlu0 2
      %7034 = vperm.xlu0 %7033, %v6560
      %v7035 = vpop.permute.xlu0 %7034
      %7037 = vset.pattern.permute.xlu0 2
      %7038 = vperm.xlu0 %7037, %v6561
      %v7039 = vpop.permute.xlu0 %7038
      %7041 = vset.pattern.permute.xlu0 2
      %7042 = vperm.xlu0 %7041, %v6562
      %v7043 = vpop.permute.xlu0 %7042
      %7045 = vset.pattern.permute.xlu0 2
      %7046 = vperm.xlu0 %7045, %v6563
      %v7047 = vpop.permute.xlu0 %7046
      %7049 = vset.pattern.permute.xlu0 2
      %7050 = vperm.xlu0 %7049, %v6564
      %v7051 = vpop.permute.xlu0 %7050
      %7053 = vset.pattern.permute.xlu0 2
      %7054 = vperm.xlu0 %7053, %v6565
      %v7055 = vpop.permute.xlu0 %7054
      %7057 = vset.pattern.permute.xlu0 2
      %7058 = vperm.xlu0 %7057, %v6566
      %v7059 = vpop.permute.xlu0 %7058
      %7061 = vset.pattern.permute.xlu0 2
      %7062 = vperm.xlu0 %7061, %v6567
      %v7063 = vpop.permute.xlu0 %7062
      %7065 = vset.pattern.permute.xlu0 2
      %7066 = vperm.xlu0 %7065, %v6568
      %v7067 = vpop.permute.xlu0 %7066
      %7069 = vset.pattern.permute.xlu0 2
      %7070 = vperm.xlu0 %7069, %v6569
      %v7071 = vpop.permute.xlu0 %7070
      %7073 = vset.pattern.permute.xlu0 2
      %7074 = vperm.xlu0 %7073, %v6570
      %v7075 = vpop.permute.xlu0 %7074
      %7077 = vset.pattern.permute.xlu0 2
      %7078 = vperm.xlu0 %7077, %v6571
      %v7079 = vpop.permute.xlu0 %7078
      %7081 = vset.pattern.permute.xlu0 2
      %7082 = vperm.xlu0 %7081, %v6572
      %v7083 = vpop.permute.xlu0 %7082
      %7085 = vset.pattern.permute.xlu0 2
      %7086 = vperm.xlu0 %7085, %v6573
      %v7087 = vpop.permute.xlu0 %7086
      %7089 = vset.pattern.permute.xlu0 2
      %7090 = vperm.xlu0 %7089, %v6574
      %v7091 = vpop.permute.xlu0 %7090
      %7093 = vset.pattern.permute.xlu0 2
      %7094 = vperm.xlu0 %7093, %v6575
      %v7095 = vpop.permute.xlu0 %7094
      %7097 = vset.pattern.permute.xlu0 2
      %7098 = vperm.xlu0 %7097, %v6576
      %v7099 = vpop.permute.xlu0 %7098
      %7101 = vset.pattern.permute.xlu0 2
      %7102 = vperm.xlu0 %7101, %v6577
      %v7103 = vpop.permute.xlu0 %7102
      %7105 = vset.pattern.permute.xlu0 2
      %7106 = vperm.xlu0 %7105, %v6578
      %v7107 = vpop.permute.xlu0 %7106
      %7109 = vset.pattern.permute.xlu0 2
      %7110 = vperm.xlu0 %7109, %v6579
      %v7111 = vpop.permute.xlu0 %7110
      %7113 = vset.pattern.permute.xlu0 2
      %7114 = vperm.xlu0 %7113, %v6580
      %v7115 = vpop.permute.xlu0 %7114
      %7117 = vset.pattern.permute.xlu0 2
      %7118 = vperm.xlu0 %7117, %v6581
      %v7119 = vpop.permute.xlu0 %7118
      %7121 = vset.pattern.permute.xlu0 2
      %7122 = vperm.xlu0 %7121, %v6582
      %v7123 = vpop.permute.xlu0 %7122
      %7125 = vset.pattern.permute.xlu0 2
      %7126 = vperm.xlu0 %7125, %v6583
      %v7127 = vpop.permute.xlu0 %7126
      %7129 = vset.pattern.permute.xlu0 2
      %7130 = vperm.xlu0 %7129, %v6584
      %v7131 = vpop.permute.xlu0 %7130
      %7133 = vset.pattern.permute.xlu0 2
      %7134 = vperm.xlu0 %7133, %v6585
      %v7135 = vpop.permute.xlu0 %7134
      %7137 = vset.pattern.permute.xlu0 2
      %7138 = vperm.xlu0 %7137, %v6586
      %v7139 = vpop.permute.xlu0 %7138
      %7141 = vset.pattern.permute.xlu0 2
      %7142 = vperm.xlu0 %7141, %v6587
      %v7143 = vpop.permute.xlu0 %7142
      %7145 = vset.pattern.permute.xlu0 2
      %7146 = vperm.xlu0 %7145, %v6588
      %v7147 = vpop.permute.xlu0 %7146
      %v7149 = vlaneseq
      %v7150 = vshrl.u32 %v7149, 7
      %v7151 = vsub.s32 2, %v7150
      %v7152 = vrot.slane %v6589, %v7151
      %v7153 = vmul.f32 %v7023, %v7152
      %v7154 = vmul.f32 %v7027, %v7152
      %v7155 = vmul.f32 %v7031, %v7152
      %v7156 = vmul.f32 %v7035, %v7152
      %v7157 = vmul.f32 %v7039, %v7152
      %v7158 = vmul.f32 %v7043, %v7152
      %v7159 = vmul.f32 %v7047, %v7152
      %v7160 = vmul.f32 %v7051, %v7152
      %v7161 = vmul.f32 %v7055, %v7152
      %v7162 = vmul.f32 %v7059, %v7152
      %v7163 = vmul.f32 %v7063, %v7152
      %v7164 = vmul.f32 %v7067, %v7152
      %v7165 = vmul.f32 %v7071, %v7152
      %v7166 = vmul.f32 %v7075, %v7152
      %v7167 = vmul.f32 %v7079, %v7152
      %v7168 = vmul.f32 %v7083, %v7152
      %v7169 = vmul.f32 %v7087, %v7152
      %v7170 = vmul.f32 %v7091, %v7152
      %v7171 = vmul.f32 %v7095, %v7152
      %v7172 = vmul.f32 %v7099, %v7152
      %v7173 = vmul.f32 %v7103, %v7152
      %v7174 = vmul.f32 %v7107, %v7152
      %v7175 = vmul.f32 %v7111, %v7152
      %v7176 = vmul.f32 %v7115, %v7152
      %v7177 = vmul.f32 %v7119, %v7152
      %v7178 = vmul.f32 %v7123, %v7152
      %v7179 = vmul.f32 %v7127, %v7152
      %v7180 = vmul.f32 %v7131, %v7152
      %v7181 = vmul.f32 %v7135, %v7152
      %v7182 = vmul.f32 %v7139, %v7152
      %v7183 = vmul.f32 %v7143, %v7152
      %v7184 = vmul.f32 %v7147, %v7152
      %v7185 = vadd.f32 %v6989, %v7153
      %v7186 = vadd.f32 %v6990, %v7154
      %v7187 = vadd.f32 %v6991, %v7155
      %v7188 = vadd.f32 %v6992, %v7156
      %v7189 = vadd.f32 %v6993, %v7157
      %v7190 = vadd.f32 %v6994, %v7158
      %v7191 = vadd.f32 %v6995, %v7159
      %v7192 = vadd.f32 %v6996, %v7160
      %v7193 = vadd.f32 %v6997, %v7161
      %v7194 = vadd.f32 %v6998, %v7162
      %v7195 = vadd.f32 %v6999, %v7163
      %v7196 = vadd.f32 %v7000, %v7164
      %v7197 = vadd.f32 %v7001, %v7165
      %v7198 = vadd.f32 %v7002, %v7166
      %v7199 = vadd.f32 %v7003, %v7167
      %v7200 = vadd.f32 %v7004, %v7168
      %v7201 = vadd.f32 %v7005, %v7169
      %v7202 = vadd.f32 %v7006, %v7170
      %v7203 = vadd.f32 %v7007, %v7171
      %v7204 = vadd.f32 %v7008, %v7172
      %v7205 = vadd.f32 %v7009, %v7173
      %v7206 = vadd.f32 %v7010, %v7174
      %v7207 = vadd.f32 %v7011, %v7175
      %v7208 = vadd.f32 %v7012, %v7176
      %v7209 = vadd.f32 %v7013, %v7177
      %v7210 = vadd.f32 %v7014, %v7178
      %v7211 = vadd.f32 %v7015, %v7179
      %v7212 = vadd.f32 %v7016, %v7180
      %v7213 = vadd.f32 %v7017, %v7181
      %v7214 = vadd.f32 %v7018, %v7182
      %v7215 = vadd.f32 %v7019, %v7183
      %v7216 = vadd.f32 %v7020, %v7184
      %7217 = vset.pattern.permute.xlu0 3
      %7218 = vperm.xlu0 %7217, %v6557
      %v7219 = vpop.permute.xlu0 %7218
      %7221 = vset.pattern.permute.xlu0 3
      %7222 = vperm.xlu0 %7221, %v6558
      %v7223 = vpop.permute.xlu0 %7222
      %7225 = vset.pattern.permute.xlu0 3
      %7226 = vperm.xlu0 %7225, %v6559
      %v7227 = vpop.permute.xlu0 %7226
      %7229 = vset.pattern.permute.xlu0 3
      %7230 = vperm.xlu0 %7229, %v6560
      %v7231 = vpop.permute.xlu0 %7230
      %7233 = vset.pattern.permute.xlu0 3
      %7234 = vperm.xlu0 %7233, %v6561
      %v7235 = vpop.permute.xlu0 %7234
      %7237 = vset.pattern.permute.xlu0 3
      %7238 = vperm.xlu0 %7237, %v6562
      %v7239 = vpop.permute.xlu0 %7238
      %7241 = vset.pattern.permute.xlu0 3
      %7242 = vperm.xlu0 %7241, %v6563
      %v7243 = vpop.permute.xlu0 %7242
      %7245 = vset.pattern.permute.xlu0 3
      %7246 = vperm.xlu0 %7245, %v6564
      %v7247 = vpop.permute.xlu0 %7246
      %7249 = vset.pattern.permute.xlu0 3
      %7250 = vperm.xlu0 %7249, %v6565
      %v7251 = vpop.permute.xlu0 %7250
      %7253 = vset.pattern.permute.xlu0 3
      %7254 = vperm.xlu0 %7253, %v6566
      %v7255 = vpop.permute.xlu0 %7254
      %7257 = vset.pattern.permute.xlu0 3
      %7258 = vperm.xlu0 %7257, %v6567
      %v7259 = vpop.permute.xlu0 %7258
      %7261 = vset.pattern.permute.xlu0 3
      %7262 = vperm.xlu0 %7261, %v6568
      %v7263 = vpop.permute.xlu0 %7262
      %7265 = vset.pattern.permute.xlu0 3
      %7266 = vperm.xlu0 %7265, %v6569
      %v7267 = vpop.permute.xlu0 %7266
      %7269 = vset.pattern.permute.xlu0 3
      %7270 = vperm.xlu0 %7269, %v6570
      %v7271 = vpop.permute.xlu0 %7270
      %7273 = vset.pattern.permute.xlu0 3
      %7274 = vperm.xlu0 %7273, %v6571
      %v7275 = vpop.permute.xlu0 %7274
      %7277 = vset.pattern.permute.xlu0 3
      %7278 = vperm.xlu0 %7277, %v6572
      %v7279 = vpop.permute.xlu0 %7278
      %7281 = vset.pattern.permute.xlu0 3
      %7282 = vperm.xlu0 %7281, %v6573
      %v7283 = vpop.permute.xlu0 %7282
      %7285 = vset.pattern.permute.xlu0 3
      %7286 = vperm.xlu0 %7285, %v6574
      %v7287 = vpop.permute.xlu0 %7286
      %7289 = vset.pattern.permute.xlu0 3
      %7290 = vperm.xlu0 %7289, %v6575
      %v7291 = vpop.permute.xlu0 %7290
      %7293 = vset.pattern.permute.xlu0 3
      %7294 = vperm.xlu0 %7293, %v6576
      %v7295 = vpop.permute.xlu0 %7294
      %7297 = vset.pattern.permute.xlu0 3
      %7298 = vperm.xlu0 %7297, %v6577
      %v7299 = vpop.permute.xlu0 %7298
      %7301 = vset.pattern.permute.xlu0 3
      %7302 = vperm.xlu0 %7301, %v6578
      %v7303 = vpop.permute.xlu0 %7302
      %7305 = vset.pattern.permute.xlu0 3
      %7306 = vperm.xlu0 %7305, %v6579
      %v7307 = vpop.permute.xlu0 %7306
      %7309 = vset.pattern.permute.xlu0 3
      %7310 = vperm.xlu0 %7309, %v6580
      %v7311 = vpop.permute.xlu0 %7310
      %7313 = vset.pattern.permute.xlu0 3
      %7314 = vperm.xlu0 %7313, %v6581
      %v7315 = vpop.permute.xlu0 %7314
      %7317 = vset.pattern.permute.xlu0 3
      %7318 = vperm.xlu0 %7317, %v6582
      %v7319 = vpop.permute.xlu0 %7318
      %7321 = vset.pattern.permute.xlu0 3
      %7322 = vperm.xlu0 %7321, %v6583
      %v7323 = vpop.permute.xlu0 %7322
      %7325 = vset.pattern.permute.xlu0 3
      %7326 = vperm.xlu0 %7325, %v6584
      %v7327 = vpop.permute.xlu0 %7326
      %7329 = vset.pattern.permute.xlu0 3
      %7330 = vperm.xlu0 %7329, %v6585
      %v7331 = vpop.permute.xlu0 %7330
      %7333 = vset.pattern.permute.xlu0 3
      %7334 = vperm.xlu0 %7333, %v6586
      %v7335 = vpop.permute.xlu0 %7334
      %7337 = vset.pattern.permute.xlu0 3
      %7338 = vperm.xlu0 %7337, %v6587
      %v7339 = vpop.permute.xlu0 %7338
      %7341 = vset.pattern.permute.xlu0 3
      %7342 = vperm.xlu0 %7341, %v6588
      %v7343 = vpop.permute.xlu0 %7342
      %v7345 = vlaneseq
      %v7346 = vshrl.u32 %v7345, 7
      %v7347 = vsub.s32 3, %v7346
      %v7348 = vrot.slane %v6589, %v7347
      %v7349 = vmul.f32 %v7219, %v7348
      %v7350 = vmul.f32 %v7223, %v7348
      %v7351 = vmul.f32 %v7227, %v7348
      %v7352 = vmul.f32 %v7231, %v7348
      %v7353 = vmul.f32 %v7235, %v7348
      %v7354 = vmul.f32 %v7239, %v7348
      %v7355 = vmul.f32 %v7243, %v7348
      %v7356 = vmul.f32 %v7247, %v7348
      %v7357 = vmul.f32 %v7251, %v7348
      %v7358 = vmul.f32 %v7255, %v7348
      %v7359 = vmul.f32 %v7259, %v7348
      %v7360 = vmul.f32 %v7263, %v7348
      %v7361 = vmul.f32 %v7267, %v7348
      %v7362 = vmul.f32 %v7271, %v7348
      %v7363 = vmul.f32 %v7275, %v7348
      %v7364 = vmul.f32 %v7279, %v7348
      %v7365 = vmul.f32 %v7283, %v7348
      %v7366 = vmul.f32 %v7287, %v7348
      %v7367 = vmul.f32 %v7291, %v7348
      %v7368 = vmul.f32 %v7295, %v7348
      %v7369 = vmul.f32 %v7299, %v7348
      %v7370 = vmul.f32 %v7303, %v7348
      %v7371 = vmul.f32 %v7307, %v7348
      %v7372 = vmul.f32 %v7311, %v7348
      %v7373 = vmul.f32 %v7315, %v7348
      %v7374 = vmul.f32 %v7319, %v7348
      %v7375 = vmul.f32 %v7323, %v7348
      %v7376 = vmul.f32 %v7327, %v7348
      %v7377 = vmul.f32 %v7331, %v7348
      %v7378 = vmul.f32 %v7335, %v7348
      %v7379 = vmul.f32 %v7339, %v7348
      %v7380 = vmul.f32 %v7343, %v7348
      %v7381 = vadd.f32 %v7185, %v7349
      %v7382 = vadd.f32 %v7186, %v7350
      %v7383 = vadd.f32 %v7187, %v7351
      %v7384 = vadd.f32 %v7188, %v7352
      %v7385 = vadd.f32 %v7189, %v7353
      %v7386 = vadd.f32 %v7190, %v7354
      %v7387 = vadd.f32 %v7191, %v7355
      %v7388 = vadd.f32 %v7192, %v7356
      %v7389 = vadd.f32 %v7193, %v7357
      %v7390 = vadd.f32 %v7194, %v7358
      %v7391 = vadd.f32 %v7195, %v7359
      %v7392 = vadd.f32 %v7196, %v7360
      %v7393 = vadd.f32 %v7197, %v7361
      %v7394 = vadd.f32 %v7198, %v7362
      %v7395 = vadd.f32 %v7199, %v7363
      %v7396 = vadd.f32 %v7200, %v7364
      %v7397 = vadd.f32 %v7201, %v7365
      %v7398 = vadd.f32 %v7202, %v7366
      %v7399 = vadd.f32 %v7203, %v7367
      %v7400 = vadd.f32 %v7204, %v7368
      %v7401 = vadd.f32 %v7205, %v7369
      %v7402 = vadd.f32 %v7206, %v7370
      %v7403 = vadd.f32 %v7207, %v7371
      %v7404 = vadd.f32 %v7208, %v7372
      %v7405 = vadd.f32 %v7209, %v7373
      %v7406 = vadd.f32 %v7210, %v7374
      %v7407 = vadd.f32 %v7211, %v7375
      %v7408 = vadd.f32 %v7212, %v7376
      %v7409 = vadd.f32 %v7213, %v7377
      %v7410 = vadd.f32 %v7214, %v7378
      %v7411 = vadd.f32 %v7215, %v7379
      %v7412 = vadd.f32 %v7216, %v7380
      %7413 = vset.pattern.permute.xlu0 4
      %7414 = vperm.xlu0 %7413, %v6557
      %v7415 = vpop.permute.xlu0 %7414
      %7417 = vset.pattern.permute.xlu0 4
      %7418 = vperm.xlu0 %7417, %v6558
      %v7419 = vpop.permute.xlu0 %7418
      %7421 = vset.pattern.permute.xlu0 4
      %7422 = vperm.xlu0 %7421, %v6559
      %v7423 = vpop.permute.xlu0 %7422
      %7425 = vset.pattern.permute.xlu0 4
      %7426 = vperm.xlu0 %7425, %v6560
      %v7427 = vpop.permute.xlu0 %7426
      %7429 = vset.pattern.permute.xlu0 4
      %7430 = vperm.xlu0 %7429, %v6561
      %v7431 = vpop.permute.xlu0 %7430
      %7433 = vset.pattern.permute.xlu0 4
      %7434 = vperm.xlu0 %7433, %v6562
      %v7435 = vpop.permute.xlu0 %7434
      %7437 = vset.pattern.permute.xlu0 4
      %7438 = vperm.xlu0 %7437, %v6563
      %v7439 = vpop.permute.xlu0 %7438
      %7441 = vset.pattern.permute.xlu0 4
      %7442 = vperm.xlu0 %7441, %v6564
      %v7443 = vpop.permute.xlu0 %7442
      %7445 = vset.pattern.permute.xlu0 4
      %7446 = vperm.xlu0 %7445, %v6565
      %v7447 = vpop.permute.xlu0 %7446
      %7449 = vset.pattern.permute.xlu0 4
      %7450 = vperm.xlu0 %7449, %v6566
      %v7451 = vpop.permute.xlu0 %7450
      %7453 = vset.pattern.permute.xlu0 4
      %7454 = vperm.xlu0 %7453, %v6567
      %v7455 = vpop.permute.xlu0 %7454
      %7457 = vset.pattern.permute.xlu0 4
      %7458 = vperm.xlu0 %7457, %v6568
      %v7459 = vpop.permute.xlu0 %7458
      %7461 = vset.pattern.permute.xlu0 4
      %7462 = vperm.xlu0 %7461, %v6569
      %v7463 = vpop.permute.xlu0 %7462
      %7465 = vset.pattern.permute.xlu0 4
      %7466 = vperm.xlu0 %7465, %v6570
      %v7467 = vpop.permute.xlu0 %7466
      %7469 = vset.pattern.permute.xlu0 4
      %7470 = vperm.xlu0 %7469, %v6571
      %v7471 = vpop.permute.xlu0 %7470
      %7473 = vset.pattern.permute.xlu0 4
      %7474 = vperm.xlu0 %7473, %v6572
      %v7475 = vpop.permute.xlu0 %7474
      %7477 = vset.pattern.permute.xlu0 4
      %7478 = vperm.xlu0 %7477, %v6573
      %v7479 = vpop.permute.xlu0 %7478
      %7481 = vset.pattern.permute.xlu0 4
      %7482 = vperm.xlu0 %7481, %v6574
      %v7483 = vpop.permute.xlu0 %7482
      %7485 = vset.pattern.permute.xlu0 4
      %7486 = vperm.xlu0 %7485, %v6575
      %v7487 = vpop.permute.xlu0 %7486
      %7489 = vset.pattern.permute.xlu0 4
      %7490 = vperm.xlu0 %7489, %v6576
      %v7491 = vpop.permute.xlu0 %7490
      %7493 = vset.pattern.permute.xlu0 4
      %7494 = vperm.xlu0 %7493, %v6577
      %v7495 = vpop.permute.xlu0 %7494
      %7497 = vset.pattern.permute.xlu0 4
      %7498 = vperm.xlu0 %7497, %v6578
      %v7499 = vpop.permute.xlu0 %7498
      %7501 = vset.pattern.permute.xlu0 4
      %7502 = vperm.xlu0 %7501, %v6579
      %v7503 = vpop.permute.xlu0 %7502
      %7505 = vset.pattern.permute.xlu0 4
      %7506 = vperm.xlu0 %7505, %v6580
      %v7507 = vpop.permute.xlu0 %7506
      %7509 = vset.pattern.permute.xlu0 4
      %7510 = vperm.xlu0 %7509, %v6581
      %v7511 = vpop.permute.xlu0 %7510
      %7513 = vset.pattern.permute.xlu0 4
      %7514 = vperm.xlu0 %7513, %v6582
      %v7515 = vpop.permute.xlu0 %7514
      %7517 = vset.pattern.permute.xlu0 4
      %7518 = vperm.xlu0 %7517, %v6583
      %v7519 = vpop.permute.xlu0 %7518
      %7521 = vset.pattern.permute.xlu0 4
      %7522 = vperm.xlu0 %7521, %v6584
      %v7523 = vpop.permute.xlu0 %7522
      %7525 = vset.pattern.permute.xlu0 4
      %7526 = vperm.xlu0 %7525, %v6585
      %v7527 = vpop.permute.xlu0 %7526
      %7529 = vset.pattern.permute.xlu0 4
      %7530 = vperm.xlu0 %7529, %v6586
      %v7531 = vpop.permute.xlu0 %7530
      %7533 = vset.pattern.permute.xlu0 4
      %7534 = vperm.xlu0 %7533, %v6587
      %v7535 = vpop.permute.xlu0 %7534
      %7537 = vset.pattern.permute.xlu0 4
      %7538 = vperm.xlu0 %7537, %v6588
      %v7539 = vpop.permute.xlu0 %7538
      %v7541 = vlaneseq
      %v7542 = vshrl.u32 %v7541, 7
      %v7543 = vsub.s32 4, %v7542
      %v7544 = vrot.slane %v6589, %v7543
      %v7545 = vmul.f32 %v7415, %v7544
      %v7546 = vmul.f32 %v7419, %v7544
      %v7547 = vmul.f32 %v7423, %v7544
      %v7548 = vmul.f32 %v7427, %v7544
      %v7549 = vmul.f32 %v7431, %v7544
      %v7550 = vmul.f32 %v7435, %v7544
      %v7551 = vmul.f32 %v7439, %v7544
      %v7552 = vmul.f32 %v7443, %v7544
      %v7553 = vmul.f32 %v7447, %v7544
      %v7554 = vmul.f32 %v7451, %v7544
      %v7555 = vmul.f32 %v7455, %v7544
      %v7556 = vmul.f32 %v7459, %v7544
      %v7557 = vmul.f32 %v7463, %v7544
      %v7558 = vmul.f32 %v7467, %v7544
      %v7559 = vmul.f32 %v7471, %v7544
      %v7560 = vmul.f32 %v7475, %v7544
      %v7561 = vmul.f32 %v7479, %v7544
      %v7562 = vmul.f32 %v7483, %v7544
      %v7563 = vmul.f32 %v7487, %v7544
      %v7564 = vmul.f32 %v7491, %v7544
      %v7565 = vmul.f32 %v7495, %v7544
      %v7566 = vmul.f32 %v7499, %v7544
      %v7567 = vmul.f32 %v7503, %v7544
      %v7568 = vmul.f32 %v7507, %v7544
      %v7569 = vmul.f32 %v7511, %v7544
      %v7570 = vmul.f32 %v7515, %v7544
      %v7571 = vmul.f32 %v7519, %v7544
      %v7572 = vmul.f32 %v7523, %v7544
      %v7573 = vmul.f32 %v7527, %v7544
      %v7574 = vmul.f32 %v7531, %v7544
      %v7575 = vmul.f32 %v7535, %v7544
      %v7576 = vmul.f32 %v7539, %v7544
      %v7577 = vadd.f32 %v7381, %v7545
      %v7578 = vadd.f32 %v7382, %v7546
      %v7579 = vadd.f32 %v7383, %v7547
      %v7580 = vadd.f32 %v7384, %v7548
      %v7581 = vadd.f32 %v7385, %v7549
      %v7582 = vadd.f32 %v7386, %v7550
      %v7583 = vadd.f32 %v7387, %v7551
      %v7584 = vadd.f32 %v7388, %v7552
      %v7585 = vadd.f32 %v7389, %v7553
      %v7586 = vadd.f32 %v7390, %v7554
      %v7587 = vadd.f32 %v7391, %v7555
      %v7588 = vadd.f32 %v7392, %v7556
      %v7589 = vadd.f32 %v7393, %v7557
      %v7590 = vadd.f32 %v7394, %v7558
      %v7591 = vadd.f32 %v7395, %v7559
      %v7592 = vadd.f32 %v7396, %v7560
      %v7593 = vadd.f32 %v7397, %v7561
      %v7594 = vadd.f32 %v7398, %v7562
      %v7595 = vadd.f32 %v7399, %v7563
      %v7596 = vadd.f32 %v7400, %v7564
      %v7597 = vadd.f32 %v7401, %v7565
      %v7598 = vadd.f32 %v7402, %v7566
      %v7599 = vadd.f32 %v7403, %v7567
      %v7600 = vadd.f32 %v7404, %v7568
      %v7601 = vadd.f32 %v7405, %v7569
      %v7602 = vadd.f32 %v7406, %v7570
      %v7603 = vadd.f32 %v7407, %v7571
      %v7604 = vadd.f32 %v7408, %v7572
      %v7605 = vadd.f32 %v7409, %v7573
      %v7606 = vadd.f32 %v7410, %v7574
      %v7607 = vadd.f32 %v7411, %v7575
      %v7608 = vadd.f32 %v7412, %v7576
      %7609 = vset.pattern.permute.xlu0 5
      %7610 = vperm.xlu0 %7609, %v6557
      %v7611 = vpop.permute.xlu0 %7610
      %7613 = vset.pattern.permute.xlu0 5
      %7614 = vperm.xlu0 %7613, %v6558
      %v7615 = vpop.permute.xlu0 %7614
      %7617 = vset.pattern.permute.xlu0 5
      %7618 = vperm.xlu0 %7617, %v6559
      %v7619 = vpop.permute.xlu0 %7618
      %7621 = vset.pattern.permute.xlu0 5
      %7622 = vperm.xlu0 %7621, %v6560
      %v7623 = vpop.permute.xlu0 %7622
      %7625 = vset.pattern.permute.xlu0 5
      %7626 = vperm.xlu0 %7625, %v6561
      %v7627 = vpop.permute.xlu0 %7626
      %7629 = vset.pattern.permute.xlu0 5
      %7630 = vperm.xlu0 %7629, %v6562
      %v7631 = vpop.permute.xlu0 %7630
      %7633 = vset.pattern.permute.xlu0 5
      %7634 = vperm.xlu0 %7633, %v6563
      %v7635 = vpop.permute.xlu0 %7634
      %7637 = vset.pattern.permute.xlu0 5
      %7638 = vperm.xlu0 %7637, %v6564
      %v7639 = vpop.permute.xlu0 %7638
      %7641 = vset.pattern.permute.xlu0 5
      %7642 = vperm.xlu0 %7641, %v6565
      %v7643 = vpop.permute.xlu0 %7642
      %7645 = vset.pattern.permute.xlu0 5
      %7646 = vperm.xlu0 %7645, %v6566
      %v7647 = vpop.permute.xlu0 %7646
      %7649 = vset.pattern.permute.xlu0 5
      %7650 = vperm.xlu0 %7649, %v6567
      %v7651 = vpop.permute.xlu0 %7650
      %7653 = vset.pattern.permute.xlu0 5
      %7654 = vperm.xlu0 %7653, %v6568
      %v7655 = vpop.permute.xlu0 %7654
      %7657 = vset.pattern.permute.xlu0 5
      %7658 = vperm.xlu0 %7657, %v6569
      %v7659 = vpop.permute.xlu0 %7658
      %7661 = vset.pattern.permute.xlu0 5
      %7662 = vperm.xlu0 %7661, %v6570
      %v7663 = vpop.permute.xlu0 %7662
      %7665 = vset.pattern.permute.xlu0 5
      %7666 = vperm.xlu0 %7665, %v6571
      %v7667 = vpop.permute.xlu0 %7666
      %7669 = vset.pattern.permute.xlu0 5
      %7670 = vperm.xlu0 %7669, %v6572
      %v7671 = vpop.permute.xlu0 %7670
      %7673 = vset.pattern.permute.xlu0 5
      %7674 = vperm.xlu0 %7673, %v6573
      %v7675 = vpop.permute.xlu0 %7674
      %7677 = vset.pattern.permute.xlu0 5
      %7678 = vperm.xlu0 %7677, %v6574
      %v7679 = vpop.permute.xlu0 %7678
      %7681 = vset.pattern.permute.xlu0 5
      %7682 = vperm.xlu0 %7681, %v6575
      %v7683 = vpop.permute.xlu0 %7682
      %7685 = vset.pattern.permute.xlu0 5
      %7686 = vperm.xlu0 %7685, %v6576
      %v7687 = vpop.permute.xlu0 %7686
      %7689 = vset.pattern.permute.xlu0 5
      %7690 = vperm.xlu0 %7689, %v6577
      %v7691 = vpop.permute.xlu0 %7690
      %7693 = vset.pattern.permute.xlu0 5
      %7694 = vperm.xlu0 %7693, %v6578
      %v7695 = vpop.permute.xlu0 %7694
      %7697 = vset.pattern.permute.xlu0 5
      %7698 = vperm.xlu0 %7697, %v6579
      %v7699 = vpop.permute.xlu0 %7698
      %7701 = vset.pattern.permute.xlu0 5
      %7702 = vperm.xlu0 %7701, %v6580
      %v7703 = vpop.permute.xlu0 %7702
      %7705 = vset.pattern.permute.xlu0 5
      %7706 = vperm.xlu0 %7705, %v6581
      %v7707 = vpop.permute.xlu0 %7706
      %7709 = vset.pattern.permute.xlu0 5
      %7710 = vperm.xlu0 %7709, %v6582
      %v7711 = vpop.permute.xlu0 %7710
      %7713 = vset.pattern.permute.xlu0 5
      %7714 = vperm.xlu0 %7713, %v6583
      %v7715 = vpop.permute.xlu0 %7714
      %7717 = vset.pattern.permute.xlu0 5
      %7718 = vperm.xlu0 %7717, %v6584
      %v7719 = vpop.permute.xlu0 %7718
      %7721 = vset.pattern.permute.xlu0 5
      %7722 = vperm.xlu0 %7721, %v6585
      %v7723 = vpop.permute.xlu0 %7722
      %7725 = vset.pattern.permute.xlu0 5
      %7726 = vperm.xlu0 %7725, %v6586
      %v7727 = vpop.permute.xlu0 %7726
      %7729 = vset.pattern.permute.xlu0 5
      %7730 = vperm.xlu0 %7729, %v6587
      %v7731 = vpop.permute.xlu0 %7730
      %7733 = vset.pattern.permute.xlu0 5
      %7734 = vperm.xlu0 %7733, %v6588
      %v7735 = vpop.permute.xlu0 %7734
      %v7737 = vlaneseq
      %v7738 = vshrl.u32 %v7737, 7
      %v7739 = vsub.s32 5, %v7738
      %v7740 = vrot.slane %v6589, %v7739
      %v7741 = vmul.f32 %v7611, %v7740
      %v7742 = vmul.f32 %v7615, %v7740
      %v7743 = vmul.f32 %v7619, %v7740
      %v7744 = vmul.f32 %v7623, %v7740
      %v7745 = vmul.f32 %v7627, %v7740
      %v7746 = vmul.f32 %v7631, %v7740
      %v7747 = vmul.f32 %v7635, %v7740
      %v7748 = vmul.f32 %v7639, %v7740
      %v7749 = vmul.f32 %v7643, %v7740
      %v7750 = vmul.f32 %v7647, %v7740
      %v7751 = vmul.f32 %v7651, %v7740
      %v7752 = vmul.f32 %v7655, %v7740
      %v7753 = vmul.f32 %v7659, %v7740
      %v7754 = vmul.f32 %v7663, %v7740
      %v7755 = vmul.f32 %v7667, %v7740
      %v7756 = vmul.f32 %v7671, %v7740
      %v7757 = vmul.f32 %v7675, %v7740
      %v7758 = vmul.f32 %v7679, %v7740
      %v7759 = vmul.f32 %v7683, %v7740
      %v7760 = vmul.f32 %v7687, %v7740
      %v7761 = vmul.f32 %v7691, %v7740
      %v7762 = vmul.f32 %v7695, %v7740
      %v7763 = vmul.f32 %v7699, %v7740
      %v7764 = vmul.f32 %v7703, %v7740
      %v7765 = vmul.f32 %v7707, %v7740
      %v7766 = vmul.f32 %v7711, %v7740
      %v7767 = vmul.f32 %v7715, %v7740
      %v7768 = vmul.f32 %v7719, %v7740
      %v7769 = vmul.f32 %v7723, %v7740
      %v7770 = vmul.f32 %v7727, %v7740
      %v7771 = vmul.f32 %v7731, %v7740
      %v7772 = vmul.f32 %v7735, %v7740
      %v7773 = vadd.f32 %v7577, %v7741
      %v7774 = vadd.f32 %v7578, %v7742
      %v7775 = vadd.f32 %v7579, %v7743
      %v7776 = vadd.f32 %v7580, %v7744
      %v7777 = vadd.f32 %v7581, %v7745
      %v7778 = vadd.f32 %v7582, %v7746
      %v7779 = vadd.f32 %v7583, %v7747
      %v7780 = vadd.f32 %v7584, %v7748
      %v7781 = vadd.f32 %v7585, %v7749
      %v7782 = vadd.f32 %v7586, %v7750
      %v7783 = vadd.f32 %v7587, %v7751
      %v7784 = vadd.f32 %v7588, %v7752
      %v7785 = vadd.f32 %v7589, %v7753
      %v7786 = vadd.f32 %v7590, %v7754
      %v7787 = vadd.f32 %v7591, %v7755
      %v7788 = vadd.f32 %v7592, %v7756
      %v7789 = vadd.f32 %v7593, %v7757
      %v7790 = vadd.f32 %v7594, %v7758
      %v7791 = vadd.f32 %v7595, %v7759
      %v7792 = vadd.f32 %v7596, %v7760
      %v7793 = vadd.f32 %v7597, %v7761
      %v7794 = vadd.f32 %v7598, %v7762
      %v7795 = vadd.f32 %v7599, %v7763
      %v7796 = vadd.f32 %v7600, %v7764
      %v7797 = vadd.f32 %v7601, %v7765
      %v7798 = vadd.f32 %v7602, %v7766
      %v7799 = vadd.f32 %v7603, %v7767
      %v7800 = vadd.f32 %v7604, %v7768
      %v7801 = vadd.f32 %v7605, %v7769
      %v7802 = vadd.f32 %v7606, %v7770
      %v7803 = vadd.f32 %v7607, %v7771
      %v7804 = vadd.f32 %v7608, %v7772
      %7805 = vset.pattern.permute.xlu0 6
      %7806 = vperm.xlu0 %7805, %v6557
      %v7807 = vpop.permute.xlu0 %7806
      %7809 = vset.pattern.permute.xlu0 6
      %7810 = vperm.xlu0 %7809, %v6558
      %v7811 = vpop.permute.xlu0 %7810
      %7813 = vset.pattern.permute.xlu0 6
      %7814 = vperm.xlu0 %7813, %v6559
      %v7815 = vpop.permute.xlu0 %7814
      %7817 = vset.pattern.permute.xlu0 6
      %7818 = vperm.xlu0 %7817, %v6560
      %v7819 = vpop.permute.xlu0 %7818
      %7821 = vset.pattern.permute.xlu0 6
      %7822 = vperm.xlu0 %7821, %v6561
      %v7823 = vpop.permute.xlu0 %7822
      %7825 = vset.pattern.permute.xlu0 6
      %7826 = vperm.xlu0 %7825, %v6562
      %v7827 = vpop.permute.xlu0 %7826
      %7829 = vset.pattern.permute.xlu0 6
      %7830 = vperm.xlu0 %7829, %v6563
      %v7831 = vpop.permute.xlu0 %7830
      %7833 = vset.pattern.permute.xlu0 6
      %7834 = vperm.xlu0 %7833, %v6564
      %v7835 = vpop.permute.xlu0 %7834
      %7837 = vset.pattern.permute.xlu0 6
      %7838 = vperm.xlu0 %7837, %v6565
      %v7839 = vpop.permute.xlu0 %7838
      %7841 = vset.pattern.permute.xlu0 6
      %7842 = vperm.xlu0 %7841, %v6566
      %v7843 = vpop.permute.xlu0 %7842
      %7845 = vset.pattern.permute.xlu0 6
      %7846 = vperm.xlu0 %7845, %v6567
      %v7847 = vpop.permute.xlu0 %7846
      %7849 = vset.pattern.permute.xlu0 6
      %7850 = vperm.xlu0 %7849, %v6568
      %v7851 = vpop.permute.xlu0 %7850
      %7853 = vset.pattern.permute.xlu0 6
      %7854 = vperm.xlu0 %7853, %v6569
      %v7855 = vpop.permute.xlu0 %7854
      %7857 = vset.pattern.permute.xlu0 6
      %7858 = vperm.xlu0 %7857, %v6570
      %v7859 = vpop.permute.xlu0 %7858
      %7861 = vset.pattern.permute.xlu0 6
      %7862 = vperm.xlu0 %7861, %v6571
      %v7863 = vpop.permute.xlu0 %7862
      %7865 = vset.pattern.permute.xlu0 6
      %7866 = vperm.xlu0 %7865, %v6572
      %v7867 = vpop.permute.xlu0 %7866
      %7869 = vset.pattern.permute.xlu0 6
      %7870 = vperm.xlu0 %7869, %v6573
      %v7871 = vpop.permute.xlu0 %7870
      %7873 = vset.pattern.permute.xlu0 6
      %7874 = vperm.xlu0 %7873, %v6574
      %v7875 = vpop.permute.xlu0 %7874
      %7877 = vset.pattern.permute.xlu0 6
      %7878 = vperm.xlu0 %7877, %v6575
      %v7879 = vpop.permute.xlu0 %7878
      %7881 = vset.pattern.permute.xlu0 6
      %7882 = vperm.xlu0 %7881, %v6576
      %v7883 = vpop.permute.xlu0 %7882
      %7885 = vset.pattern.permute.xlu0 6
      %7886 = vperm.xlu0 %7885, %v6577
      %v7887 = vpop.permute.xlu0 %7886
      %7889 = vset.pattern.permute.xlu0 6
      %7890 = vperm.xlu0 %7889, %v6578
      %v7891 = vpop.permute.xlu0 %7890
      %7893 = vset.pattern.permute.xlu0 6
      %7894 = vperm.xlu0 %7893, %v6579
      %v7895 = vpop.permute.xlu0 %7894
      %7897 = vset.pattern.permute.xlu0 6
      %7898 = vperm.xlu0 %7897, %v6580
      %v7899 = vpop.permute.xlu0 %7898
      %7901 = vset.pattern.permute.xlu0 6
      %7902 = vperm.xlu0 %7901, %v6581
      %v7903 = vpop.permute.xlu0 %7902
      %7905 = vset.pattern.permute.xlu0 6
      %7906 = vperm.xlu0 %7905, %v6582
      %v7907 = vpop.permute.xlu0 %7906
      %7909 = vset.pattern.permute.xlu0 6
      %7910 = vperm.xlu0 %7909, %v6583
      %v7911 = vpop.permute.xlu0 %7910
      %7913 = vset.pattern.permute.xlu0 6
      %7914 = vperm.xlu0 %7913, %v6584
      %v7915 = vpop.permute.xlu0 %7914
      %7917 = vset.pattern.permute.xlu0 6
      %7918 = vperm.xlu0 %7917, %v6585
      %v7919 = vpop.permute.xlu0 %7918
      %7921 = vset.pattern.permute.xlu0 6
      %7922 = vperm.xlu0 %7921, %v6586
      %v7923 = vpop.permute.xlu0 %7922
      %7925 = vset.pattern.permute.xlu0 6
      %7926 = vperm.xlu0 %7925, %v6587
      %v7927 = vpop.permute.xlu0 %7926
      %7929 = vset.pattern.permute.xlu0 6
      %7930 = vperm.xlu0 %7929, %v6588
      %v7931 = vpop.permute.xlu0 %7930
      %v7933 = vlaneseq
      %v7934 = vshrl.u32 %v7933, 7
      %v7935 = vsub.s32 6, %v7934
      %v7936 = vrot.slane %v6589, %v7935
      %v7937 = vmul.f32 %v7807, %v7936
      %v7938 = vmul.f32 %v7811, %v7936
      %v7939 = vmul.f32 %v7815, %v7936
      %v7940 = vmul.f32 %v7819, %v7936
      %v7941 = vmul.f32 %v7823, %v7936
      %v7942 = vmul.f32 %v7827, %v7936
      %v7943 = vmul.f32 %v7831, %v7936
      %v7944 = vmul.f32 %v7835, %v7936
      %v7945 = vmul.f32 %v7839, %v7936
      %v7946 = vmul.f32 %v7843, %v7936
      %v7947 = vmul.f32 %v7847, %v7936
      %v7948 = vmul.f32 %v7851, %v7936
      %v7949 = vmul.f32 %v7855, %v7936
      %v7950 = vmul.f32 %v7859, %v7936
      %v7951 = vmul.f32 %v7863, %v7936
      %v7952 = vmul.f32 %v7867, %v7936
      %v7953 = vmul.f32 %v7871, %v7936
      %v7954 = vmul.f32 %v7875, %v7936
      %v7955 = vmul.f32 %v7879, %v7936
      %v7956 = vmul.f32 %v7883, %v7936
      %v7957 = vmul.f32 %v7887, %v7936
      %v7958 = vmul.f32 %v7891, %v7936
      %v7959 = vmul.f32 %v7895, %v7936
      %v7960 = vmul.f32 %v7899, %v7936
      %v7961 = vmul.f32 %v7903, %v7936
      %v7962 = vmul.f32 %v7907, %v7936
      %v7963 = vmul.f32 %v7911, %v7936
      %v7964 = vmul.f32 %v7915, %v7936
      %v7965 = vmul.f32 %v7919, %v7936
      %v7966 = vmul.f32 %v7923, %v7936
      %v7967 = vmul.f32 %v7927, %v7936
      %v7968 = vmul.f32 %v7931, %v7936
      %v7969 = vadd.f32 %v7773, %v7937
      %v7970 = vadd.f32 %v7774, %v7938
      %v7971 = vadd.f32 %v7775, %v7939
      %v7972 = vadd.f32 %v7776, %v7940
      %v7973 = vadd.f32 %v7777, %v7941
      %v7974 = vadd.f32 %v7778, %v7942
      %v7975 = vadd.f32 %v7779, %v7943
      %v7976 = vadd.f32 %v7780, %v7944
      %v7977 = vadd.f32 %v7781, %v7945
      %v7978 = vadd.f32 %v7782, %v7946
      %v7979 = vadd.f32 %v7783, %v7947
      %v7980 = vadd.f32 %v7784, %v7948
      %v7981 = vadd.f32 %v7785, %v7949
      %v7982 = vadd.f32 %v7786, %v7950
      %v7983 = vadd.f32 %v7787, %v7951
      %v7984 = vadd.f32 %v7788, %v7952
      %v7985 = vadd.f32 %v7789, %v7953
      %v7986 = vadd.f32 %v7790, %v7954
      %v7987 = vadd.f32 %v7791, %v7955
      %v7988 = vadd.f32 %v7792, %v7956
      %v7989 = vadd.f32 %v7793, %v7957
      %v7990 = vadd.f32 %v7794, %v7958
      %v7991 = vadd.f32 %v7795, %v7959
      %v7992 = vadd.f32 %v7796, %v7960
      %v7993 = vadd.f32 %v7797, %v7961
      %v7994 = vadd.f32 %v7798, %v7962
      %v7995 = vadd.f32 %v7799, %v7963
      %v7996 = vadd.f32 %v7800, %v7964
      %v7997 = vadd.f32 %v7801, %v7965
      %v7998 = vadd.f32 %v7802, %v7966
      %v7999 = vadd.f32 %v7803, %v7967
      %v8000 = vadd.f32 %v7804, %v7968
      %8001 = vset.pattern.permute.xlu0 7
      %8002 = vperm.xlu0 %8001, %v6557
      %v8003 = vpop.permute.xlu0 %8002
      %8005 = vset.pattern.permute.xlu0 7
      %8006 = vperm.xlu0 %8005, %v6558
      %v8007 = vpop.permute.xlu0 %8006
      %8009 = vset.pattern.permute.xlu0 7
      %8010 = vperm.xlu0 %8009, %v6559
      %v8011 = vpop.permute.xlu0 %8010
      %8013 = vset.pattern.permute.xlu0 7
      %8014 = vperm.xlu0 %8013, %v6560
      %v8015 = vpop.permute.xlu0 %8014
      %8017 = vset.pattern.permute.xlu0 7
      %8018 = vperm.xlu0 %8017, %v6561
      %v8019 = vpop.permute.xlu0 %8018
      %8021 = vset.pattern.permute.xlu0 7
      %8022 = vperm.xlu0 %8021, %v6562
      %v8023 = vpop.permute.xlu0 %8022
      %8025 = vset.pattern.permute.xlu0 7
      %8026 = vperm.xlu0 %8025, %v6563
      %v8027 = vpop.permute.xlu0 %8026
      %8029 = vset.pattern.permute.xlu0 7
      %8030 = vperm.xlu0 %8029, %v6564
      %v8031 = vpop.permute.xlu0 %8030
      %8033 = vset.pattern.permute.xlu0 7
      %8034 = vperm.xlu0 %8033, %v6565
      %v8035 = vpop.permute.xlu0 %8034
      %8037 = vset.pattern.permute.xlu0 7
      %8038 = vperm.xlu0 %8037, %v6566
      %v8039 = vpop.permute.xlu0 %8038
      %8041 = vset.pattern.permute.xlu0 7
      %8042 = vperm.xlu0 %8041, %v6567
      %v8043 = vpop.permute.xlu0 %8042
      %8045 = vset.pattern.permute.xlu0 7
      %8046 = vperm.xlu0 %8045, %v6568
      %v8047 = vpop.permute.xlu0 %8046
      %8049 = vset.pattern.permute.xlu0 7
      %8050 = vperm.xlu0 %8049, %v6569
      %v8051 = vpop.permute.xlu0 %8050
      %8053 = vset.pattern.permute.xlu0 7
      %8054 = vperm.xlu0 %8053, %v6570
      %v8055 = vpop.permute.xlu0 %8054
      %8057 = vset.pattern.permute.xlu0 7
      %8058 = vperm.xlu0 %8057, %v6571
      %v8059 = vpop.permute.xlu0 %8058
      %8061 = vset.pattern.permute.xlu0 7
      %8062 = vperm.xlu0 %8061, %v6572
      %v8063 = vpop.permute.xlu0 %8062
      %8065 = vset.pattern.permute.xlu0 7
      %8066 = vperm.xlu0 %8065, %v6573
      %v8067 = vpop.permute.xlu0 %8066
      %8069 = vset.pattern.permute.xlu0 7
      %8070 = vperm.xlu0 %8069, %v6574
      %v8071 = vpop.permute.xlu0 %8070
      %8073 = vset.pattern.permute.xlu0 7
      %8074 = vperm.xlu0 %8073, %v6575
      %v8075 = vpop.permute.xlu0 %8074
      %8077 = vset.pattern.permute.xlu0 7
      %8078 = vperm.xlu0 %8077, %v6576
      %v8079 = vpop.permute.xlu0 %8078
      %8081 = vset.pattern.permute.xlu0 7
      %8082 = vperm.xlu0 %8081, %v6577
      %v8083 = vpop.permute.xlu0 %8082
      %8085 = vset.pattern.permute.xlu0 7
      %8086 = vperm.xlu0 %8085, %v6578
      %v8087 = vpop.permute.xlu0 %8086
      %8089 = vset.pattern.permute.xlu0 7
      %8090 = vperm.xlu0 %8089, %v6579
      %v8091 = vpop.permute.xlu0 %8090
      %8093 = vset.pattern.permute.xlu0 7
      %8094 = vperm.xlu0 %8093, %v6580
      %v8095 = vpop.permute.xlu0 %8094
      %8097 = vset.pattern.permute.xlu0 7
      %8098 = vperm.xlu0 %8097, %v6581
      %v8099 = vpop.permute.xlu0 %8098
      %8101 = vset.pattern.permute.xlu0 7
      %8102 = vperm.xlu0 %8101, %v6582
      %v8103 = vpop.permute.xlu0 %8102
      %8105 = vset.pattern.permute.xlu0 7
      %8106 = vperm.xlu0 %8105, %v6583
      %v8107 = vpop.permute.xlu0 %8106
      %8109 = vset.pattern.permute.xlu0 7
      %8110 = vperm.xlu0 %8109, %v6584
      %v8111 = vpop.permute.xlu0 %8110
      %8113 = vset.pattern.permute.xlu0 7
      %8114 = vperm.xlu0 %8113, %v6585
      %v8115 = vpop.permute.xlu0 %8114
      %8117 = vset.pattern.permute.xlu0 7
      %8118 = vperm.xlu0 %8117, %v6586
      %v8119 = vpop.permute.xlu0 %8118
      %8121 = vset.pattern.permute.xlu0 7
      %8122 = vperm.xlu0 %8121, %v6587
      %v8123 = vpop.permute.xlu0 %8122
      %8125 = vset.pattern.permute.xlu0 7
      %8126 = vperm.xlu0 %8125, %v6588
      %v8127 = vpop.permute.xlu0 %8126
      %v8129 = vlaneseq
      %v8130 = vshrl.u32 %v8129, 7
      %v8131 = vsub.s32 7, %v8130
      %v8132 = vrot.slane %v6589, %v8131
      %v8133 = vmul.f32 %v8003, %v8132
      %v8134 = vmul.f32 %v8007, %v8132
      %v8135 = vmul.f32 %v8011, %v8132
      %v8136 = vmul.f32 %v8015, %v8132
      %v8137 = vmul.f32 %v8019, %v8132
      %v8138 = vmul.f32 %v8023, %v8132
      %v8139 = vmul.f32 %v8027, %v8132
      %v8140 = vmul.f32 %v8031, %v8132
      %v8141 = vmul.f32 %v8035, %v8132
      %v8142 = vmul.f32 %v8039, %v8132
      %v8143 = vmul.f32 %v8043, %v8132
      %v8144 = vmul.f32 %v8047, %v8132
      %v8145 = vmul.f32 %v8051, %v8132
      %v8146 = vmul.f32 %v8055, %v8132
      %v8147 = vmul.f32 %v8059, %v8132
      %v8148 = vmul.f32 %v8063, %v8132
      %v8149 = vmul.f32 %v8067, %v8132
      %v8150 = vmul.f32 %v8071, %v8132
      %v8151 = vmul.f32 %v8075, %v8132
      %v8152 = vmul.f32 %v8079, %v8132
      %v8153 = vmul.f32 %v8083, %v8132
      %v8154 = vmul.f32 %v8087, %v8132
      %v8155 = vmul.f32 %v8091, %v8132
      %v8156 = vmul.f32 %v8095, %v8132
      %v8157 = vmul.f32 %v8099, %v8132
      %v8158 = vmul.f32 %v8103, %v8132
      %v8159 = vmul.f32 %v8107, %v8132
      %v8160 = vmul.f32 %v8111, %v8132
      %v8161 = vmul.f32 %v8115, %v8132
      %v8162 = vmul.f32 %v8119, %v8132
      %v8163 = vmul.f32 %v8123, %v8132
      %v8164 = vmul.f32 %v8127, %v8132
      %v8165 = vadd.f32 %v7969, %v8133
      %v8166 = vadd.f32 %v7970, %v8134
      %v8167 = vadd.f32 %v7971, %v8135
      %v8168 = vadd.f32 %v7972, %v8136
      %v8169 = vadd.f32 %v7973, %v8137
      %v8170 = vadd.f32 %v7974, %v8138
      %v8171 = vadd.f32 %v7975, %v8139
      %v8172 = vadd.f32 %v7976, %v8140
      %v8173 = vadd.f32 %v7977, %v8141
      %v8174 = vadd.f32 %v7978, %v8142
      %v8175 = vadd.f32 %v7979, %v8143
      %v8176 = vadd.f32 %v7980, %v8144
      %v8177 = vadd.f32 %v7981, %v8145
      %v8178 = vadd.f32 %v7982, %v8146
      %v8179 = vadd.f32 %v7983, %v8147
      %v8180 = vadd.f32 %v7984, %v8148
      %v8181 = vadd.f32 %v7985, %v8149
      %v8182 = vadd.f32 %v7986, %v8150
      %v8183 = vadd.f32 %v7987, %v8151
      %v8184 = vadd.f32 %v7988, %v8152
      %v8185 = vadd.f32 %v7989, %v8153
      %v8186 = vadd.f32 %v7990, %v8154
      %v8187 = vadd.f32 %v7991, %v8155
      %v8188 = vadd.f32 %v7992, %v8156
      %v8189 = vadd.f32 %v7993, %v8157
      %v8190 = vadd.f32 %v7994, %v8158
      %v8191 = vadd.f32 %v7995, %v8159
      %v8192 = vadd.f32 %v7996, %v8160
      %v8193 = vadd.f32 %v7997, %v8161
      %v8194 = vadd.f32 %v7998, %v8162
      %v8195 = vadd.f32 %v7999, %v8163
      %v8196 = vadd.f32 %v8000, %v8164
      %v8197 = vtanh.pop %v8165
      %v8198 = vtanh.pop %v8166
      %v8199 = vtanh.pop %v8167
      %v8200 = vtanh.pop %v8168
      %v8201 = vtanh.pop %v8169
      %v8202 = vtanh.pop %v8170
      %v8203 = vtanh.pop %v8171
      %v8204 = vtanh.pop %v8172
      %v8205 = vtanh.pop %v8173
      %v8206 = vtanh.pop %v8174
      %v8207 = vtanh.pop %v8175
      %v8208 = vtanh.pop %v8176
      %v8209 = vtanh.pop %v8177
      %v8210 = vtanh.pop %v8178
      %v8211 = vtanh.pop %v8179
      %v8212 = vtanh.pop %v8180
      %v8213 = vtanh.pop %v8181
      %v8214 = vtanh.pop %v8182
      %v8215 = vtanh.pop %v8183
      %v8216 = vtanh.pop %v8184
      %v8217 = vtanh.pop %v8185
      %v8218 = vtanh.pop %v8186
      %v8219 = vtanh.pop %v8187
      %v8220 = vtanh.pop %v8188
      %v8221 = vtanh.pop %v8189
      %v8222 = vtanh.pop %v8190
      %v8223 = vtanh.pop %v8191
      %v8224 = vtanh.pop %v8192
      %v8225 = vtanh.pop %v8193
      %v8226 = vtanh.pop %v8194
      %v8227 = vtanh.pop %v8195
      %v8228 = vtanh.pop %v8196
      %v8229 = vld [vmem:[%s13] sm:$0x1]
      %v8231 = vlaneseq
      %v8232 = vshrl.u32 %v8231, 7
      %v8233 = vsub.s32 0, %v8232
      %v8234 = vrot.slane %v8229, %v8233
      %v8236 = vmul.f32 %v8197, %v8234
      %v8237 = vmul.f32 %v8198, %v8234
      %v8238 = vmul.f32 %v8199, %v8234
      %v8239 = vmul.f32 %v8200, %v8234
      %v8240 = vmul.f32 %v8201, %v8234
      %v8241 = vmul.f32 %v8202, %v8234
      %v8242 = vmul.f32 %v8203, %v8234
      %v8243 = vmul.f32 %v8204, %v8234
      %v8244 = vmul.f32 %v8205, %v8234
      %v8245 = vmul.f32 %v8206, %v8234
      %v8246 = vmul.f32 %v8207, %v8234
      %v8247 = vmul.f32 %v8208, %v8234
      %v8248 = vmul.f32 %v8209, %v8234
      %v8249 = vmul.f32 %v8210, %v8234
      %v8250 = vmul.f32 %v8211, %v8234
      %v8251 = vmul.f32 %v8212, %v8234
      %v8252 = vmul.f32 %v8213, %v8234
      %v8253 = vmul.f32 %v8214, %v8234
      %v8254 = vmul.f32 %v8215, %v8234
      %v8255 = vmul.f32 %v8216, %v8234
      %v8256 = vmul.f32 %v8217, %v8234
      %v8257 = vmul.f32 %v8218, %v8234
      %v8258 = vmul.f32 %v8219, %v8234
      %v8259 = vmul.f32 %v8220, %v8234
      %v8260 = vmul.f32 %v8221, %v8234
      %v8261 = vmul.f32 %v8222, %v8234
      %v8262 = vmul.f32 %v8223, %v8234
      %v8263 = vmul.f32 %v8224, %v8234
      %v8264 = vmul.f32 %v8225, %v8234
      %v8265 = vmul.f32 %v8226, %v8234
      %v8266 = vmul.f32 %v8227, %v8234
      %v8267 = vmul.f32 %v8228, %v8234
      %vm8268 = vcmask 64512
      %v8269 = vsel %vm8268, %v8236, 0.0
      %8270 = vadd.xlane.f32.xlu0 %v8269
      %v8271 = vpop.xlane.xlu0 %8270
      %v8272 = vsel %vm8268, %v8237, 0.0
      %8273 = vadd.xlane.f32.xlu0 %v8272
      %v8274 = vpop.xlane.xlu0 %8273
      %v8275 = vsel %vm8268, %v8238, 0.0
      %8276 = vadd.xlane.f32.xlu0 %v8275
      %v8277 = vpop.xlane.xlu0 %8276
      %v8278 = vsel %vm8268, %v8239, 0.0
      %8279 = vadd.xlane.f32.xlu0 %v8278
      %v8280 = vpop.xlane.xlu0 %8279
      %v8281 = vsel %vm8268, %v8240, 0.0
      %8282 = vadd.xlane.f32.xlu0 %v8281
      %v8283 = vpop.xlane.xlu0 %8282
      %v8284 = vsel %vm8268, %v8241, 0.0
      %8285 = vadd.xlane.f32.xlu0 %v8284
      %v8286 = vpop.xlane.xlu0 %8285
      %v8287 = vsel %vm8268, %v8242, 0.0
      %8288 = vadd.xlane.f32.xlu0 %v8287
      %v8289 = vpop.xlane.xlu0 %8288
      %v8290 = vsel %vm8268, %v8243, 0.0
      %8291 = vadd.xlane.f32.xlu0 %v8290
      %v8292 = vpop.xlane.xlu0 %8291
      %v8293 = vsel %vm8268, %v8244, 0.0
      %8294 = vadd.xlane.f32.xlu0 %v8293
      %v8295 = vpop.xlane.xlu0 %8294
      %v8296 = vsel %vm8268, %v8245, 0.0
      %8297 = vadd.xlane.f32.xlu0 %v8296
      %v8298 = vpop.xlane.xlu0 %8297
      %v8299 = vsel %vm8268, %v8246, 0.0
      %8300 = vadd.xlane.f32.xlu0 %v8299
      %v8301 = vpop.xlane.xlu0 %8300
      %v8302 = vsel %vm8268, %v8247, 0.0
      %8303 = vadd.xlane.f32.xlu0 %v8302
      %v8304 = vpop.xlane.xlu0 %8303
      %v8305 = vsel %vm8268, %v8248, 0.0
      %8306 = vadd.xlane.f32.xlu0 %v8305
      %v8307 = vpop.xlane.xlu0 %8306
      %v8308 = vsel %vm8268, %v8249, 0.0
      %8309 = vadd.xlane.f32.xlu0 %v8308
      %v8310 = vpop.xlane.xlu0 %8309
      %v8311 = vsel %vm8268, %v8250, 0.0
      %8312 = vadd.xlane.f32.xlu0 %v8311
      %v8313 = vpop.xlane.xlu0 %8312
      %v8314 = vsel %vm8268, %v8251, 0.0
      %8315 = vadd.xlane.f32.xlu0 %v8314
      %v8316 = vpop.xlane.xlu0 %8315
      %v8317 = vsel %vm8268, %v8252, 0.0
      %8318 = vadd.xlane.f32.xlu0 %v8317
      %v8319 = vpop.xlane.xlu0 %8318
      %v8320 = vsel %vm8268, %v8253, 0.0
      %8321 = vadd.xlane.f32.xlu0 %v8320
      %v8322 = vpop.xlane.xlu0 %8321
      %v8323 = vsel %vm8268, %v8254, 0.0
      %8324 = vadd.xlane.f32.xlu0 %v8323
      %v8325 = vpop.xlane.xlu0 %8324
      %v8326 = vsel %vm8268, %v8255, 0.0
      %8327 = vadd.xlane.f32.xlu0 %v8326
      %v8328 = vpop.xlane.xlu0 %8327
      %v8329 = vsel %vm8268, %v8256, 0.0
      %8330 = vadd.xlane.f32.xlu0 %v8329
      %v8331 = vpop.xlane.xlu0 %8330
      %v8332 = vsel %vm8268, %v8257, 0.0
      %8333 = vadd.xlane.f32.xlu0 %v8332
      %v8334 = vpop.xlane.xlu0 %8333
      %v8335 = vsel %vm8268, %v8258, 0.0
      %8336 = vadd.xlane.f32.xlu0 %v8335
      %v8337 = vpop.xlane.xlu0 %8336
      %v8338 = vsel %vm8268, %v8259, 0.0
      %8339 = vadd.xlane.f32.xlu0 %v8338
      %v8340 = vpop.xlane.xlu0 %8339
      %v8341 = vsel %vm8268, %v8260, 0.0
      %8342 = vadd.xlane.f32.xlu0 %v8341
      %v8343 = vpop.xlane.xlu0 %8342
      %v8344 = vsel %vm8268, %v8261, 0.0
      %8345 = vadd.xlane.f32.xlu0 %v8344
      %v8346 = vpop.xlane.xlu0 %8345
      %v8347 = vsel %vm8268, %v8262, 0.0
      %8348 = vadd.xlane.f32.xlu0 %v8347
      %v8349 = vpop.xlane.xlu0 %8348
      %v8350 = vsel %vm8268, %v8263, 0.0
      %8351 = vadd.xlane.f32.xlu0 %v8350
      %v8352 = vpop.xlane.xlu0 %8351
      %v8353 = vsel %vm8268, %v8264, 0.0
      %8354 = vadd.xlane.f32.xlu0 %v8353
      %v8355 = vpop.xlane.xlu0 %8354
      %v8356 = vsel %vm8268, %v8265, 0.0
      %8357 = vadd.xlane.f32.xlu0 %v8356
      %v8358 = vpop.xlane.xlu0 %8357
      %v8359 = vsel %vm8268, %v8266, 0.0
      %8360 = vadd.xlane.f32.xlu0 %v8359
      %v8361 = vpop.xlane.xlu0 %8360
      %v8362 = vsel %vm8268, %v8267, 0.0
      %8363 = vadd.xlane.f32.xlu0 %v8362
      %v8364 = vpop.xlane.xlu0 %8363
      %v8365 = vld [vmem:[#allocation2] sm:$0x1]
      %v8367 = vlaneseq
      %v8368 = vshrl.u32 %v8367, 7
      %v8369 = vsub.s32 0, %v8368
      %v8370 = vrot.slane %v8365, %v8369
      %v8372 = vadd.f32 %v8271, %v8370
      %v8373 = vadd.f32 %v8274, %v8370
      %v8374 = vadd.f32 %v8277, %v8370
      %v8375 = vadd.f32 %v8280, %v8370
      %v8376 = vadd.f32 %v8283, %v8370
      %v8377 = vadd.f32 %v8286, %v8370
      %v8378 = vadd.f32 %v8289, %v8370
      %v8379 = vadd.f32 %v8292, %v8370
      %v8380 = vadd.f32 %v8295, %v8370
      %v8381 = vadd.f32 %v8298, %v8370
      %v8382 = vadd.f32 %v8301, %v8370
      %v8383 = vadd.f32 %v8304, %v8370
      %v8384 = vadd.f32 %v8307, %v8370
      %v8385 = vadd.f32 %v8310, %v8370
      %v8386 = vadd.f32 %v8313, %v8370
      %v8387 = vadd.f32 %v8316, %v8370
      %v8388 = vadd.f32 %v8319, %v8370
      %v8389 = vadd.f32 %v8322, %v8370
      %v8390 = vadd.f32 %v8325, %v8370
      %v8391 = vadd.f32 %v8328, %v8370
      %v8392 = vadd.f32 %v8331, %v8370
      %v8393 = vadd.f32 %v8334, %v8370
      %v8394 = vadd.f32 %v8337, %v8370
      %v8395 = vadd.f32 %v8340, %v8370
      %v8396 = vadd.f32 %v8343, %v8370
      %v8397 = vadd.f32 %v8346, %v8370
      %v8398 = vadd.f32 %v8349, %v8370
      %v8399 = vadd.f32 %v8352, %v8370
      %v8400 = vadd.f32 %v8355, %v8370
      %v8401 = vadd.f32 %v8358, %v8370
      %v8402 = vadd.f32 %v8361, %v8370
      %v8403 = vadd.f32 %v8364, %v8370
      %v8404 = vadd.f32 %v8372, %v6161
      %v8405 = vadd.f32 %v8373, %v6166
      %v8406 = vadd.f32 %v8374, %v6171
      %v8407 = vadd.f32 %v8375, %v6176
      %v8408 = vadd.f32 %v8376, %v6181
      %v8409 = vadd.f32 %v8377, %v6186
      %v8410 = vadd.f32 %v8378, %v6191
      %v8411 = vadd.f32 %v8379, %v6196
      %v8412 = vadd.f32 %v8380, %v6201
      %v8413 = vadd.f32 %v8381, %v6206
      %v8414 = vadd.f32 %v8382, %v6211
      %v8415 = vadd.f32 %v8383, %v6216
      %v8416 = vadd.f32 %v8384, %v6221
      %v8417 = vadd.f32 %v8385, %v6226
      %v8418 = vadd.f32 %v8386, %v6231
      %v8419 = vadd.f32 %v8387, %v6236
      %v8420 = vadd.f32 %v8388, %v6241
      %v8421 = vadd.f32 %v8389, %v6246
      %v8422 = vadd.f32 %v8390, %v6251
      %v8423 = vadd.f32 %v8391, %v6256
      %v8424 = vadd.f32 %v8392, %v6261
      %v8425 = vadd.f32 %v8393, %v6266
      %v8426 = vadd.f32 %v8394, %v6271
      %v8427 = vadd.f32 %v8395, %v6276
      %v8428 = vadd.f32 %v8396, %v6281
      %v8429 = vadd.f32 %v8397, %v6286
      %v8430 = vadd.f32 %v8398, %v6291
      %v8431 = vadd.f32 %v8399, %v6296
      %v8432 = vadd.f32 %v8400, %v6301
      %v8433 = vadd.f32 %v8401, %v6306
      %v8434 = vadd.f32 %v8402, %v6311
      %v8435 = vadd.f32 %v8403, %v6316
      %8468 = vrot.lane.b32.xlu0 %v8404, 1
      %v8469 = vpop.permute.xlu0 %8468
      %8470 = vrot.lane.b32.xlu0 %v8405, 1
      %v8471 = vpop.permute.xlu0 %8470
      %8472 = vrot.lane.b32.xlu0 %v8406, 1
      %v8473 = vpop.permute.xlu0 %8472
      %8474 = vrot.lane.b32.xlu0 %v8407, 1
      %v8475 = vpop.permute.xlu0 %8474
      %8476 = vrot.lane.b32.xlu0 %v8408, 1
      %v8477 = vpop.permute.xlu0 %8476
      %8478 = vrot.lane.b32.xlu0 %v8409, 1
      %v8479 = vpop.permute.xlu0 %8478
      %8480 = vrot.lane.b32.xlu0 %v8410, 1
      %v8481 = vpop.permute.xlu0 %8480
      %8482 = vrot.lane.b32.xlu0 %v8411, 1
      %v8483 = vpop.permute.xlu0 %8482
      %8484 = vrot.lane.b32.xlu0 %v8412, 1
      %v8485 = vpop.permute.xlu0 %8484
      %8486 = vrot.lane.b32.xlu0 %v8413, 1
      %v8487 = vpop.permute.xlu0 %8486
      %8488 = vrot.lane.b32.xlu0 %v8414, 1
      %v8489 = vpop.permute.xlu0 %8488
      %8490 = vrot.lane.b32.xlu0 %v8415, 1
      %v8491 = vpop.permute.xlu0 %8490
      %8492 = vrot.lane.b32.xlu0 %v8416, 1
      %v8493 = vpop.permute.xlu0 %8492
      %8494 = vrot.lane.b32.xlu0 %v8417, 1
      %v8495 = vpop.permute.xlu0 %8494
      %8496 = vrot.lane.b32.xlu0 %v8418, 1
      %v8497 = vpop.permute.xlu0 %8496
      %8498 = vrot.lane.b32.xlu0 %v8419, 1
      %v8499 = vpop.permute.xlu0 %8498
      %8500 = vrot.lane.b32.xlu0 %v8420, 1
      %v8501 = vpop.permute.xlu0 %8500
      %8502 = vrot.lane.b32.xlu0 %v8421, 1
      %v8503 = vpop.permute.xlu0 %8502
      %8504 = vrot.lane.b32.xlu0 %v8422, 1
      %v8505 = vpop.permute.xlu0 %8504
      %8506 = vrot.lane.b32.xlu0 %v8423, 1
      %v8507 = vpop.permute.xlu0 %8506
      %8508 = vrot.lane.b32.xlu0 %v8424, 1
      %v8509 = vpop.permute.xlu0 %8508
      %8510 = vrot.lane.b32.xlu0 %v8425, 1
      %v8511 = vpop.permute.xlu0 %8510
      %8512 = vrot.lane.b32.xlu0 %v8426, 1
      %v8513 = vpop.permute.xlu0 %8512
      %8514 = vrot.lane.b32.xlu0 %v8427, 1
      %v8515 = vpop.permute.xlu0 %8514
      %8516 = vrot.lane.b32.xlu0 %v8428, 1
      %v8517 = vpop.permute.xlu0 %8516
      %8518 = vrot.lane.b32.xlu0 %v8429, 1
      %v8519 = vpop.permute.xlu0 %8518
      %8520 = vrot.lane.b32.xlu0 %v8430, 1
      %v8521 = vpop.permute.xlu0 %8520
      %8522 = vrot.lane.b32.xlu0 %v8431, 1
      %v8523 = vpop.permute.xlu0 %8522
      %8524 = vrot.lane.b32.xlu0 %v8432, 1
      %v8525 = vpop.permute.xlu0 %8524
      %8526 = vrot.lane.b32.xlu0 %v8433, 1
      %v8527 = vpop.permute.xlu0 %8526
      %8528 = vrot.lane.b32.xlu0 %v8434, 1
      %v8529 = vpop.permute.xlu0 %8528
      %8530 = vrot.lane.b32.xlu0 %v8435, 1
      %v8531 = vpop.permute.xlu0 %8530
      %vm8564 = vcmask 7168
      %v8565 = vsel %vm8564, %v2135, %v8469
      %v8566 = vsel %vm8564, %v2136, %v8471
      %v8567 = vsel %vm8564, %v2137, %v8473
      %v8568 = vsel %vm8564, %v2138, %v8475
      %v8569 = vsel %vm8564, %v2139, %v8477
      %v8570 = vsel %vm8564, %v2140, %v8479
      %v8571 = vsel %vm8564, %v2141, %v8481
      %v8572 = vsel %vm8564, %v2142, %v8483
      %v8573 = vsel %vm8564, %v2143, %v8485
      %v8574 = vsel %vm8564, %v2144, %v8487
      %v8575 = vsel %vm8564, %v2145, %v8489
      %v8576 = vsel %vm8564, %v2146, %v8491
      %v8577 = vsel %vm8564, %v2147, %v8493
      %v8578 = vsel %vm8564, %v2148, %v8495
      %v8579 = vsel %vm8564, %v2149, %v8497
      %v8580 = vsel %vm8564, %v2150, %v8499
      %v8581 = vsel %vm8564, %v2151, %v8501
      %v8582 = vsel %vm8564, %v2152, %v8503
      %v8583 = vsel %vm8564, %v2153, %v8505
      %v8584 = vsel %vm8564, %v2154, %v8507
      %v8585 = vsel %vm8564, %v2155, %v8509
      %v8586 = vsel %vm8564, %v2156, %v8511
      %v8587 = vsel %vm8564, %v2157, %v8513
      %v8588 = vsel %vm8564, %v2158, %v8515
      %v8589 = vsel %vm8564, %v2159, %v8517
      %v8590 = vsel %vm8564, %v2160, %v8519
      %v8591 = vsel %vm8564, %v2161, %v8521
      %v8592 = vsel %vm8564, %v2162, %v8523
      %v8593 = vsel %vm8564, %v2163, %v8525
      %v8594 = vsel %vm8564, %v2164, %v8527
      %v8595 = vsel %vm8564, %v2165, %v8529
      %v8596 = vsel %vm8564, %v2166, %v8531
      %vm8597 = vcmask 15360
      %v8598 = vsel %vm8597, %v8565, %v2135
      %v8599 = vsel %vm8597, %v8566, %v2136
      %v8600 = vsel %vm8597, %v8567, %v2137
      %v8601 = vsel %vm8597, %v8568, %v2138
      %v8602 = vsel %vm8597, %v8569, %v2139
      %v8603 = vsel %vm8597, %v8570, %v2140
      %v8604 = vsel %vm8597, %v8571, %v2141
      %v8605 = vsel %vm8597, %v8572, %v2142
      %v8606 = vsel %vm8597, %v8573, %v2143
      %v8607 = vsel %vm8597, %v8574, %v2144
      %v8608 = vsel %vm8597, %v8575, %v2145
      %v8609 = vsel %vm8597, %v8576, %v2146
      %v8610 = vsel %vm8597, %v8577, %v2147
      %v8611 = vsel %vm8597, %v8578, %v2148
      %v8612 = vsel %vm8597, %v8579, %v2149
      %v8613 = vsel %vm8597, %v8580, %v2150
      %v8614 = vsel %vm8597, %v8581, %v2151
      %v8615 = vsel %vm8597, %v8582, %v2152
      %v8616 = vsel %vm8597, %v8583, %v2153
      %v8617 = vsel %vm8597, %v8584, %v2154
      %v8618 = vsel %vm8597, %v8585, %v2155
      %v8619 = vsel %vm8597, %v8586, %v2156
      %v8620 = vsel %vm8597, %v8587, %v2157
      %v8621 = vsel %vm8597, %v8588, %v2158
      %v8622 = vsel %vm8597, %v8589, %v2159
      %v8623 = vsel %vm8597, %v8590, %v2160
      %v8624 = vsel %vm8597, %v8591, %v2161
      %v8625 = vsel %vm8597, %v8592, %v2162
      %v8626 = vsel %vm8597, %v8593, %v2163
      %v8627 = vsel %vm8597, %v8594, %v2164
      %v8628 = vsel %vm8597, %v8595, %v2165
      %v8629 = vsel %vm8597, %v8596, %v2166
      %vm8630 = vcmask 23552
      %8631 = vst.msk [vmem:[%s662] sm:$0xff] %vm8630, %v8598
      %8632 = vst.msk [vmem:[%s662 + $0x8] sm:$0xff] %vm8630, %v8599
      %8633 = vst.msk [vmem:[%s662 + $0x10] sm:$0xff] %vm8630, %v8600
      %8634 = vst.msk [vmem:[%s662 + $0x18] sm:$0xff] %vm8630, %v8601
      %8635 = vst.msk [vmem:[%s662 + $0x20] sm:$0xff] %vm8630, %v8602
      %8636 = vst.msk [vmem:[%s662 + $0x28] sm:$0xff] %vm8630, %v8603
      %8637 = vst.msk [vmem:[%s662 + $0x30] sm:$0xff] %vm8630, %v8604
      %8638 = vst.msk [vmem:[%s662 + $0x38] sm:$0xff] %vm8630, %v8605
      %8639 = vst.msk [vmem:[%s662 + $0x40] sm:$0xff] %vm8630, %v8606
      %8640 = vst.msk [vmem:[%s662 + $0x48] sm:$0xff] %vm8630, %v8607
      %8641 = vst.msk [vmem:[%s662 + $0x50] sm:$0xff] %vm8630, %v8608
      %8642 = vst.msk [vmem:[%s662 + $0x58] sm:$0xff] %vm8630, %v8609
      %8643 = vst.msk [vmem:[%s662 + $0x60] sm:$0xff] %vm8630, %v8610
      %8644 = vst.msk [vmem:[%s662 + $0x68] sm:$0xff] %vm8630, %v8611
      %8645 = vst.msk [vmem:[%s662 + $0x70] sm:$0xff] %vm8630, %v8612
      %8646 = vst.msk [vmem:[%s662 + $0x78] sm:$0xff] %vm8630, %v8613
      %8647 = vst.msk [vmem:[%s662 + $0x80] sm:$0xff] %vm8630, %v8614
      %8648 = vst.msk [vmem:[%s662 + $0x88] sm:$0xff] %vm8630, %v8615
      %8649 = vst.msk [vmem:[%s662 + $0x90] sm:$0xff] %vm8630, %v8616
      %8650 = vst.msk [vmem:[%s662 + $0x98] sm:$0xff] %vm8630, %v8617
      %8651 = vst.msk [vmem:[%s662 + $0xa0] sm:$0xff] %vm8630, %v8618
      %8652 = vst.msk [vmem:[%s662 + $0xa8] sm:$0xff] %vm8630, %v8619
      %8653 = vst.msk [vmem:[%s662 + $0xb0] sm:$0xff] %vm8630, %v8620
      %8654 = vst.msk [vmem:[%s662 + $0xb8] sm:$0xff] %vm8630, %v8621
      %8655 = vst.msk [vmem:[%s662 + $0xc0] sm:$0xff] %vm8630, %v8622
      %8656 = vst.msk [vmem:[%s662 + $0xc8] sm:$0xff] %vm8630, %v8623
      %8657 = vst.msk [vmem:[%s662 + $0xd0] sm:$0xff] %vm8630, %v8624
      %8658 = vst.msk [vmem:[%s662 + $0xd8] sm:$0xff] %vm8630, %v8625
      %8659 = vst.msk [vmem:[%s662 + $0xe0] sm:$0xff] %vm8630, %v8626
      %8660 = vst.msk [vmem:[%s662 + $0xe8] sm:$0xff] %vm8630, %v8627
      %8661 = vst.msk [vmem:[%s662 + $0xf0] sm:$0xff] %vm8630, %v8628
      %8662 = vst.msk [vmem:[%s662 + $0xf8] sm:$0xff] %vm8630, %v8629
      %s8663 = smul.u32 32, %s36
      %p8664 = scmp.lt.s32.totalorder %s8663, 63
      %s8665 = scalar_select %p8664, %s8663, 63
      %s8666 = smul.addr %s8665, 8
      %s8667 = scalar_lea.vmem %s21, %s8666
      // Predicated region
      $region105: #{mymodel_forward.1} parent=103 // pred_check
        %p8668 = pneg %p500
      $region106: #{mymodel_forward.1} parent=103 // pred_check_branch
        %8670 = sbr.rel (%p8668) target = $region108
      $region107: #{mymodel_forward.1} parent=103 // pred_region
        %s8671 = smul.u32 32, %s36
      $region108: #{mymodel_forward.1} parent=103 // pred_fallthru
        _
    $region104: #{mymodel_forward.1} parent=5 // pred_fallthru
      _
    %p8672 = scmp.le.s32.totalorder 2, %s31
    // Predicated region
    $region109: #{mymodel_forward.1} parent=5 // pred_check
      %p8673 = pneg %p8672
    $region110: #{mymodel_forward.1} parent=5 // pred_check_branch
      %8675 = sbr.rel (%p8673) target = $region112
    $region111: #{mymodel_forward.1} parent=5 // pred_region
      %s8676 = ssub.s32 %s31, 2
      // Predicated region
      $region113: #{mymodel_forward.1} parent=111 // pred_check
        %p8677 = pneg %p506
      $region114: #{mymodel_forward.1} parent=111 // pred_check_branch
        %8679 = sbr.rel (%p8677) target = $region116
      $region115: #{mymodel_forward.1} parent=111 // pred_region
        %s8680 = smul.u32 32, %s37
        %p8681 = scmp.lt.s32.totalorder %s8680, 63
        %s8682 = scalar_select %p8681, %s8680, 63
        %s8683 = smul.addr %s8682, 8
        %s8684 = scalar_lea.vmem %s21, %s8683
      $region116: #{mymodel_forward.1} parent=111 // pred_fallthru
        _
    $region112: #{mymodel_forward.1} parent=5 // pred_fallthru
      _
  $region6: #{mymodel_forward.1} parent=0 // loop_footer
    %s35 = sadd.s32 1, %s31
  $region7: #{mymodel_forward.1} parent=0 // loop_footer_branch
    %30 = sbr.rel target = $region3
  $region8: #{mymodel_forward.1} parent=0 // loop_exit
    _

</llo_original>
